<compile_context>
chip_gen: v5e
topology: v5e:2x2
jax: 0.10.0
libtpu: 0.0.40
codegen_flags: <defaults>
</compile_context>

<pallas_src>
import jax
import jax.numpy as jnp
from jax.experimental import pallas as pl
from jax.experimental.pallas import tpu as pltpu

INPUT_DIM = 162     # LSTM input size
HIDDEN = 128        # LSTM hidden size
X_DIM = 484         # side-input feature size
D = 512             # MLP width
G = 4 * HIDDEN      # concatenated LSTM gates


# ----------------------------------------------------------------------------
# Single fused kernel: LSTM recurrence (last hidden state) + split dense1 + MLP
# + fused batch-argmax.  LSTM weights arrive via the normal VMEM path (needed
# immediately); all post-recurrence weights are prefetched by manual DMA so
# they land behind the serial loop.
# ----------------------------------------------------------------------------
def fused_forward_kernel(z_ref, x_ref, wih_ref, whh_ref, b_lstm_ref,
                         b1_ref, b2_ref, b3_ref, b4_ref, b5_ref,
                         w6_ref, b6_ref,
                         w1h_hbm, w1x_hbm, w2_hbm, w3_hbm, w4_hbm, w5_hbm,
                         values_ref, action_ref,
                         w1h_v, w1x_v, w2_v, w3_v, w4_v, w5_v, dma_sems):
    TB = z_ref.shape[0]           # T * B  (time-major, flattened)
    B = x_ref.shape[0]
    T = TB // B

    # ---- kick off DMA of every weight NOT needed during the recurrence ----
    # These transfers (~2.6 MB bf16) overlap the serial LSTM chain below.
    prefetch = []
    for i, (src, dst) in enumerate(((w1h_hbm, w1h_v), (w1x_hbm, w1x_v),
                                    (w2_hbm, w2_v), (w3_hbm, w3_v),
                                    (w4_hbm, w4_v), (w5_hbm, w5_v))):
        cp = pltpu.make_async_copy(src, dst, dma_sems.at[i])
        cp.start()
        prefetch.append(cp)
    w1h_copy, w1x_copy, w2_copy, w3_copy, w4_copy, w5_copy = prefetch

    # ---- hoisted LSTM input projection: one matmul over ALL time steps ----
    gates_x = (jnp.dot(z_ref[...], wih_ref[...],
                       preferred_element_type=jnp.float32)
               + b_lstm_ref[...])                                            # (T*B, 512) f32

    whh = whh_ref[...]                                                       # (128, 512) bf16
    h = jnp.zeros((B, HIDDEN), jnp.float32)
    c = jnp.zeros((B, HIDDEN), jnp.float32)

    # ---- recurrence, fully unrolled (T small & static): h @ Whh + gate math ----
    for t in range(T):
        gx_t = gates_x[t * B:(t + 1) * B, :]                                 # static slice
        gates = gx_t + jnp.dot(h.astype(jnp.bfloat16), whh,
                               preferred_element_type=jnp.float32)           # (B, 512)
        # PyTorch LSTM gate order: input, forget, cell(g), output (lane-aligned slices)
        i_g = jax.nn.sigmoid(gates[:, 0 * HIDDEN:1 * HIDDEN])
        f_g = jax.nn.sigmoid(gates[:, 1 * HIDDEN:2 * HIDDEN])
        g_g = jnp.tanh(gates[:, 2 * HIDDEN:3 * HIDDEN])
        o_g = jax.nn.sigmoid(gates[:, 3 * HIDDEN:4 * HIDDEN])
        c = f_g * c + i_g * g_g
        h = o_g * jnp.tanh(c)

    # ---- dense1 split across the concat boundary: x-branch + h-branch ----
    w1x_copy.wait()
    y1x = jnp.dot(x_ref[...], w1x_v[...], preferred_element_type=jnp.float32)  # (B, 512)
    w1h_copy.wait()
    y = jnp.maximum(
        jnp.dot(h.astype(jnp.bfloat16), w1h_v[...],
                preferred_element_type=jnp.float32) + y1x + b1_ref[...],
        0.0)

    def dense_relu(a, w_v, copy, b_ref):
        copy.wait()   # weight DMA finished long ago; wait is ~free
        return jnp.maximum(
            jnp.dot(a.astype(jnp.bfloat16), w_v[...],
                    preferred_element_type=jnp.float32) + b_ref[...],
            0.0)

    y = dense_relu(y, w2_v, w2_copy, b2_ref)
    y = dense_relu(y, w3_v, w3_copy, b3_ref)
    y = dense_relu(y, w4_v, w4_copy, b4_ref)
    y = dense_relu(y, w5_v, w5_copy, b5_ref)

    # ---- dense6 (512 -> 1) as a VPU multiply + lane reduction, no MXU pass ----
    vals = jnp.sum(y * w6_ref[...], axis=-1, keepdims=True) + b6_ref[...]    # (B, 1) f32
    values_ref[...] = vals

    # ---- fused torch.argmax(values, dim=0)[0] (first max wins on ties) ----
    best_val = vals[0:1, :]
    best_idx = jnp.zeros((1, 1), jnp.int32)
    for b in range(1, B):
        vb = vals[b:b + 1, :]
        better = vb > best_val
        best_val = jnp.where(better, vb, best_val)
        best_idx = jnp.where(better, jnp.full((1, 1), b, jnp.int32), best_idx)
    action_ref[...] = best_idx


# ----------------------------------------------------------------------------
# Wrapper
# ----------------------------------------------------------------------------
def farmer_forward_values(z, x, params):
    """(values, action) = fused LSTM + MLP + argmax as one Pallas call."""
    B, T, _ = z.shape
    # Time-major + flattened (step t occupies contiguous rows [t*B, (t+1)*B)),
    # cast to bf16 once here so the kernel does no activation casts.
    z_tm = jnp.transpose(z, (1, 0, 2)).reshape(T * B, INPUT_DIM).astype(jnp.bfloat16)
    x_bf = x.astype(jnp.bfloat16)

    args = (z_tm, x_bf,
            params["wih_t"], params["whh_t"], params["b_lstm"],
            params["b1"], params["b2"], params["b3"], params["b4"], params["b5"],
            params["w6_row"], params["b6"],
            params["w1h"], params["w1x"],
            params["w2"], params["w3"], params["w4"], params["w5"])

    vmem = pl.BlockSpec(memory_space=pltpu.MemorySpace.VMEM)
    hbm = pl.BlockSpec(memory_space=pl.ANY)   # manual DMA inside the kernel

    values, action = pl.pallas_call(
        fused_forward_kernel,
        out_shape=(jax.ShapeDtypeStruct((B, 1), jnp.float32),
                   jax.ShapeDtypeStruct((1, 1), jnp.int32)),
        in_specs=[vmem] * 12 + [hbm] * 6,
        out_specs=(vmem, vmem),
        scratch_shapes=[
            pltpu.VMEM((HIDDEN, D), jnp.bfloat16),   # w1h
            pltpu.VMEM((X_DIM, D), jnp.bfloat16),    # w1x
            pltpu.VMEM((D, D), jnp.bfloat16),        # w2
            pltpu.VMEM((D, D), jnp.bfloat16),        # w3
            pltpu.VMEM((D, D), jnp.bfloat16),        # w4
            pltpu.VMEM((D, D), jnp.bfloat16),        # w5
            pltpu.SemaphoreType.DMA((6,)),
        ],
        # Single grid point; ~3 MB of weights + tiny activations fits every
        # generation's scoped-VMEM default (incl. v7x), no grid/pipelining needed.
    )(*args)
    return values, action


def init_params(key):
    """Deterministic synthetic parameters matching the PyTorch module's shapes.

    Matmul weights are bf16 and transposed: (in, out).  dense1 is pre-split at
    the concat boundary: w1h = W1[:, :128].T, w1x = W1[:, 128:].T.  dense6 is
    stored as an f32 row vector (VPU reduction, not an MXU matmul).
    """
    ks = jax.random.split(key, 16)
    s = 0.05
    p = {}
    # LSTM: weight_ih.T (162, 4H), weight_hh.T (128, 4H), bias = b_ih + b_hh (1, 4H)
    p["wih_t"] = (jax.random.normal(ks[0], (INPUT_DIM, G)) * s).astype(jnp.bfloat16)
    p["whh_t"] = (jax.random.normal(ks[1], (HIDDEN, G)) * s).astype(jnp.bfloat16)
    p["b_lstm"] = (jax.random.normal(ks[2], (1, G)) * s).astype(jnp.float32)
    # dense1 split
    p["w1h"] = (jax.random.normal(ks[3], (HIDDEN, D)) * s).astype(jnp.bfloat16)
    p["w1x"] = (jax.random.normal(ks[4], (X_DIM, D)) * s).astype(jnp.bfloat16)
    p["b1"] = (jax.random.normal(ks[5], (1, D)) * s).astype(jnp.float32)
    # dense2..dense5
    for li in range(2, 6):
        p[f"w{li}"] = (jax.random.normal(ks[6 + 2 * (li - 2)], (D, D)) * s).astype(jnp.bfloat16)
        p[f"b{li}"] = (jax.random.normal(ks[7 + 2 * (li - 2)], (1, D)) * s).astype(jnp.float32)
    # dense6 as an f32 row vector + scalar bias
    p["w6_row"] = (jax.random.normal(ks[14], (1, D)) * s).astype(jnp.float32)
    p["b6"] = (jax.random.normal(ks[15], (1, 1)) * s).astype(jnp.float32)
    return p


@jax.jit
def farmer_lstm_forward(z, x, params):
    """Equivalent of FarmerLstmModel.forward(z, x) with flags=None.

    Returns (values, action): values is (B, 1); action == torch.argmax(values, dim=0)[0].
    """
    # TODO(synk): the flags.exp_epsilon host-side np.random exploration branch has no
    # in-kernel equivalent; only the deterministic argmax path is implemented.
    values, action = farmer_forward_values(z, x, params)
    return values, action[0, 0]


if __name__ == "__main__":
    key = jax.random.PRNGKey(0)
    k_param, k_z, k_x = jax.random.split(key, 3)

    B, T = 2, 8
    z = jax.random.normal(k_z, (B, T, INPUT_DIM), dtype=jnp.float32)
    x = jax.random.normal(k_x, (B, X_DIM), dtype=jnp.float32)

    params = init_params(k_param)
    values, action = farmer_lstm_forward(z, x, params)
    jax.block_until_ready((values, action))

    assert values.shape == (B, 1)
    assert values.dtype == jnp.float32
    assert action.dtype == jnp.int32
    assert 0 <= int(action) < B
    print("KERNEL_OK")
</pallas_src>

<mosaic_0001>
module attributes {stable_mosaic.version = 11 : i64} {
  func.func @fused_forward_kernel(%arg0: memref<16x162xbf16, #tpu.memory_space<vmem>>, %arg1: memref<2x484xbf16, #tpu.memory_space<vmem>>, %arg2: memref<162x512xbf16, #tpu.memory_space<vmem>>, %arg3: memref<128x512xbf16, #tpu.memory_space<vmem>>, %arg4: memref<1x512xf32, #tpu.memory_space<vmem>>, %arg5: memref<1x512xf32, #tpu.memory_space<vmem>>, %arg6: memref<1x512xf32, #tpu.memory_space<vmem>>, %arg7: memref<1x512xf32, #tpu.memory_space<vmem>>, %arg8: memref<1x512xf32, #tpu.memory_space<vmem>>, %arg9: memref<1x512xf32, #tpu.memory_space<vmem>>, %arg10: memref<1x512xf32, #tpu.memory_space<vmem>>, %arg11: memref<1x1xf32, #tpu.memory_space<vmem>>, %arg12: memref<128x512xbf16, #tpu.memory_space<any>>, %arg13: memref<484x512xbf16, #tpu.memory_space<any>>, %arg14: memref<512x512xbf16, #tpu.memory_space<any>>, %arg15: memref<512x512xbf16, #tpu.memory_space<any>>, %arg16: memref<512x512xbf16, #tpu.memory_space<any>>, %arg17: memref<512x512xbf16, #tpu.memory_space<any>>, %arg18: memref<2x1xf32, #tpu.memory_space<vmem>>, %arg19: memref<1x1xi32, #tpu.memory_space<vmem>>, %arg20: memref<128x512xbf16, #tpu.memory_space<vmem>>, %arg21: memref<484x512xbf16, #tpu.memory_space<vmem>>, %arg22: memref<512x512xbf16, #tpu.memory_space<vmem>>, %arg23: memref<512x512xbf16, #tpu.memory_space<vmem>>, %arg24: memref<512x512xbf16, #tpu.memory_space<vmem>>, %arg25: memref<512x512xbf16, #tpu.memory_space<vmem>>, %arg26: memref<6x!tpu.dma_semaphore, #tpu.memory_space<semaphore_mem>>) attributes {dimension_semantics = [], scalar_prefetch = 0 : i64, scratch_operands = 7 : i64, tpu.core_type = #tpu.core_type<tc>} {
    %c0_i32 = arith.constant 0 : i32
    %0 = tpu.memref_slice %arg26[%c0_i32] : memref<6x!tpu.dma_semaphore, #tpu.memory_space<semaphore_mem>> -> memref<1x!tpu.dma_semaphore, #tpu.memory_space<semaphore_mem>>
    %1 = tpu.memref_squeeze %0 : memref<1x!tpu.dma_semaphore, #tpu.memory_space<semaphore_mem>> -> memref<!tpu.dma_semaphore, #tpu.memory_space<semaphore_mem>>
    tpu.enqueue_dma source(%arg12 : memref<128x512xbf16, #tpu.memory_space<any>>) target(%arg20 : memref<128x512xbf16, #tpu.memory_space<vmem>>) target_semaphore(%1 : memref<!tpu.dma_semaphore, #tpu.memory_space<semaphore_mem>>)
    %c1_i32 = arith.constant 1 : i32
    %2 = tpu.memref_slice %arg26[%c1_i32] : memref<6x!tpu.dma_semaphore, #tpu.memory_space<semaphore_mem>> -> memref<1x!tpu.dma_semaphore, #tpu.memory_space<semaphore_mem>>
    %3 = tpu.memref_squeeze %2 : memref<1x!tpu.dma_semaphore, #tpu.memory_space<semaphore_mem>> -> memref<!tpu.dma_semaphore, #tpu.memory_space<semaphore_mem>>
    tpu.enqueue_dma source(%arg13 : memref<484x512xbf16, #tpu.memory_space<any>>) target(%arg21 : memref<484x512xbf16, #tpu.memory_space<vmem>>) target_semaphore(%3 : memref<!tpu.dma_semaphore, #tpu.memory_space<semaphore_mem>>)
    %c2_i32 = arith.constant 2 : i32
    %4 = tpu.memref_slice %arg26[%c2_i32] : memref<6x!tpu.dma_semaphore, #tpu.memory_space<semaphore_mem>> -> memref<1x!tpu.dma_semaphore, #tpu.memory_space<semaphore_mem>>
    %5 = tpu.memref_squeeze %4 : memref<1x!tpu.dma_semaphore, #tpu.memory_space<semaphore_mem>> -> memref<!tpu.dma_semaphore, #tpu.memory_space<semaphore_mem>>
    tpu.enqueue_dma source(%arg14 : memref<512x512xbf16, #tpu.memory_space<any>>) target(%arg22 : memref<512x512xbf16, #tpu.memory_space<vmem>>) target_semaphore(%5 : memref<!tpu.dma_semaphore, #tpu.memory_space<semaphore_mem>>)
    %c3_i32 = arith.constant 3 : i32
    %6 = tpu.memref_slice %arg26[%c3_i32] : memref<6x!tpu.dma_semaphore, #tpu.memory_space<semaphore_mem>> -> memref<1x!tpu.dma_semaphore, #tpu.memory_space<semaphore_mem>>
    %7 = tpu.memref_squeeze %6 : memref<1x!tpu.dma_semaphore, #tpu.memory_space<semaphore_mem>> -> memref<!tpu.dma_semaphore, #tpu.memory_space<semaphore_mem>>
    tpu.enqueue_dma source(%arg15 : memref<512x512xbf16, #tpu.memory_space<any>>) target(%arg23 : memref<512x512xbf16, #tpu.memory_space<vmem>>) target_semaphore(%7 : memref<!tpu.dma_semaphore, #tpu.memory_space<semaphore_mem>>)
    %c4_i32 = arith.constant 4 : i32
    %8 = tpu.memref_slice %arg26[%c4_i32] : memref<6x!tpu.dma_semaphore, #tpu.memory_space<semaphore_mem>> -> memref<1x!tpu.dma_semaphore, #tpu.memory_space<semaphore_mem>>
    %9 = tpu.memref_squeeze %8 : memref<1x!tpu.dma_semaphore, #tpu.memory_space<semaphore_mem>> -> memref<!tpu.dma_semaphore, #tpu.memory_space<semaphore_mem>>
    tpu.enqueue_dma source(%arg16 : memref<512x512xbf16, #tpu.memory_space<any>>) target(%arg24 : memref<512x512xbf16, #tpu.memory_space<vmem>>) target_semaphore(%9 : memref<!tpu.dma_semaphore, #tpu.memory_space<semaphore_mem>>)
    %c5_i32 = arith.constant 5 : i32
    %10 = tpu.memref_slice %arg26[%c5_i32] : memref<6x!tpu.dma_semaphore, #tpu.memory_space<semaphore_mem>> -> memref<1x!tpu.dma_semaphore, #tpu.memory_space<semaphore_mem>>
    %11 = tpu.memref_squeeze %10 : memref<1x!tpu.dma_semaphore, #tpu.memory_space<semaphore_mem>> -> memref<!tpu.dma_semaphore, #tpu.memory_space<semaphore_mem>>
    tpu.enqueue_dma source(%arg17 : memref<512x512xbf16, #tpu.memory_space<any>>) target(%arg25 : memref<512x512xbf16, #tpu.memory_space<vmem>>) target_semaphore(%11 : memref<!tpu.dma_semaphore, #tpu.memory_space<semaphore_mem>>)
    %c0 = arith.constant 0 : index
    %c0_0 = arith.constant 0 : index
    %12 = vector.load %arg0[%c0, %c0_0] : memref<16x162xbf16, #tpu.memory_space<vmem>>, vector<16x162xbf16>
    %c0_1 = arith.constant 0 : index
    %c0_2 = arith.constant 0 : index
    %13 = vector.load %arg2[%c0_1, %c0_2] : memref<162x512xbf16, #tpu.memory_space<vmem>>, vector<162x512xbf16>
    %cst = arith.constant dense<0.000000e+00> : vector<16x512xf32>
    %14 = tpu.matmul %12, %13, %cst {dimension_numbers = #tpu.dot_dimension_numbers<[1], [0], [0], [1], [0, 0, 1, 1], [], []>} : vector<16x162xbf16>, vector<162x512xbf16>, vector<16x512xf32> -> vector<16x512xf32>
    %c0_3 = arith.constant 0 : index
    %c0_4 = arith.constant 0 : index
    %15 = vector.load %arg4[%c0_3, %c0_4] : memref<1x512xf32, #tpu.memory_space<vmem>>, vector<1x512xf32>
    %16 = vector.broadcast %15 : vector<1x512xf32> to vector<16x512xf32>
    %17 = arith.addf %14, %16 : vector<16x512xf32>
    %c0_5 = arith.constant 0 : index
    %c0_6 = arith.constant 0 : index
    %18 = vector.load %arg3[%c0_5, %c0_6] : memref<128x512xbf16, #tpu.memory_space<vmem>>, vector<128x512xbf16>
    %cst_7 = arith.constant 0.000000e+00 : f32
    %19 = vector.broadcast %cst_7 : f32 to vector<2x128xf32>
    %cst_8 = arith.constant 0.000000e+00 : f32
    %20 = vector.broadcast %cst_8 : f32 to vector<2x128xf32>
    %21 = vector.extract_strided_slice %17 {offsets = [0, 0], sizes = [2, 512], strides = [1, 1]} : vector<16x512xf32> to vector<2x512xf32>
    %22 = arith.truncf %19 : vector<2x128xf32> to vector<2x128xbf16>
    %cst_9 = arith.constant dense<0.000000e+00> : vector<2x512xf32>
    %23 = tpu.matmul %22, %18, %cst_9 {dimension_numbers = #tpu.dot_dimension_numbers<[1], [0], [0], [1], [0, 0, 1, 1], [], []>} : vector<2x128xbf16>, vector<128x512xbf16>, vector<2x512xf32> -> vector<2x512xf32>
    %24 = arith.addf %21, %23 : vector<2x512xf32>
    %25 = vector.extract_strided_slice %24 {offsets = [0, 0], sizes = [2, 128], strides = [1, 1]} : vector<2x512xf32> to vector<2x128xf32>
    %26 = arith.negf %25 : vector<2x128xf32>
    %27 = math.exp %26 : vector<2x128xf32>
    %cst_10 = arith.constant 1.000000e+00 : f32
    %28 = vector.broadcast %cst_10 : f32 to vector<2x128xf32>
    %29 = arith.addf %28, %27 : vector<2x128xf32>
    %30 = arith.divf %28, %29 : vector<2x128xf32>
    %31 = vector.extract_strided_slice %24 {offsets = [0, 128], sizes = [2, 128], strides = [1, 1]} : vector<2x512xf32> to vector<2x128xf32>
    %32 = arith.negf %31 : vector<2x128xf32>
    %33 = math.exp %32 : vector<2x128xf32>
    %cst_11 = arith.constant 1.000000e+00 : f32
    %34 = vector.broadcast %cst_11 : f32 to vector<2x128xf32>
    %35 = arith.addf %34, %33 : vector<2x128xf32>
    %36 = arith.divf %34, %35 : vector<2x128xf32>
    %37 = vector.extract_strided_slice %24 {offsets = [0, 256], sizes = [2, 128], strides = [1, 1]} : vector<2x512xf32> to vector<2x128xf32>
    %38 = math.tanh %37 : vector<2x128xf32>
    %39 = vector.extract_strided_slice %24 {offsets = [0, 384], sizes = [2, 128], strides = [1, 1]} : vector<2x512xf32> to vector<2x128xf32>
    %40 = arith.negf %39 : vector<2x128xf32>
    %41 = math.exp %40 : vector<2x128xf32>
    %cst_12 = arith.constant 1.000000e+00 : f32
    %42 = vector.broadcast %cst_12 : f32 to vector<2x128xf32>
    %43 = arith.addf %42, %41 : vector<2x128xf32>
    %44 = arith.divf %42, %43 : vector<2x128xf32>
    %45 = arith.mulf %36, %20 : vector<2x128xf32>
    %46 = arith.mulf %30, %38 : vector<2x128xf32>
    %47 = arith.addf %45, %46 : vector<2x128xf32>
    %48 = math.tanh %47 : vector<2x128xf32>
    %49 = arith.mulf %44, %48 : vector<2x128xf32>
    %50 = vector.extract_strided_slice %17 {offsets = [2, 0], sizes = [2, 512], strides = [1, 1]} : vector<16x512xf32> to vector<2x512xf32>
    %51 = arith.truncf %49 : vector<2x128xf32> to vector<2x128xbf16>
    %cst_13 = arith.constant dense<0.000000e+00> : vector<2x512xf32>
    %52 = tpu.matmul %51, %18, %cst_13 {dimension_numbers = #tpu.dot_dimension_numbers<[1], [0], [0], [1], [0, 0, 1, 1], [], []>} : vector<2x128xbf16>, vector<128x512xbf16>, vector<2x512xf32> -> vector<2x512xf32>
    %53 = arith.addf %50, %52 : vector<2x512xf32>
    %54 = vector.extract_strided_slice %53 {offsets = [0, 0], sizes = [2, 128], strides = [1, 1]} : vector<2x512xf32> to vector<2x128xf32>
    %55 = arith.negf %54 : vector<2x128xf32>
    %56 = math.exp %55 : vector<2x128xf32>
    %cst_14 = arith.constant 1.000000e+00 : f32
    %57 = vector.broadcast %cst_14 : f32 to vector<2x128xf32>
    %58 = arith.addf %57, %56 : vector<2x128xf32>
    %59 = arith.divf %57, %58 : vector<2x128xf32>
    %60 = vector.extract_strided_slice %53 {offsets = [0, 128], sizes = [2, 128], strides = [1, 1]} : vector<2x512xf32> to vector<2x128xf32>
    %61 = arith.negf %60 : vector<2x128xf32>
    %62 = math.exp %61 : vector<2x128xf32>
    %cst_15 = arith.constant 1.000000e+00 : f32
    %63 = vector.broadcast %cst_15 : f32 to vector<2x128xf32>
    %64 = arith.addf %63, %62 : vector<2x128xf32>
    %65 = arith.divf %63, %64 : vector<2x128xf32>
    %66 = vector.extract_strided_slice %53 {offsets = [0, 256], sizes = [2, 128], strides = [1, 1]} : vector<2x512xf32> to vector<2x128xf32>
    %67 = math.tanh %66 : vector<2x128xf32>
    %68 = vector.extract_strided_slice %53 {offsets = [0, 384], sizes = [2, 128], strides = [1, 1]} : vector<2x512xf32> to vector<2x128xf32>
    %69 = arith.negf %68 : vector<2x128xf32>
    %70 = math.exp %69 : vector<2x128xf32>
    %cst_16 = arith.constant 1.000000e+00 : f32
    %71 = vector.broadcast %cst_16 : f32 to vector<2x128xf32>
    %72 = arith.addf %71, %70 : vector<2x128xf32>
    %73 = arith.divf %71, %72 : vector<2x128xf32>
    %74 = arith.mulf %65, %47 : vector<2x128xf32>
    %75 = arith.mulf %59, %67 : vector<2x128xf32>
    %76 = arith.addf %74, %75 : vector<2x128xf32>
    %77 = math.tanh %76 : vector<2x128xf32>
    %78 = arith.mulf %73, %77 : vector<2x128xf32>
    %79 = vector.extract_strided_slice %17 {offsets = [4, 0], sizes = [2, 512], strides = [1, 1]} : vector<16x512xf32> to vector<2x512xf32>
    %80 = arith.truncf %78 : vector<2x128xf32> to vector<2x128xbf16>
    %cst_17 = arith.constant dense<0.000000e+00> : vector<2x512xf32>
    %81 = tpu.matmul %80, %18, %cst_17 {dimension_numbers = #tpu.dot_dimension_numbers<[1], [0], [0], [1], [0, 0, 1, 1], [], []>} : vector<2x128xbf16>, vector<128x512xbf16>, vector<2x512xf32> -> vector<2x512xf32>
    %82 = arith.addf %79, %81 : vector<2x512xf32>
    %83 = vector.extract_strided_slice %82 {offsets = [0, 0], sizes = [2, 128], strides = [1, 1]} : vector<2x512xf32> to vector<2x128xf32>
    %84 = arith.negf %83 : vector<2x128xf32>
    %85 = math.exp %84 : vector<2x128xf32>
    %cst_18 = arith.constant 1.000000e+00 : f32
    %86 = vector.broadcast %cst_18 : f32 to vector<2x128xf32>
    %87 = arith.addf %86, %85 : vector<2x128xf32>
    %88 = arith.divf %86, %87 : vector<2x128xf32>
    %89 = vector.extract_strided_slice %82 {offsets = [0, 128], sizes = [2, 128], strides = [1, 1]} : vector<2x512xf32> to vector<2x128xf32>
    %90 = arith.negf %89 : vector<2x128xf32>
    %91 = math.exp %90 : vector<2x128xf32>
    %cst_19 = arith.constant 1.000000e+00 : f32
    %92 = vector.broadcast %cst_19 : f32 to vector<2x128xf32>
    %93 = arith.addf %92, %91 : vector<2x128xf32>
    %94 = arith.divf %92, %93 : vector<2x128xf32>
    %95 = vector.extract_strided_slice %82 {offsets = [0, 256], sizes = [2, 128], strides = [1, 1]} : vector<2x512xf32> to vector<2x128xf32>
    %96 = math.tanh %95 : vector<2x128xf32>
    %97 = vector.extract_strided_slice %82 {offsets = [0, 384], sizes = [2, 128], strides = [1, 1]} : vector<2x512xf32> to vector<2x128xf32>
    %98 = arith.negf %97 : vector<2x128xf32>
    %99 = math.exp %98 : vector<2x128xf32>
    %cst_20 = arith.constant 1.000000e+00 : f32
    %100 = vector.broadcast %cst_20 : f32 to vector<2x128xf32>
    %101 = arith.addf %100, %99 : vector<2x128xf32>
    %102 = arith.divf %100, %101 : vector<2x128xf32>
    %103 = arith.mulf %94, %76 : vector<2x128xf32>
    %104 = arith.mulf %88, %96 : vector<2x128xf32>
    %105 = arith.addf %103, %104 : vector<2x128xf32>
    %106 = math.tanh %105 : vector<2x128xf32>
    %107 = arith.mulf %102, %106 : vector<2x128xf32>
    %108 = vector.extract_strided_slice %17 {offsets = [6, 0], sizes = [2, 512], strides = [1, 1]} : vector<16x512xf32> to vector<2x512xf32>
    %109 = arith.truncf %107 : vector<2x128xf32> to vector<2x128xbf16>
    %cst_21 = arith.constant dense<0.000000e+00> : vector<2x512xf32>
    %110 = tpu.matmul %109, %18, %cst_21 {dimension_numbers = #tpu.dot_dimension_numbers<[1], [0], [0], [1], [0, 0, 1, 1], [], []>} : vector<2x128xbf16>, vector<128x512xbf16>, vector<2x512xf32> -> vector<2x512xf32>
    %111 = arith.addf %108, %110 : vector<2x512xf32>
    %112 = vector.extract_strided_slice %111 {offsets = [0, 0], sizes = [2, 128], strides = [1, 1]} : vector<2x512xf32> to vector<2x128xf32>
    %113 = arith.negf %112 : vector<2x128xf32>
    %114 = math.exp %113 : vector<2x128xf32>
    %cst_22 = arith.constant 1.000000e+00 : f32
    %115 = vector.broadcast %cst_22 : f32 to vector<2x128xf32>
    %116 = arith.addf %115, %114 : vector<2x128xf32>
    %117 = arith.divf %115, %116 : vector<2x128xf32>
    %118 = vector.extract_strided_slice %111 {offsets = [0, 128], sizes = [2, 128], strides = [1, 1]} : vector<2x512xf32> to vector<2x128xf32>
    %119 = arith.negf %118 : vector<2x128xf32>
    %120 = math.exp %119 : vector<2x128xf32>
    %cst_23 = arith.constant 1.000000e+00 : f32
    %121 = vector.broadcast %cst_23 : f32 to vector<2x128xf32>
    %122 = arith.addf %121, %120 : vector<2x128xf32>
    %123 = arith.divf %121, %122 : vector<2x128xf32>
    %124 = vector.extract_strided_slice %111 {offsets = [0, 256], sizes = [2, 128], strides = [1, 1]} : vector<2x512xf32> to vector<2x128xf32>
    %125 = math.tanh %124 : vector<2x128xf32>
    %126 = vector.extract_strided_slice %111 {offsets = [0, 384], sizes = [2, 128], strides = [1, 1]} : vector<2x512xf32> to vector<2x128xf32>
    %127 = arith.negf %126 : vector<2x128xf32>
    %128 = math.exp %127 : vector<2x128xf32>
    %cst_24 = arith.constant 1.000000e+00 : f32
    %129 = vector.broadcast %cst_24 : f32 to vector<2x128xf32>
    %130 = arith.addf %129, %128 : vector<2x128xf32>
    %131 = arith.divf %129, %130 : vector<2x128xf32>
    %132 = arith.mulf %123, %105 : vector<2x128xf32>
    %133 = arith.mulf %117, %125 : vector<2x128xf32>
    %134 = arith.addf %132, %133 : vector<2x128xf32>
    %135 = math.tanh %134 : vector<2x128xf32>
    %136 = arith.mulf %131, %135 : vector<2x128xf32>
    %137 = vector.extract_strided_slice %17 {offsets = [8, 0], sizes = [2, 512], strides = [1, 1]} : vector<16x512xf32> to vector<2x512xf32>
    %138 = arith.truncf %136 : vector<2x128xf32> to vector<2x128xbf16>
    %cst_25 = arith.constant dense<0.000000e+00> : vector<2x512xf32>
    %139 = tpu.matmul %138, %18, %cst_25 {dimension_numbers = #tpu.dot_dimension_numbers<[1], [0], [0], [1], [0, 0, 1, 1], [], []>} : vector<2x128xbf16>, vector<128x512xbf16>, vector<2x512xf32> -> vector<2x512xf32>
    %140 = arith.addf %137, %139 : vector<2x512xf32>
    %141 = vector.extract_strided_slice %140 {offsets = [0, 0], sizes = [2, 128], strides = [1, 1]} : vector<2x512xf32> to vector<2x128xf32>
    %142 = arith.negf %141 : vector<2x128xf32>
    %143 = math.exp %142 : vector<2x128xf32>
    %cst_26 = arith.constant 1.000000e+00 : f32
    %144 = vector.broadcast %cst_26 : f32 to vector<2x128xf32>
    %145 = arith.addf %144, %143 : vector<2x128xf32>
    %146 = arith.divf %144, %145 : vector<2x128xf32>
    %147 = vector.extract_strided_slice %140 {offsets = [0, 128], sizes = [2, 128], strides = [1, 1]} : vector<2x512xf32> to vector<2x128xf32>
    %148 = arith.negf %147 : vector<2x128xf32>
    %149 = math.exp %148 : vector<2x128xf32>
    %cst_27 = arith.constant 1.000000e+00 : f32
    %150 = vector.broadcast %cst_27 : f32 to vector<2x128xf32>
    %151 = arith.addf %150, %149 : vector<2x128xf32>
    %152 = arith.divf %150, %151 : vector<2x128xf32>
    %153 = vector.extract_strided_slice %140 {offsets = [0, 256], sizes = [2, 128], strides = [1, 1]} : vector<2x512xf32> to vector<2x128xf32>
    %154 = math.tanh %153 : vector<2x128xf32>
    %155 = vector.extract_strided_slice %140 {offsets = [0, 384], sizes = [2, 128], strides = [1, 1]} : vector<2x512xf32> to vector<2x128xf32>
    %156 = arith.negf %155 : vector<2x128xf32>
    %157 = math.exp %156 : vector<2x128xf32>
    %cst_28 = arith.constant 1.000000e+00 : f32
    %158 = vector.broadcast %cst_28 : f32 to vector<2x128xf32>
    %159 = arith.addf %158, %157 : vector<2x128xf32>
    %160 = arith.divf %158, %159 : vector<2x128xf32>
    %161 = arith.mulf %152, %134 : vector<2x128xf32>
    %162 = arith.mulf %146, %154 : vector<2x128xf32>
    %163 = arith.addf %161, %162 : vector<2x128xf32>
    %164 = math.tanh %163 : vector<2x128xf32>
    %165 = arith.mulf %160, %164 : vector<2x128xf32>
    %166 = vector.extract_strided_slice %17 {offsets = [10, 0], sizes = [2, 512], strides = [1, 1]} : vector<16x512xf32> to vector<2x512xf32>
    %167 = arith.truncf %165 : vector<2x128xf32> to vector<2x128xbf16>
    %cst_29 = arith.constant dense<0.000000e+00> : vector<2x512xf32>
    %168 = tpu.matmul %167, %18, %cst_29 {dimension_numbers = #tpu.dot_dimension_numbers<[1], [0], [0], [1], [0, 0, 1, 1], [], []>} : vector<2x128xbf16>, vector<128x512xbf16>, vector<2x512xf32> -> vector<2x512xf32>
    %169 = arith.addf %166, %168 : vector<2x512xf32>
    %170 = vector.extract_strided_slice %169 {offsets = [0, 0], sizes = [2, 128], strides = [1, 1]} : vector<2x512xf32> to vector<2x128xf32>
    %171 = arith.negf %170 : vector<2x128xf32>
    %172 = math.exp %171 : vector<2x128xf32>
    %cst_30 = arith.constant 1.000000e+00 : f32
    %173 = vector.broadcast %cst_30 : f32 to vector<2x128xf32>
    %174 = arith.addf %173, %172 : vector<2x128xf32>
    %175 = arith.divf %173, %174 : vector<2x128xf32>
    %176 = vector.extract_strided_slice %169 {offsets = [0, 128], sizes = [2, 128], strides = [1, 1]} : vector<2x512xf32> to vector<2x128xf32>
    %177 = arith.negf %176 : vector<2x128xf32>
    %178 = math.exp %177 : vector<2x128xf32>
    %cst_31 = arith.constant 1.000000e+00 : f32
    %179 = vector.broadcast %cst_31 : f32 to vector<2x128xf32>
    %180 = arith.addf %179, %178 : vector<2x128xf32>
    %181 = arith.divf %179, %180 : vector<2x128xf32>
    %182 = vector.extract_strided_slice %169 {offsets = [0, 256], sizes = [2, 128], strides = [1, 1]} : vector<2x512xf32> to vector<2x128xf32>
    %183 = math.tanh %182 : vector<2x128xf32>
    %184 = vector.extract_strided_slice %169 {offsets = [0, 384], sizes = [2, 128], strides = [1, 1]} : vector<2x512xf32> to vector<2x128xf32>
    %185 = arith.negf %184 : vector<2x128xf32>
    %186 = math.exp %185 : vector<2x128xf32>
    %cst_32 = arith.constant 1.000000e+00 : f32
    %187 = vector.broadcast %cst_32 : f32 to vector<2x128xf32>
    %188 = arith.addf %187, %186 : vector<2x128xf32>
    %189 = arith.divf %187, %188 : vector<2x128xf32>
    %190 = arith.mulf %181, %163 : vector<2x128xf32>
    %191 = arith.mulf %175, %183 : vector<2x128xf32>
    %192 = arith.addf %190, %191 : vector<2x128xf32>
    %193 = math.tanh %192 : vector<2x128xf32>
    %194 = arith.mulf %189, %193 : vector<2x128xf32>
    %195 = vector.extract_strided_slice %17 {offsets = [12, 0], sizes = [2, 512], strides = [1, 1]} : vector<16x512xf32> to vector<2x512xf32>
    %196 = arith.truncf %194 : vector<2x128xf32> to vector<2x128xbf16>
    %cst_33 = arith.constant dense<0.000000e+00> : vector<2x512xf32>
    %197 = tpu.matmul %196, %18, %cst_33 {dimension_numbers = #tpu.dot_dimension_numbers<[1], [0], [0], [1], [0, 0, 1, 1], [], []>} : vector<2x128xbf16>, vector<128x512xbf16>, vector<2x512xf32> -> vector<2x512xf32>
    %198 = arith.addf %195, %197 : vector<2x512xf32>
    %199 = vector.extract_strided_slice %198 {offsets = [0, 0], sizes = [2, 128], strides = [1, 1]} : vector<2x512xf32> to vector<2x128xf32>
    %200 = arith.negf %199 : vector<2x128xf32>
    %201 = math.exp %200 : vector<2x128xf32>
    %cst_34 = arith.constant 1.000000e+00 : f32
    %202 = vector.broadcast %cst_34 : f32 to vector<2x128xf32>
    %203 = arith.addf %202, %201 : vector<2x128xf32>
    %204 = arith.divf %202, %203 : vector<2x128xf32>
    %205 = vector.extract_strided_slice %198 {offsets = [0, 128], sizes = [2, 128], strides = [1, 1]} : vector<2x512xf32> to vector<2x128xf32>
    %206 = arith.negf %205 : vector<2x128xf32>
    %207 = math.exp %206 : vector<2x128xf32>
    %cst_35 = arith.constant 1.000000e+00 : f32
    %208 = vector.broadcast %cst_35 : f32 to vector<2x128xf32>
    %209 = arith.addf %208, %207 : vector<2x128xf32>
    %210 = arith.divf %208, %209 : vector<2x128xf32>
    %211 = vector.extract_strided_slice %198 {offsets = [0, 256], sizes = [2, 128], strides = [1, 1]} : vector<2x512xf32> to vector<2x128xf32>
    %212 = math.tanh %211 : vector<2x128xf32>
    %213 = vector.extract_strided_slice %198 {offsets = [0, 384], sizes = [2, 128], strides = [1, 1]} : vector<2x512xf32> to vector<2x128xf32>
    %214 = arith.negf %213 : vector<2x128xf32>
    %215 = math.exp %214 : vector<2x128xf32>
    %cst_36 = arith.constant 1.000000e+00 : f32
    %216 = vector.broadcast %cst_36 : f32 to vector<2x128xf32>
    %217 = arith.addf %216, %215 : vector<2x128xf32>
    %218 = arith.divf %216, %217 : vector<2x128xf32>
    %219 = arith.mulf %210, %192 : vector<2x128xf32>
    %220 = arith.mulf %204, %212 : vector<2x128xf32>
    %221 = arith.addf %219, %220 : vector<2x128xf32>
    %222 = math.tanh %221 : vector<2x128xf32>
    %223 = arith.mulf %218, %222 : vector<2x128xf32>
    %224 = vector.extract_strided_slice %17 {offsets = [14, 0], sizes = [2, 512], strides = [1, 1]} : vector<16x512xf32> to vector<2x512xf32>
    %225 = arith.truncf %223 : vector<2x128xf32> to vector<2x128xbf16>
    %cst_37 = arith.constant dense<0.000000e+00> : vector<2x512xf32>
    %226 = tpu.matmul %225, %18, %cst_37 {dimension_numbers = #tpu.dot_dimension_numbers<[1], [0], [0], [1], [0, 0, 1, 1], [], []>} : vector<2x128xbf16>, vector<128x512xbf16>, vector<2x512xf32> -> vector<2x512xf32>
    %227 = arith.addf %224, %226 : vector<2x512xf32>
    %228 = vector.extract_strided_slice %227 {offsets = [0, 0], sizes = [2, 128], strides = [1, 1]} : vector<2x512xf32> to vector<2x128xf32>
    %229 = arith.negf %228 : vector<2x128xf32>
    %230 = math.exp %229 : vector<2x128xf32>
    %cst_38 = arith.constant 1.000000e+00 : f32
    %231 = vector.broadcast %cst_38 : f32 to vector<2x128xf32>
    %232 = arith.addf %231, %230 : vector<2x128xf32>
    %233 = arith.divf %231, %232 : vector<2x128xf32>
    %234 = vector.extract_strided_slice %227 {offsets = [0, 128], sizes = [2, 128], strides = [1, 1]} : vector<2x512xf32> to vector<2x128xf32>
    %235 = arith.negf %234 : vector<2x128xf32>
    %236 = math.exp %235 : vector<2x128xf32>
    %cst_39 = arith.constant 1.000000e+00 : f32
    %237 = vector.broadcast %cst_39 : f32 to vector<2x128xf32>
    %238 = arith.addf %237, %236 : vector<2x128xf32>
    %239 = arith.divf %237, %238 : vector<2x128xf32>
    %240 = vector.extract_strided_slice %227 {offsets = [0, 256], sizes = [2, 128], strides = [1, 1]} : vector<2x512xf32> to vector<2x128xf32>
    %241 = math.tanh %240 : vector<2x128xf32>
    %242 = vector.extract_strided_slice %227 {offsets = [0, 384], sizes = [2, 128], strides = [1, 1]} : vector<2x512xf32> to vector<2x128xf32>
    %243 = arith.negf %242 : vector<2x128xf32>
    %244 = math.exp %243 : vector<2x128xf32>
    %cst_40 = arith.constant 1.000000e+00 : f32
    %245 = vector.broadcast %cst_40 : f32 to vector<2x128xf32>
    %246 = arith.addf %245, %244 : vector<2x128xf32>
    %247 = arith.divf %245, %246 : vector<2x128xf32>
    %248 = arith.mulf %239, %221 : vector<2x128xf32>
    %249 = arith.mulf %233, %241 : vector<2x128xf32>
    %250 = arith.addf %248, %249 : vector<2x128xf32>
    %251 = math.tanh %250 : vector<2x128xf32>
    %252 = arith.mulf %247, %251 : vector<2x128xf32>
    %c1_i32_41 = arith.constant 1 : i32
    %253 = tpu.memref_slice %arg26[%c1_i32_41] : memref<6x!tpu.dma_semaphore, #tpu.memory_space<semaphore_mem>> -> memref<1x!tpu.dma_semaphore, #tpu.memory_space<semaphore_mem>>
    %254 = tpu.memref_squeeze %253 : memref<1x!tpu.dma_semaphore, #tpu.memory_space<semaphore_mem>> -> memref<!tpu.dma_semaphore, #tpu.memory_space<semaphore_mem>>
    tpu.wait_dma2 semaphore(%254 : memref<!tpu.dma_semaphore, #tpu.memory_space<semaphore_mem>>) src(%arg13 : memref<484x512xbf16, #tpu.memory_space<any>>) dst(%arg21 : memref<484x512xbf16, #tpu.memory_space<vmem>>)
    %c0_42 = arith.constant 0 : index
    %c0_43 = arith.constant 0 : index
    %255 = vector.load %arg1[%c0_42, %c0_43] : memref<2x484xbf16, #tpu.memory_space<vmem>>, vector<2x484xbf16>
    %c0_44 = arith.constant 0 : index
    %c0_45 = arith.constant 0 : index
    %256 = vector.load %arg21[%c0_44, %c0_45] : memref<484x512xbf16, #tpu.memory_space<vmem>>, vector<484x512xbf16>
    %cst_46 = arith.constant dense<0.000000e+00> : vector<2x512xf32>
    %257 = tpu.matmul %255, %256, %cst_46 {dimension_numbers = #tpu.dot_dimension_numbers<[1], [0], [0], [1], [0, 0, 1, 1], [], []>} : vector<2x484xbf16>, vector<484x512xbf16>, vector<2x512xf32> -> vector<2x512xf32>
    %c0_i32_47 = arith.constant 0 : i32
    %258 = tpu.memref_slice %arg26[%c0_i32_47] : memref<6x!tpu.dma_semaphore, #tpu.memory_space<semaphore_mem>> -> memref<1x!tpu.dma_semaphore, #tpu.memory_space<semaphore_mem>>
    %259 = tpu.memref_squeeze %258 : memref<1x!tpu.dma_semaphore, #tpu.memory_space<semaphore_mem>> -> memref<!tpu.dma_semaphore, #tpu.memory_space<semaphore_mem>>
    tpu.wait_dma2 semaphore(%259 : memref<!tpu.dma_semaphore, #tpu.memory_space<semaphore_mem>>) src(%arg12 : memref<128x512xbf16, #tpu.memory_space<any>>) dst(%arg20 : memref<128x512xbf16, #tpu.memory_space<vmem>>)
    %260 = arith.truncf %252 : vector<2x128xf32> to vector<2x128xbf16>
    %c0_48 = arith.constant 0 : index
    %c0_49 = arith.constant 0 : index
    %261 = vector.load %arg20[%c0_48, %c0_49] : memref<128x512xbf16, #tpu.memory_space<vmem>>, vector<128x512xbf16>
    %cst_50 = arith.constant dense<0.000000e+00> : vector<2x512xf32>
    %262 = tpu.matmul %260, %261, %cst_50 {dimension_numbers = #tpu.dot_dimension_numbers<[1], [0], [0], [1], [0, 0, 1, 1], [], []>} : vector<2x128xbf16>, vector<128x512xbf16>, vector<2x512xf32> -> vector<2x512xf32>
    %263 = arith.addf %262, %257 : vector<2x512xf32>
    %c0_51 = arith.constant 0 : index
    %c0_52 = arith.constant 0 : index
    %264 = vector.load %arg5[%c0_51, %c0_52] : memref<1x512xf32, #tpu.memory_space<vmem>>, vector<1x512xf32>
    %265 = vector.broadcast %264 : vector<1x512xf32> to vector<2x512xf32>
    %266 = arith.addf %263, %265 : vector<2x512xf32>
    %cst_53 = arith.constant 0.000000e+00 : f32
    %267 = vector.broadcast %cst_53 : f32 to vector<2x512xf32>
    %268 = arith.maximumf %266, %267 : vector<2x512xf32>
    %c2_i32_54 = arith.constant 2 : i32
    %269 = tpu.memref_slice %arg26[%c2_i32_54] : memref<6x!tpu.dma_semaphore, #tpu.memory_space<semaphore_mem>> -> memref<1x!tpu.dma_semaphore, #tpu.memory_space<semaphore_mem>>
    %270 = tpu.memref_squeeze %269 : memref<1x!tpu.dma_semaphore, #tpu.memory_space<semaphore_mem>> -> memref<!tpu.dma_semaphore, #tpu.memory_space<semaphore_mem>>
    tpu.wait_dma2 semaphore(%270 : memref<!tpu.dma_semaphore, #tpu.memory_space<semaphore_mem>>) src(%arg14 : memref<512x512xbf16, #tpu.memory_space<any>>) dst(%arg22 : memref<512x512xbf16, #tpu.memory_space<vmem>>)
    %271 = arith.truncf %268 : vector<2x512xf32> to vector<2x512xbf16>
    %c0_55 = arith.constant 0 : index
    %c0_56 = arith.constant 0 : index
    %272 = vector.load %arg22[%c0_55, %c0_56] : memref<512x512xbf16, #tpu.memory_space<vmem>>, vector<512x512xbf16>
    %cst_57 = arith.constant dense<0.000000e+00> : vector<2x512xf32>
    %273 = tpu.matmul %271, %272, %cst_57 {dimension_numbers = #tpu.dot_dimension_numbers<[1], [0], [0], [1], [0, 0, 1, 1], [], []>} : vector<2x512xbf16>, vector<512x512xbf16>, vector<2x512xf32> -> vector<2x512xf32>
    %c0_58 = arith.constant 0 : index
    %c0_59 = arith.constant 0 : index
    %274 = vector.load %arg6[%c0_58, %c0_59] : memref<1x512xf32, #tpu.memory_space<vmem>>, vector<1x512xf32>
    %275 = vector.broadcast %274 : vector<1x512xf32> to vector<2x512xf32>
    %276 = arith.addf %273, %275 : vector<2x512xf32>
    %cst_60 = arith.constant 0.000000e+00 : f32
    %277 = vector.broadcast %cst_60 : f32 to vector<2x512xf32>
    %278 = arith.maximumf %276, %277 : vector<2x512xf32>
    %c3_i32_61 = arith.constant 3 : i32
    %279 = tpu.memref_slice %arg26[%c3_i32_61] : memref<6x!tpu.dma_semaphore, #tpu.memory_space<semaphore_mem>> -> memref<1x!tpu.dma_semaphore, #tpu.memory_space<semaphore_mem>>
    %280 = tpu.memref_squeeze %279 : memref<1x!tpu.dma_semaphore, #tpu.memory_space<semaphore_mem>> -> memref<!tpu.dma_semaphore, #tpu.memory_space<semaphore_mem>>
    tpu.wait_dma2 semaphore(%280 : memref<!tpu.dma_semaphore, #tpu.memory_space<semaphore_mem>>) src(%arg15 : memref<512x512xbf16, #tpu.memory_space<any>>) dst(%arg23 : memref<512x512xbf16, #tpu.memory_space<vmem>>)
    %281 = arith.truncf %278 : vector<2x512xf32> to vector<2x512xbf16>
    %c0_62 = arith.constant 0 : index
    %c0_63 = arith.constant 0 : index
    %282 = vector.load %arg23[%c0_62, %c0_63] : memref<512x512xbf16, #tpu.memory_space<vmem>>, vector<512x512xbf16>
    %cst_64 = arith.constant dense<0.000000e+00> : vector<2x512xf32>
    %283 = tpu.matmul %281, %282, %cst_64 {dimension_numbers = #tpu.dot_dimension_numbers<[1], [0], [0], [1], [0, 0, 1, 1], [], []>} : vector<2x512xbf16>, vector<512x512xbf16>, vector<2x512xf32> -> vector<2x512xf32>
    %c0_65 = arith.constant 0 : index
    %c0_66 = arith.constant 0 : index
    %284 = vector.load %arg7[%c0_65, %c0_66] : memref<1x512xf32, #tpu.memory_space<vmem>>, vector<1x512xf32>
    %285 = vector.broadcast %284 : vector<1x512xf32> to vector<2x512xf32>
    %286 = arith.addf %283, %285 : vector<2x512xf32>
    %cst_67 = arith.constant 0.000000e+00 : f32
    %287 = vector.broadcast %cst_67 : f32 to vector<2x512xf32>
    %288 = arith.maximumf %286, %287 : vector<2x512xf32>
    %c4_i32_68 = arith.constant 4 : i32
    %289 = tpu.memref_slice %arg26[%c4_i32_68] : memref<6x!tpu.dma_semaphore, #tpu.memory_space<semaphore_mem>> -> memref<1x!tpu.dma_semaphore, #tpu.memory_space<semaphore_mem>>
    %290 = tpu.memref_squeeze %289 : memref<1x!tpu.dma_semaphore, #tpu.memory_space<semaphore_mem>> -> memref<!tpu.dma_semaphore, #tpu.memory_space<semaphore_mem>>
    tpu.wait_dma2 semaphore(%290 : memref<!tpu.dma_semaphore, #tpu.memory_space<semaphore_mem>>) src(%arg16 : memref<512x512xbf16, #tpu.memory_space<any>>) dst(%arg24 : memref<512x512xbf16, #tpu.memory_space<vmem>>)
    %291 = arith.truncf %288 : vector<2x512xf32> to vector<2x512xbf16>
    %c0_69 = arith.constant 0 : index
    %c0_70 = arith.constant 0 : index
    %292 = vector.load %arg24[%c0_69, %c0_70] : memref<512x512xbf16, #tpu.memory_space<vmem>>, vector<512x512xbf16>
    %cst_71 = arith.constant dense<0.000000e+00> : vector<2x512xf32>
    %293 = tpu.matmul %291, %292, %cst_71 {dimension_numbers = #tpu.dot_dimension_numbers<[1], [0], [0], [1], [0, 0, 1, 1], [], []>} : vector<2x512xbf16>, vector<512x512xbf16>, vector<2x512xf32> -> vector<2x512xf32>
    %c0_72 = arith.constant 0 : index
    %c0_73 = arith.constant 0 : index
    %294 = vector.load %arg8[%c0_72, %c0_73] : memref<1x512xf32, #tpu.memory_space<vmem>>, vector<1x512xf32>
    %295 = vector.broadcast %294 : vector<1x512xf32> to vector<2x512xf32>
    %296 = arith.addf %293, %295 : vector<2x512xf32>
    %cst_74 = arith.constant 0.000000e+00 : f32
    %297 = vector.broadcast %cst_74 : f32 to vector<2x512xf32>
    %298 = arith.maximumf %296, %297 : vector<2x512xf32>
    %c5_i32_75 = arith.constant 5 : i32
    %299 = tpu.memref_slice %arg26[%c5_i32_75] : memref<6x!tpu.dma_semaphore, #tpu.memory_space<semaphore_mem>> -> memref<1x!tpu.dma_semaphore, #tpu.memory_space<semaphore_mem>>
    %300 = tpu.memref_squeeze %299 : memref<1x!tpu.dma_semaphore, #tpu.memory_space<semaphore_mem>> -> memref<!tpu.dma_semaphore, #tpu.memory_space<semaphore_mem>>
    tpu.wait_dma2 semaphore(%300 : memref<!tpu.dma_semaphore, #tpu.memory_space<semaphore_mem>>) src(%arg17 : memref<512x512xbf16, #tpu.memory_space<any>>) dst(%arg25 : memref<512x512xbf16, #tpu.memory_space<vmem>>)
    %301 = arith.truncf %298 : vector<2x512xf32> to vector<2x512xbf16>
    %c0_76 = arith.constant 0 : index
    %c0_77 = arith.constant 0 : index
    %302 = vector.load %arg25[%c0_76, %c0_77] : memref<512x512xbf16, #tpu.memory_space<vmem>>, vector<512x512xbf16>
    %cst_78 = arith.constant dense<0.000000e+00> : vector<2x512xf32>
    %303 = tpu.matmul %301, %302, %cst_78 {dimension_numbers = #tpu.dot_dimension_numbers<[1], [0], [0], [1], [0, 0, 1, 1], [], []>} : vector<2x512xbf16>, vector<512x512xbf16>, vector<2x512xf32> -> vector<2x512xf32>
    %c0_79 = arith.constant 0 : index
    %c0_80 = arith.constant 0 : index
    %304 = vector.load %arg9[%c0_79, %c0_80] : memref<1x512xf32, #tpu.memory_space<vmem>>, vector<1x512xf32>
    %305 = vector.broadcast %304 : vector<1x512xf32> to vector<2x512xf32>
    %306 = arith.addf %303, %305 : vector<2x512xf32>
    %cst_81 = arith.constant 0.000000e+00 : f32
    %307 = vector.broadcast %cst_81 : f32 to vector<2x512xf32>
    %308 = arith.maximumf %306, %307 : vector<2x512xf32>
    %c0_82 = arith.constant 0 : index
    %c0_83 = arith.constant 0 : index
    %309 = vector.load %arg10[%c0_82, %c0_83] : memref<1x512xf32, #tpu.memory_space<vmem>>, vector<1x512xf32>
    %310 = vector.broadcast %309 : vector<1x512xf32> to vector<2x512xf32>
    %311 = arith.mulf %308, %310 : vector<2x512xf32>
    %cst_84 = arith.constant dense<0.000000e+00> : vector<2xf32>
    %312 = vector.multi_reduction <add>, %311, %cst_84 [1] : vector<2x512xf32> to vector<2xf32>
    %313 = vector.shape_cast %312 : vector<2xf32> to vector<2x1xf32>
    %c0_85 = arith.constant 0 : index
    %c0_86 = arith.constant 0 : index
    %314 = vector.load %arg11[%c0_85, %c0_86] : memref<1x1xf32, #tpu.memory_space<vmem>>, vector<1x1xf32>
    %315 = vector.broadcast %314 : vector<1x1xf32> to vector<2x1xf32>
    %316 = arith.addf %313, %315 : vector<2x1xf32>
    %c0_87 = arith.constant 0 : index
    %c0_88 = arith.constant 0 : index
    %317 = vector.load %arg18[%c0_87, %c0_88] : memref<2x1xf32, #tpu.memory_space<vmem>>, vector<2x1xf32>
    tpu.vector_store %arg18[%c0_87, %c0_88], %316 {strides = array<i32>} : memref<2x1xf32, #tpu.memory_space<vmem>>, vector<2x1xf32>,
    %318 = vector.extract_strided_slice %316 {offsets = [0, 0], sizes = [1, 1], strides = [1, 1]} : vector<2x1xf32> to vector<1x1xf32>
    %c0_i32_89 = arith.constant 0 : i32
    %319 = vector.broadcast %c0_i32_89 : i32 to vector<1x1xi32>
    %320 = vector.extract_strided_slice %316 {offsets = [1, 0], sizes = [1, 1], strides = [1, 1]} : vector<2x1xf32> to vector<1x1xf32>
    %321 = arith.cmpf ogt, %320, %318 : vector<1x1xf32>
    %c1_i32_90 = arith.constant 1 : i32
    %322 = vector.broadcast %c1_i32_90 : i32 to vector<1x1xi32>
    %323 = arith.select %321, %322, %319 : vector<1x1xi1>, vector<1x1xi32>
    %c0_91 = arith.constant 0 : index
    %c0_92 = arith.constant 0 : index
    %324 = vector.load %arg19[%c0_91, %c0_92] : memref<1x1xi32, #tpu.memory_space<vmem>>, vector<1x1xi32>
    tpu.vector_store %arg19[%c0_91, %c0_92], %323 {strides = array<i32>} : memref<1x1xi32, #tpu.memory_space<vmem>>, vector<1x1xi32>,
    return
  }
}

</mosaic_0001>

<llo_original>
// kernel: farmer_lstm_forward.1
$region0: #{farmer_lstm_forward.1}
  #allocation0 [shape = 'u32[]', space=smem, size = 0x4, offset = 0x4, fixed_abs, tag = 'smem constant byte address 0x4 - core index']
  #allocation1 [shape = 'u32[72,128]{1,0:T(1,128)}', space=vmem, size = 0x9000, scoped, tag = 'internal scratch']
  #allocation2 [shape = 'bf16[128,512]{1,0:T(8,128)(2,1)}', space=vmem, size = 0x20000, scoped, tag = 'scratch operand']
  #allocation3 [shape = 'bf16[484,512]{1,0:T(8,128)(2,1)}', space=vmem, size = 0x7a000, scoped, tag = 'scratch operand']
  #allocation4 [shape = 'bf16[512,512]{1,0:T(8,128)(2,1)}', space=vmem, size = 0x80000, scoped, tag = 'scratch operand']
  #allocation5 [shape = 'bf16[512,512]{1,0:T(8,128)(2,1)}', space=vmem, size = 0x80000, scoped, tag = 'scratch operand']
  #allocation6 [shape = 'bf16[512,512]{1,0:T(8,128)(2,1)}', space=vmem, size = 0x80000, scoped, tag = 'scratch operand']
  #allocation7 [shape = 'bf16[512,512]{1,0:T(8,128)(2,1)}', space=vmem, size = 0x80000, scoped, tag = 'scratch operand']
  #allocation8 [shape = 's32[6]{0}', space=sflag, size = 0x18, scoped, tag = 'scratch operand']
  #allocation9 [shape = 'f32[1,1]{1,0:T(1,128)S(1)}', space=vmem, size = 0x200, scoped, tag = 'scoped memory for farmer_lstm_forward.1']
  #allocation16 [shape = 's32[]', space=sflag, size = 0x4, offset = 0, fixed_abs, tag = 'sflag constant byte address 0x0 - dummy sync flag']
  #allocation17 [shape = 's32[]', space=sflag, size = 0x4, offset = 0, fixed_abs, tag = 'sflag constant byte address 0x0 - dummy sync flag']
  #allocation18 [shape = 'u32[]', space=smem, size = 0x4, offset = 0x44, fixed_abs, tag = 'smem constant byte address 0x44 - assertion arg 0']
  #allocation19 [shape = 'u32[]', space=smem, size = 0x4, offset = 0x48, fixed_abs, tag = 'smem constant byte address 0x48 - assertion arg 1']
  #allocation20 [shape = 's32[]', space=sflag, size = 0x4, offset = 0, fixed_abs, tag = 'sflag constant byte address 0x0 - dummy sync flag']
  #allocation21 [shape = 's32[]', space=sflag, size = 0x4, offset = 0, fixed_abs, tag = 'sflag constant byte address 0x0 - dummy sync flag']
  #allocation22 [shape = 's32[]', space=sflag, size = 0x4, offset = 0, fixed_abs, tag = 'sflag constant byte address 0x0 - dummy sync flag']
  #allocation23 [shape = 's32[]', space=sflag, size = 0x4, offset = 0, fixed_abs, tag = 'sflag constant byte address 0x0 - dummy sync flag']
  #allocation24 [shape = 's32[]', space=sflag, size = 0x4, offset = 0, fixed_abs, tag = 'sflag constant byte address 0x0 - dummy sync flag']
  #allocation25 [shape = 's32[]', space=sflag, size = 0x4, offset = 0, fixed_abs, tag = 'sflag constant byte address 0x0 - dummy sync flag']
  #allocation26 [shape = 's32[]', space=sflag, size = 0x4, offset = 0, fixed_abs, tag = 'sflag constant byte address 0x0 - dummy sync flag']
  #allocation27 [shape = 's32[]', space=sflag, size = 0x4, offset = 0, fixed_abs, tag = 'sflag constant byte address 0x0 - dummy sync flag']
  #allocation28 [shape = 's32[]', space=sflag, size = 0x4, offset = 0, fixed_abs, tag = 'sflag constant byte address 0x0 - dummy sync flag']
  #allocation29 [shape = 's32[]', space=sflag, size = 0x4, offset = 0, fixed_abs, tag = 'sflag constant byte address 0x0 - dummy sync flag']
  %s0 = inlined_call_operand.vmem [shape: bf16[16,162], index: 0, kind: input, shape index: {}]
  %s1 = inlined_call_operand.vmem [shape: bf16[2,484], index: 1, kind: input, shape index: {}]
  %s2 = inlined_call_operand.hbm [shape: bf16[162,512], index: 2, kind: input, shape index: {}]
  %s3 = inlined_call_operand.hbm [shape: bf16[128,512], index: 3, kind: input, shape index: {}]
  %s4 = inlined_call_operand.vmem [shape: f32[1,512], index: 4, kind: input, shape index: {}]
  %s5 = inlined_call_operand.vmem [shape: f32[1,512], index: 5, kind: input, shape index: {}]
  %s6 = inlined_call_operand.vmem [shape: f32[1,512], index: 6, kind: input, shape index: {}]
  %s7 = inlined_call_operand.vmem [shape: f32[1,512], index: 7, kind: input, shape index: {}]
  %s8 = inlined_call_operand.vmem [shape: f32[1,512], index: 8, kind: input, shape index: {}]
  %s9 = inlined_call_operand.vmem [shape: f32[1,512], index: 9, kind: input, shape index: {}]
  %s10 = inlined_call_operand.vmem [shape: f32[1,512], index: 10, kind: input, shape index: {}]
  %s11 = inlined_call_operand.<no memory space> [shape: f32[1,1], index: 11, kind: input, shape index: {}]
  %s12 = inlined_call_operand.hbm [shape: bf16[128,512], index: 12, kind: input, shape index: {}]
  %s13 = inlined_call_operand.hbm [shape: bf16[484,512], index: 13, kind: input, shape index: {}]
  %s14 = inlined_call_operand.hbm [shape: bf16[512,512], index: 14, kind: input, shape index: {}]
  %s15 = inlined_call_operand.hbm [shape: bf16[512,512], index: 15, kind: input, shape index: {}]
  %s16 = inlined_call_operand.hbm [shape: bf16[512,512], index: 16, kind: input, shape index: {}]
  %s17 = inlined_call_operand.hbm [shape: bf16[512,512], index: 17, kind: input, shape index: {}]
  %s18 = inlined_call_operand.vmem [shape: f32[2,1], index: 18, kind: output, shape index: {0}]
  %s19 = inlined_call_operand.hbm [shape: s32[1,1], index: 19, kind: output, shape index: {1}]
  %20 = xla_tuple %s18, %s19
  %s21 = sld [smem:[#allocation0]]
  $region98: #{farmer_lstm_forward.1} parent=0
    _
  %s23 = ssub.s32 1, %s21
  %s24 = scalar_select 0, %s23, %s21
  %v25 = vstv %s11
  %26 = vst [vmem:[#allocation9] sm:$0x1] %v25
  $region1: #{farmer_lstm_forward.1} parent=0
    #allocation10 [shape = 'u8[172032]{0}', space=vmem, size = 0x2a000, scoped, tag = 'input window, operand 2, single buffered']
    #allocation11 [shape = 's32[1]{0}', space=sflag, size = 0x4, scoped, tag = 'scoped memory for farmer_lstm_forward.1']
    #allocation12 [shape = 's32[1]{0}', space=sflag, size = 0x4, scoped, tag = 'scoped memory for farmer_lstm_forward.1']
    #allocation13 [shape = 'u8[131072]{0}', space=vmem, size = 0x20000, scoped, tag = 'input window, operand 3, single buffered']
    #allocation14 [shape = 's32[1]{0}', space=sflag, size = 0x4, scoped, tag = 'scoped memory for farmer_lstm_forward.1']
    #allocation15 [shape = 'u8[512]{0}', space=vmem, size = 0x400, scoped, tag = 'output window, operand 1, single buffered']
    %27 = vsyncpa [#allocation11], 0
    %28 = vsyncpa [#allocation14], 0
    %29 = vsyncpa [#allocation12], 0
    // Predicated region
    $region2: #{farmer_lstm_forward.1} parent=1 // pred_check
      _
    $region3: #{farmer_lstm_forward.1} parent=1 // pred_check_branch
      %31 = sbr.rel (0) target = $region5
    $region4: #{farmer_lstm_forward.1} parent=1 // pred_region
      _
    $region5: #{farmer_lstm_forward.1} parent=1 // pred_fallthru
      _
    // Predicated region
    $region6: #{farmer_lstm_forward.1} parent=1 // pred_check
      _
    $region7: #{farmer_lstm_forward.1} parent=1 // pred_check_branch
      %33 = sbr.rel (0) target = $region9
    $region8: #{farmer_lstm_forward.1} parent=1 // pred_region
      _
    $region9: #{farmer_lstm_forward.1} parent=1 // pred_fallthru
      _
    // Predicated region
    $region10: #{farmer_lstm_forward.1} parent=1 // pred_check
      _
    $region11: #{farmer_lstm_forward.1} parent=1 // pred_check_branch
      %35 = sbr.rel (0) target = $region13
    $region12: #{farmer_lstm_forward.1} parent=1 // pred_region
      %37 = vsyncadd [#allocation11], 0
      %s38 = sshll.u32 %s2, 4
      %s39 = int_to_ptr.hbm [resolvable:$true] %s38
      %s40 = sshll.u32 [#allocation10], 4
      %s41 = int_to_ptr.vmem [resolvable:$true] %s40
      %46 = dma.hbm_to_vmem [thread:$0]  %s39, 5376, %s41, [#allocation11], 256, 256, 16
    $region13: #{farmer_lstm_forward.1} parent=1 // pred_fallthru
      _
    // Predicated region
    $region14: #{farmer_lstm_forward.1} parent=1 // pred_check
      _
    $region15: #{farmer_lstm_forward.1} parent=1 // pred_check_branch
      %48 = sbr.rel (0) target = $region17
    $region16: #{farmer_lstm_forward.1} parent=1 // pred_region
      %50 = vsyncadd [#allocation14], 0
      %s51 = sshll.u32 %s3, 4
      %s52 = int_to_ptr.hbm [resolvable:$true] %s51
      %s53 = sshll.u32 [#allocation13], 4
      %s54 = int_to_ptr.vmem [resolvable:$true] %s53
      %59 = dma.hbm_to_vmem [thread:$0]  %s52, 4096, %s54, [#allocation14], 256, 256, 16
    $region17: #{farmer_lstm_forward.1} parent=1 // pred_fallthru
      _
    // Predicated region
    $region18: #{farmer_lstm_forward.1} parent=1 // pred_check
      _
    $region19: #{farmer_lstm_forward.1} parent=1 // pred_check_branch
      %61 = sbr.rel (0) target = $region21
    $region20: #{farmer_lstm_forward.1} parent=1 // pred_region
      _
    $region21: #{farmer_lstm_forward.1} parent=1 // pred_fallthru
      _
    // Predicated region
    $region22: #{farmer_lstm_forward.1} parent=1 // pred_check
      _
    $region23: #{farmer_lstm_forward.1} parent=1 // pred_check_branch
      %63 = sbr.rel (0) target = $region25
    $region24: #{farmer_lstm_forward.1} parent=1 // pred_region
      _
    $region25: #{farmer_lstm_forward.1} parent=1 // pred_fallthru
      _
    // Predicated region
    $region26: #{farmer_lstm_forward.1} parent=1 // pred_check
      _
    $region27: #{farmer_lstm_forward.1} parent=1 // pred_check_branch
      %65 = sbr.rel (0) target = $region29
    $region28: #{farmer_lstm_forward.1} parent=1 // pred_region
      _
    $region29: #{farmer_lstm_forward.1} parent=1 // pred_fallthru
      _
    // Predicated region
    $region30: #{farmer_lstm_forward.1} parent=1 // pred_check
      _
    $region31: #{farmer_lstm_forward.1} parent=1 // pred_check_branch
      %67 = sbr.rel (0) target = $region33
    $region32: #{farmer_lstm_forward.1} parent=1 // pred_region
      _
    $region33: #{farmer_lstm_forward.1} parent=1 // pred_fallthru
      _
    // Predicated region
    $region34: #{farmer_lstm_forward.1} parent=1 // pred_check
      _
    $region35: #{farmer_lstm_forward.1} parent=1 // pred_check_branch
      %69 = sbr.rel (0) target = $region37
    $region36: #{farmer_lstm_forward.1} parent=1 // pred_region
      _
    $region37: #{farmer_lstm_forward.1} parent=1 // pred_fallthru
      _
    // Predicated region
    $region38: #{farmer_lstm_forward.1} parent=1 // pred_check
      _
    $region39: #{farmer_lstm_forward.1} parent=1 // pred_check_branch
      %71 = sbr.rel (0) target = $region41
    $region40: #{farmer_lstm_forward.1} parent=1 // pred_region
      _
    $region41: #{farmer_lstm_forward.1} parent=1 // pred_fallthru
      _
    // Predicated region
    $region42: #{farmer_lstm_forward.1} parent=1 // pred_check
      _
    $region43: #{farmer_lstm_forward.1} parent=1 // pred_check_branch
      %73 = sbr.rel (0) target = $region45
    $region44: #{farmer_lstm_forward.1} parent=1 // pred_region
      _
    $region45: #{farmer_lstm_forward.1} parent=1 // pred_fallthru
      _
    // Predicated region
    $region46: #{farmer_lstm_forward.1} parent=1 // pred_check
      _
    $region47: #{farmer_lstm_forward.1} parent=1 // pred_check_branch
      %75 = sbr.rel (0) target = $region49
    $region48: #{farmer_lstm_forward.1} parent=1 // pred_region
      _
    $region49: #{farmer_lstm_forward.1} parent=1 // pred_fallthru
      _
    // Predicated region
    $region50: #{farmer_lstm_forward.1} parent=1 // pred_check
      _
    $region51: #{farmer_lstm_forward.1} parent=1 // pred_check_branch
      %77 = sbr.rel (0) target = $region53
    $region52: #{farmer_lstm_forward.1} parent=1 // pred_region
      %79 = dma.done [#allocation11], 5376
    $region53: #{farmer_lstm_forward.1} parent=1 // pred_fallthru
      _
    // Predicated region
    $region54: #{farmer_lstm_forward.1} parent=1 // pred_check
      _
    $region55: #{farmer_lstm_forward.1} parent=1 // pred_check_branch
      %81 = sbr.rel (0) target = $region57
    $region56: #{farmer_lstm_forward.1} parent=1 // pred_region
      %83 = dma.done [#allocation14], 4096
    $region57: #{farmer_lstm_forward.1} parent=1 // pred_fallthru
      _
    // Predicated region
    $region58: #{farmer_lstm_forward.1} parent=1 // pred_check
      _
    $region59: #{farmer_lstm_forward.1} parent=1 // pred_check_branch
      %86 = sbr.rel target = $region61
    $region60: #{farmer_lstm_forward.1} parent=1 // pred_region
      %87 = sst [smem:[#allocation18]] [#allocation17]
      %88 = sst [smem:[#allocation19]] [#allocation16]
    $region61: #{farmer_lstm_forward.1} parent=1 // pred_fallthru
      _
    %90 = shalt.err (0)
    %s92 = sshll.u32 %s12, 4
    %s93 = int_to_ptr.hbm [resolvable:$true] %s92
    %s94 = sshll.u32 [#allocation2], 4
    %s95 = int_to_ptr.vmem [resolvable:$true] %s94
    %97 = dma.hbm_to_vmem [thread:$0]  %s93, 4096, %s95, [#allocation8]
    %s98 = scalar_lea.sflag [#allocation8], 1
    // Predicated region
    $region62: #{farmer_lstm_forward.1} parent=1 // pred_check
      _
    $region63: #{farmer_lstm_forward.1} parent=1 // pred_check_branch
      %100 = sbr.rel target = $region65
    $region64: #{farmer_lstm_forward.1} parent=1 // pred_region
      %101 = sst [smem:[#allocation18]] [#allocation21]
      %102 = sst [smem:[#allocation19]] [#allocation20]
    $region65: #{farmer_lstm_forward.1} parent=1 // pred_fallthru
      _
    %104 = shalt.err (0)
    %s106 = sshll.u32 %s13, 4
    %s107 = int_to_ptr.hbm [resolvable:$true] %s106
    %s108 = sshll.u32 [#allocation3], 4
    %s109 = int_to_ptr.vmem [resolvable:$true] %s108
    %111 = dma.hbm_to_vmem [thread:$0]  %s107, 15616, %s109, %s98
    %s112 = scalar_lea.sflag [#allocation8], 2
    // Predicated region
    $region66: #{farmer_lstm_forward.1} parent=1 // pred_check
      _
    $region67: #{farmer_lstm_forward.1} parent=1 // pred_check_branch
      %114 = sbr.rel target = $region69
    $region68: #{farmer_lstm_forward.1} parent=1 // pred_region
      %115 = sst [smem:[#allocation18]] [#allocation23]
      %116 = sst [smem:[#allocation19]] [#allocation22]
    $region69: #{farmer_lstm_forward.1} parent=1 // pred_fallthru
      _
    %118 = shalt.err (0)
    %s120 = sshll.u32 %s14, 4
    %s121 = int_to_ptr.hbm [resolvable:$true] %s120
    %s122 = sshll.u32 [#allocation4], 4
    %s123 = int_to_ptr.vmem [resolvable:$true] %s122
    %125 = dma.hbm_to_vmem [thread:$0]  %s121, 16384, %s123, %s112
    %s126 = scalar_lea.sflag [#allocation8], 3
    // Predicated region
    $region70: #{farmer_lstm_forward.1} parent=1 // pred_check
      _
    $region71: #{farmer_lstm_forward.1} parent=1 // pred_check_branch
      %128 = sbr.rel target = $region73
    $region72: #{farmer_lstm_forward.1} parent=1 // pred_region
      %129 = sst [smem:[#allocation18]] [#allocation25]
      %130 = sst [smem:[#allocation19]] [#allocation24]
    $region73: #{farmer_lstm_forward.1} parent=1 // pred_fallthru
      _
    %132 = shalt.err (0)
    %s134 = sshll.u32 %s15, 4
    %s135 = int_to_ptr.hbm [resolvable:$true] %s134
    %s136 = sshll.u32 [#allocation5], 4
    %s137 = int_to_ptr.vmem [resolvable:$true] %s136
    %139 = dma.hbm_to_vmem [thread:$0]  %s135, 16384, %s137, %s126
    %s140 = scalar_lea.sflag [#allocation8], 4
    // Predicated region
    $region74: #{farmer_lstm_forward.1} parent=1 // pred_check
      _
    $region75: #{farmer_lstm_forward.1} parent=1 // pred_check_branch
      %142 = sbr.rel target = $region77
    $region76: #{farmer_lstm_forward.1} parent=1 // pred_region
      %143 = sst [smem:[#allocation18]] [#allocation27]
      %144 = sst [smem:[#allocation19]] [#allocation26]
    $region77: #{farmer_lstm_forward.1} parent=1 // pred_fallthru
      _
    %146 = shalt.err (0)
    %s148 = sshll.u32 %s16, 4
    %s149 = int_to_ptr.hbm [resolvable:$true] %s148
    %s150 = sshll.u32 [#allocation6], 4
    %s151 = int_to_ptr.vmem [resolvable:$true] %s150
    %153 = dma.hbm_to_vmem [thread:$0]  %s149, 16384, %s151, %s140
    %s154 = scalar_lea.sflag [#allocation8], 5
    // Predicated region
    $region78: #{farmer_lstm_forward.1} parent=1 // pred_check
      _
    $region79: #{farmer_lstm_forward.1} parent=1 // pred_check_branch
      %156 = sbr.rel target = $region81
    $region80: #{farmer_lstm_forward.1} parent=1 // pred_region
      %157 = sst [smem:[#allocation18]] [#allocation29]
      %158 = sst [smem:[#allocation19]] [#allocation28]
    $region81: #{farmer_lstm_forward.1} parent=1 // pred_fallthru
      _
    %160 = shalt.err (0)
    %s162 = sshll.u32 %s17, 4
    %s163 = int_to_ptr.hbm [resolvable:$true] %s162
    %s164 = sshll.u32 [#allocation7], 4
    %s165 = int_to_ptr.vmem [resolvable:$true] %s164
    %167 = dma.hbm_to_vmem [thread:$0]  %s163, 16384, %s165, %s154
    %v168 = vld [vmem:[%s0] sm:$0xff]
    %v169 = vld [vmem:[%s0 + $0x8] sm:$0xff]
    %v170 = vld [vmem:[#allocation10] sm:$0xff]
    %v171 = vld [vmem:[#allocation10 + $0x8] sm:$0xff]
    %v172 = vld [vmem:[#allocation10 + $0x10] sm:$0xff]
    %v173 = vld [vmem:[#allocation10 + $0x18] sm:$0xff]
    %v174 = vld [vmem:[#allocation10 + $0x20] sm:$0xff]
    %v175 = vld [vmem:[#allocation10 + $0x28] sm:$0xff]
    %v176 = vld [vmem:[#allocation10 + $0x30] sm:$0xff]
    %v177 = vld [vmem:[#allocation10 + $0x38] sm:$0xff]
    %v178 = vld [vmem:[#allocation10 + $0x40] sm:$0xff]
    %v179 = vld [vmem:[#allocation10 + $0x48] sm:$0xff]
    %v180 = vld [vmem:[#allocation10 + $0x50] sm:$0xff]
    %v181 = vld [vmem:[#allocation10 + $0x58] sm:$0xff]
    %v182 = vld [vmem:[#allocation10 + $0x60] sm:$0xff]
    %v183 = vld [vmem:[#allocation10 + $0x68] sm:$0xff]
    %v184 = vld [vmem:[#allocation10 + $0x70] sm:$0xff]
    %v185 = vld [vmem:[#allocation10 + $0x78] sm:$0xff]
    %v186 = vld [vmem:[#allocation10 + $0x80] sm:$0xff]
    %v187 = vld [vmem:[#allocation10 + $0x88] sm:$0xff]
    %v188 = vld [vmem:[#allocation10 + $0x90] sm:$0xff]
    %v189 = vld [vmem:[#allocation10 + $0x98] sm:$0xff]
    %v190 = vld [vmem:[#allocation10 + $0xa0] sm:$0xff]
    %v191 = vld [vmem:[#allocation10 + $0xa8] sm:$0xff]
    %v192 = vld [vmem:[#allocation10 + $0xb0] sm:$0xff]
    %v193 = vld [vmem:[#allocation10 + $0xb8] sm:$0xff]
    %v194 = vld [vmem:[#allocation10 + $0xc0] sm:$0xff]
    %v195 = vld [vmem:[#allocation10 + $0xc8] sm:$0xff]
    %v196 = vld [vmem:[#allocation10 + $0xd0] sm:$0xff]
    %v197 = vld [vmem:[#allocation10 + $0xd8] sm:$0xff]
    %v198 = vld [vmem:[#allocation10 + $0xe0] sm:$0xff]
    %v199 = vld [vmem:[#allocation10 + $0xe8] sm:$0xff]
    %v200 = vld [vmem:[#allocation10 + $0xf0] sm:$0xff]
    %v201 = vld [vmem:[#allocation10 + $0xf8] sm:$0xff]
    %v202 = vld [vmem:[#allocation10 + $0x100] sm:$0xff]
    %v203 = vld [vmem:[#allocation10 + $0x108] sm:$0xff]
    %v204 = vld [vmem:[#allocation10 + $0x110] sm:$0xff]
    %v205 = vld [vmem:[#allocation10 + $0x118] sm:$0xff]
    %v206 = vld [vmem:[#allocation10 + $0x120] sm:$0xff]
    %v207 = vld [vmem:[#allocation10 + $0x128] sm:$0xff]
    %v208 = vld [vmem:[#allocation10 + $0x130] sm:$0xff]
    %v209 = vld [vmem:[#allocation10 + $0x138] sm:$0xff]
    %v210 = vld [vmem:[#allocation10 + $0x140] sm:$0x11]
    %v211 = vld [vmem:[#allocation10 + $0x148] sm:$0x11]
    %v212 = vld [vmem:[%s4] sm:$0xf]
    %v214 = vperm.slane %v212, 0
    %v215 = vperm.slane %v212, 1
    %v216 = vperm.slane %v212, 2
    %v217 = vperm.slane %v212, 3
    %v224 = vunpack.c.l.b16 %v168
    %v225 = vunpack.c.h.b16 %v168
    %v226 = vunpack.c.l.b16 %v169
    %v227 = vunpack.c.h.b16 %v169
    %v228 = vpack.c.b16 %v226, %v224
    %v229 = vpack.c.b16 %v227, %v225
    %v273 = vunpack.c.l.b16 %v170
    %v274 = vunpack.c.h.b16 %v170
    %v275 = vunpack.c.l.b16 %v171
    %v276 = vunpack.c.h.b16 %v171
    %v277 = vunpack.c.l.b16 %v172
    %v278 = vunpack.c.h.b16 %v172
    %v279 = vunpack.c.l.b16 %v173
    %v280 = vunpack.c.h.b16 %v173
    %v281 = vunpack.c.l.b16 %v174
    %v282 = vunpack.c.h.b16 %v174
    %v283 = vunpack.c.l.b16 %v175
    %v284 = vunpack.c.h.b16 %v175
    %v285 = vunpack.c.l.b16 %v176
    %v286 = vunpack.c.h.b16 %v176
    %v287 = vunpack.c.l.b16 %v177
    %v288 = vunpack.c.h.b16 %v177
    %v289 = vunpack.c.l.b16 %v178
    %v290 = vunpack.c.h.b16 %v178
    %v291 = vunpack.c.l.b16 %v179
    %v292 = vunpack.c.h.b16 %v179
    %v293 = vunpack.c.l.b16 %v180
    %v294 = vunpack.c.h.b16 %v180
    %v295 = vunpack.c.l.b16 %v181
    %v296 = vunpack.c.h.b16 %v181
    %v297 = vunpack.c.l.b16 %v182
    %v298 = vunpack.c.h.b16 %v182
    %v299 = vunpack.c.l.b16 %v183
    %v300 = vunpack.c.h.b16 %v183
    %v301 = vunpack.c.l.b16 %v184
    %v302 = vunpack.c.h.b16 %v184
    %v303 = vunpack.c.l.b16 %v185
    %v304 = vunpack.c.h.b16 %v185
    %v305 = vunpack.c.l.b16 %v186
    %v306 = vunpack.c.h.b16 %v186
    %v307 = vunpack.c.l.b16 %v187
    %v308 = vunpack.c.h.b16 %v187
    %v309 = vunpack.c.l.b16 %v188
    %v310 = vunpack.c.h.b16 %v188
    %v311 = vunpack.c.l.b16 %v189
    %v312 = vunpack.c.h.b16 %v189
    %v313 = vunpack.c.l.b16 %v190
    %v314 = vunpack.c.h.b16 %v190
    %v315 = vunpack.c.l.b16 %v191
    %v316 = vunpack.c.h.b16 %v191
    %v317 = vunpack.c.l.b16 %v192
    %v318 = vunpack.c.h.b16 %v192
    %v319 = vunpack.c.l.b16 %v193
    %v320 = vunpack.c.h.b16 %v193
    %v321 = vunpack.c.l.b16 %v194
    %v322 = vunpack.c.h.b16 %v194
    %v323 = vunpack.c.l.b16 %v195
    %v324 = vunpack.c.h.b16 %v195
    %v325 = vunpack.c.l.b16 %v196
    %v326 = vunpack.c.h.b16 %v196
    %v327 = vunpack.c.l.b16 %v197
    %v328 = vunpack.c.h.b16 %v197
    %v329 = vunpack.c.l.b16 %v198
    %v330 = vunpack.c.h.b16 %v198
    %v331 = vunpack.c.l.b16 %v199
    %v332 = vunpack.c.h.b16 %v199
    %v333 = vunpack.c.l.b16 %v200
    %v334 = vunpack.c.h.b16 %v200
    %v335 = vunpack.c.l.b16 %v201
    %v336 = vunpack.c.h.b16 %v201
    %v337 = vunpack.c.l.b16 %v202
    %v338 = vunpack.c.h.b16 %v202
    %v339 = vunpack.c.l.b16 %v203
    %v340 = vunpack.c.h.b16 %v203
    %v341 = vunpack.c.l.b16 %v204
    %v342 = vunpack.c.h.b16 %v204
    %v343 = vunpack.c.l.b16 %v205
    %v344 = vunpack.c.h.b16 %v205
    %v345 = vunpack.c.l.b16 %v206
    %v346 = vunpack.c.h.b16 %v206
    %v347 = vunpack.c.l.b16 %v207
    %v348 = vunpack.c.h.b16 %v207
    %v349 = vunpack.c.l.b16 %v208
    %v350 = vunpack.c.h.b16 %v208
    %v351 = vunpack.c.l.b16 %v209
    %v352 = vunpack.c.h.b16 %v209
    %v353 = vunpack.c.l.b16 %v210
    %v354 = vunpack.c.h.b16 %v210
    %v355 = vunpack.c.l.b16 %v211
    %v356 = vunpack.c.h.b16 %v211
    %v357 = vpack.c.b16 %v277, %v273
    %v358 = vpack.c.b16 %v278, %v274
    %v359 = vpack.c.b16 %v279, %v275
    %v360 = vpack.c.b16 %v280, %v276
    %v361 = vpack.c.b16 %v285, %v281
    %v362 = vpack.c.b16 %v286, %v282
    %v363 = vpack.c.b16 %v287, %v283
    %v364 = vpack.c.b16 %v288, %v284
    %v365 = vpack.c.b16 %v293, %v289
    %v366 = vpack.c.b16 %v294, %v290
    %v367 = vpack.c.b16 %v295, %v291
    %v368 = vpack.c.b16 %v296, %v292
    %v369 = vpack.c.b16 %v301, %v297
    %v370 = vpack.c.b16 %v302, %v298
    %v371 = vpack.c.b16 %v303, %v299
    %v372 = vpack.c.b16 %v304, %v300
    %v373 = vpack.c.b16 %v309, %v305
    %v374 = vpack.c.b16 %v310, %v306
    %v375 = vpack.c.b16 %v311, %v307
    %v376 = vpack.c.b16 %v312, %v308
    %v377 = vpack.c.b16 %v317, %v313
    %v378 = vpack.c.b16 %v318, %v314
    %v379 = vpack.c.b16 %v319, %v315
    %v380 = vpack.c.b16 %v320, %v316
    %v381 = vpack.c.b16 %v325, %v321
    %v382 = vpack.c.b16 %v326, %v322
    %v383 = vpack.c.b16 %v327, %v323
    %v384 = vpack.c.b16 %v328, %v324
    %v385 = vpack.c.b16 %v333, %v329
    %v386 = vpack.c.b16 %v334, %v330
    %v387 = vpack.c.b16 %v335, %v331
    %v388 = vpack.c.b16 %v336, %v332
    %v389 = vpack.c.b16 %v341, %v337
    %v390 = vpack.c.b16 %v342, %v338
    %v391 = vpack.c.b16 %v343, %v339
    %v392 = vpack.c.b16 %v344, %v340
    %v393 = vpack.c.b16 %v349, %v345
    %v394 = vpack.c.b16 %v350, %v346
    %v395 = vpack.c.b16 %v351, %v347
    %v396 = vpack.c.b16 %v352, %v348
    %v397 = vpack.c.b16 %v353, %v353
    %v398 = vpack.c.b16 %v354, %v354
    %v399 = vpack.c.b16 %v355, %v355
    %v400 = vpack.c.b16 %v356, %v356
    %vm441 = vcmask 277504
    %v443 = vsel %vm441, %v229, 0
    %vm445 = vcmask 1040384
    %v447 = vsel %vm445, %v397, 0
    %v450 = vsel %vm445, %v398, 0
    %v453 = vsel %vm445, %v399, 0
    %v456 = vsel %vm445, %v400, 0
    %458 = vmatpush.bf16.msra.mxu0 %v385
    %459 = vmatpush.bf16.msra.mxu0 %v381
    %460 = vmatpush.bf16.msra.mxu0 %v377
    %461 = vmatpush.bf16.msra.mxu0 %v373
    %462 = vmatpush.bf16.msra.mxu0 %v369
    %463 = vmatpush.bf16.msra.mxu0 %v365
    %464 = vmatpush.bf16.msra.mxu0 %v361
    %465 = vmatpush.bf16.msra.mxu0 %v357
    %466 = vmatmul.bf16.gmra.mxu0 %v228
    %v467 = vpop.f32.mrf.mxu0
    %v468 = vadd.f32 %v214, %v467
    %v469 = vpop.f32.mrf.mxu0
    %v470 = vadd.f32 %v214, %v469
    %471 = vdwg.mxu0
    %472 = vmatpush.bf16.msra.mxu0 0
    %473 = vmatpush.bf16.msra.mxu0 0
    %474 = vmatpush.bf16.msra.mxu0 0
    %475 = vmatpush.bf16.msra.mxu0 0
    %476 = vmatpush.bf16.msra.mxu0 0
    %477 = vmatpush.bf16.msra.mxu0 %v447
    %478 = vmatpush.bf16.msra.mxu0 %v393
    %479 = vmatpush.bf16.msra.mxu0 %v389
    %480 = vmatmul.bf16.gmra.mxu0 %v443
    %v481 = vpop.f32.mrf.mxu0
    %v482 = vadd.f32 %v468, %v481
    %v483 = vpop.f32.mrf.mxu0
    %v484 = vadd.f32 %v470, %v483
    %485 = vdwg.mxu0
    %486 = vmatpush.bf16.msra.mxu0 %v386
    %487 = vmatpush.bf16.msra.mxu0 %v382
    %488 = vmatpush.bf16.msra.mxu0 %v378
    %489 = vmatpush.bf16.msra.mxu0 %v374
    %490 = vmatpush.bf16.msra.mxu0 %v370
    %491 = vmatpush.bf16.msra.mxu0 %v366
    %492 = vmatpush.bf16.msra.mxu0 %v362
    %493 = vmatpush.bf16.msra.mxu0 %v358
    %494 = vmatmul.bf16.gmra.mxu0 %v228
    %v495 = vpop.f32.mrf.mxu0
    %v496 = vadd.f32 %v215, %v495
    %v497 = vpop.f32.mrf.mxu0
    %v498 = vadd.f32 %v215, %v497
    %499 = vdwg.mxu0
    %500 = vmatpush.bf16.msra.mxu0 0
    %501 = vmatpush.bf16.msra.mxu0 0
    %502 = vmatpush.bf16.msra.mxu0 0
    %503 = vmatpush.bf16.msra.mxu0 0
    %504 = vmatpush.bf16.msra.mxu0 0
    %505 = vmatpush.bf16.msra.mxu0 %v450
    %506 = vmatpush.bf16.msra.mxu0 %v394
    %507 = vmatpush.bf16.msra.mxu0 %v390
    %508 = vmatmul.bf16.gmra.mxu0 %v443
    %v509 = vpop.f32.mrf.mxu0
    %v510 = vadd.f32 %v496, %v509
    %v511 = vpop.f32.mrf.mxu0
    %v512 = vadd.f32 %v498, %v511
    %513 = vdwg.mxu0
    %514 = vmatpush.bf16.msra.mxu0 %v387
    %515 = vmatpush.bf16.msra.mxu0 %v383
    %516 = vmatpush.bf16.msra.mxu0 %v379
    %517 = vmatpush.bf16.msra.mxu0 %v375
    %518 = vmatpush.bf16.msra.mxu0 %v371
    %519 = vmatpush.bf16.msra.mxu0 %v367
    %520 = vmatpush.bf16.msra.mxu0 %v363
    %521 = vmatpush.bf16.msra.mxu0 %v359
    %522 = vmatmul.bf16.gmra.mxu0 %v228
    %v523 = vpop.f32.mrf.mxu0
    %v524 = vadd.f32 %v216, %v523
    %v525 = vpop.f32.mrf.mxu0
    %v526 = vadd.f32 %v216, %v525
    %527 = vdwg.mxu0
    %528 = vmatpush.bf16.msra.mxu0 0
    %529 = vmatpush.bf16.msra.mxu0 0
    %530 = vmatpush.bf16.msra.mxu0 0
    %531 = vmatpush.bf16.msra.mxu0 0
    %532 = vmatpush.bf16.msra.mxu0 0
    %533 = vmatpush.bf16.msra.mxu0 %v453
    %534 = vmatpush.bf16.msra.mxu0 %v395
    %535 = vmatpush.bf16.msra.mxu0 %v391
    %536 = vmatmul.bf16.gmra.mxu0 %v443
    %v537 = vpop.f32.mrf.mxu0
    %v538 = vadd.f32 %v524, %v537
    %v539 = vpop.f32.mrf.mxu0
    %v540 = vadd.f32 %v526, %v539
    %541 = vdwg.mxu0
    %542 = vmatpush.bf16.msra.mxu0 %v388
    %543 = vmatpush.bf16.msra.mxu0 %v384
    %544 = vmatpush.bf16.msra.mxu0 %v380
    %545 = vmatpush.bf16.msra.mxu0 %v376
    %546 = vmatpush.bf16.msra.mxu0 %v372
    %547 = vmatpush.bf16.msra.mxu0 %v368
    %548 = vmatpush.bf16.msra.mxu0 %v364
    %549 = vmatpush.bf16.msra.mxu0 %v360
    %550 = vmatmul.bf16.gmra.mxu0 %v228
    %v551 = vpop.f32.mrf.mxu0
    %v552 = vadd.f32 %v217, %v551
    %v553 = vpop.f32.mrf.mxu0
    %v554 = vadd.f32 %v217, %v553
    %555 = vdwg.mxu0
    %556 = vmatpush.bf16.msra.mxu0 0
    %557 = vmatpush.bf16.msra.mxu0 0
    %558 = vmatpush.bf16.msra.mxu0 0
    %559 = vmatpush.bf16.msra.mxu0 0
    %560 = vmatpush.bf16.msra.mxu0 0
    %561 = vmatpush.bf16.msra.mxu0 %v456
    %562 = vmatpush.bf16.msra.mxu0 %v396
    %563 = vmatpush.bf16.msra.mxu0 %v392
    %564 = vmatmul.bf16.gmra.mxu0 %v443
    %v565 = vpop.f32.mrf.mxu0
    %v566 = vadd.f32 %v552, %v565
    %v567 = vpop.f32.mrf.mxu0
    %v568 = vadd.f32 %v554, %v567
    %569 = vdwg.mxu0
    %v570 = vld [vmem:[#allocation13] sm:$0xff]
    %v571 = vld [vmem:[#allocation13 + $0x8] sm:$0xff]
    %v572 = vld [vmem:[#allocation13 + $0x10] sm:$0xff]
    %v573 = vld [vmem:[#allocation13 + $0x18] sm:$0xff]
    %v574 = vld [vmem:[#allocation13 + $0x20] sm:$0xff]
    %v575 = vld [vmem:[#allocation13 + $0x28] sm:$0xff]
    %v576 = vld [vmem:[#allocation13 + $0x30] sm:$0xff]
    %v577 = vld [vmem:[#allocation13 + $0x38] sm:$0xff]
    %v578 = vld [vmem:[#allocation13 + $0x40] sm:$0xff]
    %v579 = vld [vmem:[#allocation13 + $0x48] sm:$0xff]
    %v580 = vld [vmem:[#allocation13 + $0x50] sm:$0xff]
    %v581 = vld [vmem:[#allocation13 + $0x58] sm:$0xff]
    %v582 = vld [vmem:[#allocation13 + $0x60] sm:$0xff]
    %v583 = vld [vmem:[#allocation13 + $0x68] sm:$0xff]
    %v584 = vld [vmem:[#allocation13 + $0x70] sm:$0xff]
    %v585 = vld [vmem:[#allocation13 + $0x78] sm:$0xff]
    %v586 = vld [vmem:[#allocation13 + $0x80] sm:$0xff]
    %v587 = vld [vmem:[#allocation13 + $0x88] sm:$0xff]
    %v588 = vld [vmem:[#allocation13 + $0x90] sm:$0xff]
    %v589 = vld [vmem:[#allocation13 + $0x98] sm:$0xff]
    %v590 = vld [vmem:[#allocation13 + $0xa0] sm:$0xff]
    %v591 = vld [vmem:[#allocation13 + $0xa8] sm:$0xff]
    %v592 = vld [vmem:[#allocation13 + $0xb0] sm:$0xff]
    %v593 = vld [vmem:[#allocation13 + $0xb8] sm:$0xff]
    %v594 = vld [vmem:[#allocation13 + $0xc0] sm:$0xff]
    %v595 = vld [vmem:[#allocation13 + $0xc8] sm:$0xff]
    %v596 = vld [vmem:[#allocation13 + $0xd0] sm:$0xff]
    %v597 = vld [vmem:[#allocation13 + $0xd8] sm:$0xff]
    %v598 = vld [vmem:[#allocation13 + $0xe0] sm:$0xff]
    %v599 = vld [vmem:[#allocation13 + $0xe8] sm:$0xff]
    %v600 = vld [vmem:[#allocation13 + $0xf0] sm:$0xff]
    %v601 = vld [vmem:[#allocation13 + $0xf8] sm:$0xff]
    %v634 = vunpack.c.l.b16 %v570
    %v635 = vunpack.c.h.b16 %v570
    %v636 = vunpack.c.l.b16 %v571
    %v637 = vunpack.c.h.b16 %v571
    %v638 = vunpack.c.l.b16 %v572
    %v639 = vunpack.c.h.b16 %v572
    %v640 = vunpack.c.l.b16 %v573
    %v641 = vunpack.c.h.b16 %v573
    %v642 = vunpack.c.l.b16 %v574
    %v643 = vunpack.c.h.b16 %v574
    %v644 = vunpack.c.l.b16 %v575
    %v645 = vunpack.c.h.b16 %v575
    %v646 = vunpack.c.l.b16 %v576
    %v647 = vunpack.c.h.b16 %v576
    %v648 = vunpack.c.l.b16 %v577
    %v649 = vunpack.c.h.b16 %v577
    %v650 = vunpack.c.l.b16 %v578
    %v651 = vunpack.c.h.b16 %v578
    %v652 = vunpack.c.l.b16 %v579
    %v653 = vunpack.c.h.b16 %v579
    %v654 = vunpack.c.l.b16 %v580
    %v655 = vunpack.c.h.b16 %v580
    %v656 = vunpack.c.l.b16 %v581
    %v657 = vunpack.c.h.b16 %v581
    %v658 = vunpack.c.l.b16 %v582
    %v659 = vunpack.c.h.b16 %v582
    %v660 = vunpack.c.l.b16 %v583
    %v661 = vunpack.c.h.b16 %v583
    %v662 = vunpack.c.l.b16 %v584
    %v663 = vunpack.c.h.b16 %v584
    %v664 = vunpack.c.l.b16 %v585
    %v665 = vunpack.c.h.b16 %v585
    %v666 = vunpack.c.l.b16 %v586
    %v667 = vunpack.c.h.b16 %v586
    %v668 = vunpack.c.l.b16 %v587
    %v669 = vunpack.c.h.b16 %v587
    %v670 = vunpack.c.l.b16 %v588
    %v671 = vunpack.c.h.b16 %v588
    %v672 = vunpack.c.l.b16 %v589
    %v673 = vunpack.c.h.b16 %v589
    %v674 = vunpack.c.l.b16 %v590
    %v675 = vunpack.c.h.b16 %v590
    %v676 = vunpack.c.l.b16 %v591
    %v677 = vunpack.c.h.b16 %v591
    %v678 = vunpack.c.l.b16 %v592
    %v679 = vunpack.c.h.b16 %v592
    %v680 = vunpack.c.l.b16 %v593
    %v681 = vunpack.c.h.b16 %v593
    %v682 = vunpack.c.l.b16 %v594
    %v683 = vunpack.c.h.b16 %v594
    %v684 = vunpack.c.l.b16 %v595
    %v685 = vunpack.c.h.b16 %v595
    %v686 = vunpack.c.l.b16 %v596
    %v687 = vunpack.c.h.b16 %v596
    %v688 = vunpack.c.l.b16 %v597
    %v689 = vunpack.c.h.b16 %v597
    %v690 = vunpack.c.l.b16 %v598
    %v691 = vunpack.c.h.b16 %v598
    %v692 = vunpack.c.l.b16 %v599
    %v693 = vunpack.c.h.b16 %v599
    %v694 = vunpack.c.l.b16 %v600
    %v695 = vunpack.c.h.b16 %v600
    %v696 = vunpack.c.l.b16 %v601
    %v697 = vunpack.c.h.b16 %v601
    %v698 = vpack.c.b16 %v638, %v634
    %v699 = vpack.c.b16 %v639, %v635
    %v700 = vpack.c.b16 %v640, %v636
    %v701 = vpack.c.b16 %v641, %v637
    %v702 = vpack.c.b16 %v646, %v642
    %v703 = vpack.c.b16 %v647, %v643
    %v704 = vpack.c.b16 %v648, %v644
    %v705 = vpack.c.b16 %v649, %v645
    %v706 = vpack.c.b16 %v654, %v650
    %v707 = vpack.c.b16 %v655, %v651
    %v708 = vpack.c.b16 %v656, %v652
    %v709 = vpack.c.b16 %v657, %v653
    %v710 = vpack.c.b16 %v662, %v658
    %v711 = vpack.c.b16 %v663, %v659
    %v712 = vpack.c.b16 %v664, %v660
    %v713 = vpack.c.b16 %v665, %v661
    %v714 = vpack.c.b16 %v670, %v666
    %v715 = vpack.c.b16 %v671, %v667
    %v716 = vpack.c.b16 %v672, %v668
    %v717 = vpack.c.b16 %v673, %v669
    %v718 = vpack.c.b16 %v678, %v674
    %v719 = vpack.c.b16 %v679, %v675
    %v720 = vpack.c.b16 %v680, %v676
    %v721 = vpack.c.b16 %v681, %v677
    %v722 = vpack.c.b16 %v686, %v682
    %v723 = vpack.c.b16 %v687, %v683
    %v724 = vpack.c.b16 %v688, %v684
    %v725 = vpack.c.b16 %v689, %v685
    %v726 = vpack.c.b16 %v694, %v690
    %v727 = vpack.c.b16 %v695, %v691
    %v728 = vpack.c.b16 %v696, %v692
    %v729 = vpack.c.b16 %v697, %v693
    %762 = vmatpush.bf16.msra.mxu0 %v726
    %763 = vmatpush.bf16.msra.mxu0 %v722
    %764 = vmatpush.bf16.msra.mxu0 %v718
    %765 = vmatpush.bf16.msra.mxu0 %v714
    %766 = vmatpush.bf16.msra.mxu0 %v710
    %767 = vmatpush.bf16.msra.mxu0 %v706
    %768 = vmatpush.bf16.msra.mxu0 %v702
    %769 = vmatpush.bf16.msra.mxu0 %v698
    %770 = vmatmul.bf16.gmra.mxu0 0
    %v771 = vpop.f32.mrf.mxu0
    %v772 = vadd.f32 0.0, %v771
    %v773 = vpop.f32.mrf.mxu0
    %774 = vdwg.mxu0
    %775 = vmatpush.bf16.msra.mxu0 %v727
    %776 = vmatpush.bf16.msra.mxu0 %v723
    %777 = vmatpush.bf16.msra.mxu0 %v719
    %778 = vmatpush.bf16.msra.mxu0 %v715
    %779 = vmatpush.bf16.msra.mxu0 %v711
    %780 = vmatpush.bf16.msra.mxu0 %v707
    %781 = vmatpush.bf16.msra.mxu0 %v703
    %782 = vmatpush.bf16.msra.mxu0 %v699
    %783 = vmatmul.bf16.gmra.mxu0 0
    %v784 = vpop.f32.mrf.mxu0
    %v785 = vadd.f32 0.0, %v784
    %v786 = vpop.f32.mrf.mxu0
    %787 = vdwg.mxu0
    %788 = vmatpush.bf16.msra.mxu0 %v728
    %789 = vmatpush.bf16.msra.mxu0 %v724
    %790 = vmatpush.bf16.msra.mxu0 %v720
    %791 = vmatpush.bf16.msra.mxu0 %v716
    %792 = vmatpush.bf16.msra.mxu0 %v712
    %793 = vmatpush.bf16.msra.mxu0 %v708
    %794 = vmatpush.bf16.msra.mxu0 %v704
    %795 = vmatpush.bf16.msra.mxu0 %v700
    %796 = vmatmul.bf16.gmra.mxu0 0
    %v797 = vpop.f32.mrf.mxu0
    %v798 = vadd.f32 0.0, %v797
    %v799 = vpop.f32.mrf.mxu0
    %800 = vdwg.mxu0
    %801 = vmatpush.bf16.msra.mxu0 %v729
    %802 = vmatpush.bf16.msra.mxu0 %v725
    %803 = vmatpush.bf16.msra.mxu0 %v721
    %804 = vmatpush.bf16.msra.mxu0 %v717
    %805 = vmatpush.bf16.msra.mxu0 %v713
    %806 = vmatpush.bf16.msra.mxu0 %v709
    %807 = vmatpush.bf16.msra.mxu0 %v705
    %808 = vmatpush.bf16.msra.mxu0 %v701
    %809 = vmatmul.bf16.gmra.mxu0 0
    %v810 = vpop.f32.mrf.mxu0
    %v811 = vadd.f32 0.0, %v810
    %v812 = vpop.f32.mrf.mxu0
    %813 = vdwg.mxu0
    %v814 = vadd.f32 %v482, %v772
    %v815 = vadd.f32 %v510, %v785
    %v816 = vadd.f32 %v538, %v798
    %v817 = vadd.f32 %v566, %v811
    %v818 = vxor.u32 %v814, 2147483648
    %v819 = vmul.f32 %v818, 1.442695
    %v820 = vpow.pop %v819
    %v821 = vadd.f32 %v820, 1.0
    %v822 = vrcp.pop %v821
    %v823 = vmul.f32 %v821, %v822
    %v824 = vsub.f32 1.0, %v823
    %v825 = vmul.f32 %v822, %v824
    %v826 = vadd.f32 %v822, %v825
    %vm827 = vweird.f32 %v821
    %vm828 = vweird.f32 %v822
    %vm829 = vmor %vm827, %vm828
    %v830 = vsel %vm829, %v822, %v826
    %v831 = vand.u32 2147483647, %v821
    %vm832 = vcmp.eq.f32.partialorder %v831, 8.507059e+37
    %v833 = vand.u32 %v821, 2147483648
    %v834 = vor.u32 1.1754944e-38, %v833
    %v835 = vsel %vm832, %v834, %v830
    %v836 = vmul.f32 1.0, %v835
    %v837 = vxor.u32 %v815, 2147483648
    %v838 = vmul.f32 %v837, 1.442695
    %v839 = vpow.pop %v838
    %v840 = vadd.f32 %v839, 1.0
    %v841 = vrcp.pop %v840
    %v842 = vmul.f32 %v840, %v841
    %v843 = vsub.f32 1.0, %v842
    %v844 = vmul.f32 %v841, %v843
    %v845 = vadd.f32 %v841, %v844
    %vm846 = vweird.f32 %v840
    %vm847 = vweird.f32 %v841
    %vm848 = vmor %vm846, %vm847
    %v849 = vsel %vm848, %v841, %v845
    %v850 = vand.u32 2147483647, %v840
    %vm851 = vcmp.eq.f32.partialorder %v850, 8.507059e+37
    %v852 = vand.u32 %v840, 2147483648
    %v853 = vor.u32 1.1754944e-38, %v852
    %v854 = vsel %vm851, %v853, %v849
    %v855 = vmul.f32 1.0, %v854
    %v856 = vtanh.pop %v816
    %v857 = vxor.u32 %v817, 2147483648
    %v858 = vmul.f32 %v857, 1.442695
    %v859 = vpow.pop %v858
    %v860 = vadd.f32 %v859, 1.0
    %v861 = vrcp.pop %v860
    %v862 = vmul.f32 %v860, %v861
    %v863 = vsub.f32 1.0, %v862
    %v864 = vmul.f32 %v861, %v863
    %v865 = vadd.f32 %v861, %v864
    %vm866 = vweird.f32 %v860
    %vm867 = vweird.f32 %v861
    %vm868 = vmor %vm866, %vm867
    %v869 = vsel %vm868, %v861, %v865
    %v870 = vand.u32 2147483647, %v860
    %vm871 = vcmp.eq.f32.partialorder %v870, 8.507059e+37
    %v872 = vand.u32 %v860, 2147483648
    %v873 = vor.u32 1.1754944e-38, %v872
    %v874 = vsel %vm871, %v873, %v869
    %v875 = vmul.f32 1.0, %v874
    %v876 = vmul.f32 %v855, 0.0
    %v877 = vmul.f32 %v836, %v856
    %v878 = vadd.f32 %v876, %v877
    %v879 = vtanh.pop %v878
    %v880 = vmul.f32 %v875, %v879
    %v881 = vpack.c.bf16 %v880, %v880
    %882 = vmatpush.bf16.msra.mxu0 %v726
    %883 = vmatpush.bf16.msra.mxu0 %v722
    %884 = vmatpush.bf16.msra.mxu0 %v718
    %885 = vmatpush.bf16.msra.mxu0 %v714
    %886 = vmatpush.bf16.msra.mxu0 %v710
    %887 = vmatpush.bf16.msra.mxu0 %v706
    %888 = vmatpush.bf16.msra.mxu0 %v702
    %889 = vmatpush.bf16.msra.mxu0 %v698
    %890 = vmatmul.bf16.gmra.mxu0 %v881
    %v891 = vpop.f32.mrf.mxu0
    %v892 = vadd.f32 0.0, %v891
    %v893 = vpop.f32.mrf.mxu0
    %894 = vdwg.mxu0
    %895 = vmatpush.bf16.msra.mxu0 %v727
    %896 = vmatpush.bf16.msra.mxu0 %v723
    %897 = vmatpush.bf16.msra.mxu0 %v719
    %898 = vmatpush.bf16.msra.mxu0 %v715
    %899 = vmatpush.bf16.msra.mxu0 %v711
    %900 = vmatpush.bf16.msra.mxu0 %v707
    %901 = vmatpush.bf16.msra.mxu0 %v703
    %902 = vmatpush.bf16.msra.mxu0 %v699
    %903 = vmatmul.bf16.gmra.mxu0 %v881
    %v904 = vpop.f32.mrf.mxu0
    %v905 = vadd.f32 0.0, %v904
    %v906 = vpop.f32.mrf.mxu0
    %907 = vdwg.mxu0
    %908 = vmatpush.bf16.msra.mxu0 %v728
    %909 = vmatpush.bf16.msra.mxu0 %v724
    %910 = vmatpush.bf16.msra.mxu0 %v720
    %911 = vmatpush.bf16.msra.mxu0 %v716
    %912 = vmatpush.bf16.msra.mxu0 %v712
    %913 = vmatpush.bf16.msra.mxu0 %v708
    %914 = vmatpush.bf16.msra.mxu0 %v704
    %915 = vmatpush.bf16.msra.mxu0 %v700
    %916 = vmatmul.bf16.gmra.mxu0 %v881
    %v917 = vpop.f32.mrf.mxu0
    %v918 = vadd.f32 0.0, %v917
    %v919 = vpop.f32.mrf.mxu0
    %920 = vdwg.mxu0
    %921 = vmatpush.bf16.msra.mxu0 %v729
    %922 = vmatpush.bf16.msra.mxu0 %v725
    %923 = vmatpush.bf16.msra.mxu0 %v721
    %924 = vmatpush.bf16.msra.mxu0 %v717
    %925 = vmatpush.bf16.msra.mxu0 %v713
    %926 = vmatpush.bf16.msra.mxu0 %v709
    %927 = vmatpush.bf16.msra.mxu0 %v705
    %928 = vmatpush.bf16.msra.mxu0 %v701
    %929 = vmatmul.bf16.gmra.mxu0 %v881
    %v930 = vpop.f32.mrf.mxu0
    %v931 = vadd.f32 0.0, %v930
    %v932 = vpop.f32.mrf.mxu0
    %933 = vdwg.mxu0
    %v938 = vrot.slane %v892, 6
    %v939 = vrot.slane %v905, 6
    %v940 = vrot.slane %v918, 6
    %v941 = vrot.slane %v931, 6
    %v946 = vadd.f32 %v482, %v938
    %v947 = vadd.f32 %v510, %v939
    %v948 = vadd.f32 %v538, %v940
    %v949 = vadd.f32 %v566, %v941
    %v950 = vxor.u32 %v946, 2147483648
    %v951 = vmul.f32 %v950, 1.442695
    %v952 = vpow.pop %v951
    %v953 = vadd.f32 %v952, 1.0
    %v954 = vrcp.pop %v953
    %v955 = vmul.f32 %v953, %v954
    %v956 = vsub.f32 1.0, %v955
    %v957 = vmul.f32 %v954, %v956
    %v958 = vadd.f32 %v954, %v957
    %vm959 = vweird.f32 %v953
    %vm960 = vweird.f32 %v954
    %vm961 = vmor %vm959, %vm960
    %v962 = vsel %vm961, %v954, %v958
    %v963 = vand.u32 2147483647, %v953
    %vm964 = vcmp.eq.f32.partialorder %v963, 8.507059e+37
    %v965 = vand.u32 %v953, 2147483648
    %v966 = vor.u32 1.1754944e-38, %v965
    %v967 = vsel %vm964, %v966, %v962
    %v968 = vmul.f32 1.0, %v967
    %v969 = vxor.u32 %v947, 2147483648
    %v970 = vmul.f32 %v969, 1.442695
    %v971 = vpow.pop %v970
    %v972 = vadd.f32 %v971, 1.0
    %v973 = vrcp.pop %v972
    %v974 = vmul.f32 %v972, %v973
    %v975 = vsub.f32 1.0, %v974
    %v976 = vmul.f32 %v973, %v975
    %v977 = vadd.f32 %v973, %v976
    %vm978 = vweird.f32 %v972
    %vm979 = vweird.f32 %v973
    %vm980 = vmor %vm978, %vm979
    %v981 = vsel %vm980, %v973, %v977
    %v982 = vand.u32 2147483647, %v972
    %vm983 = vcmp.eq.f32.partialorder %v982, 8.507059e+37
    %v984 = vand.u32 %v972, 2147483648
    %v985 = vor.u32 1.1754944e-38, %v984
    %v986 = vsel %vm983, %v985, %v981
    %v987 = vmul.f32 1.0, %v986
    %v988 = vtanh.pop %v948
    %v989 = vxor.u32 %v949, 2147483648
    %v990 = vmul.f32 %v989, 1.442695
    %v991 = vpow.pop %v990
    %v992 = vadd.f32 %v991, 1.0
    %v993 = vrcp.pop %v992
    %v994 = vmul.f32 %v992, %v993
    %v995 = vsub.f32 1.0, %v994
    %v996 = vmul.f32 %v993, %v995
    %v997 = vadd.f32 %v993, %v996
    %vm998 = vweird.f32 %v992
    %vm999 = vweird.f32 %v993
    %vm1000 = vmor %vm998, %vm999
    %v1001 = vsel %vm1000, %v993, %v997
    %v1002 = vand.u32 2147483647, %v992
    %vm1003 = vcmp.eq.f32.partialorder %v1002, 8.507059e+37
    %v1004 = vand.u32 %v992, 2147483648
    %v1005 = vor.u32 1.1754944e-38, %v1004
    %v1006 = vsel %vm1003, %v1005, %v1001
    %v1007 = vmul.f32 1.0, %v1006
    %v1009 = vrot.slane %v878, 6
    %v1011 = vmul.f32 %v987, %v1009
    %v1012 = vmul.f32 %v968, %v988
    %v1013 = vadd.f32 %v1011, %v1012
    %v1014 = vtanh.pop %v1013
    %v1015 = vmul.f32 %v1007, %v1014
    %v1016 = vpack.c.bf16 %v1015, %v1015
    %v1018 = vrot.slane %v1016, 1
    %1020 = vmatpush.bf16.msra.mxu0 %v726
    %1021 = vmatpush.bf16.msra.mxu0 %v722
    %1022 = vmatpush.bf16.msra.mxu0 %v718
    %1023 = vmatpush.bf16.msra.mxu0 %v714
    %1024 = vmatpush.bf16.msra.mxu0 %v710
    %1025 = vmatpush.bf16.msra.mxu0 %v706
    %1026 = vmatpush.bf16.msra.mxu0 %v702
    %1027 = vmatpush.bf16.msra.mxu0 %v698
    %1028 = vmatmul.bf16.gmra.mxu0 %v1018
    %v1029 = vpop.f32.mrf.mxu0
    %v1030 = vadd.f32 0.0, %v1029
    %v1031 = vpop.f32.mrf.mxu0
    %1032 = vdwg.mxu0
    %1033 = vmatpush.bf16.msra.mxu0 %v727
    %1034 = vmatpush.bf16.msra.mxu0 %v723
    %1035 = vmatpush.bf16.msra.mxu0 %v719
    %1036 = vmatpush.bf16.msra.mxu0 %v715
    %1037 = vmatpush.bf16.msra.mxu0 %v711
    %1038 = vmatpush.bf16.msra.mxu0 %v707
    %1039 = vmatpush.bf16.msra.mxu0 %v703
    %1040 = vmatpush.bf16.msra.mxu0 %v699
    %1041 = vmatmul.bf16.gmra.mxu0 %v1018
    %v1042 = vpop.f32.mrf.mxu0
    %v1043 = vadd.f32 0.0, %v1042
    %v1044 = vpop.f32.mrf.mxu0
    %1045 = vdwg.mxu0
    %1046 = vmatpush.bf16.msra.mxu0 %v728
    %1047 = vmatpush.bf16.msra.mxu0 %v724
    %1048 = vmatpush.bf16.msra.mxu0 %v720
    %1049 = vmatpush.bf16.msra.mxu0 %v716
    %1050 = vmatpush.bf16.msra.mxu0 %v712
    %1051 = vmatpush.bf16.msra.mxu0 %v708
    %1052 = vmatpush.bf16.msra.mxu0 %v704
    %1053 = vmatpush.bf16.msra.mxu0 %v700
    %1054 = vmatmul.bf16.gmra.mxu0 %v1018
    %v1055 = vpop.f32.mrf.mxu0
    %v1056 = vadd.f32 0.0, %v1055
    %v1057 = vpop.f32.mrf.mxu0
    %1058 = vdwg.mxu0
    %1059 = vmatpush.bf16.msra.mxu0 %v729
    %1060 = vmatpush.bf16.msra.mxu0 %v725
    %1061 = vmatpush.bf16.msra.mxu0 %v721
    %1062 = vmatpush.bf16.msra.mxu0 %v717
    %1063 = vmatpush.bf16.msra.mxu0 %v713
    %1064 = vmatpush.bf16.msra.mxu0 %v709
    %1065 = vmatpush.bf16.msra.mxu0 %v705
    %1066 = vmatpush.bf16.msra.mxu0 %v701
    %1067 = vmatmul.bf16.gmra.mxu0 %v1018
    %v1068 = vpop.f32.mrf.mxu0
    %v1069 = vadd.f32 0.0, %v1068
    %v1070 = vpop.f32.mrf.mxu0
    %1071 = vdwg.mxu0
    %v1076 = vrot.slane %v1030, 4
    %v1077 = vrot.slane %v1043, 4
    %v1078 = vrot.slane %v1056, 4
    %v1079 = vrot.slane %v1069, 4
    %v1084 = vadd.f32 %v482, %v1076
    %v1085 = vadd.f32 %v510, %v1077
    %v1086 = vadd.f32 %v538, %v1078
    %v1087 = vadd.f32 %v566, %v1079
    %v1088 = vxor.u32 %v1084, 2147483648
    %v1089 = vmul.f32 %v1088, 1.442695
    %v1090 = vpow.pop %v1089
    %v1091 = vadd.f32 %v1090, 1.0
    %v1092 = vrcp.pop %v1091
    %v1093 = vmul.f32 %v1091, %v1092
    %v1094 = vsub.f32 1.0, %v1093
    %v1095 = vmul.f32 %v1092, %v1094
    %v1096 = vadd.f32 %v1092, %v1095
    %vm1097 = vweird.f32 %v1091
    %vm1098 = vweird.f32 %v1092
    %vm1099 = vmor %vm1097, %vm1098
    %v1100 = vsel %vm1099, %v1092, %v1096
    %v1101 = vand.u32 2147483647, %v1091
    %vm1102 = vcmp.eq.f32.partialorder %v1101, 8.507059e+37
    %v1103 = vand.u32 %v1091, 2147483648
    %v1104 = vor.u32 1.1754944e-38, %v1103
    %v1105 = vsel %vm1102, %v1104, %v1100
    %v1106 = vmul.f32 1.0, %v1105
    %v1107 = vxor.u32 %v1085, 2147483648
    %v1108 = vmul.f32 %v1107, 1.442695
    %v1109 = vpow.pop %v1108
    %v1110 = vadd.f32 %v1109, 1.0
    %v1111 = vrcp.pop %v1110
    %v1112 = vmul.f32 %v1110, %v1111
    %v1113 = vsub.f32 1.0, %v1112
    %v1114 = vmul.f32 %v1111, %v1113
    %v1115 = vadd.f32 %v1111, %v1114
    %vm1116 = vweird.f32 %v1110
    %vm1117 = vweird.f32 %v1111
    %vm1118 = vmor %vm1116, %vm1117
    %v1119 = vsel %vm1118, %v1111, %v1115
    %v1120 = vand.u32 2147483647, %v1110
    %vm1121 = vcmp.eq.f32.partialorder %v1120, 8.507059e+37
    %v1122 = vand.u32 %v1110, 2147483648
    %v1123 = vor.u32 1.1754944e-38, %v1122
    %v1124 = vsel %vm1121, %v1123, %v1119
    %v1125 = vmul.f32 1.0, %v1124
    %v1126 = vtanh.pop %v1086
    %v1127 = vxor.u32 %v1087, 2147483648
    %v1128 = vmul.f32 %v1127, 1.442695
    %v1129 = vpow.pop %v1128
    %v1130 = vadd.f32 %v1129, 1.0
    %v1131 = vrcp.pop %v1130
    %v1132 = vmul.f32 %v1130, %v1131
    %v1133 = vsub.f32 1.0, %v1132
    %v1134 = vmul.f32 %v1131, %v1133
    %v1135 = vadd.f32 %v1131, %v1134
    %vm1136 = vweird.f32 %v1130
    %vm1137 = vweird.f32 %v1131
    %vm1138 = vmor %vm1136, %vm1137
    %v1139 = vsel %vm1138, %v1131, %v1135
    %v1140 = vand.u32 2147483647, %v1130
    %vm1141 = vcmp.eq.f32.partialorder %v1140, 8.507059e+37
    %v1142 = vand.u32 %v1130, 2147483648
    %v1143 = vor.u32 1.1754944e-38, %v1142
    %v1144 = vsel %vm1141, %v1143, %v1139
    %v1145 = vmul.f32 1.0, %v1144
    %v1147 = vrot.slane %v1013, 6
    %v1149 = vmul.f32 %v1125, %v1147
    %v1150 = vmul.f32 %v1106, %v1126
    %v1151 = vadd.f32 %v1149, %v1150
    %v1152 = vtanh.pop %v1151
    %v1153 = vmul.f32 %v1145, %v1152
    %v1154 = vpack.c.bf16 %v1153, %v1153
    %v1156 = vrot.slane %v1154, 2
    %1158 = vmatpush.bf16.msra.mxu0 %v726
    %1159 = vmatpush.bf16.msra.mxu0 %v722
    %1160 = vmatpush.bf16.msra.mxu0 %v718
    %1161 = vmatpush.bf16.msra.mxu0 %v714
    %1162 = vmatpush.bf16.msra.mxu0 %v710
    %1163 = vmatpush.bf16.msra.mxu0 %v706
    %1164 = vmatpush.bf16.msra.mxu0 %v702
    %1165 = vmatpush.bf16.msra.mxu0 %v698
    %1166 = vmatmul.bf16.gmra.mxu0 %v1156
    %v1167 = vpop.f32.mrf.mxu0
    %v1168 = vadd.f32 0.0, %v1167
    %v1169 = vpop.f32.mrf.mxu0
    %1170 = vdwg.mxu0
    %1171 = vmatpush.bf16.msra.mxu0 %v727
    %1172 = vmatpush.bf16.msra.mxu0 %v723
    %1173 = vmatpush.bf16.msra.mxu0 %v719
    %1174 = vmatpush.bf16.msra.mxu0 %v715
    %1175 = vmatpush.bf16.msra.mxu0 %v711
    %1176 = vmatpush.bf16.msra.mxu0 %v707
    %1177 = vmatpush.bf16.msra.mxu0 %v703
    %1178 = vmatpush.bf16.msra.mxu0 %v699
    %1179 = vmatmul.bf16.gmra.mxu0 %v1156
    %v1180 = vpop.f32.mrf.mxu0
    %v1181 = vadd.f32 0.0, %v1180
    %v1182 = vpop.f32.mrf.mxu0
    %1183 = vdwg.mxu0
    %1184 = vmatpush.bf16.msra.mxu0 %v728
    %1185 = vmatpush.bf16.msra.mxu0 %v724
    %1186 = vmatpush.bf16.msra.mxu0 %v720
    %1187 = vmatpush.bf16.msra.mxu0 %v716
    %1188 = vmatpush.bf16.msra.mxu0 %v712
    %1189 = vmatpush.bf16.msra.mxu0 %v708
    %1190 = vmatpush.bf16.msra.mxu0 %v704
    %1191 = vmatpush.bf16.msra.mxu0 %v700
    %1192 = vmatmul.bf16.gmra.mxu0 %v1156
    %v1193 = vpop.f32.mrf.mxu0
    %v1194 = vadd.f32 0.0, %v1193
    %v1195 = vpop.f32.mrf.mxu0
    %1196 = vdwg.mxu0
    %1197 = vmatpush.bf16.msra.mxu0 %v729
    %1198 = vmatpush.bf16.msra.mxu0 %v725
    %1199 = vmatpush.bf16.msra.mxu0 %v721
    %1200 = vmatpush.bf16.msra.mxu0 %v717
    %1201 = vmatpush.bf16.msra.mxu0 %v713
    %1202 = vmatpush.bf16.msra.mxu0 %v709
    %1203 = vmatpush.bf16.msra.mxu0 %v705
    %1204 = vmatpush.bf16.msra.mxu0 %v701
    %1205 = vmatmul.bf16.gmra.mxu0 %v1156
    %v1206 = vpop.f32.mrf.mxu0
    %v1207 = vadd.f32 0.0, %v1206
    %v1208 = vpop.f32.mrf.mxu0
    %1209 = vdwg.mxu0
    %v1214 = vrot.slane %v1168, 2
    %v1215 = vrot.slane %v1181, 2
    %v1216 = vrot.slane %v1194, 2
    %v1217 = vrot.slane %v1207, 2
    %v1222 = vadd.f32 %v482, %v1214
    %v1223 = vadd.f32 %v510, %v1215
    %v1224 = vadd.f32 %v538, %v1216
    %v1225 = vadd.f32 %v566, %v1217
    %v1226 = vxor.u32 %v1222, 2147483648
    %v1227 = vmul.f32 %v1226, 1.442695
    %v1228 = vpow.pop %v1227
    %v1229 = vadd.f32 %v1228, 1.0
    %v1230 = vrcp.pop %v1229
    %v1231 = vmul.f32 %v1229, %v1230
    %v1232 = vsub.f32 1.0, %v1231
    %v1233 = vmul.f32 %v1230, %v1232
    %v1234 = vadd.f32 %v1230, %v1233
    %vm1235 = vweird.f32 %v1229
    %vm1236 = vweird.f32 %v1230
    %vm1237 = vmor %vm1235, %vm1236
    %v1238 = vsel %vm1237, %v1230, %v1234
    %v1239 = vand.u32 2147483647, %v1229
    %vm1240 = vcmp.eq.f32.partialorder %v1239, 8.507059e+37
    %v1241 = vand.u32 %v1229, 2147483648
    %v1242 = vor.u32 1.1754944e-38, %v1241
    %v1243 = vsel %vm1240, %v1242, %v1238
    %v1244 = vmul.f32 1.0, %v1243
    %v1245 = vxor.u32 %v1223, 2147483648
    %v1246 = vmul.f32 %v1245, 1.442695
    %v1247 = vpow.pop %v1246
    %v1248 = vadd.f32 %v1247, 1.0
    %v1249 = vrcp.pop %v1248
    %v1250 = vmul.f32 %v1248, %v1249
    %v1251 = vsub.f32 1.0, %v1250
    %v1252 = vmul.f32 %v1249, %v1251
    %v1253 = vadd.f32 %v1249, %v1252
    %vm1254 = vweird.f32 %v1248
    %vm1255 = vweird.f32 %v1249
    %vm1256 = vmor %vm1254, %vm1255
    %v1257 = vsel %vm1256, %v1249, %v1253
    %v1258 = vand.u32 2147483647, %v1248
    %vm1259 = vcmp.eq.f32.partialorder %v1258, 8.507059e+37
    %v1260 = vand.u32 %v1248, 2147483648
    %v1261 = vor.u32 1.1754944e-38, %v1260
    %v1262 = vsel %vm1259, %v1261, %v1257
    %v1263 = vmul.f32 1.0, %v1262
    %v1264 = vtanh.pop %v1224
    %v1265 = vxor.u32 %v1225, 2147483648
    %v1266 = vmul.f32 %v1265, 1.442695
    %v1267 = vpow.pop %v1266
    %v1268 = vadd.f32 %v1267, 1.0
    %v1269 = vrcp.pop %v1268
    %v1270 = vmul.f32 %v1268, %v1269
    %v1271 = vsub.f32 1.0, %v1270
    %v1272 = vmul.f32 %v1269, %v1271
    %v1273 = vadd.f32 %v1269, %v1272
    %vm1274 = vweird.f32 %v1268
    %vm1275 = vweird.f32 %v1269
    %vm1276 = vmor %vm1274, %vm1275
    %v1277 = vsel %vm1276, %v1269, %v1273
    %v1278 = vand.u32 2147483647, %v1268
    %vm1279 = vcmp.eq.f32.partialorder %v1278, 8.507059e+37
    %v1280 = vand.u32 %v1268, 2147483648
    %v1281 = vor.u32 1.1754944e-38, %v1280
    %v1282 = vsel %vm1279, %v1281, %v1277
    %v1283 = vmul.f32 1.0, %v1282
    %v1285 = vrot.slane %v1151, 6
    %v1287 = vmul.f32 %v1263, %v1285
    %v1288 = vmul.f32 %v1244, %v1264
    %v1289 = vadd.f32 %v1287, %v1288
    %v1290 = vtanh.pop %v1289
    %v1291 = vmul.f32 %v1283, %v1290
    %v1292 = vpack.c.bf16 %v1291, %v1291
    %v1294 = vrot.slane %v1292, 3
    %1296 = vmatpush.bf16.msra.mxu0 %v726
    %1297 = vmatpush.bf16.msra.mxu0 %v722
    %1298 = vmatpush.bf16.msra.mxu0 %v718
    %1299 = vmatpush.bf16.msra.mxu0 %v714
    %1300 = vmatpush.bf16.msra.mxu0 %v710
    %1301 = vmatpush.bf16.msra.mxu0 %v706
    %1302 = vmatpush.bf16.msra.mxu0 %v702
    %1303 = vmatpush.bf16.msra.mxu0 %v698
    %1304 = vmatmul.bf16.gmra.mxu0 %v1294
    %v1305 = vpop.f32.mrf.mxu0
    %v1306 = vadd.f32 0.0, %v1305
    %v1307 = vpop.f32.mrf.mxu0
    %1308 = vdwg.mxu0
    %1309 = vmatpush.bf16.msra.mxu0 %v727
    %1310 = vmatpush.bf16.msra.mxu0 %v723
    %1311 = vmatpush.bf16.msra.mxu0 %v719
    %1312 = vmatpush.bf16.msra.mxu0 %v715
    %1313 = vmatpush.bf16.msra.mxu0 %v711
    %1314 = vmatpush.bf16.msra.mxu0 %v707
    %1315 = vmatpush.bf16.msra.mxu0 %v703
    %1316 = vmatpush.bf16.msra.mxu0 %v699
    %1317 = vmatmul.bf16.gmra.mxu0 %v1294
    %v1318 = vpop.f32.mrf.mxu0
    %v1319 = vadd.f32 0.0, %v1318
    %v1320 = vpop.f32.mrf.mxu0
    %1321 = vdwg.mxu0
    %1322 = vmatpush.bf16.msra.mxu0 %v728
    %1323 = vmatpush.bf16.msra.mxu0 %v724
    %1324 = vmatpush.bf16.msra.mxu0 %v720
    %1325 = vmatpush.bf16.msra.mxu0 %v716
    %1326 = vmatpush.bf16.msra.mxu0 %v712
    %1327 = vmatpush.bf16.msra.mxu0 %v708
    %1328 = vmatpush.bf16.msra.mxu0 %v704
    %1329 = vmatpush.bf16.msra.mxu0 %v700
    %1330 = vmatmul.bf16.gmra.mxu0 %v1294
    %v1331 = vpop.f32.mrf.mxu0
    %v1332 = vadd.f32 0.0, %v1331
    %v1333 = vpop.f32.mrf.mxu0
    %1334 = vdwg.mxu0
    %1335 = vmatpush.bf16.msra.mxu0 %v729
    %1336 = vmatpush.bf16.msra.mxu0 %v725
    %1337 = vmatpush.bf16.msra.mxu0 %v721
    %1338 = vmatpush.bf16.msra.mxu0 %v717
    %1339 = vmatpush.bf16.msra.mxu0 %v713
    %1340 = vmatpush.bf16.msra.mxu0 %v709
    %1341 = vmatpush.bf16.msra.mxu0 %v705
    %1342 = vmatpush.bf16.msra.mxu0 %v701
    %1343 = vmatmul.bf16.gmra.mxu0 %v1294
    %v1344 = vpop.f32.mrf.mxu0
    %v1345 = vadd.f32 0.0, %v1344
    %v1346 = vpop.f32.mrf.mxu0
    %1347 = vdwg.mxu0
    %v1348 = vadd.f32 %v484, %v1306
    %v1349 = vadd.f32 %v512, %v1319
    %v1350 = vadd.f32 %v540, %v1332
    %v1351 = vadd.f32 %v568, %v1345
    %v1352 = vxor.u32 %v1348, 2147483648
    %v1353 = vmul.f32 %v1352, 1.442695
    %v1354 = vpow.pop %v1353
    %v1355 = vadd.f32 %v1354, 1.0
    %v1356 = vrcp.pop %v1355
    %v1357 = vmul.f32 %v1355, %v1356
    %v1358 = vsub.f32 1.0, %v1357
    %v1359 = vmul.f32 %v1356, %v1358
    %v1360 = vadd.f32 %v1356, %v1359
    %vm1361 = vweird.f32 %v1355
    %vm1362 = vweird.f32 %v1356
    %vm1363 = vmor %vm1361, %vm1362
    %v1364 = vsel %vm1363, %v1356, %v1360
    %v1365 = vand.u32 2147483647, %v1355
    %vm1366 = vcmp.eq.f32.partialorder %v1365, 8.507059e+37
    %v1367 = vand.u32 %v1355, 2147483648
    %v1368 = vor.u32 1.1754944e-38, %v1367
    %v1369 = vsel %vm1366, %v1368, %v1364
    %v1370 = vmul.f32 1.0, %v1369
    %v1371 = vxor.u32 %v1349, 2147483648
    %v1372 = vmul.f32 %v1371, 1.442695
    %v1373 = vpow.pop %v1372
    %v1374 = vadd.f32 %v1373, 1.0
    %v1375 = vrcp.pop %v1374
    %v1376 = vmul.f32 %v1374, %v1375
    %v1377 = vsub.f32 1.0, %v1376
    %v1378 = vmul.f32 %v1375, %v1377
    %v1379 = vadd.f32 %v1375, %v1378
    %vm1380 = vweird.f32 %v1374
    %vm1381 = vweird.f32 %v1375
    %vm1382 = vmor %vm1380, %vm1381
    %v1383 = vsel %vm1382, %v1375, %v1379
    %v1384 = vand.u32 2147483647, %v1374
    %vm1385 = vcmp.eq.f32.partialorder %v1384, 8.507059e+37
    %v1386 = vand.u32 %v1374, 2147483648
    %v1387 = vor.u32 1.1754944e-38, %v1386
    %v1388 = vsel %vm1385, %v1387, %v1383
    %v1389 = vmul.f32 1.0, %v1388
    %v1390 = vtanh.pop %v1350
    %v1391 = vxor.u32 %v1351, 2147483648
    %v1392 = vmul.f32 %v1391, 1.442695
    %v1393 = vpow.pop %v1392
    %v1394 = vadd.f32 %v1393, 1.0
    %v1395 = vrcp.pop %v1394
    %v1396 = vmul.f32 %v1394, %v1395
    %v1397 = vsub.f32 1.0, %v1396
    %v1398 = vmul.f32 %v1395, %v1397
    %v1399 = vadd.f32 %v1395, %v1398
    %vm1400 = vweird.f32 %v1394
    %vm1401 = vweird.f32 %v1395
    %vm1402 = vmor %vm1400, %vm1401
    %v1403 = vsel %vm1402, %v1395, %v1399
    %v1404 = vand.u32 2147483647, %v1394
    %vm1405 = vcmp.eq.f32.partialorder %v1404, 8.507059e+37
    %v1406 = vand.u32 %v1394, 2147483648
    %v1407 = vor.u32 1.1754944e-38, %v1406
    %v1408 = vsel %vm1405, %v1407, %v1403
    %v1409 = vmul.f32 1.0, %v1408
    %v1411 = vrot.slane %v1289, 6
    %v1413 = vmul.f32 %v1389, %v1411
    %v1414 = vmul.f32 %v1370, %v1390
    %v1415 = vadd.f32 %v1413, %v1414
    %v1416 = vtanh.pop %v1415
    %v1417 = vmul.f32 %v1409, %v1416
    %v1418 = vpack.c.bf16 %v1417, %v1417
    %1419 = vmatpush.bf16.msra.mxu0 %v726
    %1420 = vmatpush.bf16.msra.mxu0 %v722
    %1421 = vmatpush.bf16.msra.mxu0 %v718
    %1422 = vmatpush.bf16.msra.mxu0 %v714
    %1423 = vmatpush.bf16.msra.mxu0 %v710
    %1424 = vmatpush.bf16.msra.mxu0 %v706
    %1425 = vmatpush.bf16.msra.mxu0 %v702
    %1426 = vmatpush.bf16.msra.mxu0 %v698
    %1427 = vmatmul.bf16.gmra.mxu0 %v1418
    %v1428 = vpop.f32.mrf.mxu0
    %v1429 = vadd.f32 0.0, %v1428
    %v1430 = vpop.f32.mrf.mxu0
    %1431 = vdwg.mxu0
    %1432 = vmatpush.bf16.msra.mxu0 %v727
    %1433 = vmatpush.bf16.msra.mxu0 %v723
    %1434 = vmatpush.bf16.msra.mxu0 %v719
    %1435 = vmatpush.bf16.msra.mxu0 %v715
    %1436 = vmatpush.bf16.msra.mxu0 %v711
    %1437 = vmatpush.bf16.msra.mxu0 %v707
    %1438 = vmatpush.bf16.msra.mxu0 %v703
    %1439 = vmatpush.bf16.msra.mxu0 %v699
    %1440 = vmatmul.bf16.gmra.mxu0 %v1418
    %v1441 = vpop.f32.mrf.mxu0
    %v1442 = vadd.f32 0.0, %v1441
    %v1443 = vpop.f32.mrf.mxu0
    %1444 = vdwg.mxu0
    %1445 = vmatpush.bf16.msra.mxu0 %v728
    %1446 = vmatpush.bf16.msra.mxu0 %v724
    %1447 = vmatpush.bf16.msra.mxu0 %v720
    %1448 = vmatpush.bf16.msra.mxu0 %v716
    %1449 = vmatpush.bf16.msra.mxu0 %v712
    %1450 = vmatpush.bf16.msra.mxu0 %v708
    %1451 = vmatpush.bf16.msra.mxu0 %v704
    %1452 = vmatpush.bf16.msra.mxu0 %v700
    %1453 = vmatmul.bf16.gmra.mxu0 %v1418
    %v1454 = vpop.f32.mrf.mxu0
    %v1455 = vadd.f32 0.0, %v1454
    %v1456 = vpop.f32.mrf.mxu0
    %1457 = vdwg.mxu0
    %1458 = vmatpush.bf16.msra.mxu0 %v729
    %1459 = vmatpush.bf16.msra.mxu0 %v725
    %1460 = vmatpush.bf16.msra.mxu0 %v721
    %1461 = vmatpush.bf16.msra.mxu0 %v717
    %1462 = vmatpush.bf16.msra.mxu0 %v713
    %1463 = vmatpush.bf16.msra.mxu0 %v709
    %1464 = vmatpush.bf16.msra.mxu0 %v705
    %1465 = vmatpush.bf16.msra.mxu0 %v701
    %1466 = vmatmul.bf16.gmra.mxu0 %v1418
    %v1467 = vpop.f32.mrf.mxu0
    %v1468 = vadd.f32 0.0, %v1467
    %v1469 = vpop.f32.mrf.mxu0
    %1470 = vdwg.mxu0
    %v1475 = vrot.slane %v1429, 6
    %v1476 = vrot.slane %v1442, 6
    %v1477 = vrot.slane %v1455, 6
    %v1478 = vrot.slane %v1468, 6
    %v1483 = vadd.f32 %v484, %v1475
    %v1484 = vadd.f32 %v512, %v1476
    %v1485 = vadd.f32 %v540, %v1477
    %v1486 = vadd.f32 %v568, %v1478
    %v1487 = vxor.u32 %v1483, 2147483648
    %v1488 = vmul.f32 %v1487, 1.442695
    %v1489 = vpow.pop %v1488
    %v1490 = vadd.f32 %v1489, 1.0
    %v1491 = vrcp.pop %v1490
    %v1492 = vmul.f32 %v1490, %v1491
    %v1493 = vsub.f32 1.0, %v1492
    %v1494 = vmul.f32 %v1491, %v1493
    %v1495 = vadd.f32 %v1491, %v1494
    %vm1496 = vweird.f32 %v1490
    %vm1497 = vweird.f32 %v1491
    %vm1498 = vmor %vm1496, %vm1497
    %v1499 = vsel %vm1498, %v1491, %v1495
    %v1500 = vand.u32 2147483647, %v1490
    %vm1501 = vcmp.eq.f32.partialorder %v1500, 8.507059e+37
    %v1502 = vand.u32 %v1490, 2147483648
    %v1503 = vor.u32 1.1754944e-38, %v1502
    %v1504 = vsel %vm1501, %v1503, %v1499
    %v1505 = vmul.f32 1.0, %v1504
    %v1506 = vxor.u32 %v1484, 2147483648
    %v1507 = vmul.f32 %v1506, 1.442695
    %v1508 = vpow.pop %v1507
    %v1509 = vadd.f32 %v1508, 1.0
    %v1510 = vrcp.pop %v1509
    %v1511 = vmul.f32 %v1509, %v1510
    %v1512 = vsub.f32 1.0, %v1511
    %v1513 = vmul.f32 %v1510, %v1512
    %v1514 = vadd.f32 %v1510, %v1513
    %vm1515 = vweird.f32 %v1509
    %vm1516 = vweird.f32 %v1510
    %vm1517 = vmor %vm1515, %vm1516
    %v1518 = vsel %vm1517, %v1510, %v1514
    %v1519 = vand.u32 2147483647, %v1509
    %vm1520 = vcmp.eq.f32.partialorder %v1519, 8.507059e+37
    %v1521 = vand.u32 %v1509, 2147483648
    %v1522 = vor.u32 1.1754944e-38, %v1521
    %v1523 = vsel %vm1520, %v1522, %v1518
    %v1524 = vmul.f32 1.0, %v1523
    %v1525 = vtanh.pop %v1485
    %v1526 = vxor.u32 %v1486, 2147483648
    %v1527 = vmul.f32 %v1526, 1.442695
    %v1528 = vpow.pop %v1527
    %v1529 = vadd.f32 %v1528, 1.0
    %v1530 = vrcp.pop %v1529
    %v1531 = vmul.f32 %v1529, %v1530
    %v1532 = vsub.f32 1.0, %v1531
    %v1533 = vmul.f32 %v1530, %v1532
    %v1534 = vadd.f32 %v1530, %v1533
    %vm1535 = vweird.f32 %v1529
    %vm1536 = vweird.f32 %v1530
    %vm1537 = vmor %vm1535, %vm1536
    %v1538 = vsel %vm1537, %v1530, %v1534
    %v1539 = vand.u32 2147483647, %v1529
    %vm1540 = vcmp.eq.f32.partialorder %v1539, 8.507059e+37
    %v1541 = vand.u32 %v1529, 2147483648
    %v1542 = vor.u32 1.1754944e-38, %v1541
    %v1543 = vsel %vm1540, %v1542, %v1538
    %v1544 = vmul.f32 1.0, %v1543
    %v1546 = vrot.slane %v1415, 6
    %v1548 = vmul.f32 %v1524, %v1546
    %v1549 = vmul.f32 %v1505, %v1525
    %v1550 = vadd.f32 %v1548, %v1549
    %v1551 = vtanh.pop %v1550
    %v1552 = vmul.f32 %v1544, %v1551
    %v1553 = vpack.c.bf16 %v1552, %v1552
    %v1555 = vrot.slane %v1553, 1
    %1557 = vmatpush.bf16.msra.mxu0 %v726
    %1558 = vmatpush.bf16.msra.mxu0 %v722
    %1559 = vmatpush.bf16.msra.mxu0 %v718
    %1560 = vmatpush.bf16.msra.mxu0 %v714
    %1561 = vmatpush.bf16.msra.mxu0 %v710
    %1562 = vmatpush.bf16.msra.mxu0 %v706
    %1563 = vmatpush.bf16.msra.mxu0 %v702
    %1564 = vmatpush.bf16.msra.mxu0 %v698
    %1565 = vmatmul.bf16.gmra.mxu0 %v1555
    %v1566 = vpop.f32.mrf.mxu0
    %v1567 = vadd.f32 0.0, %v1566
    %v1568 = vpop.f32.mrf.mxu0
    %1569 = vdwg.mxu0
    %1570 = vmatpush.bf16.msra.mxu0 %v727
    %1571 = vmatpush.bf16.msra.mxu0 %v723
    %1572 = vmatpush.bf16.msra.mxu0 %v719
    %1573 = vmatpush.bf16.msra.mxu0 %v715
    %1574 = vmatpush.bf16.msra.mxu0 %v711
    %1575 = vmatpush.bf16.msra.mxu0 %v707
    %1576 = vmatpush.bf16.msra.mxu0 %v703
    %1577 = vmatpush.bf16.msra.mxu0 %v699
    %1578 = vmatmul.bf16.gmra.mxu0 %v1555
    %v1579 = vpop.f32.mrf.mxu0
    %v1580 = vadd.f32 0.0, %v1579
    %v1581 = vpop.f32.mrf.mxu0
    %1582 = vdwg.mxu0
    %1583 = vmatpush.bf16.msra.mxu0 %v728
    %1584 = vmatpush.bf16.msra.mxu0 %v724
    %1585 = vmatpush.bf16.msra.mxu0 %v720
    %1586 = vmatpush.bf16.msra.mxu0 %v716
    %1587 = vmatpush.bf16.msra.mxu0 %v712
    %1588 = vmatpush.bf16.msra.mxu0 %v708
    %1589 = vmatpush.bf16.msra.mxu0 %v704
    %1590 = vmatpush.bf16.msra.mxu0 %v700
    %1591 = vmatmul.bf16.gmra.mxu0 %v1555
    %v1592 = vpop.f32.mrf.mxu0
    %v1593 = vadd.f32 0.0, %v1592
    %v1594 = vpop.f32.mrf.mxu0
    %1595 = vdwg.mxu0
    %1596 = vmatpush.bf16.msra.mxu0 %v729
    %1597 = vmatpush.bf16.msra.mxu0 %v725
    %1598 = vmatpush.bf16.msra.mxu0 %v721
    %1599 = vmatpush.bf16.msra.mxu0 %v717
    %1600 = vmatpush.bf16.msra.mxu0 %v713
    %1601 = vmatpush.bf16.msra.mxu0 %v709
    %1602 = vmatpush.bf16.msra.mxu0 %v705
    %1603 = vmatpush.bf16.msra.mxu0 %v701
    %1604 = vmatmul.bf16.gmra.mxu0 %v1555
    %v1605 = vpop.f32.mrf.mxu0
    %v1606 = vadd.f32 0.0, %v1605
    %v1607 = vpop.f32.mrf.mxu0
    %1608 = vdwg.mxu0
    %v1613 = vrot.slane %v1567, 4
    %v1614 = vrot.slane %v1580, 4
    %v1615 = vrot.slane %v1593, 4
    %v1616 = vrot.slane %v1606, 4
    %v1621 = vadd.f32 %v484, %v1613
    %v1622 = vadd.f32 %v512, %v1614
    %v1623 = vadd.f32 %v540, %v1615
    %v1624 = vadd.f32 %v568, %v1616
    %v1625 = vxor.u32 %v1621, 2147483648
    %v1626 = vmul.f32 %v1625, 1.442695
    %v1627 = vpow.pop %v1626
    %v1628 = vadd.f32 %v1627, 1.0
    %v1629 = vrcp.pop %v1628
    %v1630 = vmul.f32 %v1628, %v1629
    %v1631 = vsub.f32 1.0, %v1630
    %v1632 = vmul.f32 %v1629, %v1631
    %v1633 = vadd.f32 %v1629, %v1632
    %vm1634 = vweird.f32 %v1628
    %vm1635 = vweird.f32 %v1629
    %vm1636 = vmor %vm1634, %vm1635
    %v1637 = vsel %vm1636, %v1629, %v1633
    %v1638 = vand.u32 2147483647, %v1628
    %vm1639 = vcmp.eq.f32.partialorder %v1638, 8.507059e+37
    %v1640 = vand.u32 %v1628, 2147483648
    %v1641 = vor.u32 1.1754944e-38, %v1640
    %v1642 = vsel %vm1639, %v1641, %v1637
    %v1643 = vmul.f32 1.0, %v1642
    %v1644 = vxor.u32 %v1622, 2147483648
    %v1645 = vmul.f32 %v1644, 1.442695
    %v1646 = vpow.pop %v1645
    %v1647 = vadd.f32 %v1646, 1.0
    %v1648 = vrcp.pop %v1647
    %v1649 = vmul.f32 %v1647, %v1648
    %v1650 = vsub.f32 1.0, %v1649
    %v1651 = vmul.f32 %v1648, %v1650
    %v1652 = vadd.f32 %v1648, %v1651
    %vm1653 = vweird.f32 %v1647
    %vm1654 = vweird.f32 %v1648
    %vm1655 = vmor %vm1653, %vm1654
    %v1656 = vsel %vm1655, %v1648, %v1652
    %v1657 = vand.u32 2147483647, %v1647
    %vm1658 = vcmp.eq.f32.partialorder %v1657, 8.507059e+37
    %v1659 = vand.u32 %v1647, 2147483648
    %v1660 = vor.u32 1.1754944e-38, %v1659
    %v1661 = vsel %vm1658, %v1660, %v1656
    %v1662 = vmul.f32 1.0, %v1661
    %v1663 = vtanh.pop %v1623
    %v1664 = vxor.u32 %v1624, 2147483648
    %v1665 = vmul.f32 %v1664, 1.442695
    %v1666 = vpow.pop %v1665
    %v1667 = vadd.f32 %v1666, 1.0
    %v1668 = vrcp.pop %v1667
    %v1669 = vmul.f32 %v1667, %v1668
    %v1670 = vsub.f32 1.0, %v1669
    %v1671 = vmul.f32 %v1668, %v1670
    %v1672 = vadd.f32 %v1668, %v1671
    %vm1673 = vweird.f32 %v1667
    %vm1674 = vweird.f32 %v1668
    %vm1675 = vmor %vm1673, %vm1674
    %v1676 = vsel %vm1675, %v1668, %v1672
    %v1677 = vand.u32 2147483647, %v1667
    %vm1678 = vcmp.eq.f32.partialorder %v1677, 8.507059e+37
    %v1679 = vand.u32 %v1667, 2147483648
    %v1680 = vor.u32 1.1754944e-38, %v1679
    %v1681 = vsel %vm1678, %v1680, %v1676
    %v1682 = vmul.f32 1.0, %v1681
    %v1684 = vrot.slane %v1550, 6
    %v1686 = vmul.f32 %v1662, %v1684
    %v1687 = vmul.f32 %v1643, %v1663
    %v1688 = vadd.f32 %v1686, %v1687
    %v1689 = vtanh.pop %v1688
    %v1690 = vmul.f32 %v1682, %v1689
    %v1691 = vpack.c.bf16 %v1690, %v1690
    %v1693 = vrot.slane %v1691, 2
    %1695 = vmatpush.bf16.msra.mxu0 %v726
    %1696 = vmatpush.bf16.msra.mxu0 %v722
    %1697 = vmatpush.bf16.msra.mxu0 %v718
    %1698 = vmatpush.bf16.msra.mxu0 %v714
    %1699 = vmatpush.bf16.msra.mxu0 %v710
    %1700 = vmatpush.bf16.msra.mxu0 %v706
    %1701 = vmatpush.bf16.msra.mxu0 %v702
    %1702 = vmatpush.bf16.msra.mxu0 %v698
    %1703 = vmatmul.bf16.gmra.mxu0 %v1693
    %v1704 = vpop.f32.mrf.mxu0
    %v1705 = vadd.f32 0.0, %v1704
    %v1706 = vpop.f32.mrf.mxu0
    %1707 = vdwg.mxu0
    %1708 = vmatpush.bf16.msra.mxu0 %v727
    %1709 = vmatpush.bf16.msra.mxu0 %v723
    %1710 = vmatpush.bf16.msra.mxu0 %v719
    %1711 = vmatpush.bf16.msra.mxu0 %v715
    %1712 = vmatpush.bf16.msra.mxu0 %v711
    %1713 = vmatpush.bf16.msra.mxu0 %v707
    %1714 = vmatpush.bf16.msra.mxu0 %v703
    %1715 = vmatpush.bf16.msra.mxu0 %v699
    %1716 = vmatmul.bf16.gmra.mxu0 %v1693
    %v1717 = vpop.f32.mrf.mxu0
    %v1718 = vadd.f32 0.0, %v1717
    %v1719 = vpop.f32.mrf.mxu0
    %1720 = vdwg.mxu0
    %1721 = vmatpush.bf16.msra.mxu0 %v728
    %1722 = vmatpush.bf16.msra.mxu0 %v724
    %1723 = vmatpush.bf16.msra.mxu0 %v720
    %1724 = vmatpush.bf16.msra.mxu0 %v716
    %1725 = vmatpush.bf16.msra.mxu0 %v712
    %1726 = vmatpush.bf16.msra.mxu0 %v708
    %1727 = vmatpush.bf16.msra.mxu0 %v704
    %1728 = vmatpush.bf16.msra.mxu0 %v700
    %1729 = vmatmul.bf16.gmra.mxu0 %v1693
    %v1730 = vpop.f32.mrf.mxu0
    %v1731 = vadd.f32 0.0, %v1730
    %v1732 = vpop.f32.mrf.mxu0
    %1733 = vdwg.mxu0
    %1734 = vmatpush.bf16.msra.mxu0 %v729
    %1735 = vmatpush.bf16.msra.mxu0 %v725
    %1736 = vmatpush.bf16.msra.mxu0 %v721
    %1737 = vmatpush.bf16.msra.mxu0 %v717
    %1738 = vmatpush.bf16.msra.mxu0 %v713
    %1739 = vmatpush.bf16.msra.mxu0 %v709
    %1740 = vmatpush.bf16.msra.mxu0 %v705
    %1741 = vmatpush.bf16.msra.mxu0 %v701
    %1742 = vmatmul.bf16.gmra.mxu0 %v1693
    %v1743 = vpop.f32.mrf.mxu0
    %v1744 = vadd.f32 0.0, %v1743
    %v1745 = vpop.f32.mrf.mxu0
    %1746 = vdwg.mxu0
    %v1751 = vrot.slane %v1705, 2
    %v1752 = vrot.slane %v1718, 2
    %v1753 = vrot.slane %v1731, 2
    %v1754 = vrot.slane %v1744, 2
    %v1759 = vadd.f32 %v484, %v1751
    %v1760 = vadd.f32 %v512, %v1752
    %v1761 = vadd.f32 %v540, %v1753
    %v1762 = vadd.f32 %v568, %v1754
    %v1763 = vxor.u32 %v1759, 2147483648
    %v1764 = vmul.f32 %v1763, 1.442695
    %v1765 = vpow.pop %v1764
    %v1766 = vadd.f32 %v1765, 1.0
    %v1767 = vrcp.pop %v1766
    %v1768 = vmul.f32 %v1766, %v1767
    %v1769 = vsub.f32 1.0, %v1768
    %v1770 = vmul.f32 %v1767, %v1769
    %v1771 = vadd.f32 %v1767, %v1770
    %vm1772 = vweird.f32 %v1766
    %vm1773 = vweird.f32 %v1767
    %vm1774 = vmor %vm1772, %vm1773
    %v1775 = vsel %vm1774, %v1767, %v1771
    %v1776 = vand.u32 2147483647, %v1766
    %vm1777 = vcmp.eq.f32.partialorder %v1776, 8.507059e+37
    %v1778 = vand.u32 %v1766, 2147483648
    %v1779 = vor.u32 1.1754944e-38, %v1778
    %v1780 = vsel %vm1777, %v1779, %v1775
    %v1781 = vmul.f32 1.0, %v1780
    %v1782 = vxor.u32 %v1760, 2147483648
    %v1783 = vmul.f32 %v1782, 1.442695
    %v1784 = vpow.pop %v1783
    %v1785 = vadd.f32 %v1784, 1.0
    %v1786 = vrcp.pop %v1785
    %v1787 = vmul.f32 %v1785, %v1786
    %v1788 = vsub.f32 1.0, %v1787
    %v1789 = vmul.f32 %v1786, %v1788
    %v1790 = vadd.f32 %v1786, %v1789
    %vm1791 = vweird.f32 %v1785
    %vm1792 = vweird.f32 %v1786
    %vm1793 = vmor %vm1791, %vm1792
    %v1794 = vsel %vm1793, %v1786, %v1790
    %v1795 = vand.u32 2147483647, %v1785
    %vm1796 = vcmp.eq.f32.partialorder %v1795, 8.507059e+37
    %v1797 = vand.u32 %v1785, 2147483648
    %v1798 = vor.u32 1.1754944e-38, %v1797
    %v1799 = vsel %vm1796, %v1798, %v1794
    %v1800 = vmul.f32 1.0, %v1799
    %v1801 = vtanh.pop %v1761
    %v1802 = vxor.u32 %v1762, 2147483648
    %v1803 = vmul.f32 %v1802, 1.442695
    %v1804 = vpow.pop %v1803
    %v1805 = vadd.f32 %v1804, 1.0
    %v1806 = vrcp.pop %v1805
    %v1807 = vmul.f32 %v1805, %v1806
    %v1808 = vsub.f32 1.0, %v1807
    %v1809 = vmul.f32 %v1806, %v1808
    %v1810 = vadd.f32 %v1806, %v1809
    %vm1811 = vweird.f32 %v1805
    %vm1812 = vweird.f32 %v1806
    %vm1813 = vmor %vm1811, %vm1812
    %v1814 = vsel %vm1813, %v1806, %v1810
    %v1815 = vand.u32 2147483647, %v1805
    %vm1816 = vcmp.eq.f32.partialorder %v1815, 8.507059e+37
    %v1817 = vand.u32 %v1805, 2147483648
    %v1818 = vor.u32 1.1754944e-38, %v1817
    %v1819 = vsel %vm1816, %v1818, %v1814
    %v1820 = vmul.f32 1.0, %v1819
    %v1822 = vrot.slane %v1688, 6
    %v1824 = vmul.f32 %v1800, %v1822
    %v1825 = vmul.f32 %v1781, %v1801
    %v1826 = vadd.f32 %v1824, %v1825
    %v1827 = vtanh.pop %v1826
    %v1828 = vmul.f32 %v1820, %v1827
    %s1829 = smul.u32 4, 61
    %s1830 = smul.u32 %s1829, 4
    %s1831 = sshll.u32 %s1830, 4
    %1832 = dma.done %s98, %s1831
    %v1833 = vld [vmem:[%s1] sm:$0xf]
    %v1834 = vld [vmem:[#allocation3] sm:$0xff]
    %v1835 = vld [vmem:[#allocation3 + $0x8] sm:$0xff]
    %v1836 = vld [vmem:[#allocation3 + $0x10] sm:$0xff]
    %v1837 = vld [vmem:[#allocation3 + $0x18] sm:$0xff]
    %v1838 = vld [vmem:[#allocation3 + $0x20] sm:$0xff]
    %v1839 = vld [vmem:[#allocation3 + $0x28] sm:$0xff]
    %v1840 = vld [vmem:[#allocation3 + $0x30] sm:$0xff]
    %v1841 = vld [vmem:[#allocation3 + $0x38] sm:$0xff]
    %v1842 = vld [vmem:[#allocation3 + $0x40] sm:$0xff]
    %v1843 = vld [vmem:[#allocation3 + $0x48] sm:$0xff]
    %v1844 = vld [vmem:[#allocation3 + $0x50] sm:$0xff]
    %v1845 = vld [vmem:[#allocation3 + $0x58] sm:$0xff]
    %v1846 = vld [vmem:[#allocation3 + $0x60] sm:$0xff]
    %v1847 = vld [vmem:[#allocation3 + $0x68] sm:$0xff]
    %v1848 = vld [vmem:[#allocation3 + $0x70] sm:$0xff]
    %v1849 = vld [vmem:[#allocation3 + $0x78] sm:$0xff]
    %v1850 = vld [vmem:[#allocation3 + $0x80] sm:$0xff]
    %v1851 = vld [vmem:[#allocation3 + $0x88] sm:$0xff]
    %v1852 = vld [vmem:[#allocation3 + $0x90] sm:$0xff]
    %v1853 = vld [vmem:[#allocation3 + $0x98] sm:$0xff]
    %v1854 = vld [vmem:[#allocation3 + $0xa0] sm:$0xff]
    %v1855 = vld [vmem:[#allocation3 + $0xa8] sm:$0xff]
    %v1856 = vld [vmem:[#allocation3 + $0xb0] sm:$0xff]
    %v1857 = vld [vmem:[#allocation3 + $0xb8] sm:$0xff]
    %v1858 = vld [vmem:[#allocation3 + $0xc0] sm:$0xff]
    %v1859 = vld [vmem:[#allocation3 + $0xc8] sm:$0xff]
    %v1860 = vld [vmem:[#allocation3 + $0xd0] sm:$0xff]
    %v1861 = vld [vmem:[#allocation3 + $0xd8] sm:$0xff]
    %v1862 = vld [vmem:[#allocation3 + $0xe0] sm:$0xff]
    %v1863 = vld [vmem:[#allocation3 + $0xe8] sm:$0xff]
    %v1864 = vld [vmem:[#allocation3 + $0xf0] sm:$0xff]
    %v1865 = vld [vmem:[#allocation3 + $0xf8] sm:$0xff]
    %v1866 = vld [vmem:[#allocation3 + $0x100] sm:$0xff]
    %v1867 = vld [vmem:[#allocation3 + $0x108] sm:$0xff]
    %v1868 = vld [vmem:[#allocation3 + $0x110] sm:$0xff]
    %v1869 = vld [vmem:[#allocation3 + $0x118] sm:$0xff]
    %v1870 = vld [vmem:[#allocation3 + $0x120] sm:$0xff]
    %v1871 = vld [vmem:[#allocation3 + $0x128] sm:$0xff]
    %v1872 = vld [vmem:[#allocation3 + $0x130] sm:$0xff]
    %v1873 = vld [vmem:[#allocation3 + $0x138] sm:$0xff]
    %v1874 = vld [vmem:[#allocation3 + $0x140] sm:$0xff]
    %v1875 = vld [vmem:[#allocation3 + $0x148] sm:$0xff]
    %v1876 = vld [vmem:[#allocation3 + $0x150] sm:$0xff]
    %v1877 = vld [vmem:[#allocation3 + $0x158] sm:$0xff]
    %v1878 = vld [vmem:[#allocation3 + $0x160] sm:$0xff]
    %v1879 = vld [vmem:[#allocation3 + $0x168] sm:$0xff]
    %v1880 = vld [vmem:[#allocation3 + $0x170] sm:$0xff]
    %v1881 = vld [vmem:[#allocation3 + $0x178] sm:$0xff]
    %v1882 = vld [vmem:[#allocation3 + $0x180] sm:$0xff]
    %v1883 = vld [vmem:[#allocation3 + $0x188] sm:$0xff]
    %v1884 = vld [vmem:[#allocation3 + $0x190] sm:$0xff]
    %v1885 = vld [vmem:[#allocation3 + $0x198] sm:$0xff]
    %v1886 = vld [vmem:[#allocation3 + $0x1a0] sm:$0xff]
    %v1887 = vld [vmem:[#allocation3 + $0x1a8] sm:$0xff]
    %v1888 = vld [vmem:[#allocation3 + $0x1b0] sm:$0xff]
    %v1889 = vld [vmem:[#allocation3 + $0x1b8] sm:$0xff]
    %v1890 = vld [vmem:[#allocation3 + $0x1c0] sm:$0xff]
    %v1891 = vld [vmem:[#allocation3 + $0x1c8] sm:$0xff]
    %v1892 = vld [vmem:[#allocation3 + $0x1d0] sm:$0xff]
    %v1893 = vld [vmem:[#allocation3 + $0x1d8] sm:$0xff]
    %v1894 = vld [vmem:[#allocation3 + $0x1e0] sm:$0xff]
    %v1895 = vld [vmem:[#allocation3 + $0x1e8] sm:$0xff]
    %v1896 = vld [vmem:[#allocation3 + $0x1f0] sm:$0xff]
    %v1897 = vld [vmem:[#allocation3 + $0x1f8] sm:$0xff]
    %v1898 = vld [vmem:[#allocation3 + $0x200] sm:$0xff]
    %v1899 = vld [vmem:[#allocation3 + $0x208] sm:$0xff]
    %v1900 = vld [vmem:[#allocation3 + $0x210] sm:$0xff]
    %v1901 = vld [vmem:[#allocation3 + $0x218] sm:$0xff]
    %v1902 = vld [vmem:[#allocation3 + $0x220] sm:$0xff]
    %v1903 = vld [vmem:[#allocation3 + $0x228] sm:$0xff]
    %v1904 = vld [vmem:[#allocation3 + $0x230] sm:$0xff]
    %v1905 = vld [vmem:[#allocation3 + $0x238] sm:$0xff]
    %v1906 = vld [vmem:[#allocation3 + $0x240] sm:$0xff]
    %v1907 = vld [vmem:[#allocation3 + $0x248] sm:$0xff]
    %v1908 = vld [vmem:[#allocation3 + $0x250] sm:$0xff]
    %v1909 = vld [vmem:[#allocation3 + $0x258] sm:$0xff]
    %v1910 = vld [vmem:[#allocation3 + $0x260] sm:$0xff]
    %v1911 = vld [vmem:[#allocation3 + $0x268] sm:$0xff]
    %v1912 = vld [vmem:[#allocation3 + $0x270] sm:$0xff]
    %v1913 = vld [vmem:[#allocation3 + $0x278] sm:$0xff]
    %v1914 = vld [vmem:[#allocation3 + $0x280] sm:$0xff]
    %v1915 = vld [vmem:[#allocation3 + $0x288] sm:$0xff]
    %v1916 = vld [vmem:[#allocation3 + $0x290] sm:$0xff]
    %v1917 = vld [vmem:[#allocation3 + $0x298] sm:$0xff]
    %v1918 = vld [vmem:[#allocation3 + $0x2a0] sm:$0xff]
    %v1919 = vld [vmem:[#allocation3 + $0x2a8] sm:$0xff]
    %v1920 = vld [vmem:[#allocation3 + $0x2b0] sm:$0xff]
    %v1921 = vld [vmem:[#allocation3 + $0x2b8] sm:$0xff]
    %v1922 = vld [vmem:[#allocation3 + $0x2c0] sm:$0xff]
    %v1923 = vld [vmem:[#allocation3 + $0x2c8] sm:$0xff]
    %v1924 = vld [vmem:[#allocation3 + $0x2d0] sm:$0xff]
    %v1925 = vld [vmem:[#allocation3 + $0x2d8] sm:$0xff]
    %v1926 = vld [vmem:[#allocation3 + $0x2e0] sm:$0xff]
    %v1927 = vld [vmem:[#allocation3 + $0x2e8] sm:$0xff]
    %v1928 = vld [vmem:[#allocation3 + $0x2f0] sm:$0xff]
    %v1929 = vld [vmem:[#allocation3 + $0x2f8] sm:$0xff]
    %v1930 = vld [vmem:[#allocation3 + $0x300] sm:$0xff]
    %v1931 = vld [vmem:[#allocation3 + $0x308] sm:$0xff]
    %v1932 = vld [vmem:[#allocation3 + $0x310] sm:$0xff]
    %v1933 = vld [vmem:[#allocation3 + $0x318] sm:$0xff]
    %v1934 = vld [vmem:[#allocation3 + $0x320] sm:$0xff]
    %v1935 = vld [vmem:[#allocation3 + $0x328] sm:$0xff]
    %v1936 = vld [vmem:[#allocation3 + $0x330] sm:$0xff]
    %v1937 = vld [vmem:[#allocation3 + $0x338] sm:$0xff]
    %v1938 = vld [vmem:[#allocation3 + $0x340] sm:$0xff]
    %v1939 = vld [vmem:[#allocation3 + $0x348] sm:$0xff]
    %v1940 = vld [vmem:[#allocation3 + $0x350] sm:$0xff]
    %v1941 = vld [vmem:[#allocation3 + $0x358] sm:$0xff]
    %v1942 = vld [vmem:[#allocation3 + $0x360] sm:$0xff]
    %v1943 = vld [vmem:[#allocation3 + $0x368] sm:$0xff]
    %v1944 = vld [vmem:[#allocation3 + $0x370] sm:$0xff]
    %v1945 = vld [vmem:[#allocation3 + $0x378] sm:$0xff]
    %v1946 = vld [vmem:[#allocation3 + $0x380] sm:$0xff]
    %v1947 = vld [vmem:[#allocation3 + $0x388] sm:$0xff]
    %v1948 = vld [vmem:[#allocation3 + $0x390] sm:$0xff]
    %v1949 = vld [vmem:[#allocation3 + $0x398] sm:$0xff]
    %v1950 = vld [vmem:[#allocation3 + $0x3a0] sm:$0xff]
    %v1951 = vld [vmem:[#allocation3 + $0x3a8] sm:$0xff]
    %v1952 = vld [vmem:[#allocation3 + $0x3b0] sm:$0xff]
    %v1953 = vld [vmem:[#allocation3 + $0x3b8] sm:$0xff]
    %v1954 = vld [vmem:[#allocation3 + $0x3c0] sm:$0x33]
    %v1955 = vld [vmem:[#allocation3 + $0x3c8] sm:$0x33]
    %1957 = vst [vmem:[#allocation1] ss:$9 sm:$0xff] %v1833
    %v1958 = vld [vmem:[#allocation1] sm:$0xff]
    %v1959 = vld [vmem:[#allocation1 + $0x9] sm:$0xff]
    %v1960 = vld [vmem:[#allocation1 + $0x12] sm:$0xff]
    %v1961 = vld [vmem:[#allocation1 + $0x1b] sm:$0xff]
    %v2087 = vunpack.c.l.b16 %v1834
    %v2088 = vunpack.c.h.b16 %v1834
    %v2089 = vunpack.c.l.b16 %v1835
    %v2090 = vunpack.c.h.b16 %v1835
    %v2091 = vunpack.c.l.b16 %v1836
    %v2092 = vunpack.c.h.b16 %v1836
    %v2093 = vunpack.c.l.b16 %v1837
    %v2094 = vunpack.c.h.b16 %v1837
    %v2095 = vunpack.c.l.b16 %v1838
    %v2096 = vunpack.c.h.b16 %v1838
    %v2097 = vunpack.c.l.b16 %v1839
    %v2098 = vunpack.c.h.b16 %v1839
    %v2099 = vunpack.c.l.b16 %v1840
    %v2100 = vunpack.c.h.b16 %v1840
    %v2101 = vunpack.c.l.b16 %v1841
    %v2102 = vunpack.c.h.b16 %v1841
    %v2103 = vunpack.c.l.b16 %v1842
    %v2104 = vunpack.c.h.b16 %v1842
    %v2105 = vunpack.c.l.b16 %v1843
    %v2106 = vunpack.c.h.b16 %v1843
    %v2107 = vunpack.c.l.b16 %v1844
    %v2108 = vunpack.c.h.b16 %v1844
    %v2109 = vunpack.c.l.b16 %v1845
    %v2110 = vunpack.c.h.b16 %v1845
    %v2111 = vunpack.c.l.b16 %v1846
    %v2112 = vunpack.c.h.b16 %v1846
    %v2113 = vunpack.c.l.b16 %v1847
    %v2114 = vunpack.c.h.b16 %v1847
    %v2115 = vunpack.c.l.b16 %v1848
    %v2116 = vunpack.c.h.b16 %v1848
    %v2117 = vunpack.c.l.b16 %v1849
    %v2118 = vunpack.c.h.b16 %v1849
    %v2119 = vunpack.c.l.b16 %v1850
    %v2120 = vunpack.c.h.b16 %v1850
    %v2121 = vunpack.c.l.b16 %v1851
    %v2122 = vunpack.c.h.b16 %v1851
    %v2123 = vunpack.c.l.b16 %v1852
    %v2124 = vunpack.c.h.b16 %v1852
    %v2125 = vunpack.c.l.b16 %v1853
    %v2126 = vunpack.c.h.b16 %v1853
    %v2127 = vunpack.c.l.b16 %v1854
    %v2128 = vunpack.c.h.b16 %v1854
    %v2129 = vunpack.c.l.b16 %v1855
    %v2130 = vunpack.c.h.b16 %v1855
    %v2131 = vunpack.c.l.b16 %v1856
    %v2132 = vunpack.c.h.b16 %v1856
    %v2133 = vunpack.c.l.b16 %v1857
    %v2134 = vunpack.c.h.b16 %v1857
    %v2135 = vunpack.c.l.b16 %v1858
    %v2136 = vunpack.c.h.b16 %v1858
    %v2137 = vunpack.c.l.b16 %v1859
    %v2138 = vunpack.c.h.b16 %v1859
    %v2139 = vunpack.c.l.b16 %v1860
    %v2140 = vunpack.c.h.b16 %v1860
    %v2141 = vunpack.c.l.b16 %v1861
    %v2142 = vunpack.c.h.b16 %v1861
    %v2143 = vunpack.c.l.b16 %v1862
    %v2144 = vunpack.c.h.b16 %v1862
    %v2145 = vunpack.c.l.b16 %v1863
    %v2146 = vunpack.c.h.b16 %v1863
    %v2147 = vunpack.c.l.b16 %v1864
    %v2148 = vunpack.c.h.b16 %v1864
    %v2149 = vunpack.c.l.b16 %v1865
    %v2150 = vunpack.c.h.b16 %v1865
    %v2151 = vunpack.c.l.b16 %v1866
    %v2152 = vunpack.c.h.b16 %v1866
    %v2153 = vunpack.c.l.b16 %v1867
    %v2154 = vunpack.c.h.b16 %v1867
    %v2155 = vunpack.c.l.b16 %v1868
    %v2156 = vunpack.c.h.b16 %v1868
    %v2157 = vunpack.c.l.b16 %v1869
    %v2158 = vunpack.c.h.b16 %v1869
    %v2159 = vunpack.c.l.b16 %v1870
    %v2160 = vunpack.c.h.b16 %v1870
    %v2161 = vunpack.c.l.b16 %v1871
    %v2162 = vunpack.c.h.b16 %v1871
    %v2163 = vunpack.c.l.b16 %v1872
    %v2164 = vunpack.c.h.b16 %v1872
    %v2165 = vunpack.c.l.b16 %v1873
    %v2166 = vunpack.c.h.b16 %v1873
    %v2167 = vunpack.c.l.b16 %v1874
    %v2168 = vunpack.c.h.b16 %v1874
    %v2169 = vunpack.c.l.b16 %v1875
    %v2170 = vunpack.c.h.b16 %v1875
    %v2171 = vunpack.c.l.b16 %v1876
    %v2172 = vunpack.c.h.b16 %v1876
    %v2173 = vunpack.c.l.b16 %v1877
    %v2174 = vunpack.c.h.b16 %v1877
    %v2175 = vunpack.c.l.b16 %v1878
    %v2176 = vunpack.c.h.b16 %v1878
    %v2177 = vunpack.c.l.b16 %v1879
    %v2178 = vunpack.c.h.b16 %v1879
    %v2179 = vunpack.c.l.b16 %v1880
    %v2180 = vunpack.c.h.b16 %v1880
    %v2181 = vunpack.c.l.b16 %v1881
    %v2182 = vunpack.c.h.b16 %v1881
    %v2183 = vunpack.c.l.b16 %v1882
    %v2184 = vunpack.c.h.b16 %v1882
    %v2185 = vunpack.c.l.b16 %v1883
    %v2186 = vunpack.c.h.b16 %v1883
    %v2187 = vunpack.c.l.b16 %v1884
    %v2188 = vunpack.c.h.b16 %v1884
    %v2189 = vunpack.c.l.b16 %v1885
    %v2190 = vunpack.c.h.b16 %v1885
    %v2191 = vunpack.c.l.b16 %v1886
    %v2192 = vunpack.c.h.b16 %v1886
    %v2193 = vunpack.c.l.b16 %v1887
    %v2194 = vunpack.c.h.b16 %v1887
    %v2195 = vunpack.c.l.b16 %v1888
    %v2196 = vunpack.c.h.b16 %v1888
    %v2197 = vunpack.c.l.b16 %v1889
    %v2198 = vunpack.c.h.b16 %v1889
    %v2199 = vunpack.c.l.b16 %v1890
    %v2200 = vunpack.c.h.b16 %v1890
    %v2201 = vunpack.c.l.b16 %v1891
    %v2202 = vunpack.c.h.b16 %v1891
    %v2203 = vunpack.c.l.b16 %v1892
    %v2204 = vunpack.c.h.b16 %v1892
    %v2205 = vunpack.c.l.b16 %v1893
    %v2206 = vunpack.c.h.b16 %v1893
    %v2207 = vunpack.c.l.b16 %v1894
    %v2208 = vunpack.c.h.b16 %v1894
    %v2209 = vunpack.c.l.b16 %v1895
    %v2210 = vunpack.c.h.b16 %v1895
    %v2211 = vunpack.c.l.b16 %v1896
    %v2212 = vunpack.c.h.b16 %v1896
    %v2213 = vunpack.c.l.b16 %v1897
    %v2214 = vunpack.c.h.b16 %v1897
    %v2215 = vunpack.c.l.b16 %v1898
    %v2216 = vunpack.c.h.b16 %v1898
    %v2217 = vunpack.c.l.b16 %v1899
    %v2218 = vunpack.c.h.b16 %v1899
    %v2219 = vunpack.c.l.b16 %v1900
    %v2220 = vunpack.c.h.b16 %v1900
    %v2221 = vunpack.c.l.b16 %v1901
    %v2222 = vunpack.c.h.b16 %v1901
    %v2223 = vunpack.c.l.b16 %v1902
    %v2224 = vunpack.c.h.b16 %v1902
    %v2225 = vunpack.c.l.b16 %v1903
    %v2226 = vunpack.c.h.b16 %v1903
    %v2227 = vunpack.c.l.b16 %v1904
    %v2228 = vunpack.c.h.b16 %v1904
    %v2229 = vunpack.c.l.b16 %v1905
    %v2230 = vunpack.c.h.b16 %v1905
    %v2231 = vunpack.c.l.b16 %v1906
    %v2232 = vunpack.c.h.b16 %v1906
    %v2233 = vunpack.c.l.b16 %v1907
    %v2234 = vunpack.c.h.b16 %v1907
    %v2235 = vunpack.c.l.b16 %v1908
    %v2236 = vunpack.c.h.b16 %v1908
    %v2237 = vunpack.c.l.b16 %v1909
    %v2238 = vunpack.c.h.b16 %v1909
    %v2239 = vunpack.c.l.b16 %v1910
    %v2240 = vunpack.c.h.b16 %v1910
    %v2241 = vunpack.c.l.b16 %v1911
    %v2242 = vunpack.c.h.b16 %v1911
    %v2243 = vunpack.c.l.b16 %v1912
    %v2244 = vunpack.c.h.b16 %v1912
    %v2245 = vunpack.c.l.b16 %v1913
    %v2246 = vunpack.c.h.b16 %v1913
    %v2247 = vunpack.c.l.b16 %v1914
    %v2248 = vunpack.c.h.b16 %v1914
    %v2249 = vunpack.c.l.b16 %v1915
    %v2250 = vunpack.c.h.b16 %v1915
    %v2251 = vunpack.c.l.b16 %v1916
    %v2252 = vunpack.c.h.b16 %v1916
    %v2253 = vunpack.c.l.b16 %v1917
    %v2254 = vunpack.c.h.b16 %v1917
    %v2255 = vunpack.c.l.b16 %v1918
    %v2256 = vunpack.c.h.b16 %v1918
    %v2257 = vunpack.c.l.b16 %v1919
    %v2258 = vunpack.c.h.b16 %v1919
    %v2259 = vunpack.c.l.b16 %v1920
    %v2260 = vunpack.c.h.b16 %v1920
    %v2261 = vunpack.c.l.b16 %v1921
    %v2262 = vunpack.c.h.b16 %v1921
    %v2263 = vunpack.c.l.b16 %v1922
    %v2264 = vunpack.c.h.b16 %v1922
    %v2265 = vunpack.c.l.b16 %v1923
    %v2266 = vunpack.c.h.b16 %v1923
    %v2267 = vunpack.c.l.b16 %v1924
    %v2268 = vunpack.c.h.b16 %v1924
    %v2269 = vunpack.c.l.b16 %v1925
    %v2270 = vunpack.c.h.b16 %v1925
    %v2271 = vunpack.c.l.b16 %v1926
    %v2272 = vunpack.c.h.b16 %v1926
    %v2273 = vunpack.c.l.b16 %v1927
    %v2274 = vunpack.c.h.b16 %v1927
    %v2275 = vunpack.c.l.b16 %v1928
    %v2276 = vunpack.c.h.b16 %v1928
    %v2277 = vunpack.c.l.b16 %v1929
    %v2278 = vunpack.c.h.b16 %v1929
    %v2279 = vunpack.c.l.b16 %v1930
    %v2280 = vunpack.c.h.b16 %v1930
    %v2281 = vunpack.c.l.b16 %v1931
    %v2282 = vunpack.c.h.b16 %v1931
    %v2283 = vunpack.c.l.b16 %v1932
    %v2284 = vunpack.c.h.b16 %v1932
    %v2285 = vunpack.c.l.b16 %v1933
    %v2286 = vunpack.c.h.b16 %v1933
    %v2287 = vunpack.c.l.b16 %v1934
    %v2288 = vunpack.c.h.b16 %v1934
    %v2289 = vunpack.c.l.b16 %v1935
    %v2290 = vunpack.c.h.b16 %v1935
    %v2291 = vunpack.c.l.b16 %v1936
    %v2292 = vunpack.c.h.b16 %v1936
    %v2293 = vunpack.c.l.b16 %v1937
    %v2294 = vunpack.c.h.b16 %v1937
    %v2295 = vunpack.c.l.b16 %v1938
    %v2296 = vunpack.c.h.b16 %v1938
    %v2297 = vunpack.c.l.b16 %v1939
    %v2298 = vunpack.c.h.b16 %v1939
    %v2299 = vunpack.c.l.b16 %v1940
    %v2300 = vunpack.c.h.b16 %v1940
    %v2301 = vunpack.c.l.b16 %v1941
    %v2302 = vunpack.c.h.b16 %v1941
    %v2303 = vunpack.c.l.b16 %v1942
    %v2304 = vunpack.c.h.b16 %v1942
    %v2305 = vunpack.c.l.b16 %v1943
    %v2306 = vunpack.c.h.b16 %v1943
    %v2307 = vunpack.c.l.b16 %v1944
    %v2308 = vunpack.c.h.b16 %v1944
    %v2309 = vunpack.c.l.b16 %v1945
    %v2310 = vunpack.c.h.b16 %v1945
    %v2311 = vunpack.c.l.b16 %v1946
    %v2312 = vunpack.c.h.b16 %v1946
    %v2313 = vunpack.c.l.b16 %v1947
    %v2314 = vunpack.c.h.b16 %v1947
    %v2315 = vunpack.c.l.b16 %v1948
    %v2316 = vunpack.c.h.b16 %v1948
    %v2317 = vunpack.c.l.b16 %v1949
    %v2318 = vunpack.c.h.b16 %v1949
    %v2319 = vunpack.c.l.b16 %v1950
    %v2320 = vunpack.c.h.b16 %v1950
    %v2321 = vunpack.c.l.b16 %v1951
    %v2322 = vunpack.c.h.b16 %v1951
    %v2323 = vunpack.c.l.b16 %v1952
    %v2324 = vunpack.c.h.b16 %v1952
    %v2325 = vunpack.c.l.b16 %v1953
    %v2326 = vunpack.c.h.b16 %v1953
    %v2327 = vunpack.c.l.b16 %v1954
    %v2328 = vunpack.c.h.b16 %v1954
    %v2329 = vunpack.c.l.b16 %v1955
    %v2330 = vunpack.c.h.b16 %v1955
    %v2331 = vpack.c.b16 %v2091, %v2087
    %v2332 = vpack.c.b16 %v2092, %v2088
    %v2333 = vpack.c.b16 %v2093, %v2089
    %v2334 = vpack.c.b16 %v2094, %v2090
    %v2335 = vpack.c.b16 %v2099, %v2095
    %v2336 = vpack.c.b16 %v2100, %v2096
    %v2337 = vpack.c.b16 %v2101, %v2097
    %v2338 = vpack.c.b16 %v2102, %v2098
    %v2339 = vpack.c.b16 %v2107, %v2103
    %v2340 = vpack.c.b16 %v2108, %v2104
    %v2341 = vpack.c.b16 %v2109, %v2105
    %v2342 = vpack.c.b16 %v2110, %v2106
    %v2343 = vpack.c.b16 %v2115, %v2111
    %v2344 = vpack.c.b16 %v2116, %v2112
    %v2345 = vpack.c.b16 %v2117, %v2113
    %v2346 = vpack.c.b16 %v2118, %v2114
    %v2347 = vpack.c.b16 %v2123, %v2119
    %v2348 = vpack.c.b16 %v2124, %v2120
    %v2349 = vpack.c.b16 %v2125, %v2121
    %v2350 = vpack.c.b16 %v2126, %v2122
    %v2351 = vpack.c.b16 %v2131, %v2127
    %v2352 = vpack.c.b16 %v2132, %v2128
    %v2353 = vpack.c.b16 %v2133, %v2129
    %v2354 = vpack.c.b16 %v2134, %v2130
    %v2355 = vpack.c.b16 %v2139, %v2135
    %v2356 = vpack.c.b16 %v2140, %v2136
    %v2357 = vpack.c.b16 %v2141, %v2137
    %v2358 = vpack.c.b16 %v2142, %v2138
    %v2359 = vpack.c.b16 %v2147, %v2143
    %v2360 = vpack.c.b16 %v2148, %v2144
    %v2361 = vpack.c.b16 %v2149, %v2145
    %v2362 = vpack.c.b16 %v2150, %v2146
    %v2363 = vpack.c.b16 %v2155, %v2151
    %v2364 = vpack.c.b16 %v2156, %v2152
    %v2365 = vpack.c.b16 %v2157, %v2153
    %v2366 = vpack.c.b16 %v2158, %v2154
    %v2367 = vpack.c.b16 %v2163, %v2159
    %v2368 = vpack.c.b16 %v2164, %v2160
    %v2369 = vpack.c.b16 %v2165, %v2161
    %v2370 = vpack.c.b16 %v2166, %v2162
    %v2371 = vpack.c.b16 %v2171, %v2167
    %v2372 = vpack.c.b16 %v2172, %v2168
    %v2373 = vpack.c.b16 %v2173, %v2169
    %v2374 = vpack.c.b16 %v2174, %v2170
    %v2375 = vpack.c.b16 %v2179, %v2175
    %v2376 = vpack.c.b16 %v2180, %v2176
    %v2377 = vpack.c.b16 %v2181, %v2177
    %v2378 = vpack.c.b16 %v2182, %v2178
    %v2379 = vpack.c.b16 %v2187, %v2183
    %v2380 = vpack.c.b16 %v2188, %v2184
    %v2381 = vpack.c.b16 %v2189, %v2185
    %v2382 = vpack.c.b16 %v2190, %v2186
    %v2383 = vpack.c.b16 %v2195, %v2191
    %v2384 = vpack.c.b16 %v2196, %v2192
    %v2385 = vpack.c.b16 %v2197, %v2193
    %v2386 = vpack.c.b16 %v2198, %v2194
    %v2387 = vpack.c.b16 %v2203, %v2199
    %v2388 = vpack.c.b16 %v2204, %v2200
    %v2389 = vpack.c.b16 %v2205, %v2201
    %v2390 = vpack.c.b16 %v2206, %v2202
    %v2391 = vpack.c.b16 %v2211, %v2207
    %v2392 = vpack.c.b16 %v2212, %v2208
    %v2393 = vpack.c.b16 %v2213, %v2209
    %v2394 = vpack.c.b16 %v2214, %v2210
    %v2395 = vpack.c.b16 %v2219, %v2215
    %v2396 = vpack.c.b16 %v2220, %v2216
    %v2397 = vpack.c.b16 %v2221, %v2217
    %v2398 = vpack.c.b16 %v2222, %v2218
    %v2399 = vpack.c.b16 %v2227, %v2223
    %v2400 = vpack.c.b16 %v2228, %v2224
    %v2401 = vpack.c.b16 %v2229, %v2225
    %v2402 = vpack.c.b16 %v2230, %v2226
    %v2403 = vpack.c.b16 %v2235, %v2231
    %v2404 = vpack.c.b16 %v2236, %v2232
    %v2405 = vpack.c.b16 %v2237, %v2233
    %v2406 = vpack.c.b16 %v2238, %v2234
    %v2407 = vpack.c.b16 %v2243, %v2239
    %v2408 = vpack.c.b16 %v2244, %v2240
    %v2409 = vpack.c.b16 %v2245, %v2241
    %v2410 = vpack.c.b16 %v2246, %v2242
    %v2411 = vpack.c.b16 %v2251, %v2247
    %v2412 = vpack.c.b16 %v2252, %v2248
    %v2413 = vpack.c.b16 %v2253, %v2249
    %v2414 = vpack.c.b16 %v2254, %v2250
    %v2415 = vpack.c.b16 %v2259, %v2255
    %v2416 = vpack.c.b16 %v2260, %v2256
    %v2417 = vpack.c.b16 %v2261, %v2257
    %v2418 = vpack.c.b16 %v2262, %v2258
    %v2419 = vpack.c.b16 %v2267, %v2263
    %v2420 = vpack.c.b16 %v2268, %v2264
    %v2421 = vpack.c.b16 %v2269, %v2265
    %v2422 = vpack.c.b16 %v2270, %v2266
    %v2423 = vpack.c.b16 %v2275, %v2271
    %v2424 = vpack.c.b16 %v2276, %v2272
    %v2425 = vpack.c.b16 %v2277, %v2273
    %v2426 = vpack.c.b16 %v2278, %v2274
    %v2427 = vpack.c.b16 %v2283, %v2279
    %v2428 = vpack.c.b16 %v2284, %v2280
    %v2429 = vpack.c.b16 %v2285, %v2281
    %v2430 = vpack.c.b16 %v2286, %v2282
    %v2431 = vpack.c.b16 %v2291, %v2287
    %v2432 = vpack.c.b16 %v2292, %v2288
    %v2433 = vpack.c.b16 %v2293, %v2289
    %v2434 = vpack.c.b16 %v2294, %v2290
    %v2435 = vpack.c.b16 %v2299, %v2295
    %v2436 = vpack.c.b16 %v2300, %v2296
    %v2437 = vpack.c.b16 %v2301, %v2297
    %v2438 = vpack.c.b16 %v2302, %v2298
    %v2439 = vpack.c.b16 %v2307, %v2303
    %v2440 = vpack.c.b16 %v2308, %v2304
    %v2441 = vpack.c.b16 %v2309, %v2305
    %v2442 = vpack.c.b16 %v2310, %v2306
    %v2443 = vpack.c.b16 %v2315, %v2311
    %v2444 = vpack.c.b16 %v2316, %v2312
    %v2445 = vpack.c.b16 %v2317, %v2313
    %v2446 = vpack.c.b16 %v2318, %v2314
    %v2447 = vpack.c.b16 %v2323, %v2319
    %v2448 = vpack.c.b16 %v2324, %v2320
    %v2449 = vpack.c.b16 %v2325, %v2321
    %v2450 = vpack.c.b16 %v2326, %v2322
    %v2451 = vpack.c.b16 %v2327, %v2327
    %v2452 = vpack.c.b16 %v2328, %v2328
    %v2453 = vpack.c.b16 %v2329, %v2329
    %v2454 = vpack.c.b16 %v2330, %v2330
    %vm2575 = vcmask 818176
    %v2576 = vsel %vm2575, %v1961, 0
    %vm2578 = vcmask 1041408
    %v2580 = vsel %vm2578, %v2451, 0
    %v2583 = vsel %vm2578, %v2452, 0
    %v2586 = vsel %vm2578, %v2453, 0
    %v2589 = vsel %vm2578, %v2454, 0
    %2591 = vmatpush.bf16.msra.mxu0 %v2359
    %2592 = vmatpush.bf16.msra.mxu0 %v2355
    %2593 = vmatpush.bf16.msra.mxu0 %v2351
    %2594 = vmatpush.bf16.msra.mxu0 %v2347
    %2595 = vmatpush.bf16.msra.mxu0 %v2343
    %2596 = vmatpush.bf16.msra.mxu0 %v2339
    %2597 = vmatpush.bf16.msra.mxu0 %v2335
    %2598 = vmatpush.bf16.msra.mxu0 %v2331
    %2599 = vmatmul.bf16.gmra.mxu0 %v1958
    %v2600 = vpop.f32.mrf.mxu0
    %v2601 = vadd.f32 0.0, %v2600
    %v2602 = vpop.f32.mrf.mxu0
    %2603 = vdwg.mxu0
    %2604 = vmatpush.bf16.msra.mxu0 %v2391
    %2605 = vmatpush.bf16.msra.mxu0 %v2387
    %2606 = vmatpush.bf16.msra.mxu0 %v2383
    %2607 = vmatpush.bf16.msra.mxu0 %v2379
    %2608 = vmatpush.bf16.msra.mxu0 %v2375
    %2609 = vmatpush.bf16.msra.mxu0 %v2371
    %2610 = vmatpush.bf16.msra.mxu0 %v2367
    %2611 = vmatpush.bf16.msra.mxu0 %v2363
    %2612 = vmatmul.bf16.gmra.mxu0 %v1959
    %v2613 = vpop.f32.mrf.mxu0
    %v2614 = vadd.f32 %v2601, %v2613
    %v2615 = vpop.f32.mrf.mxu0
    %2616 = vdwg.mxu0
    %2617 = vmatpush.bf16.msra.mxu0 %v2423
    %2618 = vmatpush.bf16.msra.mxu0 %v2419
    %2619 = vmatpush.bf16.msra.mxu0 %v2415
    %2620 = vmatpush.bf16.msra.mxu0 %v2411
    %2621 = vmatpush.bf16.msra.mxu0 %v2407
    %2622 = vmatpush.bf16.msra.mxu0 %v2403
    %2623 = vmatpush.bf16.msra.mxu0 %v2399
    %2624 = vmatpush.bf16.msra.mxu0 %v2395
    %2625 = vmatmul.bf16.gmra.mxu0 %v1960
    %v2626 = vpop.f32.mrf.mxu0
    %v2627 = vadd.f32 %v2614, %v2626
    %v2628 = vpop.f32.mrf.mxu0
    %2629 = vdwg.mxu0
    %2630 = vmatpush.bf16.msra.mxu0 0
    %2631 = vmatpush.bf16.msra.mxu0 %v2580
    %2632 = vmatpush.bf16.msra.mxu0 %v2447
    %2633 = vmatpush.bf16.msra.mxu0 %v2443
    %2634 = vmatpush.bf16.msra.mxu0 %v2439
    %2635 = vmatpush.bf16.msra.mxu0 %v2435
    %2636 = vmatpush.bf16.msra.mxu0 %v2431
    %2637 = vmatpush.bf16.msra.mxu0 %v2427
    %2638 = vmatmul.bf16.gmra.mxu0 %v2576
    %v2639 = vpop.f32.mrf.mxu0
    %v2640 = vadd.f32 %v2627, %v2639
    %v2641 = vpop.f32.mrf.mxu0
    %2642 = vdwg.mxu0
    %2643 = vmatpush.bf16.msra.mxu0 %v2360
    %2644 = vmatpush.bf16.msra.mxu0 %v2356
    %2645 = vmatpush.bf16.msra.mxu0 %v2352
    %2646 = vmatpush.bf16.msra.mxu0 %v2348
    %2647 = vmatpush.bf16.msra.mxu0 %v2344
    %2648 = vmatpush.bf16.msra.mxu0 %v2340
    %2649 = vmatpush.bf16.msra.mxu0 %v2336
    %2650 = vmatpush.bf16.msra.mxu0 %v2332
    %2651 = vmatmul.bf16.gmra.mxu0 %v1958
    %v2652 = vpop.f32.mrf.mxu0
    %v2653 = vadd.f32 0.0, %v2652
    %v2654 = vpop.f32.mrf.mxu0
    %2655 = vdwg.mxu0
    %2656 = vmatpush.bf16.msra.mxu0 %v2392
    %2657 = vmatpush.bf16.msra.mxu0 %v2388
    %2658 = vmatpush.bf16.msra.mxu0 %v2384
    %2659 = vmatpush.bf16.msra.mxu0 %v2380
    %2660 = vmatpush.bf16.msra.mxu0 %v2376
    %2661 = vmatpush.bf16.msra.mxu0 %v2372
    %2662 = vmatpush.bf16.msra.mxu0 %v2368
    %2663 = vmatpush.bf16.msra.mxu0 %v2364
    %2664 = vmatmul.bf16.gmra.mxu0 %v1959
    %v2665 = vpop.f32.mrf.mxu0
    %v2666 = vadd.f32 %v2653, %v2665
    %v2667 = vpop.f32.mrf.mxu0
    %2668 = vdwg.mxu0
    %2669 = vmatpush.bf16.msra.mxu0 %v2424
    %2670 = vmatpush.bf16.msra.mxu0 %v2420
    %2671 = vmatpush.bf16.msra.mxu0 %v2416
    %2672 = vmatpush.bf16.msra.mxu0 %v2412
    %2673 = vmatpush.bf16.msra.mxu0 %v2408
    %2674 = vmatpush.bf16.msra.mxu0 %v2404
    %2675 = vmatpush.bf16.msra.mxu0 %v2400
    %2676 = vmatpush.bf16.msra.mxu0 %v2396
    %2677 = vmatmul.bf16.gmra.mxu0 %v1960
    %v2678 = vpop.f32.mrf.mxu0
    %v2679 = vadd.f32 %v2666, %v2678
    %v2680 = vpop.f32.mrf.mxu0
    %2681 = vdwg.mxu0
    %2682 = vmatpush.bf16.msra.mxu0 0
    %2683 = vmatpush.bf16.msra.mxu0 %v2583
    %2684 = vmatpush.bf16.msra.mxu0 %v2448
    %2685 = vmatpush.bf16.msra.mxu0 %v2444
    %2686 = vmatpush.bf16.msra.mxu0 %v2440
    %2687 = vmatpush.bf16.msra.mxu0 %v2436
    %2688 = vmatpush.bf16.msra.mxu0 %v2432
    %2689 = vmatpush.bf16.msra.mxu0 %v2428
    %2690 = vmatmul.bf16.gmra.mxu0 %v2576
    %v2691 = vpop.f32.mrf.mxu0
    %v2692 = vadd.f32 %v2679, %v2691
    %v2693 = vpop.f32.mrf.mxu0
    %2694 = vdwg.mxu0
    %2695 = vmatpush.bf16.msra.mxu0 %v2361
    %2696 = vmatpush.bf16.msra.mxu0 %v2357
    %2697 = vmatpush.bf16.msra.mxu0 %v2353
    %2698 = vmatpush.bf16.msra.mxu0 %v2349
    %2699 = vmatpush.bf16.msra.mxu0 %v2345
    %2700 = vmatpush.bf16.msra.mxu0 %v2341
    %2701 = vmatpush.bf16.msra.mxu0 %v2337
    %2702 = vmatpush.bf16.msra.mxu0 %v2333
    %2703 = vmatmul.bf16.gmra.mxu0 %v1958
    %v2704 = vpop.f32.mrf.mxu0
    %v2705 = vadd.f32 0.0, %v2704
    %v2706 = vpop.f32.mrf.mxu0
    %2707 = vdwg.mxu0
    %2708 = vmatpush.bf16.msra.mxu0 %v2393
    %2709 = vmatpush.bf16.msra.mxu0 %v2389
    %2710 = vmatpush.bf16.msra.mxu0 %v2385
    %2711 = vmatpush.bf16.msra.mxu0 %v2381
    %2712 = vmatpush.bf16.msra.mxu0 %v2377
    %2713 = vmatpush.bf16.msra.mxu0 %v2373
    %2714 = vmatpush.bf16.msra.mxu0 %v2369
    %2715 = vmatpush.bf16.msra.mxu0 %v2365
    %2716 = vmatmul.bf16.gmra.mxu0 %v1959
    %v2717 = vpop.f32.mrf.mxu0
    %v2718 = vadd.f32 %v2705, %v2717
    %v2719 = vpop.f32.mrf.mxu0
    %2720 = vdwg.mxu0
    %2721 = vmatpush.bf16.msra.mxu0 %v2425
    %2722 = vmatpush.bf16.msra.mxu0 %v2421
    %2723 = vmatpush.bf16.msra.mxu0 %v2417
    %2724 = vmatpush.bf16.msra.mxu0 %v2413
    %2725 = vmatpush.bf16.msra.mxu0 %v2409
    %2726 = vmatpush.bf16.msra.mxu0 %v2405
    %2727 = vmatpush.bf16.msra.mxu0 %v2401
    %2728 = vmatpush.bf16.msra.mxu0 %v2397
    %2729 = vmatmul.bf16.gmra.mxu0 %v1960
    %v2730 = vpop.f32.mrf.mxu0
    %v2731 = vadd.f32 %v2718, %v2730
    %v2732 = vpop.f32.mrf.mxu0
    %2733 = vdwg.mxu0
    %2734 = vmatpush.bf16.msra.mxu0 0
    %2735 = vmatpush.bf16.msra.mxu0 %v2586
    %2736 = vmatpush.bf16.msra.mxu0 %v2449
    %2737 = vmatpush.bf16.msra.mxu0 %v2445
    %2738 = vmatpush.bf16.msra.mxu0 %v2441
    %2739 = vmatpush.bf16.msra.mxu0 %v2437
    %2740 = vmatpush.bf16.msra.mxu0 %v2433
    %2741 = vmatpush.bf16.msra.mxu0 %v2429
    %2742 = vmatmul.bf16.gmra.mxu0 %v2576
    %v2743 = vpop.f32.mrf.mxu0
    %v2744 = vadd.f32 %v2731, %v2743
    %v2745 = vpop.f32.mrf.mxu0
    %2746 = vdwg.mxu0
    %2747 = vmatpush.bf16.msra.mxu0 %v2362
    %2748 = vmatpush.bf16.msra.mxu0 %v2358
    %2749 = vmatpush.bf16.msra.mxu0 %v2354
    %2750 = vmatpush.bf16.msra.mxu0 %v2350
    %2751 = vmatpush.bf16.msra.mxu0 %v2346
    %2752 = vmatpush.bf16.msra.mxu0 %v2342
    %2753 = vmatpush.bf16.msra.mxu0 %v2338
    %2754 = vmatpush.bf16.msra.mxu0 %v2334
    %2755 = vmatmul.bf16.gmra.mxu0 %v1958
    %v2756 = vpop.f32.mrf.mxu0
    %v2757 = vadd.f32 0.0, %v2756
    %v2758 = vpop.f32.mrf.mxu0
    %2759 = vdwg.mxu0
    %2760 = vmatpush.bf16.msra.mxu0 %v2394
    %2761 = vmatpush.bf16.msra.mxu0 %v2390
    %2762 = vmatpush.bf16.msra.mxu0 %v2386
    %2763 = vmatpush.bf16.msra.mxu0 %v2382
    %2764 = vmatpush.bf16.msra.mxu0 %v2378
    %2765 = vmatpush.bf16.msra.mxu0 %v2374
    %2766 = vmatpush.bf16.msra.mxu0 %v2370
    %2767 = vmatpush.bf16.msra.mxu0 %v2366
    %2768 = vmatmul.bf16.gmra.mxu0 %v1959
    %v2769 = vpop.f32.mrf.mxu0
    %v2770 = vadd.f32 %v2757, %v2769
    %v2771 = vpop.f32.mrf.mxu0
    %2772 = vdwg.mxu0
    %2773 = vmatpush.bf16.msra.mxu0 %v2426
    %2774 = vmatpush.bf16.msra.mxu0 %v2422
    %2775 = vmatpush.bf16.msra.mxu0 %v2418
    %2776 = vmatpush.bf16.msra.mxu0 %v2414
    %2777 = vmatpush.bf16.msra.mxu0 %v2410
    %2778 = vmatpush.bf16.msra.mxu0 %v2406
    %2779 = vmatpush.bf16.msra.mxu0 %v2402
    %2780 = vmatpush.bf16.msra.mxu0 %v2398
    %2781 = vmatmul.bf16.gmra.mxu0 %v1960
    %v2782 = vpop.f32.mrf.mxu0
    %v2783 = vadd.f32 %v2770, %v2782
    %v2784 = vpop.f32.mrf.mxu0
    %2785 = vdwg.mxu0
    %2786 = vmatpush.bf16.msra.mxu0 0
    %2787 = vmatpush.bf16.msra.mxu0 %v2589
    %2788 = vmatpush.bf16.msra.mxu0 %v2450
    %2789 = vmatpush.bf16.msra.mxu0 %v2446
    %2790 = vmatpush.bf16.msra.mxu0 %v2442
    %2791 = vmatpush.bf16.msra.mxu0 %v2438
    %2792 = vmatpush.bf16.msra.mxu0 %v2434
    %2793 = vmatpush.bf16.msra.mxu0 %v2430
    %2794 = vmatmul.bf16.gmra.mxu0 %v2576
    %v2795 = vpop.f32.mrf.mxu0
    %v2796 = vadd.f32 %v2783, %v2795
    %v2797 = vpop.f32.mrf.mxu0
    %2798 = vdwg.mxu0
    %s2799 = smul.u32 4, 16
    %s2800 = smul.u32 %s2799, 4
    %s2801 = sshll.u32 %s2800, 4
    %2802 = dma.done [#allocation8], %s2801
    %v2803 = vpack.c.bf16 %v1828, %v1828
    %v2804 = vld [vmem:[#allocation2] sm:$0xff]
    %v2805 = vld [vmem:[#allocation2 + $0x8] sm:$0xff]
    %v2806 = vld [vmem:[#allocation2 + $0x10] sm:$0xff]
    %v2807 = vld [vmem:[#allocation2 + $0x18] sm:$0xff]
    %v2808 = vld [vmem:[#allocation2 + $0x20] sm:$0xff]
    %v2809 = vld [vmem:[#allocation2 + $0x28] sm:$0xff]
    %v2810 = vld [vmem:[#allocation2 + $0x30] sm:$0xff]
    %v2811 = vld [vmem:[#allocation2 + $0x38] sm:$0xff]
    %v2812 = vld [vmem:[#allocation2 + $0x40] sm:$0xff]
    %v2813 = vld [vmem:[#allocation2 + $0x48] sm:$0xff]
    %v2814 = vld [vmem:[#allocation2 + $0x50] sm:$0xff]
    %v2815 = vld [vmem:[#allocation2 + $0x58] sm:$0xff]
    %v2816 = vld [vmem:[#allocation2 + $0x60] sm:$0xff]
    %v2817 = vld [vmem:[#allocation2 + $0x68] sm:$0xff]
    %v2818 = vld [vmem:[#allocation2 + $0x70] sm:$0xff]
    %v2819 = vld [vmem:[#allocation2 + $0x78] sm:$0xff]
    %v2820 = vld [vmem:[#allocation2 + $0x80] sm:$0xff]
    %v2821 = vld [vmem:[#allocation2 + $0x88] sm:$0xff]
    %v2822 = vld [vmem:[#allocation2 + $0x90] sm:$0xff]
    %v2823 = vld [vmem:[#allocation2 + $0x98] sm:$0xff]
    %v2824 = vld [vmem:[#allocation2 + $0xa0] sm:$0xff]
    %v2825 = vld [vmem:[#allocation2 + $0xa8] sm:$0xff]
    %v2826 = vld [vmem:[#allocation2 + $0xb0] sm:$0xff]
    %v2827 = vld [vmem:[#allocation2 + $0xb8] sm:$0xff]
    %v2828 = vld [vmem:[#allocation2 + $0xc0] sm:$0xff]
    %v2829 = vld [vmem:[#allocation2 + $0xc8] sm:$0xff]
    %v2830 = vld [vmem:[#allocation2 + $0xd0] sm:$0xff]
    %v2831 = vld [vmem:[#allocation2 + $0xd8] sm:$0xff]
    %v2832 = vld [vmem:[#allocation2 + $0xe0] sm:$0xff]
    %v2833 = vld [vmem:[#allocation2 + $0xe8] sm:$0xff]
    %v2834 = vld [vmem:[#allocation2 + $0xf0] sm:$0xff]
    %v2835 = vld [vmem:[#allocation2 + $0xf8] sm:$0xff]
    %v2837 = vrot.slane %v2803, 3
    %v2871 = vunpack.c.l.b16 %v2804
    %v2872 = vunpack.c.h.b16 %v2804
    %v2873 = vunpack.c.l.b16 %v2805
    %v2874 = vunpack.c.h.b16 %v2805
    %v2875 = vunpack.c.l.b16 %v2806
    %v2876 = vunpack.c.h.b16 %v2806
    %v2877 = vunpack.c.l.b16 %v2807
    %v2878 = vunpack.c.h.b16 %v2807
    %v2879 = vunpack.c.l.b16 %v2808
    %v2880 = vunpack.c.h.b16 %v2808
    %v2881 = vunpack.c.l.b16 %v2809
    %v2882 = vunpack.c.h.b16 %v2809
    %v2883 = vunpack.c.l.b16 %v2810
    %v2884 = vunpack.c.h.b16 %v2810
    %v2885 = vunpack.c.l.b16 %v2811
    %v2886 = vunpack.c.h.b16 %v2811
    %v2887 = vunpack.c.l.b16 %v2812
    %v2888 = vunpack.c.h.b16 %v2812
    %v2889 = vunpack.c.l.b16 %v2813
    %v2890 = vunpack.c.h.b16 %v2813
    %v2891 = vunpack.c.l.b16 %v2814
    %v2892 = vunpack.c.h.b16 %v2814
    %v2893 = vunpack.c.l.b16 %v2815
    %v2894 = vunpack.c.h.b16 %v2815
    %v2895 = vunpack.c.l.b16 %v2816
    %v2896 = vunpack.c.h.b16 %v2816
    %v2897 = vunpack.c.l.b16 %v2817
    %v2898 = vunpack.c.h.b16 %v2817
    %v2899 = vunpack.c.l.b16 %v2818
    %v2900 = vunpack.c.h.b16 %v2818
    %v2901 = vunpack.c.l.b16 %v2819
    %v2902 = vunpack.c.h.b16 %v2819
    %v2903 = vunpack.c.l.b16 %v2820
    %v2904 = vunpack.c.h.b16 %v2820
    %v2905 = vunpack.c.l.b16 %v2821
    %v2906 = vunpack.c.h.b16 %v2821
    %v2907 = vunpack.c.l.b16 %v2822
    %v2908 = vunpack.c.h.b16 %v2822
    %v2909 = vunpack.c.l.b16 %v2823
    %v2910 = vunpack.c.h.b16 %v2823
    %v2911 = vunpack.c.l.b16 %v2824
    %v2912 = vunpack.c.h.b16 %v2824
    %v2913 = vunpack.c.l.b16 %v2825
    %v2914 = vunpack.c.h.b16 %v2825
    %v2915 = vunpack.c.l.b16 %v2826
    %v2916 = vunpack.c.h.b16 %v2826
    %v2917 = vunpack.c.l.b16 %v2827
    %v2918 = vunpack.c.h.b16 %v2827
    %v2919 = vunpack.c.l.b16 %v2828
    %v2920 = vunpack.c.h.b16 %v2828
    %v2921 = vunpack.c.l.b16 %v2829
    %v2922 = vunpack.c.h.b16 %v2829
    %v2923 = vunpack.c.l.b16 %v2830
    %v2924 = vunpack.c.h.b16 %v2830
    %v2925 = vunpack.c.l.b16 %v2831
    %v2926 = vunpack.c.h.b16 %v2831
    %v2927 = vunpack.c.l.b16 %v2832
    %v2928 = vunpack.c.h.b16 %v2832
    %v2929 = vunpack.c.l.b16 %v2833
    %v2930 = vunpack.c.h.b16 %v2833
    %v2931 = vunpack.c.l.b16 %v2834
    %v2932 = vunpack.c.h.b16 %v2834
    %v2933 = vunpack.c.l.b16 %v2835
    %v2934 = vunpack.c.h.b16 %v2835
    %v2935 = vpack.c.b16 %v2875, %v2871
    %v2936 = vpack.c.b16 %v2876, %v2872
    %v2937 = vpack.c.b16 %v2877, %v2873
    %v2938 = vpack.c.b16 %v2878, %v2874
    %v2939 = vpack.c.b16 %v2883, %v2879
    %v2940 = vpack.c.b16 %v2884, %v2880
    %v2941 = vpack.c.b16 %v2885, %v2881
    %v2942 = vpack.c.b16 %v2886, %v2882
    %v2943 = vpack.c.b16 %v2891, %v2887
    %v2944 = vpack.c.b16 %v2892, %v2888
    %v2945 = vpack.c.b16 %v2893, %v2889
    %v2946 = vpack.c.b16 %v2894, %v2890
    %v2947 = vpack.c.b16 %v2899, %v2895
    %v2948 = vpack.c.b16 %v2900, %v2896
    %v2949 = vpack.c.b16 %v2901, %v2897
    %v2950 = vpack.c.b16 %v2902, %v2898
    %v2951 = vpack.c.b16 %v2907, %v2903
    %v2952 = vpack.c.b16 %v2908, %v2904
    %v2953 = vpack.c.b16 %v2909, %v2905
    %v2954 = vpack.c.b16 %v2910, %v2906
    %v2955 = vpack.c.b16 %v2915, %v2911
    %v2956 = vpack.c.b16 %v2916, %v2912
    %v2957 = vpack.c.b16 %v2917, %v2913
    %v2958 = vpack.c.b16 %v2918, %v2914
    %v2959 = vpack.c.b16 %v2923, %v2919
    %v2960 = vpack.c.b16 %v2924, %v2920
    %v2961 = vpack.c.b16 %v2925, %v2921
    %v2962 = vpack.c.b16 %v2926, %v2922
    %v2963 = vpack.c.b16 %v2931, %v2927
    %v2964 = vpack.c.b16 %v2932, %v2928
    %v2965 = vpack.c.b16 %v2933, %v2929
    %v2966 = vpack.c.b16 %v2934, %v2930
    %2999 = vmatpush.bf16.msra.mxu0 %v2963
    %3000 = vmatpush.bf16.msra.mxu0 %v2959
    %3001 = vmatpush.bf16.msra.mxu0 %v2955
    %3002 = vmatpush.bf16.msra.mxu0 %v2951
    %3003 = vmatpush.bf16.msra.mxu0 %v2947
    %3004 = vmatpush.bf16.msra.mxu0 %v2943
    %3005 = vmatpush.bf16.msra.mxu0 %v2939
    %3006 = vmatpush.bf16.msra.mxu0 %v2935
    %3007 = vmatmul.bf16.gmra.mxu0 %v2837
    %v3008 = vpop.f32.mrf.mxu0
    %v3009 = vadd.f32 %v2640, %v3008
    %v3010 = vpop.f32.mrf.mxu0
    %3011 = vdwg.mxu0
    %3012 = vmatpush.bf16.msra.mxu0 %v2964
    %3013 = vmatpush.bf16.msra.mxu0 %v2960
    %3014 = vmatpush.bf16.msra.mxu0 %v2956
    %3015 = vmatpush.bf16.msra.mxu0 %v2952
    %3016 = vmatpush.bf16.msra.mxu0 %v2948
    %3017 = vmatpush.bf16.msra.mxu0 %v2944
    %3018 = vmatpush.bf16.msra.mxu0 %v2940
    %3019 = vmatpush.bf16.msra.mxu0 %v2936
    %3020 = vmatmul.bf16.gmra.mxu0 %v2837
    %v3021 = vpop.f32.mrf.mxu0
    %v3022 = vadd.f32 %v2692, %v3021
    %v3023 = vpop.f32.mrf.mxu0
    %3024 = vdwg.mxu0
    %3025 = vmatpush.bf16.msra.mxu0 %v2965
    %3026 = vmatpush.bf16.msra.mxu0 %v2961
    %3027 = vmatpush.bf16.msra.mxu0 %v2957
    %3028 = vmatpush.bf16.msra.mxu0 %v2953
    %3029 = vmatpush.bf16.msra.mxu0 %v2949
    %3030 = vmatpush.bf16.msra.mxu0 %v2945
    %3031 = vmatpush.bf16.msra.mxu0 %v2941
    %3032 = vmatpush.bf16.msra.mxu0 %v2937
    %3033 = vmatmul.bf16.gmra.mxu0 %v2837
    %v3034 = vpop.f32.mrf.mxu0
    %v3035 = vadd.f32 %v2744, %v3034
    %v3036 = vpop.f32.mrf.mxu0
    %3037 = vdwg.mxu0
    %3038 = vmatpush.bf16.msra.mxu0 %v2966
    %3039 = vmatpush.bf16.msra.mxu0 %v2962
    %3040 = vmatpush.bf16.msra.mxu0 %v2958
    %3041 = vmatpush.bf16.msra.mxu0 %v2954
    %3042 = vmatpush.bf16.msra.mxu0 %v2950
    %3043 = vmatpush.bf16.msra.mxu0 %v2946
    %3044 = vmatpush.bf16.msra.mxu0 %v2942
    %3045 = vmatpush.bf16.msra.mxu0 %v2938
    %3046 = vmatmul.bf16.gmra.mxu0 %v2837
    %v3047 = vpop.f32.mrf.mxu0
    %v3048 = vadd.f32 %v2796, %v3047
    %v3049 = vpop.f32.mrf.mxu0
    %3050 = vdwg.mxu0
    %v3051 = vld [vmem:[%s5] sm:$0xf]
    %v3053 = vperm.slane %v3051, 0
    %v3054 = vperm.slane %v3051, 1
    %v3055 = vperm.slane %v3051, 2
    %v3056 = vperm.slane %v3051, 3
    %v3061 = vadd.f32 %v3009, %v3053
    %v3062 = vadd.f32 %v3022, %v3054
    %v3063 = vadd.f32 %v3035, %v3055
    %v3064 = vadd.f32 %v3048, %v3056
    %v3065 = vmax.f32 %v3061, 0.0
    %v3066 = vmax.f32 %v3062, 0.0
    %v3067 = vmax.f32 %v3063, 0.0
    %v3068 = vmax.f32 %v3064, 0.0
    %s3069 = smul.u32 4, 64
    %s3070 = smul.u32 %s3069, 4
    %s3071 = sshll.u32 %s3070, 4
    %3072 = dma.done %s112, %s3071
    %v3073 = vpack.c.bf16 %v3065, %v3065
    %v3074 = vpack.c.bf16 %v3066, %v3066
    %v3075 = vpack.c.bf16 %v3067, %v3067
    %v3076 = vpack.c.bf16 %v3068, %v3068
    %v3077 = vld [vmem:[#allocation4] sm:$0xff]
    %v3078 = vld [vmem:[#allocation4 + $0x8] sm:$0xff]
    %v3079 = vld [vmem:[#allocation4 + $0x10] sm:$0xff]
    %v3080 = vld [vmem:[#allocation4 + $0x18] sm:$0xff]
    %v3081 = vld [vmem:[#allocation4 + $0x20] sm:$0xff]
    %v3082 = vld [vmem:[#allocation4 + $0x28] sm:$0xff]
    %v3083 = vld [vmem:[#allocation4 + $0x30] sm:$0xff]
    %v3084 = vld [vmem:[#allocation4 + $0x38] sm:$0xff]
    %v3085 = vld [vmem:[#allocation4 + $0x40] sm:$0xff]
    %v3086 = vld [vmem:[#allocation4 + $0x48] sm:$0xff]
    %v3087 = vld [vmem:[#allocation4 + $0x50] sm:$0xff]
    %v3088 = vld [vmem:[#allocation4 + $0x58] sm:$0xff]
    %v3089 = vld [vmem:[#allocation4 + $0x60] sm:$0xff]
    %v3090 = vld [vmem:[#allocation4 + $0x68] sm:$0xff]
    %v3091 = vld [vmem:[#allocation4 + $0x70] sm:$0xff]
    %v3092 = vld [vmem:[#allocation4 + $0x78] sm:$0xff]
    %v3093 = vld [vmem:[#allocation4 + $0x80] sm:$0xff]
    %v3094 = vld [vmem:[#allocation4 + $0x88] sm:$0xff]
    %v3095 = vld [vmem:[#allocation4 + $0x90] sm:$0xff]
    %v3096 = vld [vmem:[#allocation4 + $0x98] sm:$0xff]
    %v3097 = vld [vmem:[#allocation4 + $0xa0] sm:$0xff]
    %v3098 = vld [vmem:[#allocation4 + $0xa8] sm:$0xff]
    %v3099 = vld [vmem:[#allocation4 + $0xb0] sm:$0xff]
    %v3100 = vld [vmem:[#allocation4 + $0xb8] sm:$0xff]
    %v3101 = vld [vmem:[#allocation4 + $0xc0] sm:$0xff]
    %v3102 = vld [vmem:[#allocation4 + $0xc8] sm:$0xff]
    %v3103 = vld [vmem:[#allocation4 + $0xd0] sm:$0xff]
    %v3104 = vld [vmem:[#allocation4 + $0xd8] sm:$0xff]
    %v3105 = vld [vmem:[#allocation4 + $0xe0] sm:$0xff]
    %v3106 = vld [vmem:[#allocation4 + $0xe8] sm:$0xff]
    %v3107 = vld [vmem:[#allocation4 + $0xf0] sm:$0xff]
    %v3108 = vld [vmem:[#allocation4 + $0xf8] sm:$0xff]
    %v3109 = vld [vmem:[#allocation4 + $0x100] sm:$0xff]
    %v3110 = vld [vmem:[#allocation4 + $0x108] sm:$0xff]
    %v3111 = vld [vmem:[#allocation4 + $0x110] sm:$0xff]
    %v3112 = vld [vmem:[#allocation4 + $0x118] sm:$0xff]
    %v3113 = vld [vmem:[#allocation4 + $0x120] sm:$0xff]
    %v3114 = vld [vmem:[#allocation4 + $0x128] sm:$0xff]
    %v3115 = vld [vmem:[#allocation4 + $0x130] sm:$0xff]
    %v3116 = vld [vmem:[#allocation4 + $0x138] sm:$0xff]
    %v3117 = vld [vmem:[#allocation4 + $0x140] sm:$0xff]
    %v3118 = vld [vmem:[#allocation4 + $0x148] sm:$0xff]
    %v3119 = vld [vmem:[#allocation4 + $0x150] sm:$0xff]
    %v3120 = vld [vmem:[#allocation4 + $0x158] sm:$0xff]
    %v3121 = vld [vmem:[#allocation4 + $0x160] sm:$0xff]
    %v3122 = vld [vmem:[#allocation4 + $0x168] sm:$0xff]
    %v3123 = vld [vmem:[#allocation4 + $0x170] sm:$0xff]
    %v3124 = vld [vmem:[#allocation4 + $0x178] sm:$0xff]
    %v3125 = vld [vmem:[#allocation4 + $0x180] sm:$0xff]
    %v3126 = vld [vmem:[#allocation4 + $0x188] sm:$0xff]
    %v3127 = vld [vmem:[#allocation4 + $0x190] sm:$0xff]
    %v3128 = vld [vmem:[#allocation4 + $0x198] sm:$0xff]
    %v3129 = vld [vmem:[#allocation4 + $0x1a0] sm:$0xff]
    %v3130 = vld [vmem:[#allocation4 + $0x1a8] sm:$0xff]
    %v3131 = vld [vmem:[#allocation4 + $0x1b0] sm:$0xff]
    %v3132 = vld [vmem:[#allocation4 + $0x1b8] sm:$0xff]
    %v3133 = vld [vmem:[#allocation4 + $0x1c0] sm:$0xff]
    %v3134 = vld [vmem:[#allocation4 + $0x1c8] sm:$0xff]
    %v3135 = vld [vmem:[#allocation4 + $0x1d0] sm:$0xff]
    %v3136 = vld [vmem:[#allocation4 + $0x1d8] sm:$0xff]
    %v3137 = vld [vmem:[#allocation4 + $0x1e0] sm:$0xff]
    %v3138 = vld [vmem:[#allocation4 + $0x1e8] sm:$0xff]
    %v3139 = vld [vmem:[#allocation4 + $0x1f0] sm:$0xff]
    %v3140 = vld [vmem:[#allocation4 + $0x1f8] sm:$0xff]
    %v3141 = vld [vmem:[#allocation4 + $0x200] sm:$0xff]
    %v3142 = vld [vmem:[#allocation4 + $0x208] sm:$0xff]
    %v3143 = vld [vmem:[#allocation4 + $0x210] sm:$0xff]
    %v3144 = vld [vmem:[#allocation4 + $0x218] sm:$0xff]
    %v3145 = vld [vmem:[#allocation4 + $0x220] sm:$0xff]
    %v3146 = vld [vmem:[#allocation4 + $0x228] sm:$0xff]
    %v3147 = vld [vmem:[#allocation4 + $0x230] sm:$0xff]
    %v3148 = vld [vmem:[#allocation4 + $0x238] sm:$0xff]
    %v3149 = vld [vmem:[#allocation4 + $0x240] sm:$0xff]
    %v3150 = vld [vmem:[#allocation4 + $0x248] sm:$0xff]
    %v3151 = vld [vmem:[#allocation4 + $0x250] sm:$0xff]
    %v3152 = vld [vmem:[#allocation4 + $0x258] sm:$0xff]
    %v3153 = vld [vmem:[#allocation4 + $0x260] sm:$0xff]
    %v3154 = vld [vmem:[#allocation4 + $0x268] sm:$0xff]
    %v3155 = vld [vmem:[#allocation4 + $0x270] sm:$0xff]
    %v3156 = vld [vmem:[#allocation4 + $0x278] sm:$0xff]
    %v3157 = vld [vmem:[#allocation4 + $0x280] sm:$0xff]
    %v3158 = vld [vmem:[#allocation4 + $0x288] sm:$0xff]
    %v3159 = vld [vmem:[#allocation4 + $0x290] sm:$0xff]
    %v3160 = vld [vmem:[#allocation4 + $0x298] sm:$0xff]
    %v3161 = vld [vmem:[#allocation4 + $0x2a0] sm:$0xff]
    %v3162 = vld [vmem:[#allocation4 + $0x2a8] sm:$0xff]
    %v3163 = vld [vmem:[#allocation4 + $0x2b0] sm:$0xff]
    %v3164 = vld [vmem:[#allocation4 + $0x2b8] sm:$0xff]
    %v3165 = vld [vmem:[#allocation4 + $0x2c0] sm:$0xff]
    %v3166 = vld [vmem:[#allocation4 + $0x2c8] sm:$0xff]
    %v3167 = vld [vmem:[#allocation4 + $0x2d0] sm:$0xff]
    %v3168 = vld [vmem:[#allocation4 + $0x2d8] sm:$0xff]
    %v3169 = vld [vmem:[#allocation4 + $0x2e0] sm:$0xff]
    %v3170 = vld [vmem:[#allocation4 + $0x2e8] sm:$0xff]
    %v3171 = vld [vmem:[#allocation4 + $0x2f0] sm:$0xff]
    %v3172 = vld [vmem:[#allocation4 + $0x2f8] sm:$0xff]
    %v3173 = vld [vmem:[#allocation4 + $0x300] sm:$0xff]
    %v3174 = vld [vmem:[#allocation4 + $0x308] sm:$0xff]
    %v3175 = vld [vmem:[#allocation4 + $0x310] sm:$0xff]
    %v3176 = vld [vmem:[#allocation4 + $0x318] sm:$0xff]
    %v3177 = vld [vmem:[#allocation4 + $0x320] sm:$0xff]
    %v3178 = vld [vmem:[#allocation4 + $0x328] sm:$0xff]
    %v3179 = vld [vmem:[#allocation4 + $0x330] sm:$0xff]
    %v3180 = vld [vmem:[#allocation4 + $0x338] sm:$0xff]
    %v3181 = vld [vmem:[#allocation4 + $0x340] sm:$0xff]
    %v3182 = vld [vmem:[#allocation4 + $0x348] sm:$0xff]
    %v3183 = vld [vmem:[#allocation4 + $0x350] sm:$0xff]
    %v3184 = vld [vmem:[#allocation4 + $0x358] sm:$0xff]
    %v3185 = vld [vmem:[#allocation4 + $0x360] sm:$0xff]
    %v3186 = vld [vmem:[#allocation4 + $0x368] sm:$0xff]
    %v3187 = vld [vmem:[#allocation4 + $0x370] sm:$0xff]
    %v3188 = vld [vmem:[#allocation4 + $0x378] sm:$0xff]
    %v3189 = vld [vmem:[#allocation4 + $0x380] sm:$0xff]
    %v3190 = vld [vmem:[#allocation4 + $0x388] sm:$0xff]
    %v3191 = vld [vmem:[#allocation4 + $0x390] sm:$0xff]
    %v3192 = vld [vmem:[#allocation4 + $0x398] sm:$0xff]
    %v3193 = vld [vmem:[#allocation4 + $0x3a0] sm:$0xff]
    %v3194 = vld [vmem:[#allocation4 + $0x3a8] sm:$0xff]
    %v3195 = vld [vmem:[#allocation4 + $0x3b0] sm:$0xff]
    %v3196 = vld [vmem:[#allocation4 + $0x3b8] sm:$0xff]
    %v3197 = vld [vmem:[#allocation4 + $0x3c0] sm:$0xff]
    %v3198 = vld [vmem:[#allocation4 + $0x3c8] sm:$0xff]
    %v3199 = vld [vmem:[#allocation4 + $0x3d0] sm:$0xff]
    %v3200 = vld [vmem:[#allocation4 + $0x3d8] sm:$0xff]
    %v3201 = vld [vmem:[#allocation4 + $0x3e0] sm:$0xff]
    %v3202 = vld [vmem:[#allocation4 + $0x3e8] sm:$0xff]
    %v3203 = vld [vmem:[#allocation4 + $0x3f0] sm:$0xff]
    %v3204 = vld [vmem:[#allocation4 + $0x3f8] sm:$0xff]
    %v3205 = vld [vmem:[%s6] sm:$0xf]
    %v3207 = vperm.slane %v3205, 0
    %v3208 = vperm.slane %v3205, 1
    %v3209 = vperm.slane %v3205, 2
    %v3210 = vperm.slane %v3205, 3
    %v3343 = vunpack.c.l.b16 %v3077
    %v3344 = vunpack.c.h.b16 %v3077
    %v3345 = vunpack.c.l.b16 %v3078
    %v3346 = vunpack.c.h.b16 %v3078
    %v3347 = vunpack.c.l.b16 %v3079
    %v3348 = vunpack.c.h.b16 %v3079
    %v3349 = vunpack.c.l.b16 %v3080
    %v3350 = vunpack.c.h.b16 %v3080
    %v3351 = vunpack.c.l.b16 %v3081
    %v3352 = vunpack.c.h.b16 %v3081
    %v3353 = vunpack.c.l.b16 %v3082
    %v3354 = vunpack.c.h.b16 %v3082
    %v3355 = vunpack.c.l.b16 %v3083
    %v3356 = vunpack.c.h.b16 %v3083
    %v3357 = vunpack.c.l.b16 %v3084
    %v3358 = vunpack.c.h.b16 %v3084
    %v3359 = vunpack.c.l.b16 %v3085
    %v3360 = vunpack.c.h.b16 %v3085
    %v3361 = vunpack.c.l.b16 %v3086
    %v3362 = vunpack.c.h.b16 %v3086
    %v3363 = vunpack.c.l.b16 %v3087
    %v3364 = vunpack.c.h.b16 %v3087
    %v3365 = vunpack.c.l.b16 %v3088
    %v3366 = vunpack.c.h.b16 %v3088
    %v3367 = vunpack.c.l.b16 %v3089
    %v3368 = vunpack.c.h.b16 %v3089
    %v3369 = vunpack.c.l.b16 %v3090
    %v3370 = vunpack.c.h.b16 %v3090
    %v3371 = vunpack.c.l.b16 %v3091
    %v3372 = vunpack.c.h.b16 %v3091
    %v3373 = vunpack.c.l.b16 %v3092
    %v3374 = vunpack.c.h.b16 %v3092
    %v3375 = vunpack.c.l.b16 %v3093
    %v3376 = vunpack.c.h.b16 %v3093
    %v3377 = vunpack.c.l.b16 %v3094
    %v3378 = vunpack.c.h.b16 %v3094
    %v3379 = vunpack.c.l.b16 %v3095
    %v3380 = vunpack.c.h.b16 %v3095
    %v3381 = vunpack.c.l.b16 %v3096
    %v3382 = vunpack.c.h.b16 %v3096
    %v3383 = vunpack.c.l.b16 %v3097
    %v3384 = vunpack.c.h.b16 %v3097
    %v3385 = vunpack.c.l.b16 %v3098
    %v3386 = vunpack.c.h.b16 %v3098
    %v3387 = vunpack.c.l.b16 %v3099
    %v3388 = vunpack.c.h.b16 %v3099
    %v3389 = vunpack.c.l.b16 %v3100
    %v3390 = vunpack.c.h.b16 %v3100
    %v3391 = vunpack.c.l.b16 %v3101
    %v3392 = vunpack.c.h.b16 %v3101
    %v3393 = vunpack.c.l.b16 %v3102
    %v3394 = vunpack.c.h.b16 %v3102
    %v3395 = vunpack.c.l.b16 %v3103
    %v3396 = vunpack.c.h.b16 %v3103
    %v3397 = vunpack.c.l.b16 %v3104
    %v3398 = vunpack.c.h.b16 %v3104
    %v3399 = vunpack.c.l.b16 %v3105
    %v3400 = vunpack.c.h.b16 %v3105
    %v3401 = vunpack.c.l.b16 %v3106
    %v3402 = vunpack.c.h.b16 %v3106
    %v3403 = vunpack.c.l.b16 %v3107
    %v3404 = vunpack.c.h.b16 %v3107
    %v3405 = vunpack.c.l.b16 %v3108
    %v3406 = vunpack.c.h.b16 %v3108
    %v3407 = vunpack.c.l.b16 %v3109
    %v3408 = vunpack.c.h.b16 %v3109
    %v3409 = vunpack.c.l.b16 %v3110
    %v3410 = vunpack.c.h.b16 %v3110
    %v3411 = vunpack.c.l.b16 %v3111
    %v3412 = vunpack.c.h.b16 %v3111
    %v3413 = vunpack.c.l.b16 %v3112
    %v3414 = vunpack.c.h.b16 %v3112
    %v3415 = vunpack.c.l.b16 %v3113
    %v3416 = vunpack.c.h.b16 %v3113
    %v3417 = vunpack.c.l.b16 %v3114
    %v3418 = vunpack.c.h.b16 %v3114
    %v3419 = vunpack.c.l.b16 %v3115
    %v3420 = vunpack.c.h.b16 %v3115
    %v3421 = vunpack.c.l.b16 %v3116
    %v3422 = vunpack.c.h.b16 %v3116
    %v3423 = vunpack.c.l.b16 %v3117
    %v3424 = vunpack.c.h.b16 %v3117
    %v3425 = vunpack.c.l.b16 %v3118
    %v3426 = vunpack.c.h.b16 %v3118
    %v3427 = vunpack.c.l.b16 %v3119
    %v3428 = vunpack.c.h.b16 %v3119
    %v3429 = vunpack.c.l.b16 %v3120
    %v3430 = vunpack.c.h.b16 %v3120
    %v3431 = vunpack.c.l.b16 %v3121
    %v3432 = vunpack.c.h.b16 %v3121
    %v3433 = vunpack.c.l.b16 %v3122
    %v3434 = vunpack.c.h.b16 %v3122
    %v3435 = vunpack.c.l.b16 %v3123
    %v3436 = vunpack.c.h.b16 %v3123
    %v3437 = vunpack.c.l.b16 %v3124
    %v3438 = vunpack.c.h.b16 %v3124
    %v3439 = vunpack.c.l.b16 %v3125
    %v3440 = vunpack.c.h.b16 %v3125
    %v3441 = vunpack.c.l.b16 %v3126
    %v3442 = vunpack.c.h.b16 %v3126
    %v3443 = vunpack.c.l.b16 %v3127
    %v3444 = vunpack.c.h.b16 %v3127
    %v3445 = vunpack.c.l.b16 %v3128
    %v3446 = vunpack.c.h.b16 %v3128
    %v3447 = vunpack.c.l.b16 %v3129
    %v3448 = vunpack.c.h.b16 %v3129
    %v3449 = vunpack.c.l.b16 %v3130
    %v3450 = vunpack.c.h.b16 %v3130
    %v3451 = vunpack.c.l.b16 %v3131
    %v3452 = vunpack.c.h.b16 %v3131
    %v3453 = vunpack.c.l.b16 %v3132
    %v3454 = vunpack.c.h.b16 %v3132
    %v3455 = vunpack.c.l.b16 %v3133
    %v3456 = vunpack.c.h.b16 %v3133
    %v3457 = vunpack.c.l.b16 %v3134
    %v3458 = vunpack.c.h.b16 %v3134
    %v3459 = vunpack.c.l.b16 %v3135
    %v3460 = vunpack.c.h.b16 %v3135
    %v3461 = vunpack.c.l.b16 %v3136
    %v3462 = vunpack.c.h.b16 %v3136
    %v3463 = vunpack.c.l.b16 %v3137
    %v3464 = vunpack.c.h.b16 %v3137
    %v3465 = vunpack.c.l.b16 %v3138
    %v3466 = vunpack.c.h.b16 %v3138
    %v3467 = vunpack.c.l.b16 %v3139
    %v3468 = vunpack.c.h.b16 %v3139
    %v3469 = vunpack.c.l.b16 %v3140
    %v3470 = vunpack.c.h.b16 %v3140
    %v3471 = vunpack.c.l.b16 %v3141
    %v3472 = vunpack.c.h.b16 %v3141
    %v3473 = vunpack.c.l.b16 %v3142
    %v3474 = vunpack.c.h.b16 %v3142
    %v3475 = vunpack.c.l.b16 %v3143
    %v3476 = vunpack.c.h.b16 %v3143
    %v3477 = vunpack.c.l.b16 %v3144
    %v3478 = vunpack.c.h.b16 %v3144
    %v3479 = vunpack.c.l.b16 %v3145
    %v3480 = vunpack.c.h.b16 %v3145
    %v3481 = vunpack.c.l.b16 %v3146
    %v3482 = vunpack.c.h.b16 %v3146
    %v3483 = vunpack.c.l.b16 %v3147
    %v3484 = vunpack.c.h.b16 %v3147
    %v3485 = vunpack.c.l.b16 %v3148
    %v3486 = vunpack.c.h.b16 %v3148
    %v3487 = vunpack.c.l.b16 %v3149
    %v3488 = vunpack.c.h.b16 %v3149
    %v3489 = vunpack.c.l.b16 %v3150
    %v3490 = vunpack.c.h.b16 %v3150
    %v3491 = vunpack.c.l.b16 %v3151
    %v3492 = vunpack.c.h.b16 %v3151
    %v3493 = vunpack.c.l.b16 %v3152
    %v3494 = vunpack.c.h.b16 %v3152
    %v3495 = vunpack.c.l.b16 %v3153
    %v3496 = vunpack.c.h.b16 %v3153
    %v3497 = vunpack.c.l.b16 %v3154
    %v3498 = vunpack.c.h.b16 %v3154
    %v3499 = vunpack.c.l.b16 %v3155
    %v3500 = vunpack.c.h.b16 %v3155
    %v3501 = vunpack.c.l.b16 %v3156
    %v3502 = vunpack.c.h.b16 %v3156
    %v3503 = vunpack.c.l.b16 %v3157
    %v3504 = vunpack.c.h.b16 %v3157
    %v3505 = vunpack.c.l.b16 %v3158
    %v3506 = vunpack.c.h.b16 %v3158
    %v3507 = vunpack.c.l.b16 %v3159
    %v3508 = vunpack.c.h.b16 %v3159
    %v3509 = vunpack.c.l.b16 %v3160
    %v3510 = vunpack.c.h.b16 %v3160
    %v3511 = vunpack.c.l.b16 %v3161
    %v3512 = vunpack.c.h.b16 %v3161
    %v3513 = vunpack.c.l.b16 %v3162
    %v3514 = vunpack.c.h.b16 %v3162
    %v3515 = vunpack.c.l.b16 %v3163
    %v3516 = vunpack.c.h.b16 %v3163
    %v3517 = vunpack.c.l.b16 %v3164
    %v3518 = vunpack.c.h.b16 %v3164
    %v3519 = vunpack.c.l.b16 %v3165
    %v3520 = vunpack.c.h.b16 %v3165
    %v3521 = vunpack.c.l.b16 %v3166
    %v3522 = vunpack.c.h.b16 %v3166
    %v3523 = vunpack.c.l.b16 %v3167
    %v3524 = vunpack.c.h.b16 %v3167
    %v3525 = vunpack.c.l.b16 %v3168
    %v3526 = vunpack.c.h.b16 %v3168
    %v3527 = vunpack.c.l.b16 %v3169
    %v3528 = vunpack.c.h.b16 %v3169
    %v3529 = vunpack.c.l.b16 %v3170
    %v3530 = vunpack.c.h.b16 %v3170
    %v3531 = vunpack.c.l.b16 %v3171
    %v3532 = vunpack.c.h.b16 %v3171
    %v3533 = vunpack.c.l.b16 %v3172
    %v3534 = vunpack.c.h.b16 %v3172
    %v3535 = vunpack.c.l.b16 %v3173
    %v3536 = vunpack.c.h.b16 %v3173
    %v3537 = vunpack.c.l.b16 %v3174
    %v3538 = vunpack.c.h.b16 %v3174
    %v3539 = vunpack.c.l.b16 %v3175
    %v3540 = vunpack.c.h.b16 %v3175
    %v3541 = vunpack.c.l.b16 %v3176
    %v3542 = vunpack.c.h.b16 %v3176
    %v3543 = vunpack.c.l.b16 %v3177
    %v3544 = vunpack.c.h.b16 %v3177
    %v3545 = vunpack.c.l.b16 %v3178
    %v3546 = vunpack.c.h.b16 %v3178
    %v3547 = vunpack.c.l.b16 %v3179
    %v3548 = vunpack.c.h.b16 %v3179
    %v3549 = vunpack.c.l.b16 %v3180
    %v3550 = vunpack.c.h.b16 %v3180
    %v3551 = vunpack.c.l.b16 %v3181
    %v3552 = vunpack.c.h.b16 %v3181
    %v3553 = vunpack.c.l.b16 %v3182
    %v3554 = vunpack.c.h.b16 %v3182
    %v3555 = vunpack.c.l.b16 %v3183
    %v3556 = vunpack.c.h.b16 %v3183
    %v3557 = vunpack.c.l.b16 %v3184
    %v3558 = vunpack.c.h.b16 %v3184
    %v3559 = vunpack.c.l.b16 %v3185
    %v3560 = vunpack.c.h.b16 %v3185
    %v3561 = vunpack.c.l.b16 %v3186
    %v3562 = vunpack.c.h.b16 %v3186
    %v3563 = vunpack.c.l.b16 %v3187
    %v3564 = vunpack.c.h.b16 %v3187
    %v3565 = vunpack.c.l.b16 %v3188
    %v3566 = vunpack.c.h.b16 %v3188
    %v3567 = vunpack.c.l.b16 %v3189
    %v3568 = vunpack.c.h.b16 %v3189
    %v3569 = vunpack.c.l.b16 %v3190
    %v3570 = vunpack.c.h.b16 %v3190
    %v3571 = vunpack.c.l.b16 %v3191
    %v3572 = vunpack.c.h.b16 %v3191
    %v3573 = vunpack.c.l.b16 %v3192
    %v3574 = vunpack.c.h.b16 %v3192
    %v3575 = vunpack.c.l.b16 %v3193
    %v3576 = vunpack.c.h.b16 %v3193
    %v3577 = vunpack.c.l.b16 %v3194
    %v3578 = vunpack.c.h.b16 %v3194
    %v3579 = vunpack.c.l.b16 %v3195
    %v3580 = vunpack.c.h.b16 %v3195
    %v3581 = vunpack.c.l.b16 %v3196
    %v3582 = vunpack.c.h.b16 %v3196
    %v3583 = vunpack.c.l.b16 %v3197
    %v3584 = vunpack.c.h.b16 %v3197
    %v3585 = vunpack.c.l.b16 %v3198
    %v3586 = vunpack.c.h.b16 %v3198
    %v3587 = vunpack.c.l.b16 %v3199
    %v3588 = vunpack.c.h.b16 %v3199
    %v3589 = vunpack.c.l.b16 %v3200
    %v3590 = vunpack.c.h.b16 %v3200
    %v3591 = vunpack.c.l.b16 %v3201
    %v3592 = vunpack.c.h.b16 %v3201
    %v3593 = vunpack.c.l.b16 %v3202
    %v3594 = vunpack.c.h.b16 %v3202
    %v3595 = vunpack.c.l.b16 %v3203
    %v3596 = vunpack.c.h.b16 %v3203
    %v3597 = vunpack.c.l.b16 %v3204
    %v3598 = vunpack.c.h.b16 %v3204
    %v3599 = vpack.c.b16 %v3347, %v3343
    %v3600 = vpack.c.b16 %v3348, %v3344
    %v3601 = vpack.c.b16 %v3349, %v3345
    %v3602 = vpack.c.b16 %v3350, %v3346
    %v3603 = vpack.c.b16 %v3355, %v3351
    %v3604 = vpack.c.b16 %v3356, %v3352
    %v3605 = vpack.c.b16 %v3357, %v3353
    %v3606 = vpack.c.b16 %v3358, %v3354
    %v3607 = vpack.c.b16 %v3363, %v3359
    %v3608 = vpack.c.b16 %v3364, %v3360
    %v3609 = vpack.c.b16 %v3365, %v3361
    %v3610 = vpack.c.b16 %v3366, %v3362
    %v3611 = vpack.c.b16 %v3371, %v3367
    %v3612 = vpack.c.b16 %v3372, %v3368
    %v3613 = vpack.c.b16 %v3373, %v3369
    %v3614 = vpack.c.b16 %v3374, %v3370
    %v3615 = vpack.c.b16 %v3379, %v3375
    %v3616 = vpack.c.b16 %v3380, %v3376
    %v3617 = vpack.c.b16 %v3381, %v3377
    %v3618 = vpack.c.b16 %v3382, %v3378
    %v3619 = vpack.c.b16 %v3387, %v3383
    %v3620 = vpack.c.b16 %v3388, %v3384
    %v3621 = vpack.c.b16 %v3389, %v3385
    %v3622 = vpack.c.b16 %v3390, %v3386
    %v3623 = vpack.c.b16 %v3395, %v3391
    %v3624 = vpack.c.b16 %v3396, %v3392
    %v3625 = vpack.c.b16 %v3397, %v3393
    %v3626 = vpack.c.b16 %v3398, %v3394
    %v3627 = vpack.c.b16 %v3403, %v3399
    %v3628 = vpack.c.b16 %v3404, %v3400
    %v3629 = vpack.c.b16 %v3405, %v3401
    %v3630 = vpack.c.b16 %v3406, %v3402
    %v3631 = vpack.c.b16 %v3411, %v3407
    %v3632 = vpack.c.b16 %v3412, %v3408
    %v3633 = vpack.c.b16 %v3413, %v3409
    %v3634 = vpack.c.b16 %v3414, %v3410
    %v3635 = vpack.c.b16 %v3419, %v3415
    %v3636 = vpack.c.b16 %v3420, %v3416
    %v3637 = vpack.c.b16 %v3421, %v3417
    %v3638 = vpack.c.b16 %v3422, %v3418
    %v3639 = vpack.c.b16 %v3427, %v3423
    %v3640 = vpack.c.b16 %v3428, %v3424
    %v3641 = vpack.c.b16 %v3429, %v3425
    %v3642 = vpack.c.b16 %v3430, %v3426
    %v3643 = vpack.c.b16 %v3435, %v3431
    %v3644 = vpack.c.b16 %v3436, %v3432
    %v3645 = vpack.c.b16 %v3437, %v3433
    %v3646 = vpack.c.b16 %v3438, %v3434
    %v3647 = vpack.c.b16 %v3443, %v3439
    %v3648 = vpack.c.b16 %v3444, %v3440
    %v3649 = vpack.c.b16 %v3445, %v3441
    %v3650 = vpack.c.b16 %v3446, %v3442
    %v3651 = vpack.c.b16 %v3451, %v3447
    %v3652 = vpack.c.b16 %v3452, %v3448
    %v3653 = vpack.c.b16 %v3453, %v3449
    %v3654 = vpack.c.b16 %v3454, %v3450
    %v3655 = vpack.c.b16 %v3459, %v3455
    %v3656 = vpack.c.b16 %v3460, %v3456
    %v3657 = vpack.c.b16 %v3461, %v3457
    %v3658 = vpack.c.b16 %v3462, %v3458
    %v3659 = vpack.c.b16 %v3467, %v3463
    %v3660 = vpack.c.b16 %v3468, %v3464
    %v3661 = vpack.c.b16 %v3469, %v3465
    %v3662 = vpack.c.b16 %v3470, %v3466
    %v3663 = vpack.c.b16 %v3475, %v3471
    %v3664 = vpack.c.b16 %v3476, %v3472
    %v3665 = vpack.c.b16 %v3477, %v3473
    %v3666 = vpack.c.b16 %v3478, %v3474
    %v3667 = vpack.c.b16 %v3483, %v3479
    %v3668 = vpack.c.b16 %v3484, %v3480
    %v3669 = vpack.c.b16 %v3485, %v3481
    %v3670 = vpack.c.b16 %v3486, %v3482
    %v3671 = vpack.c.b16 %v3491, %v3487
    %v3672 = vpack.c.b16 %v3492, %v3488
    %v3673 = vpack.c.b16 %v3493, %v3489
    %v3674 = vpack.c.b16 %v3494, %v3490
    %v3675 = vpack.c.b16 %v3499, %v3495
    %v3676 = vpack.c.b16 %v3500, %v3496
    %v3677 = vpack.c.b16 %v3501, %v3497
    %v3678 = vpack.c.b16 %v3502, %v3498
    %v3679 = vpack.c.b16 %v3507, %v3503
    %v3680 = vpack.c.b16 %v3508, %v3504
    %v3681 = vpack.c.b16 %v3509, %v3505
    %v3682 = vpack.c.b16 %v3510, %v3506
    %v3683 = vpack.c.b16 %v3515, %v3511
    %v3684 = vpack.c.b16 %v3516, %v3512
    %v3685 = vpack.c.b16 %v3517, %v3513
    %v3686 = vpack.c.b16 %v3518, %v3514
    %v3687 = vpack.c.b16 %v3523, %v3519
    %v3688 = vpack.c.b16 %v3524, %v3520
    %v3689 = vpack.c.b16 %v3525, %v3521
    %v3690 = vpack.c.b16 %v3526, %v3522
    %v3691 = vpack.c.b16 %v3531, %v3527
    %v3692 = vpack.c.b16 %v3532, %v3528
    %v3693 = vpack.c.b16 %v3533, %v3529
    %v3694 = vpack.c.b16 %v3534, %v3530
    %v3695 = vpack.c.b16 %v3539, %v3535
    %v3696 = vpack.c.b16 %v3540, %v3536
    %v3697 = vpack.c.b16 %v3541, %v3537
    %v3698 = vpack.c.b16 %v3542, %v3538
    %v3699 = vpack.c.b16 %v3547, %v3543
    %v3700 = vpack.c.b16 %v3548, %v3544
    %v3701 = vpack.c.b16 %v3549, %v3545
    %v3702 = vpack.c.b16 %v3550, %v3546
    %v3703 = vpack.c.b16 %v3555, %v3551
    %v3704 = vpack.c.b16 %v3556, %v3552
    %v3705 = vpack.c.b16 %v3557, %v3553
    %v3706 = vpack.c.b16 %v3558, %v3554
    %v3707 = vpack.c.b16 %v3563, %v3559
    %v3708 = vpack.c.b16 %v3564, %v3560
    %v3709 = vpack.c.b16 %v3565, %v3561
    %v3710 = vpack.c.b16 %v3566, %v3562
    %v3711 = vpack.c.b16 %v3571, %v3567
    %v3712 = vpack.c.b16 %v3572, %v3568
    %v3713 = vpack.c.b16 %v3573, %v3569
    %v3714 = vpack.c.b16 %v3574, %v3570
    %v3715 = vpack.c.b16 %v3579, %v3575
    %v3716 = vpack.c.b16 %v3580, %v3576
    %v3717 = vpack.c.b16 %v3581, %v3577
    %v3718 = vpack.c.b16 %v3582, %v3578
    %v3719 = vpack.c.b16 %v3587, %v3583
    %v3720 = vpack.c.b16 %v3588, %v3584
    %v3721 = vpack.c.b16 %v3589, %v3585
    %v3722 = vpack.c.b16 %v3590, %v3586
    %v3723 = vpack.c.b16 %v3595, %v3591
    %v3724 = vpack.c.b16 %v3596, %v3592
    %v3725 = vpack.c.b16 %v3597, %v3593
    %v3726 = vpack.c.b16 %v3598, %v3594
    %3855 = vmatpush.bf16.msra.mxu0 %v3627
    %3856 = vmatpush.bf16.msra.mxu0 %v3623
    %3857 = vmatpush.bf16.msra.mxu0 %v3619
    %3858 = vmatpush.bf16.msra.mxu0 %v3615
    %3859 = vmatpush.bf16.msra.mxu0 %v3611
    %3860 = vmatpush.bf16.msra.mxu0 %v3607
    %3861 = vmatpush.bf16.msra.mxu0 %v3603
    %3862 = vmatpush.bf16.msra.mxu0 %v3599
    %3863 = vmatmul.bf16.gmra.mxu0 %v3073
    %v3864 = vpop.f32.mrf.mxu0
    %v3865 = vadd.f32 %v3207, %v3864
    %v3866 = vpop.f32.mrf.mxu0
    %3867 = vdwg.mxu0
    %3868 = vmatpush.bf16.msra.mxu0 %v3659
    %3869 = vmatpush.bf16.msra.mxu0 %v3655
    %3870 = vmatpush.bf16.msra.mxu0 %v3651
    %3871 = vmatpush.bf16.msra.mxu0 %v3647
    %3872 = vmatpush.bf16.msra.mxu0 %v3643
    %3873 = vmatpush.bf16.msra.mxu0 %v3639
    %3874 = vmatpush.bf16.msra.mxu0 %v3635
    %3875 = vmatpush.bf16.msra.mxu0 %v3631
    %3876 = vmatmul.bf16.gmra.mxu0 %v3074
    %v3877 = vpop.f32.mrf.mxu0
    %v3878 = vadd.f32 %v3865, %v3877
    %v3879 = vpop.f32.mrf.mxu0
    %3880 = vdwg.mxu0
    %3881 = vmatpush.bf16.msra.mxu0 %v3691
    %3882 = vmatpush.bf16.msra.mxu0 %v3687
    %3883 = vmatpush.bf16.msra.mxu0 %v3683
    %3884 = vmatpush.bf16.msra.mxu0 %v3679
    %3885 = vmatpush.bf16.msra.mxu0 %v3675
    %3886 = vmatpush.bf16.msra.mxu0 %v3671
    %3887 = vmatpush.bf16.msra.mxu0 %v3667
    %3888 = vmatpush.bf16.msra.mxu0 %v3663
    %3889 = vmatmul.bf16.gmra.mxu0 %v3075
    %v3890 = vpop.f32.mrf.mxu0
    %v3891 = vadd.f32 %v3878, %v3890
    %v3892 = vpop.f32.mrf.mxu0
    %3893 = vdwg.mxu0
    %3894 = vmatpush.bf16.msra.mxu0 %v3723
    %3895 = vmatpush.bf16.msra.mxu0 %v3719
    %3896 = vmatpush.bf16.msra.mxu0 %v3715
    %3897 = vmatpush.bf16.msra.mxu0 %v3711
    %3898 = vmatpush.bf16.msra.mxu0 %v3707
    %3899 = vmatpush.bf16.msra.mxu0 %v3703
    %3900 = vmatpush.bf16.msra.mxu0 %v3699
    %3901 = vmatpush.bf16.msra.mxu0 %v3695
    %3902 = vmatmul.bf16.gmra.mxu0 %v3076
    %v3903 = vpop.f32.mrf.mxu0
    %v3904 = vadd.f32 %v3891, %v3903
    %v3905 = vpop.f32.mrf.mxu0
    %3906 = vdwg.mxu0
    %3907 = vmatpush.bf16.msra.mxu0 %v3628
    %3908 = vmatpush.bf16.msra.mxu0 %v3624
    %3909 = vmatpush.bf16.msra.mxu0 %v3620
    %3910 = vmatpush.bf16.msra.mxu0 %v3616
    %3911 = vmatpush.bf16.msra.mxu0 %v3612
    %3912 = vmatpush.bf16.msra.mxu0 %v3608
    %3913 = vmatpush.bf16.msra.mxu0 %v3604
    %3914 = vmatpush.bf16.msra.mxu0 %v3600
    %3915 = vmatmul.bf16.gmra.mxu0 %v3073
    %v3916 = vpop.f32.mrf.mxu0
    %v3917 = vadd.f32 %v3208, %v3916
    %v3918 = vpop.f32.mrf.mxu0
    %3919 = vdwg.mxu0
    %3920 = vmatpush.bf16.msra.mxu0 %v3660
    %3921 = vmatpush.bf16.msra.mxu0 %v3656
    %3922 = vmatpush.bf16.msra.mxu0 %v3652
    %3923 = vmatpush.bf16.msra.mxu0 %v3648
    %3924 = vmatpush.bf16.msra.mxu0 %v3644
    %3925 = vmatpush.bf16.msra.mxu0 %v3640
    %3926 = vmatpush.bf16.msra.mxu0 %v3636
    %3927 = vmatpush.bf16.msra.mxu0 %v3632
    %3928 = vmatmul.bf16.gmra.mxu0 %v3074
    %v3929 = vpop.f32.mrf.mxu0
    %v3930 = vadd.f32 %v3917, %v3929
    %v3931 = vpop.f32.mrf.mxu0
    %3932 = vdwg.mxu0
    %3933 = vmatpush.bf16.msra.mxu0 %v3692
    %3934 = vmatpush.bf16.msra.mxu0 %v3688
    %3935 = vmatpush.bf16.msra.mxu0 %v3684
    %3936 = vmatpush.bf16.msra.mxu0 %v3680
    %3937 = vmatpush.bf16.msra.mxu0 %v3676
    %3938 = vmatpush.bf16.msra.mxu0 %v3672
    %3939 = vmatpush.bf16.msra.mxu0 %v3668
    %3940 = vmatpush.bf16.msra.mxu0 %v3664
    %3941 = vmatmul.bf16.gmra.mxu0 %v3075
    %v3942 = vpop.f32.mrf.mxu0
    %v3943 = vadd.f32 %v3930, %v3942
    %v3944 = vpop.f32.mrf.mxu0
    %3945 = vdwg.mxu0
    %3946 = vmatpush.bf16.msra.mxu0 %v3724
    %3947 = vmatpush.bf16.msra.mxu0 %v3720
    %3948 = vmatpush.bf16.msra.mxu0 %v3716
    %3949 = vmatpush.bf16.msra.mxu0 %v3712
    %3950 = vmatpush.bf16.msra.mxu0 %v3708
    %3951 = vmatpush.bf16.msra.mxu0 %v3704
    %3952 = vmatpush.bf16.msra.mxu0 %v3700
    %3953 = vmatpush.bf16.msra.mxu0 %v3696
    %3954 = vmatmul.bf16.gmra.mxu0 %v3076
    %v3955 = vpop.f32.mrf.mxu0
    %v3956 = vadd.f32 %v3943, %v3955
    %v3957 = vpop.f32.mrf.mxu0
    %3958 = vdwg.mxu0
    %3959 = vmatpush.bf16.msra.mxu0 %v3629
    %3960 = vmatpush.bf16.msra.mxu0 %v3625
    %3961 = vmatpush.bf16.msra.mxu0 %v3621
    %3962 = vmatpush.bf16.msra.mxu0 %v3617
    %3963 = vmatpush.bf16.msra.mxu0 %v3613
    %3964 = vmatpush.bf16.msra.mxu0 %v3609
    %3965 = vmatpush.bf16.msra.mxu0 %v3605
    %3966 = vmatpush.bf16.msra.mxu0 %v3601
    %3967 = vmatmul.bf16.gmra.mxu0 %v3073
    %v3968 = vpop.f32.mrf.mxu0
    %v3969 = vadd.f32 %v3209, %v3968
    %v3970 = vpop.f32.mrf.mxu0
    %3971 = vdwg.mxu0
    %3972 = vmatpush.bf16.msra.mxu0 %v3661
    %3973 = vmatpush.bf16.msra.mxu0 %v3657
    %3974 = vmatpush.bf16.msra.mxu0 %v3653
    %3975 = vmatpush.bf16.msra.mxu0 %v3649
    %3976 = vmatpush.bf16.msra.mxu0 %v3645
    %3977 = vmatpush.bf16.msra.mxu0 %v3641
    %3978 = vmatpush.bf16.msra.mxu0 %v3637
    %3979 = vmatpush.bf16.msra.mxu0 %v3633
    %3980 = vmatmul.bf16.gmra.mxu0 %v3074
    %v3981 = vpop.f32.mrf.mxu0
    %v3982 = vadd.f32 %v3969, %v3981
    %v3983 = vpop.f32.mrf.mxu0
    %3984 = vdwg.mxu0
    %3985 = vmatpush.bf16.msra.mxu0 %v3693
    %3986 = vmatpush.bf16.msra.mxu0 %v3689
    %3987 = vmatpush.bf16.msra.mxu0 %v3685
    %3988 = vmatpush.bf16.msra.mxu0 %v3681
    %3989 = vmatpush.bf16.msra.mxu0 %v3677
    %3990 = vmatpush.bf16.msra.mxu0 %v3673
    %3991 = vmatpush.bf16.msra.mxu0 %v3669
    %3992 = vmatpush.bf16.msra.mxu0 %v3665
    %3993 = vmatmul.bf16.gmra.mxu0 %v3075
    %v3994 = vpop.f32.mrf.mxu0
    %v3995 = vadd.f32 %v3982, %v3994
    %v3996 = vpop.f32.mrf.mxu0
    %3997 = vdwg.mxu0
    %3998 = vmatpush.bf16.msra.mxu0 %v3725
    %3999 = vmatpush.bf16.msra.mxu0 %v3721
    %4000 = vmatpush.bf16.msra.mxu0 %v3717
    %4001 = vmatpush.bf16.msra.mxu0 %v3713
    %4002 = vmatpush.bf16.msra.mxu0 %v3709
    %4003 = vmatpush.bf16.msra.mxu0 %v3705
    %4004 = vmatpush.bf16.msra.mxu0 %v3701
    %4005 = vmatpush.bf16.msra.mxu0 %v3697
    %4006 = vmatmul.bf16.gmra.mxu0 %v3076
    %v4007 = vpop.f32.mrf.mxu0
    %v4008 = vadd.f32 %v3995, %v4007
    %v4009 = vpop.f32.mrf.mxu0
    %4010 = vdwg.mxu0
    %4011 = vmatpush.bf16.msra.mxu0 %v3630
    %4012 = vmatpush.bf16.msra.mxu0 %v3626
    %4013 = vmatpush.bf16.msra.mxu0 %v3622
    %4014 = vmatpush.bf16.msra.mxu0 %v3618
    %4015 = vmatpush.bf16.msra.mxu0 %v3614
    %4016 = vmatpush.bf16.msra.mxu0 %v3610
    %4017 = vmatpush.bf16.msra.mxu0 %v3606
    %4018 = vmatpush.bf16.msra.mxu0 %v3602
    %4019 = vmatmul.bf16.gmra.mxu0 %v3073
    %v4020 = vpop.f32.mrf.mxu0
    %v4021 = vadd.f32 %v3210, %v4020
    %v4022 = vpop.f32.mrf.mxu0
    %4023 = vdwg.mxu0
    %4024 = vmatpush.bf16.msra.mxu0 %v3662
    %4025 = vmatpush.bf16.msra.mxu0 %v3658
    %4026 = vmatpush.bf16.msra.mxu0 %v3654
    %4027 = vmatpush.bf16.msra.mxu0 %v3650
    %4028 = vmatpush.bf16.msra.mxu0 %v3646
    %4029 = vmatpush.bf16.msra.mxu0 %v3642
    %4030 = vmatpush.bf16.msra.mxu0 %v3638
    %4031 = vmatpush.bf16.msra.mxu0 %v3634
    %4032 = vmatmul.bf16.gmra.mxu0 %v3074
    %v4033 = vpop.f32.mrf.mxu0
    %v4034 = vadd.f32 %v4021, %v4033
    %v4035 = vpop.f32.mrf.mxu0
    %4036 = vdwg.mxu0
    %4037 = vmatpush.bf16.msra.mxu0 %v3694
    %4038 = vmatpush.bf16.msra.mxu0 %v3690
    %4039 = vmatpush.bf16.msra.mxu0 %v3686
    %4040 = vmatpush.bf16.msra.mxu0 %v3682
    %4041 = vmatpush.bf16.msra.mxu0 %v3678
    %4042 = vmatpush.bf16.msra.mxu0 %v3674
    %4043 = vmatpush.bf16.msra.mxu0 %v3670
    %4044 = vmatpush.bf16.msra.mxu0 %v3666
    %4045 = vmatmul.bf16.gmra.mxu0 %v3075
    %v4046 = vpop.f32.mrf.mxu0
    %v4047 = vadd.f32 %v4034, %v4046
    %v4048 = vpop.f32.mrf.mxu0
    %4049 = vdwg.mxu0
    %4050 = vmatpush.bf16.msra.mxu0 %v3726
    %4051 = vmatpush.bf16.msra.mxu0 %v3722
    %4052 = vmatpush.bf16.msra.mxu0 %v3718
    %4053 = vmatpush.bf16.msra.mxu0 %v3714
    %4054 = vmatpush.bf16.msra.mxu0 %v3710
    %4055 = vmatpush.bf16.msra.mxu0 %v3706
    %4056 = vmatpush.bf16.msra.mxu0 %v3702
    %4057 = vmatpush.bf16.msra.mxu0 %v3698
    %4058 = vmatmul.bf16.gmra.mxu0 %v3076
    %v4059 = vpop.f32.mrf.mxu0
    %v4060 = vadd.f32 %v4047, %v4059
    %v4061 = vpop.f32.mrf.mxu0
    %4062 = vdwg.mxu0
    %v4063 = vmax.f32 %v3904, 0.0
    %v4064 = vmax.f32 %v3956, 0.0
    %v4065 = vmax.f32 %v4008, 0.0
    %v4066 = vmax.f32 %v4060, 0.0
    %s4067 = sshll.u32 %s3070, 4
    %4068 = dma.done %s126, %s4067
    %v4069 = vpack.c.bf16 %v4063, %v4063
    %v4070 = vpack.c.bf16 %v4064, %v4064
    %v4071 = vpack.c.bf16 %v4065, %v4065
    %v4072 = vpack.c.bf16 %v4066, %v4066
    %v4073 = vld [vmem:[#allocation5] sm:$0xff]
    %v4074 = vld [vmem:[#allocation5 + $0x8] sm:$0xff]
    %v4075 = vld [vmem:[#allocation5 + $0x10] sm:$0xff]
    %v4076 = vld [vmem:[#allocation5 + $0x18] sm:$0xff]
    %v4077 = vld [vmem:[#allocation5 + $0x20] sm:$0xff]
    %v4078 = vld [vmem:[#allocation5 + $0x28] sm:$0xff]
    %v4079 = vld [vmem:[#allocation5 + $0x30] sm:$0xff]
    %v4080 = vld [vmem:[#allocation5 + $0x38] sm:$0xff]
    %v4081 = vld [vmem:[#allocation5 + $0x40] sm:$0xff]
    %v4082 = vld [vmem:[#allocation5 + $0x48] sm:$0xff]
    %v4083 = vld [vmem:[#allocation5 + $0x50] sm:$0xff]
    %v4084 = vld [vmem:[#allocation5 + $0x58] sm:$0xff]
    %v4085 = vld [vmem:[#allocation5 + $0x60] sm:$0xff]
    %v4086 = vld [vmem:[#allocation5 + $0x68] sm:$0xff]
    %v4087 = vld [vmem:[#allocation5 + $0x70] sm:$0xff]
    %v4088 = vld [vmem:[#allocation5 + $0x78] sm:$0xff]
    %v4089 = vld [vmem:[#allocation5 + $0x80] sm:$0xff]
    %v4090 = vld [vmem:[#allocation5 + $0x88] sm:$0xff]
    %v4091 = vld [vmem:[#allocation5 + $0x90] sm:$0xff]
    %v4092 = vld [vmem:[#allocation5 + $0x98] sm:$0xff]
    %v4093 = vld [vmem:[#allocation5 + $0xa0] sm:$0xff]
    %v4094 = vld [vmem:[#allocation5 + $0xa8] sm:$0xff]
    %v4095 = vld [vmem:[#allocation5 + $0xb0] sm:$0xff]
    %v4096 = vld [vmem:[#allocation5 + $0xb8] sm:$0xff]
    %v4097 = vld [vmem:[#allocation5 + $0xc0] sm:$0xff]
    %v4098 = vld [vmem:[#allocation5 + $0xc8] sm:$0xff]
    %v4099 = vld [vmem:[#allocation5 + $0xd0] sm:$0xff]
    %v4100 = vld [vmem:[#allocation5 + $0xd8] sm:$0xff]
    %v4101 = vld [vmem:[#allocation5 + $0xe0] sm:$0xff]
    %v4102 = vld [vmem:[#allocation5 + $0xe8] sm:$0xff]
    %v4103 = vld [vmem:[#allocation5 + $0xf0] sm:$0xff]
    %v4104 = vld [vmem:[#allocation5 + $0xf8] sm:$0xff]
    %v4105 = vld [vmem:[#allocation5 + $0x100] sm:$0xff]
    %v4106 = vld [vmem:[#allocation5 + $0x108] sm:$0xff]
    %v4107 = vld [vmem:[#allocation5 + $0x110] sm:$0xff]
    %v4108 = vld [vmem:[#allocation5 + $0x118] sm:$0xff]
    %v4109 = vld [vmem:[#allocation5 + $0x120] sm:$0xff]
    %v4110 = vld [vmem:[#allocation5 + $0x128] sm:$0xff]
    %v4111 = vld [vmem:[#allocation5 + $0x130] sm:$0xff]
    %v4112 = vld [vmem:[#allocation5 + $0x138] sm:$0xff]
    %v4113 = vld [vmem:[#allocation5 + $0x140] sm:$0xff]
    %v4114 = vld [vmem:[#allocation5 + $0x148] sm:$0xff]
    %v4115 = vld [vmem:[#allocation5 + $0x150] sm:$0xff]
    %v4116 = vld [vmem:[#allocation5 + $0x158] sm:$0xff]
    %v4117 = vld [vmem:[#allocation5 + $0x160] sm:$0xff]
    %v4118 = vld [vmem:[#allocation5 + $0x168] sm:$0xff]
    %v4119 = vld [vmem:[#allocation5 + $0x170] sm:$0xff]
    %v4120 = vld [vmem:[#allocation5 + $0x178] sm:$0xff]
    %v4121 = vld [vmem:[#allocation5 + $0x180] sm:$0xff]
    %v4122 = vld [vmem:[#allocation5 + $0x188] sm:$0xff]
    %v4123 = vld [vmem:[#allocation5 + $0x190] sm:$0xff]
    %v4124 = vld [vmem:[#allocation5 + $0x198] sm:$0xff]
    %v4125 = vld [vmem:[#allocation5 + $0x1a0] sm:$0xff]
    %v4126 = vld [vmem:[#allocation5 + $0x1a8] sm:$0xff]
    %v4127 = vld [vmem:[#allocation5 + $0x1b0] sm:$0xff]
    %v4128 = vld [vmem:[#allocation5 + $0x1b8] sm:$0xff]
    %v4129 = vld [vmem:[#allocation5 + $0x1c0] sm:$0xff]
    %v4130 = vld [vmem:[#allocation5 + $0x1c8] sm:$0xff]
    %v4131 = vld [vmem:[#allocation5 + $0x1d0] sm:$0xff]
    %v4132 = vld [vmem:[#allocation5 + $0x1d8] sm:$0xff]
    %v4133 = vld [vmem:[#allocation5 + $0x1e0] sm:$0xff]
    %v4134 = vld [vmem:[#allocation5 + $0x1e8] sm:$0xff]
    %v4135 = vld [vmem:[#allocation5 + $0x1f0] sm:$0xff]
    %v4136 = vld [vmem:[#allocation5 + $0x1f8] sm:$0xff]
    %v4137 = vld [vmem:[#allocation5 + $0x200] sm:$0xff]
    %v4138 = vld [vmem:[#allocation5 + $0x208] sm:$0xff]
    %v4139 = vld [vmem:[#allocation5 + $0x210] sm:$0xff]
    %v4140 = vld [vmem:[#allocation5 + $0x218] sm:$0xff]
    %v4141 = vld [vmem:[#allocation5 + $0x220] sm:$0xff]
    %v4142 = vld [vmem:[#allocation5 + $0x228] sm:$0xff]
    %v4143 = vld [vmem:[#allocation5 + $0x230] sm:$0xff]
    %v4144 = vld [vmem:[#allocation5 + $0x238] sm:$0xff]
    %v4145 = vld [vmem:[#allocation5 + $0x240] sm:$0xff]
    %v4146 = vld [vmem:[#allocation5 + $0x248] sm:$0xff]
    %v4147 = vld [vmem:[#allocation5 + $0x250] sm:$0xff]
    %v4148 = vld [vmem:[#allocation5 + $0x258] sm:$0xff]
    %v4149 = vld [vmem:[#allocation5 + $0x260] sm:$0xff]
    %v4150 = vld [vmem:[#allocation5 + $0x268] sm:$0xff]
    %v4151 = vld [vmem:[#allocation5 + $0x270] sm:$0xff]
    %v4152 = vld [vmem:[#allocation5 + $0x278] sm:$0xff]
    %v4153 = vld [vmem:[#allocation5 + $0x280] sm:$0xff]
    %v4154 = vld [vmem:[#allocation5 + $0x288] sm:$0xff]
    %v4155 = vld [vmem:[#allocation5 + $0x290] sm:$0xff]
    %v4156 = vld [vmem:[#allocation5 + $0x298] sm:$0xff]
    %v4157 = vld [vmem:[#allocation5 + $0x2a0] sm:$0xff]
    %v4158 = vld [vmem:[#allocation5 + $0x2a8] sm:$0xff]
    %v4159 = vld [vmem:[#allocation5 + $0x2b0] sm:$0xff]
    %v4160 = vld [vmem:[#allocation5 + $0x2b8] sm:$0xff]
    %v4161 = vld [vmem:[#allocation5 + $0x2c0] sm:$0xff]
    %v4162 = vld [vmem:[#allocation5 + $0x2c8] sm:$0xff]
    %v4163 = vld [vmem:[#allocation5 + $0x2d0] sm:$0xff]
    %v4164 = vld [vmem:[#allocation5 + $0x2d8] sm:$0xff]
    %v4165 = vld [vmem:[#allocation5 + $0x2e0] sm:$0xff]
    %v4166 = vld [vmem:[#allocation5 + $0x2e8] sm:$0xff]
    %v4167 = vld [vmem:[#allocation5 + $0x2f0] sm:$0xff]
    %v4168 = vld [vmem:[#allocation5 + $0x2f8] sm:$0xff]
    %v4169 = vld [vmem:[#allocation5 + $0x300] sm:$0xff]
    %v4170 = vld [vmem:[#allocation5 + $0x308] sm:$0xff]
    %v4171 = vld [vmem:[#allocation5 + $0x310] sm:$0xff]
    %v4172 = vld [vmem:[#allocation5 + $0x318] sm:$0xff]
    %v4173 = vld [vmem:[#allocation5 + $0x320] sm:$0xff]
    %v4174 = vld [vmem:[#allocation5 + $0x328] sm:$0xff]
    %v4175 = vld [vmem:[#allocation5 + $0x330] sm:$0xff]
    %v4176 = vld [vmem:[#allocation5 + $0x338] sm:$0xff]
    %v4177 = vld [vmem:[#allocation5 + $0x340] sm:$0xff]
    %v4178 = vld [vmem:[#allocation5 + $0x348] sm:$0xff]
    %v4179 = vld [vmem:[#allocation5 + $0x350] sm:$0xff]
    %v4180 = vld [vmem:[#allocation5 + $0x358] sm:$0xff]
    %v4181 = vld [vmem:[#allocation5 + $0x360] sm:$0xff]
    %v4182 = vld [vmem:[#allocation5 + $0x368] sm:$0xff]
    %v4183 = vld [vmem:[#allocation5 + $0x370] sm:$0xff]
    %v4184 = vld [vmem:[#allocation5 + $0x378] sm:$0xff]
    %v4185 = vld [vmem:[#allocation5 + $0x380] sm:$0xff]
    %v4186 = vld [vmem:[#allocation5 + $0x388] sm:$0xff]
    %v4187 = vld [vmem:[#allocation5 + $0x390] sm:$0xff]
    %v4188 = vld [vmem:[#allocation5 + $0x398] sm:$0xff]
    %v4189 = vld [vmem:[#allocation5 + $0x3a0] sm:$0xff]
    %v4190 = vld [vmem:[#allocation5 + $0x3a8] sm:$0xff]
    %v4191 = vld [vmem:[#allocation5 + $0x3b0] sm:$0xff]
    %v4192 = vld [vmem:[#allocation5 + $0x3b8] sm:$0xff]
    %v4193 = vld [vmem:[#allocation5 + $0x3c0] sm:$0xff]
    %v4194 = vld [vmem:[#allocation5 + $0x3c8] sm:$0xff]
    %v4195 = vld [vmem:[#allocation5 + $0x3d0] sm:$0xff]
    %v4196 = vld [vmem:[#allocation5 + $0x3d8] sm:$0xff]
    %v4197 = vld [vmem:[#allocation5 + $0x3e0] sm:$0xff]
    %v4198 = vld [vmem:[#allocation5 + $0x3e8] sm:$0xff]
    %v4199 = vld [vmem:[#allocation5 + $0x3f0] sm:$0xff]
    %v4200 = vld [vmem:[#allocation5 + $0x3f8] sm:$0xff]
    %v4201 = vld [vmem:[%s7] sm:$0xf]
    %v4203 = vperm.slane %v4201, 0
    %v4204 = vperm.slane %v4201, 1
    %v4205 = vperm.slane %v4201, 2
    %v4206 = vperm.slane %v4201, 3
    %v4339 = vunpack.c.l.b16 %v4073
    %v4340 = vunpack.c.h.b16 %v4073
    %v4341 = vunpack.c.l.b16 %v4074
    %v4342 = vunpack.c.h.b16 %v4074
    %v4343 = vunpack.c.l.b16 %v4075
    %v4344 = vunpack.c.h.b16 %v4075
    %v4345 = vunpack.c.l.b16 %v4076
    %v4346 = vunpack.c.h.b16 %v4076
    %v4347 = vunpack.c.l.b16 %v4077
    %v4348 = vunpack.c.h.b16 %v4077
    %v4349 = vunpack.c.l.b16 %v4078
    %v4350 = vunpack.c.h.b16 %v4078
    %v4351 = vunpack.c.l.b16 %v4079
    %v4352 = vunpack.c.h.b16 %v4079
    %v4353 = vunpack.c.l.b16 %v4080
    %v4354 = vunpack.c.h.b16 %v4080
    %v4355 = vunpack.c.l.b16 %v4081
    %v4356 = vunpack.c.h.b16 %v4081
    %v4357 = vunpack.c.l.b16 %v4082
    %v4358 = vunpack.c.h.b16 %v4082
    %v4359 = vunpack.c.l.b16 %v4083
    %v4360 = vunpack.c.h.b16 %v4083
    %v4361 = vunpack.c.l.b16 %v4084
    %v4362 = vunpack.c.h.b16 %v4084
    %v4363 = vunpack.c.l.b16 %v4085
    %v4364 = vunpack.c.h.b16 %v4085
    %v4365 = vunpack.c.l.b16 %v4086
    %v4366 = vunpack.c.h.b16 %v4086
    %v4367 = vunpack.c.l.b16 %v4087
    %v4368 = vunpack.c.h.b16 %v4087
    %v4369 = vunpack.c.l.b16 %v4088
    %v4370 = vunpack.c.h.b16 %v4088
    %v4371 = vunpack.c.l.b16 %v4089
    %v4372 = vunpack.c.h.b16 %v4089
    %v4373 = vunpack.c.l.b16 %v4090
    %v4374 = vunpack.c.h.b16 %v4090
    %v4375 = vunpack.c.l.b16 %v4091
    %v4376 = vunpack.c.h.b16 %v4091
    %v4377 = vunpack.c.l.b16 %v4092
    %v4378 = vunpack.c.h.b16 %v4092
    %v4379 = vunpack.c.l.b16 %v4093
    %v4380 = vunpack.c.h.b16 %v4093
    %v4381 = vunpack.c.l.b16 %v4094
    %v4382 = vunpack.c.h.b16 %v4094
    %v4383 = vunpack.c.l.b16 %v4095
    %v4384 = vunpack.c.h.b16 %v4095
    %v4385 = vunpack.c.l.b16 %v4096
    %v4386 = vunpack.c.h.b16 %v4096
    %v4387 = vunpack.c.l.b16 %v4097
    %v4388 = vunpack.c.h.b16 %v4097
    %v4389 = vunpack.c.l.b16 %v4098
    %v4390 = vunpack.c.h.b16 %v4098
    %v4391 = vunpack.c.l.b16 %v4099
    %v4392 = vunpack.c.h.b16 %v4099
    %v4393 = vunpack.c.l.b16 %v4100
    %v4394 = vunpack.c.h.b16 %v4100
    %v4395 = vunpack.c.l.b16 %v4101
    %v4396 = vunpack.c.h.b16 %v4101
    %v4397 = vunpack.c.l.b16 %v4102
    %v4398 = vunpack.c.h.b16 %v4102
    %v4399 = vunpack.c.l.b16 %v4103
    %v4400 = vunpack.c.h.b16 %v4103
    %v4401 = vunpack.c.l.b16 %v4104
    %v4402 = vunpack.c.h.b16 %v4104
    %v4403 = vunpack.c.l.b16 %v4105
    %v4404 = vunpack.c.h.b16 %v4105
    %v4405 = vunpack.c.l.b16 %v4106
    %v4406 = vunpack.c.h.b16 %v4106
    %v4407 = vunpack.c.l.b16 %v4107
    %v4408 = vunpack.c.h.b16 %v4107
    %v4409 = vunpack.c.l.b16 %v4108
    %v4410 = vunpack.c.h.b16 %v4108
    %v4411 = vunpack.c.l.b16 %v4109
    %v4412 = vunpack.c.h.b16 %v4109
    %v4413 = vunpack.c.l.b16 %v4110
    %v4414 = vunpack.c.h.b16 %v4110
    %v4415 = vunpack.c.l.b16 %v4111
    %v4416 = vunpack.c.h.b16 %v4111
    %v4417 = vunpack.c.l.b16 %v4112
    %v4418 = vunpack.c.h.b16 %v4112
    %v4419 = vunpack.c.l.b16 %v4113
    %v4420 = vunpack.c.h.b16 %v4113
    %v4421 = vunpack.c.l.b16 %v4114
    %v4422 = vunpack.c.h.b16 %v4114
    %v4423 = vunpack.c.l.b16 %v4115
    %v4424 = vunpack.c.h.b16 %v4115
    %v4425 = vunpack.c.l.b16 %v4116
    %v4426 = vunpack.c.h.b16 %v4116
    %v4427 = vunpack.c.l.b16 %v4117
    %v4428 = vunpack.c.h.b16 %v4117
    %v4429 = vunpack.c.l.b16 %v4118
    %v4430 = vunpack.c.h.b16 %v4118
    %v4431 = vunpack.c.l.b16 %v4119
    %v4432 = vunpack.c.h.b16 %v4119
    %v4433 = vunpack.c.l.b16 %v4120
    %v4434 = vunpack.c.h.b16 %v4120
    %v4435 = vunpack.c.l.b16 %v4121
    %v4436 = vunpack.c.h.b16 %v4121
    %v4437 = vunpack.c.l.b16 %v4122
    %v4438 = vunpack.c.h.b16 %v4122
    %v4439 = vunpack.c.l.b16 %v4123
    %v4440 = vunpack.c.h.b16 %v4123
    %v4441 = vunpack.c.l.b16 %v4124
    %v4442 = vunpack.c.h.b16 %v4124
    %v4443 = vunpack.c.l.b16 %v4125
    %v4444 = vunpack.c.h.b16 %v4125
    %v4445 = vunpack.c.l.b16 %v4126
    %v4446 = vunpack.c.h.b16 %v4126
    %v4447 = vunpack.c.l.b16 %v4127
    %v4448 = vunpack.c.h.b16 %v4127
    %v4449 = vunpack.c.l.b16 %v4128
    %v4450 = vunpack.c.h.b16 %v4128
    %v4451 = vunpack.c.l.b16 %v4129
    %v4452 = vunpack.c.h.b16 %v4129
    %v4453 = vunpack.c.l.b16 %v4130
    %v4454 = vunpack.c.h.b16 %v4130
    %v4455 = vunpack.c.l.b16 %v4131
    %v4456 = vunpack.c.h.b16 %v4131
    %v4457 = vunpack.c.l.b16 %v4132
    %v4458 = vunpack.c.h.b16 %v4132
    %v4459 = vunpack.c.l.b16 %v4133
    %v4460 = vunpack.c.h.b16 %v4133
    %v4461 = vunpack.c.l.b16 %v4134
    %v4462 = vunpack.c.h.b16 %v4134
    %v4463 = vunpack.c.l.b16 %v4135
    %v4464 = vunpack.c.h.b16 %v4135
    %v4465 = vunpack.c.l.b16 %v4136
    %v4466 = vunpack.c.h.b16 %v4136
    %v4467 = vunpack.c.l.b16 %v4137
    %v4468 = vunpack.c.h.b16 %v4137
    %v4469 = vunpack.c.l.b16 %v4138
    %v4470 = vunpack.c.h.b16 %v4138
    %v4471 = vunpack.c.l.b16 %v4139
    %v4472 = vunpack.c.h.b16 %v4139
    %v4473 = vunpack.c.l.b16 %v4140
    %v4474 = vunpack.c.h.b16 %v4140
    %v4475 = vunpack.c.l.b16 %v4141
    %v4476 = vunpack.c.h.b16 %v4141
    %v4477 = vunpack.c.l.b16 %v4142
    %v4478 = vunpack.c.h.b16 %v4142
    %v4479 = vunpack.c.l.b16 %v4143
    %v4480 = vunpack.c.h.b16 %v4143
    %v4481 = vunpack.c.l.b16 %v4144
    %v4482 = vunpack.c.h.b16 %v4144
    %v4483 = vunpack.c.l.b16 %v4145
    %v4484 = vunpack.c.h.b16 %v4145
    %v4485 = vunpack.c.l.b16 %v4146
    %v4486 = vunpack.c.h.b16 %v4146
    %v4487 = vunpack.c.l.b16 %v4147
    %v4488 = vunpack.c.h.b16 %v4147
    %v4489 = vunpack.c.l.b16 %v4148
    %v4490 = vunpack.c.h.b16 %v4148
    %v4491 = vunpack.c.l.b16 %v4149
    %v4492 = vunpack.c.h.b16 %v4149
    %v4493 = vunpack.c.l.b16 %v4150
    %v4494 = vunpack.c.h.b16 %v4150
    %v4495 = vunpack.c.l.b16 %v4151
    %v4496 = vunpack.c.h.b16 %v4151
    %v4497 = vunpack.c.l.b16 %v4152
    %v4498 = vunpack.c.h.b16 %v4152
    %v4499 = vunpack.c.l.b16 %v4153
    %v4500 = vunpack.c.h.b16 %v4153
    %v4501 = vunpack.c.l.b16 %v4154
    %v4502 = vunpack.c.h.b16 %v4154
    %v4503 = vunpack.c.l.b16 %v4155
    %v4504 = vunpack.c.h.b16 %v4155
    %v4505 = vunpack.c.l.b16 %v4156
    %v4506 = vunpack.c.h.b16 %v4156
    %v4507 = vunpack.c.l.b16 %v4157
    %v4508 = vunpack.c.h.b16 %v4157
    %v4509 = vunpack.c.l.b16 %v4158
    %v4510 = vunpack.c.h.b16 %v4158
    %v4511 = vunpack.c.l.b16 %v4159
    %v4512 = vunpack.c.h.b16 %v4159
    %v4513 = vunpack.c.l.b16 %v4160
    %v4514 = vunpack.c.h.b16 %v4160
    %v4515 = vunpack.c.l.b16 %v4161
    %v4516 = vunpack.c.h.b16 %v4161
    %v4517 = vunpack.c.l.b16 %v4162
    %v4518 = vunpack.c.h.b16 %v4162
    %v4519 = vunpack.c.l.b16 %v4163
    %v4520 = vunpack.c.h.b16 %v4163
    %v4521 = vunpack.c.l.b16 %v4164
    %v4522 = vunpack.c.h.b16 %v4164
    %v4523 = vunpack.c.l.b16 %v4165
    %v4524 = vunpack.c.h.b16 %v4165
    %v4525 = vunpack.c.l.b16 %v4166
    %v4526 = vunpack.c.h.b16 %v4166
    %v4527 = vunpack.c.l.b16 %v4167
    %v4528 = vunpack.c.h.b16 %v4167
    %v4529 = vunpack.c.l.b16 %v4168
    %v4530 = vunpack.c.h.b16 %v4168
    %v4531 = vunpack.c.l.b16 %v4169
    %v4532 = vunpack.c.h.b16 %v4169
    %v4533 = vunpack.c.l.b16 %v4170
    %v4534 = vunpack.c.h.b16 %v4170
    %v4535 = vunpack.c.l.b16 %v4171
    %v4536 = vunpack.c.h.b16 %v4171
    %v4537 = vunpack.c.l.b16 %v4172
    %v4538 = vunpack.c.h.b16 %v4172
    %v4539 = vunpack.c.l.b16 %v4173
    %v4540 = vunpack.c.h.b16 %v4173
    %v4541 = vunpack.c.l.b16 %v4174
    %v4542 = vunpack.c.h.b16 %v4174
    %v4543 = vunpack.c.l.b16 %v4175
    %v4544 = vunpack.c.h.b16 %v4175
    %v4545 = vunpack.c.l.b16 %v4176
    %v4546 = vunpack.c.h.b16 %v4176
    %v4547 = vunpack.c.l.b16 %v4177
    %v4548 = vunpack.c.h.b16 %v4177
    %v4549 = vunpack.c.l.b16 %v4178
    %v4550 = vunpack.c.h.b16 %v4178
    %v4551 = vunpack.c.l.b16 %v4179
    %v4552 = vunpack.c.h.b16 %v4179
    %v4553 = vunpack.c.l.b16 %v4180
    %v4554 = vunpack.c.h.b16 %v4180
    %v4555 = vunpack.c.l.b16 %v4181
    %v4556 = vunpack.c.h.b16 %v4181
    %v4557 = vunpack.c.l.b16 %v4182
    %v4558 = vunpack.c.h.b16 %v4182
    %v4559 = vunpack.c.l.b16 %v4183
    %v4560 = vunpack.c.h.b16 %v4183
    %v4561 = vunpack.c.l.b16 %v4184
    %v4562 = vunpack.c.h.b16 %v4184
    %v4563 = vunpack.c.l.b16 %v4185
    %v4564 = vunpack.c.h.b16 %v4185
    %v4565 = vunpack.c.l.b16 %v4186
    %v4566 = vunpack.c.h.b16 %v4186
    %v4567 = vunpack.c.l.b16 %v4187
    %v4568 = vunpack.c.h.b16 %v4187
    %v4569 = vunpack.c.l.b16 %v4188
    %v4570 = vunpack.c.h.b16 %v4188
    %v4571 = vunpack.c.l.b16 %v4189
    %v4572 = vunpack.c.h.b16 %v4189
    %v4573 = vunpack.c.l.b16 %v4190
    %v4574 = vunpack.c.h.b16 %v4190
    %v4575 = vunpack.c.l.b16 %v4191
    %v4576 = vunpack.c.h.b16 %v4191
    %v4577 = vunpack.c.l.b16 %v4192
    %v4578 = vunpack.c.h.b16 %v4192
    %v4579 = vunpack.c.l.b16 %v4193
    %v4580 = vunpack.c.h.b16 %v4193
    %v4581 = vunpack.c.l.b16 %v4194
    %v4582 = vunpack.c.h.b16 %v4194
    %v4583 = vunpack.c.l.b16 %v4195
    %v4584 = vunpack.c.h.b16 %v4195
    %v4585 = vunpack.c.l.b16 %v4196
    %v4586 = vunpack.c.h.b16 %v4196
    %v4587 = vunpack.c.l.b16 %v4197
    %v4588 = vunpack.c.h.b16 %v4197
    %v4589 = vunpack.c.l.b16 %v4198
    %v4590 = vunpack.c.h.b16 %v4198
    %v4591 = vunpack.c.l.b16 %v4199
    %v4592 = vunpack.c.h.b16 %v4199
    %v4593 = vunpack.c.l.b16 %v4200
    %v4594 = vunpack.c.h.b16 %v4200
    %v4595 = vpack.c.b16 %v4343, %v4339
    %v4596 = vpack.c.b16 %v4344, %v4340
    %v4597 = vpack.c.b16 %v4345, %v4341
    %v4598 = vpack.c.b16 %v4346, %v4342
    %v4599 = vpack.c.b16 %v4351, %v4347
    %v4600 = vpack.c.b16 %v4352, %v4348
    %v4601 = vpack.c.b16 %v4353, %v4349
    %v4602 = vpack.c.b16 %v4354, %v4350
    %v4603 = vpack.c.b16 %v4359, %v4355
    %v4604 = vpack.c.b16 %v4360, %v4356
    %v4605 = vpack.c.b16 %v4361, %v4357
    %v4606 = vpack.c.b16 %v4362, %v4358
    %v4607 = vpack.c.b16 %v4367, %v4363
    %v4608 = vpack.c.b16 %v4368, %v4364
    %v4609 = vpack.c.b16 %v4369, %v4365
    %v4610 = vpack.c.b16 %v4370, %v4366
    %v4611 = vpack.c.b16 %v4375, %v4371
    %v4612 = vpack.c.b16 %v4376, %v4372
    %v4613 = vpack.c.b16 %v4377, %v4373
    %v4614 = vpack.c.b16 %v4378, %v4374
    %v4615 = vpack.c.b16 %v4383, %v4379
    %v4616 = vpack.c.b16 %v4384, %v4380
    %v4617 = vpack.c.b16 %v4385, %v4381
    %v4618 = vpack.c.b16 %v4386, %v4382
    %v4619 = vpack.c.b16 %v4391, %v4387
    %v4620 = vpack.c.b16 %v4392, %v4388
    %v4621 = vpack.c.b16 %v4393, %v4389
    %v4622 = vpack.c.b16 %v4394, %v4390
    %v4623 = vpack.c.b16 %v4399, %v4395
    %v4624 = vpack.c.b16 %v4400, %v4396
    %v4625 = vpack.c.b16 %v4401, %v4397
    %v4626 = vpack.c.b16 %v4402, %v4398
    %v4627 = vpack.c.b16 %v4407, %v4403
    %v4628 = vpack.c.b16 %v4408, %v4404
    %v4629 = vpack.c.b16 %v4409, %v4405
    %v4630 = vpack.c.b16 %v4410, %v4406
    %v4631 = vpack.c.b16 %v4415, %v4411
    %v4632 = vpack.c.b16 %v4416, %v4412
    %v4633 = vpack.c.b16 %v4417, %v4413
    %v4634 = vpack.c.b16 %v4418, %v4414
    %v4635 = vpack.c.b16 %v4423, %v4419
    %v4636 = vpack.c.b16 %v4424, %v4420
    %v4637 = vpack.c.b16 %v4425, %v4421
    %v4638 = vpack.c.b16 %v4426, %v4422
    %v4639 = vpack.c.b16 %v4431, %v4427
    %v4640 = vpack.c.b16 %v4432, %v4428
    %v4641 = vpack.c.b16 %v4433, %v4429
    %v4642 = vpack.c.b16 %v4434, %v4430
    %v4643 = vpack.c.b16 %v4439, %v4435
    %v4644 = vpack.c.b16 %v4440, %v4436
    %v4645 = vpack.c.b16 %v4441, %v4437
    %v4646 = vpack.c.b16 %v4442, %v4438
    %v4647 = vpack.c.b16 %v4447, %v4443
    %v4648 = vpack.c.b16 %v4448, %v4444
    %v4649 = vpack.c.b16 %v4449, %v4445
    %v4650 = vpack.c.b16 %v4450, %v4446
    %v4651 = vpack.c.b16 %v4455, %v4451
    %v4652 = vpack.c.b16 %v4456, %v4452
    %v4653 = vpack.c.b16 %v4457, %v4453
    %v4654 = vpack.c.b16 %v4458, %v4454
    %v4655 = vpack.c.b16 %v4463, %v4459
    %v4656 = vpack.c.b16 %v4464, %v4460
    %v4657 = vpack.c.b16 %v4465, %v4461
    %v4658 = vpack.c.b16 %v4466, %v4462
    %v4659 = vpack.c.b16 %v4471, %v4467
    %v4660 = vpack.c.b16 %v4472, %v4468
    %v4661 = vpack.c.b16 %v4473, %v4469
    %v4662 = vpack.c.b16 %v4474, %v4470
    %v4663 = vpack.c.b16 %v4479, %v4475
    %v4664 = vpack.c.b16 %v4480, %v4476
    %v4665 = vpack.c.b16 %v4481, %v4477
    %v4666 = vpack.c.b16 %v4482, %v4478
    %v4667 = vpack.c.b16 %v4487, %v4483
    %v4668 = vpack.c.b16 %v4488, %v4484
    %v4669 = vpack.c.b16 %v4489, %v4485
    %v4670 = vpack.c.b16 %v4490, %v4486
    %v4671 = vpack.c.b16 %v4495, %v4491
    %v4672 = vpack.c.b16 %v4496, %v4492
    %v4673 = vpack.c.b16 %v4497, %v4493
    %v4674 = vpack.c.b16 %v4498, %v4494
    %v4675 = vpack.c.b16 %v4503, %v4499
    %v4676 = vpack.c.b16 %v4504, %v4500
    %v4677 = vpack.c.b16 %v4505, %v4501
    %v4678 = vpack.c.b16 %v4506, %v4502
    %v4679 = vpack.c.b16 %v4511, %v4507
    %v4680 = vpack.c.b16 %v4512, %v4508
    %v4681 = vpack.c.b16 %v4513, %v4509
    %v4682 = vpack.c.b16 %v4514, %v4510
    %v4683 = vpack.c.b16 %v4519, %v4515
    %v4684 = vpack.c.b16 %v4520, %v4516
    %v4685 = vpack.c.b16 %v4521, %v4517
    %v4686 = vpack.c.b16 %v4522, %v4518
    %v4687 = vpack.c.b16 %v4527, %v4523
    %v4688 = vpack.c.b16 %v4528, %v4524
    %v4689 = vpack.c.b16 %v4529, %v4525
    %v4690 = vpack.c.b16 %v4530, %v4526
    %v4691 = vpack.c.b16 %v4535, %v4531
    %v4692 = vpack.c.b16 %v4536, %v4532
    %v4693 = vpack.c.b16 %v4537, %v4533
    %v4694 = vpack.c.b16 %v4538, %v4534
    %v4695 = vpack.c.b16 %v4543, %v4539
    %v4696 = vpack.c.b16 %v4544, %v4540
    %v4697 = vpack.c.b16 %v4545, %v4541
    %v4698 = vpack.c.b16 %v4546, %v4542
    %v4699 = vpack.c.b16 %v4551, %v4547
    %v4700 = vpack.c.b16 %v4552, %v4548
    %v4701 = vpack.c.b16 %v4553, %v4549
    %v4702 = vpack.c.b16 %v4554, %v4550
    %v4703 = vpack.c.b16 %v4559, %v4555
    %v4704 = vpack.c.b16 %v4560, %v4556
    %v4705 = vpack.c.b16 %v4561, %v4557
    %v4706 = vpack.c.b16 %v4562, %v4558
    %v4707 = vpack.c.b16 %v4567, %v4563
    %v4708 = vpack.c.b16 %v4568, %v4564
    %v4709 = vpack.c.b16 %v4569, %v4565
    %v4710 = vpack.c.b16 %v4570, %v4566
    %v4711 = vpack.c.b16 %v4575, %v4571
    %v4712 = vpack.c.b16 %v4576, %v4572
    %v4713 = vpack.c.b16 %v4577, %v4573
    %v4714 = vpack.c.b16 %v4578, %v4574
    %v4715 = vpack.c.b16 %v4583, %v4579
    %v4716 = vpack.c.b16 %v4584, %v4580
    %v4717 = vpack.c.b16 %v4585, %v4581
    %v4718 = vpack.c.b16 %v4586, %v4582
    %v4719 = vpack.c.b16 %v4591, %v4587
    %v4720 = vpack.c.b16 %v4592, %v4588
    %v4721 = vpack.c.b16 %v4593, %v4589
    %v4722 = vpack.c.b16 %v4594, %v4590
    %4851 = vmatpush.bf16.msra.mxu0 %v4623
    %4852 = vmatpush.bf16.msra.mxu0 %v4619
    %4853 = vmatpush.bf16.msra.mxu0 %v4615
    %4854 = vmatpush.bf16.msra.mxu0 %v4611
    %4855 = vmatpush.bf16.msra.mxu0 %v4607
    %4856 = vmatpush.bf16.msra.mxu0 %v4603
    %4857 = vmatpush.bf16.msra.mxu0 %v4599
    %4858 = vmatpush.bf16.msra.mxu0 %v4595
    %4859 = vmatmul.bf16.gmra.mxu0 %v4069
    %v4860 = vpop.f32.mrf.mxu0
    %v4861 = vadd.f32 %v4203, %v4860
    %v4862 = vpop.f32.mrf.mxu0
    %4863 = vdwg.mxu0
    %4864 = vmatpush.bf16.msra.mxu0 %v4655
    %4865 = vmatpush.bf16.msra.mxu0 %v4651
    %4866 = vmatpush.bf16.msra.mxu0 %v4647
    %4867 = vmatpush.bf16.msra.mxu0 %v4643
    %4868 = vmatpush.bf16.msra.mxu0 %v4639
    %4869 = vmatpush.bf16.msra.mxu0 %v4635
    %4870 = vmatpush.bf16.msra.mxu0 %v4631
    %4871 = vmatpush.bf16.msra.mxu0 %v4627
    %4872 = vmatmul.bf16.gmra.mxu0 %v4070
    %v4873 = vpop.f32.mrf.mxu0
    %v4874 = vadd.f32 %v4861, %v4873
    %v4875 = vpop.f32.mrf.mxu0
    %4876 = vdwg.mxu0
    %4877 = vmatpush.bf16.msra.mxu0 %v4687
    %4878 = vmatpush.bf16.msra.mxu0 %v4683
    %4879 = vmatpush.bf16.msra.mxu0 %v4679
    %4880 = vmatpush.bf16.msra.mxu0 %v4675
    %4881 = vmatpush.bf16.msra.mxu0 %v4671
    %4882 = vmatpush.bf16.msra.mxu0 %v4667
    %4883 = vmatpush.bf16.msra.mxu0 %v4663
    %4884 = vmatpush.bf16.msra.mxu0 %v4659
    %4885 = vmatmul.bf16.gmra.mxu0 %v4071
    %v4886 = vpop.f32.mrf.mxu0
    %v4887 = vadd.f32 %v4874, %v4886
    %v4888 = vpop.f32.mrf.mxu0
    %4889 = vdwg.mxu0
    %4890 = vmatpush.bf16.msra.mxu0 %v4719
    %4891 = vmatpush.bf16.msra.mxu0 %v4715
    %4892 = vmatpush.bf16.msra.mxu0 %v4711
    %4893 = vmatpush.bf16.msra.mxu0 %v4707
    %4894 = vmatpush.bf16.msra.mxu0 %v4703
    %4895 = vmatpush.bf16.msra.mxu0 %v4699
    %4896 = vmatpush.bf16.msra.mxu0 %v4695
    %4897 = vmatpush.bf16.msra.mxu0 %v4691
    %4898 = vmatmul.bf16.gmra.mxu0 %v4072
    %v4899 = vpop.f32.mrf.mxu0
    %v4900 = vadd.f32 %v4887, %v4899
    %v4901 = vpop.f32.mrf.mxu0
    %4902 = vdwg.mxu0
    %4903 = vmatpush.bf16.msra.mxu0 %v4624
    %4904 = vmatpush.bf16.msra.mxu0 %v4620
    %4905 = vmatpush.bf16.msra.mxu0 %v4616
    %4906 = vmatpush.bf16.msra.mxu0 %v4612
    %4907 = vmatpush.bf16.msra.mxu0 %v4608
    %4908 = vmatpush.bf16.msra.mxu0 %v4604
    %4909 = vmatpush.bf16.msra.mxu0 %v4600
    %4910 = vmatpush.bf16.msra.mxu0 %v4596
    %4911 = vmatmul.bf16.gmra.mxu0 %v4069
    %v4912 = vpop.f32.mrf.mxu0
    %v4913 = vadd.f32 %v4204, %v4912
    %v4914 = vpop.f32.mrf.mxu0
    %4915 = vdwg.mxu0
    %4916 = vmatpush.bf16.msra.mxu0 %v4656
    %4917 = vmatpush.bf16.msra.mxu0 %v4652
    %4918 = vmatpush.bf16.msra.mxu0 %v4648
    %4919 = vmatpush.bf16.msra.mxu0 %v4644
    %4920 = vmatpush.bf16.msra.mxu0 %v4640
    %4921 = vmatpush.bf16.msra.mxu0 %v4636
    %4922 = vmatpush.bf16.msra.mxu0 %v4632
    %4923 = vmatpush.bf16.msra.mxu0 %v4628
    %4924 = vmatmul.bf16.gmra.mxu0 %v4070
    %v4925 = vpop.f32.mrf.mxu0
    %v4926 = vadd.f32 %v4913, %v4925
    %v4927 = vpop.f32.mrf.mxu0
    %4928 = vdwg.mxu0
    %4929 = vmatpush.bf16.msra.mxu0 %v4688
    %4930 = vmatpush.bf16.msra.mxu0 %v4684
    %4931 = vmatpush.bf16.msra.mxu0 %v4680
    %4932 = vmatpush.bf16.msra.mxu0 %v4676
    %4933 = vmatpush.bf16.msra.mxu0 %v4672
    %4934 = vmatpush.bf16.msra.mxu0 %v4668
    %4935 = vmatpush.bf16.msra.mxu0 %v4664
    %4936 = vmatpush.bf16.msra.mxu0 %v4660
    %4937 = vmatmul.bf16.gmra.mxu0 %v4071
    %v4938 = vpop.f32.mrf.mxu0
    %v4939 = vadd.f32 %v4926, %v4938
    %v4940 = vpop.f32.mrf.mxu0
    %4941 = vdwg.mxu0
    %4942 = vmatpush.bf16.msra.mxu0 %v4720
    %4943 = vmatpush.bf16.msra.mxu0 %v4716
    %4944 = vmatpush.bf16.msra.mxu0 %v4712
    %4945 = vmatpush.bf16.msra.mxu0 %v4708
    %4946 = vmatpush.bf16.msra.mxu0 %v4704
    %4947 = vmatpush.bf16.msra.mxu0 %v4700
    %4948 = vmatpush.bf16.msra.mxu0 %v4696
    %4949 = vmatpush.bf16.msra.mxu0 %v4692
    %4950 = vmatmul.bf16.gmra.mxu0 %v4072
    %v4951 = vpop.f32.mrf.mxu0
    %v4952 = vadd.f32 %v4939, %v4951
    %v4953 = vpop.f32.mrf.mxu0
    %4954 = vdwg.mxu0
    %4955 = vmatpush.bf16.msra.mxu0 %v4625
    %4956 = vmatpush.bf16.msra.mxu0 %v4621
    %4957 = vmatpush.bf16.msra.mxu0 %v4617
    %4958 = vmatpush.bf16.msra.mxu0 %v4613
    %4959 = vmatpush.bf16.msra.mxu0 %v4609
    %4960 = vmatpush.bf16.msra.mxu0 %v4605
    %4961 = vmatpush.bf16.msra.mxu0 %v4601
    %4962 = vmatpush.bf16.msra.mxu0 %v4597
    %4963 = vmatmul.bf16.gmra.mxu0 %v4069
    %v4964 = vpop.f32.mrf.mxu0
    %v4965 = vadd.f32 %v4205, %v4964
    %v4966 = vpop.f32.mrf.mxu0
    %4967 = vdwg.mxu0
    %4968 = vmatpush.bf16.msra.mxu0 %v4657
    %4969 = vmatpush.bf16.msra.mxu0 %v4653
    %4970 = vmatpush.bf16.msra.mxu0 %v4649
    %4971 = vmatpush.bf16.msra.mxu0 %v4645
    %4972 = vmatpush.bf16.msra.mxu0 %v4641
    %4973 = vmatpush.bf16.msra.mxu0 %v4637
    %4974 = vmatpush.bf16.msra.mxu0 %v4633
    %4975 = vmatpush.bf16.msra.mxu0 %v4629
    %4976 = vmatmul.bf16.gmra.mxu0 %v4070
    %v4977 = vpop.f32.mrf.mxu0
    %v4978 = vadd.f32 %v4965, %v4977
    %v4979 = vpop.f32.mrf.mxu0
    %4980 = vdwg.mxu0
    %4981 = vmatpush.bf16.msra.mxu0 %v4689
    %4982 = vmatpush.bf16.msra.mxu0 %v4685
    %4983 = vmatpush.bf16.msra.mxu0 %v4681
    %4984 = vmatpush.bf16.msra.mxu0 %v4677
    %4985 = vmatpush.bf16.msra.mxu0 %v4673
    %4986 = vmatpush.bf16.msra.mxu0 %v4669
    %4987 = vmatpush.bf16.msra.mxu0 %v4665
    %4988 = vmatpush.bf16.msra.mxu0 %v4661
    %4989 = vmatmul.bf16.gmra.mxu0 %v4071
    %v4990 = vpop.f32.mrf.mxu0
    %v4991 = vadd.f32 %v4978, %v4990
    %v4992 = vpop.f32.mrf.mxu0
    %4993 = vdwg.mxu0
    %4994 = vmatpush.bf16.msra.mxu0 %v4721
    %4995 = vmatpush.bf16.msra.mxu0 %v4717
    %4996 = vmatpush.bf16.msra.mxu0 %v4713
    %4997 = vmatpush.bf16.msra.mxu0 %v4709
    %4998 = vmatpush.bf16.msra.mxu0 %v4705
    %4999 = vmatpush.bf16.msra.mxu0 %v4701
    %5000 = vmatpush.bf16.msra.mxu0 %v4697
    %5001 = vmatpush.bf16.msra.mxu0 %v4693
    %5002 = vmatmul.bf16.gmra.mxu0 %v4072
    %v5003 = vpop.f32.mrf.mxu0
    %v5004 = vadd.f32 %v4991, %v5003
    %v5005 = vpop.f32.mrf.mxu0
    %5006 = vdwg.mxu0
    %5007 = vmatpush.bf16.msra.mxu0 %v4626
    %5008 = vmatpush.bf16.msra.mxu0 %v4622
    %5009 = vmatpush.bf16.msra.mxu0 %v4618
    %5010 = vmatpush.bf16.msra.mxu0 %v4614
    %5011 = vmatpush.bf16.msra.mxu0 %v4610
    %5012 = vmatpush.bf16.msra.mxu0 %v4606
    %5013 = vmatpush.bf16.msra.mxu0 %v4602
    %5014 = vmatpush.bf16.msra.mxu0 %v4598
    %5015 = vmatmul.bf16.gmra.mxu0 %v4069
    %v5016 = vpop.f32.mrf.mxu0
    %v5017 = vadd.f32 %v4206, %v5016
    %v5018 = vpop.f32.mrf.mxu0
    %5019 = vdwg.mxu0
    %5020 = vmatpush.bf16.msra.mxu0 %v4658
    %5021 = vmatpush.bf16.msra.mxu0 %v4654
    %5022 = vmatpush.bf16.msra.mxu0 %v4650
    %5023 = vmatpush.bf16.msra.mxu0 %v4646
    %5024 = vmatpush.bf16.msra.mxu0 %v4642
    %5025 = vmatpush.bf16.msra.mxu0 %v4638
    %5026 = vmatpush.bf16.msra.mxu0 %v4634
    %5027 = vmatpush.bf16.msra.mxu0 %v4630
    %5028 = vmatmul.bf16.gmra.mxu0 %v4070
    %v5029 = vpop.f32.mrf.mxu0
    %v5030 = vadd.f32 %v5017, %v5029
    %v5031 = vpop.f32.mrf.mxu0
    %5032 = vdwg.mxu0
    %5033 = vmatpush.bf16.msra.mxu0 %v4690
    %5034 = vmatpush.bf16.msra.mxu0 %v4686
    %5035 = vmatpush.bf16.msra.mxu0 %v4682
    %5036 = vmatpush.bf16.msra.mxu0 %v4678
    %5037 = vmatpush.bf16.msra.mxu0 %v4674
    %5038 = vmatpush.bf16.msra.mxu0 %v4670
    %5039 = vmatpush.bf16.msra.mxu0 %v4666
    %5040 = vmatpush.bf16.msra.mxu0 %v4662
    %5041 = vmatmul.bf16.gmra.mxu0 %v4071
    %v5042 = vpop.f32.mrf.mxu0
    %v5043 = vadd.f32 %v5030, %v5042
    %v5044 = vpop.f32.mrf.mxu0
    %5045 = vdwg.mxu0
    %5046 = vmatpush.bf16.msra.mxu0 %v4722
    %5047 = vmatpush.bf16.msra.mxu0 %v4718
    %5048 = vmatpush.bf16.msra.mxu0 %v4714
    %5049 = vmatpush.bf16.msra.mxu0 %v4710
    %5050 = vmatpush.bf16.msra.mxu0 %v4706
    %5051 = vmatpush.bf16.msra.mxu0 %v4702
    %5052 = vmatpush.bf16.msra.mxu0 %v4698
    %5053 = vmatpush.bf16.msra.mxu0 %v4694
    %5054 = vmatmul.bf16.gmra.mxu0 %v4072
    %v5055 = vpop.f32.mrf.mxu0
    %v5056 = vadd.f32 %v5043, %v5055
    %v5057 = vpop.f32.mrf.mxu0
    %5058 = vdwg.mxu0
    %v5059 = vmax.f32 %v4900, 0.0
    %v5060 = vmax.f32 %v4952, 0.0
    %v5061 = vmax.f32 %v5004, 0.0
    %v5062 = vmax.f32 %v5056, 0.0
    %s5063 = sshll.u32 %s3070, 4
    %5064 = dma.done %s140, %s5063
    %v5065 = vpack.c.bf16 %v5059, %v5059
    %v5066 = vpack.c.bf16 %v5060, %v5060
    %v5067 = vpack.c.bf16 %v5061, %v5061
    %v5068 = vpack.c.bf16 %v5062, %v5062
    %v5069 = vld [vmem:[#allocation6] sm:$0xff]
    %v5070 = vld [vmem:[#allocation6 + $0x8] sm:$0xff]
    %v5071 = vld [vmem:[#allocation6 + $0x10] sm:$0xff]
    %v5072 = vld [vmem:[#allocation6 + $0x18] sm:$0xff]
    %v5073 = vld [vmem:[#allocation6 + $0x20] sm:$0xff]
    %v5074 = vld [vmem:[#allocation6 + $0x28] sm:$0xff]
    %v5075 = vld [vmem:[#allocation6 + $0x30] sm:$0xff]
    %v5076 = vld [vmem:[#allocation6 + $0x38] sm:$0xff]
    %v5077 = vld [vmem:[#allocation6 + $0x40] sm:$0xff]
    %v5078 = vld [vmem:[#allocation6 + $0x48] sm:$0xff]
    %v5079 = vld [vmem:[#allocation6 + $0x50] sm:$0xff]
    %v5080 = vld [vmem:[#allocation6 + $0x58] sm:$0xff]
    %v5081 = vld [vmem:[#allocation6 + $0x60] sm:$0xff]
    %v5082 = vld [vmem:[#allocation6 + $0x68] sm:$0xff]
    %v5083 = vld [vmem:[#allocation6 + $0x70] sm:$0xff]
    %v5084 = vld [vmem:[#allocation6 + $0x78] sm:$0xff]
    %v5085 = vld [vmem:[#allocation6 + $0x80] sm:$0xff]
    %v5086 = vld [vmem:[#allocation6 + $0x88] sm:$0xff]
    %v5087 = vld [vmem:[#allocation6 + $0x90] sm:$0xff]
    %v5088 = vld [vmem:[#allocation6 + $0x98] sm:$0xff]
    %v5089 = vld [vmem:[#allocation6 + $0xa0] sm:$0xff]
    %v5090 = vld [vmem:[#allocation6 + $0xa8] sm:$0xff]
    %v5091 = vld [vmem:[#allocation6 + $0xb0] sm:$0xff]
    %v5092 = vld [vmem:[#allocation6 + $0xb8] sm:$0xff]
    %v5093 = vld [vmem:[#allocation6 + $0xc0] sm:$0xff]
    %v5094 = vld [vmem:[#allocation6 + $0xc8] sm:$0xff]
    %v5095 = vld [vmem:[#allocation6 + $0xd0] sm:$0xff]
    %v5096 = vld [vmem:[#allocation6 + $0xd8] sm:$0xff]
    %v5097 = vld [vmem:[#allocation6 + $0xe0] sm:$0xff]
    %v5098 = vld [vmem:[#allocation6 + $0xe8] sm:$0xff]
    %v5099 = vld [vmem:[#allocation6 + $0xf0] sm:$0xff]
    %v5100 = vld [vmem:[#allocation6 + $0xf8] sm:$0xff]
    %v5101 = vld [vmem:[#allocation6 + $0x100] sm:$0xff]
    %v5102 = vld [vmem:[#allocation6 + $0x108] sm:$0xff]
    %v5103 = vld [vmem:[#allocation6 + $0x110] sm:$0xff]
    %v5104 = vld [vmem:[#allocation6 + $0x118] sm:$0xff]
    %v5105 = vld [vmem:[#allocation6 + $0x120] sm:$0xff]
    %v5106 = vld [vmem:[#allocation6 + $0x128] sm:$0xff]
    %v5107 = vld [vmem:[#allocation6 + $0x130] sm:$0xff]
    %v5108 = vld [vmem:[#allocation6 + $0x138] sm:$0xff]
    %v5109 = vld [vmem:[#allocation6 + $0x140] sm:$0xff]
    %v5110 = vld [vmem:[#allocation6 + $0x148] sm:$0xff]
    %v5111 = vld [vmem:[#allocation6 + $0x150] sm:$0xff]
    %v5112 = vld [vmem:[#allocation6 + $0x158] sm:$0xff]
    %v5113 = vld [vmem:[#allocation6 + $0x160] sm:$0xff]
    %v5114 = vld [vmem:[#allocation6 + $0x168] sm:$0xff]
    %v5115 = vld [vmem:[#allocation6 + $0x170] sm:$0xff]
    %v5116 = vld [vmem:[#allocation6 + $0x178] sm:$0xff]
    %v5117 = vld [vmem:[#allocation6 + $0x180] sm:$0xff]
    %v5118 = vld [vmem:[#allocation6 + $0x188] sm:$0xff]
    %v5119 = vld [vmem:[#allocation6 + $0x190] sm:$0xff]
    %v5120 = vld [vmem:[#allocation6 + $0x198] sm:$0xff]
    %v5121 = vld [vmem:[#allocation6 + $0x1a0] sm:$0xff]
    %v5122 = vld [vmem:[#allocation6 + $0x1a8] sm:$0xff]
    %v5123 = vld [vmem:[#allocation6 + $0x1b0] sm:$0xff]
    %v5124 = vld [vmem:[#allocation6 + $0x1b8] sm:$0xff]
    %v5125 = vld [vmem:[#allocation6 + $0x1c0] sm:$0xff]
    %v5126 = vld [vmem:[#allocation6 + $0x1c8] sm:$0xff]
    %v5127 = vld [vmem:[#allocation6 + $0x1d0] sm:$0xff]
    %v5128 = vld [vmem:[#allocation6 + $0x1d8] sm:$0xff]
    %v5129 = vld [vmem:[#allocation6 + $0x1e0] sm:$0xff]
    %v5130 = vld [vmem:[#allocation6 + $0x1e8] sm:$0xff]
    %v5131 = vld [vmem:[#allocation6 + $0x1f0] sm:$0xff]
    %v5132 = vld [vmem:[#allocation6 + $0x1f8] sm:$0xff]
    %v5133 = vld [vmem:[#allocation6 + $0x200] sm:$0xff]
    %v5134 = vld [vmem:[#allocation6 + $0x208] sm:$0xff]
    %v5135 = vld [vmem:[#allocation6 + $0x210] sm:$0xff]
    %v5136 = vld [vmem:[#allocation6 + $0x218] sm:$0xff]
    %v5137 = vld [vmem:[#allocation6 + $0x220] sm:$0xff]
    %v5138 = vld [vmem:[#allocation6 + $0x228] sm:$0xff]
    %v5139 = vld [vmem:[#allocation6 + $0x230] sm:$0xff]
    %v5140 = vld [vmem:[#allocation6 + $0x238] sm:$0xff]
    %v5141 = vld [vmem:[#allocation6 + $0x240] sm:$0xff]
    %v5142 = vld [vmem:[#allocation6 + $0x248] sm:$0xff]
    %v5143 = vld [vmem:[#allocation6 + $0x250] sm:$0xff]
    %v5144 = vld [vmem:[#allocation6 + $0x258] sm:$0xff]
    %v5145 = vld [vmem:[#allocation6 + $0x260] sm:$0xff]
    %v5146 = vld [vmem:[#allocation6 + $0x268] sm:$0xff]
    %v5147 = vld [vmem:[#allocation6 + $0x270] sm:$0xff]
    %v5148 = vld [vmem:[#allocation6 + $0x278] sm:$0xff]
    %v5149 = vld [vmem:[#allocation6 + $0x280] sm:$0xff]
    %v5150 = vld [vmem:[#allocation6 + $0x288] sm:$0xff]
    %v5151 = vld [vmem:[#allocation6 + $0x290] sm:$0xff]
    %v5152 = vld [vmem:[#allocation6 + $0x298] sm:$0xff]
    %v5153 = vld [vmem:[#allocation6 + $0x2a0] sm:$0xff]
    %v5154 = vld [vmem:[#allocation6 + $0x2a8] sm:$0xff]
    %v5155 = vld [vmem:[#allocation6 + $0x2b0] sm:$0xff]
    %v5156 = vld [vmem:[#allocation6 + $0x2b8] sm:$0xff]
    %v5157 = vld [vmem:[#allocation6 + $0x2c0] sm:$0xff]
    %v5158 = vld [vmem:[#allocation6 + $0x2c8] sm:$0xff]
    %v5159 = vld [vmem:[#allocation6 + $0x2d0] sm:$0xff]
    %v5160 = vld [vmem:[#allocation6 + $0x2d8] sm:$0xff]
    %v5161 = vld [vmem:[#allocation6 + $0x2e0] sm:$0xff]
    %v5162 = vld [vmem:[#allocation6 + $0x2e8] sm:$0xff]
    %v5163 = vld [vmem:[#allocation6 + $0x2f0] sm:$0xff]
    %v5164 = vld [vmem:[#allocation6 + $0x2f8] sm:$0xff]
    %v5165 = vld [vmem:[#allocation6 + $0x300] sm:$0xff]
    %v5166 = vld [vmem:[#allocation6 + $0x308] sm:$0xff]
    %v5167 = vld [vmem:[#allocation6 + $0x310] sm:$0xff]
    %v5168 = vld [vmem:[#allocation6 + $0x318] sm:$0xff]
    %v5169 = vld [vmem:[#allocation6 + $0x320] sm:$0xff]
    %v5170 = vld [vmem:[#allocation6 + $0x328] sm:$0xff]
    %v5171 = vld [vmem:[#allocation6 + $0x330] sm:$0xff]
    %v5172 = vld [vmem:[#allocation6 + $0x338] sm:$0xff]
    %v5173 = vld [vmem:[#allocation6 + $0x340] sm:$0xff]
    %v5174 = vld [vmem:[#allocation6 + $0x348] sm:$0xff]
    %v5175 = vld [vmem:[#allocation6 + $0x350] sm:$0xff]
    %v5176 = vld [vmem:[#allocation6 + $0x358] sm:$0xff]
    %v5177 = vld [vmem:[#allocation6 + $0x360] sm:$0xff]
    %v5178 = vld [vmem:[#allocation6 + $0x368] sm:$0xff]
    %v5179 = vld [vmem:[#allocation6 + $0x370] sm:$0xff]
    %v5180 = vld [vmem:[#allocation6 + $0x378] sm:$0xff]
    %v5181 = vld [vmem:[#allocation6 + $0x380] sm:$0xff]
    %v5182 = vld [vmem:[#allocation6 + $0x388] sm:$0xff]
    %v5183 = vld [vmem:[#allocation6 + $0x390] sm:$0xff]
    %v5184 = vld [vmem:[#allocation6 + $0x398] sm:$0xff]
    %v5185 = vld [vmem:[#allocation6 + $0x3a0] sm:$0xff]
    %v5186 = vld [vmem:[#allocation6 + $0x3a8] sm:$0xff]
    %v5187 = vld [vmem:[#allocation6 + $0x3b0] sm:$0xff]
    %v5188 = vld [vmem:[#allocation6 + $0x3b8] sm:$0xff]
    %v5189 = vld [vmem:[#allocation6 + $0x3c0] sm:$0xff]
    %v5190 = vld [vmem:[#allocation6 + $0x3c8] sm:$0xff]
    %v5191 = vld [vmem:[#allocation6 + $0x3d0] sm:$0xff]
    %v5192 = vld [vmem:[#allocation6 + $0x3d8] sm:$0xff]
    %v5193 = vld [vmem:[#allocation6 + $0x3e0] sm:$0xff]
    %v5194 = vld [vmem:[#allocation6 + $0x3e8] sm:$0xff]
    %v5195 = vld [vmem:[#allocation6 + $0x3f0] sm:$0xff]
    %v5196 = vld [vmem:[#allocation6 + $0x3f8] sm:$0xff]
    %v5197 = vld [vmem:[%s8] sm:$0xf]
    %v5199 = vperm.slane %v5197, 0
    %v5200 = vperm.slane %v5197, 1
    %v5201 = vperm.slane %v5197, 2
    %v5202 = vperm.slane %v5197, 3
    %v5335 = vunpack.c.l.b16 %v5069
    %v5336 = vunpack.c.h.b16 %v5069
    %v5337 = vunpack.c.l.b16 %v5070
    %v5338 = vunpack.c.h.b16 %v5070
    %v5339 = vunpack.c.l.b16 %v5071
    %v5340 = vunpack.c.h.b16 %v5071
    %v5341 = vunpack.c.l.b16 %v5072
    %v5342 = vunpack.c.h.b16 %v5072
    %v5343 = vunpack.c.l.b16 %v5073
    %v5344 = vunpack.c.h.b16 %v5073
    %v5345 = vunpack.c.l.b16 %v5074
    %v5346 = vunpack.c.h.b16 %v5074
    %v5347 = vunpack.c.l.b16 %v5075
    %v5348 = vunpack.c.h.b16 %v5075
    %v5349 = vunpack.c.l.b16 %v5076
    %v5350 = vunpack.c.h.b16 %v5076
    %v5351 = vunpack.c.l.b16 %v5077
    %v5352 = vunpack.c.h.b16 %v5077
    %v5353 = vunpack.c.l.b16 %v5078
    %v5354 = vunpack.c.h.b16 %v5078
    %v5355 = vunpack.c.l.b16 %v5079
    %v5356 = vunpack.c.h.b16 %v5079
    %v5357 = vunpack.c.l.b16 %v5080
    %v5358 = vunpack.c.h.b16 %v5080
    %v5359 = vunpack.c.l.b16 %v5081
    %v5360 = vunpack.c.h.b16 %v5081
    %v5361 = vunpack.c.l.b16 %v5082
    %v5362 = vunpack.c.h.b16 %v5082
    %v5363 = vunpack.c.l.b16 %v5083
    %v5364 = vunpack.c.h.b16 %v5083
    %v5365 = vunpack.c.l.b16 %v5084
    %v5366 = vunpack.c.h.b16 %v5084
    %v5367 = vunpack.c.l.b16 %v5085
    %v5368 = vunpack.c.h.b16 %v5085
    %v5369 = vunpack.c.l.b16 %v5086
    %v5370 = vunpack.c.h.b16 %v5086
    %v5371 = vunpack.c.l.b16 %v5087
    %v5372 = vunpack.c.h.b16 %v5087
    %v5373 = vunpack.c.l.b16 %v5088
    %v5374 = vunpack.c.h.b16 %v5088
    %v5375 = vunpack.c.l.b16 %v5089
    %v5376 = vunpack.c.h.b16 %v5089
    %v5377 = vunpack.c.l.b16 %v5090
    %v5378 = vunpack.c.h.b16 %v5090
    %v5379 = vunpack.c.l.b16 %v5091
    %v5380 = vunpack.c.h.b16 %v5091
    %v5381 = vunpack.c.l.b16 %v5092
    %v5382 = vunpack.c.h.b16 %v5092
    %v5383 = vunpack.c.l.b16 %v5093
    %v5384 = vunpack.c.h.b16 %v5093
    %v5385 = vunpack.c.l.b16 %v5094
    %v5386 = vunpack.c.h.b16 %v5094
    %v5387 = vunpack.c.l.b16 %v5095
    %v5388 = vunpack.c.h.b16 %v5095
    %v5389 = vunpack.c.l.b16 %v5096
    %v5390 = vunpack.c.h.b16 %v5096
    %v5391 = vunpack.c.l.b16 %v5097
    %v5392 = vunpack.c.h.b16 %v5097
    %v5393 = vunpack.c.l.b16 %v5098
    %v5394 = vunpack.c.h.b16 %v5098
    %v5395 = vunpack.c.l.b16 %v5099
    %v5396 = vunpack.c.h.b16 %v5099
    %v5397 = vunpack.c.l.b16 %v5100
    %v5398 = vunpack.c.h.b16 %v5100
    %v5399 = vunpack.c.l.b16 %v5101
    %v5400 = vunpack.c.h.b16 %v5101
    %v5401 = vunpack.c.l.b16 %v5102
    %v5402 = vunpack.c.h.b16 %v5102
    %v5403 = vunpack.c.l.b16 %v5103
    %v5404 = vunpack.c.h.b16 %v5103
    %v5405 = vunpack.c.l.b16 %v5104
    %v5406 = vunpack.c.h.b16 %v5104
    %v5407 = vunpack.c.l.b16 %v5105
    %v5408 = vunpack.c.h.b16 %v5105
    %v5409 = vunpack.c.l.b16 %v5106
    %v5410 = vunpack.c.h.b16 %v5106
    %v5411 = vunpack.c.l.b16 %v5107
    %v5412 = vunpack.c.h.b16 %v5107
    %v5413 = vunpack.c.l.b16 %v5108
    %v5414 = vunpack.c.h.b16 %v5108
    %v5415 = vunpack.c.l.b16 %v5109
    %v5416 = vunpack.c.h.b16 %v5109
    %v5417 = vunpack.c.l.b16 %v5110
    %v5418 = vunpack.c.h.b16 %v5110
    %v5419 = vunpack.c.l.b16 %v5111
    %v5420 = vunpack.c.h.b16 %v5111
    %v5421 = vunpack.c.l.b16 %v5112
    %v5422 = vunpack.c.h.b16 %v5112
    %v5423 = vunpack.c.l.b16 %v5113
    %v5424 = vunpack.c.h.b16 %v5113
    %v5425 = vunpack.c.l.b16 %v5114
    %v5426 = vunpack.c.h.b16 %v5114
    %v5427 = vunpack.c.l.b16 %v5115
    %v5428 = vunpack.c.h.b16 %v5115
    %v5429 = vunpack.c.l.b16 %v5116
    %v5430 = vunpack.c.h.b16 %v5116
    %v5431 = vunpack.c.l.b16 %v5117
    %v5432 = vunpack.c.h.b16 %v5117
    %v5433 = vunpack.c.l.b16 %v5118
    %v5434 = vunpack.c.h.b16 %v5118
    %v5435 = vunpack.c.l.b16 %v5119
    %v5436 = vunpack.c.h.b16 %v5119
    %v5437 = vunpack.c.l.b16 %v5120
    %v5438 = vunpack.c.h.b16 %v5120
    %v5439 = vunpack.c.l.b16 %v5121
    %v5440 = vunpack.c.h.b16 %v5121
    %v5441 = vunpack.c.l.b16 %v5122
    %v5442 = vunpack.c.h.b16 %v5122
    %v5443 = vunpack.c.l.b16 %v5123
    %v5444 = vunpack.c.h.b16 %v5123
    %v5445 = vunpack.c.l.b16 %v5124
    %v5446 = vunpack.c.h.b16 %v5124
    %v5447 = vunpack.c.l.b16 %v5125
    %v5448 = vunpack.c.h.b16 %v5125
    %v5449 = vunpack.c.l.b16 %v5126
    %v5450 = vunpack.c.h.b16 %v5126
    %v5451 = vunpack.c.l.b16 %v5127
    %v5452 = vunpack.c.h.b16 %v5127
    %v5453 = vunpack.c.l.b16 %v5128
    %v5454 = vunpack.c.h.b16 %v5128
    %v5455 = vunpack.c.l.b16 %v5129
    %v5456 = vunpack.c.h.b16 %v5129
    %v5457 = vunpack.c.l.b16 %v5130
    %v5458 = vunpack.c.h.b16 %v5130
    %v5459 = vunpack.c.l.b16 %v5131
    %v5460 = vunpack.c.h.b16 %v5131
    %v5461 = vunpack.c.l.b16 %v5132
    %v5462 = vunpack.c.h.b16 %v5132
    %v5463 = vunpack.c.l.b16 %v5133
    %v5464 = vunpack.c.h.b16 %v5133
    %v5465 = vunpack.c.l.b16 %v5134
    %v5466 = vunpack.c.h.b16 %v5134
    %v5467 = vunpack.c.l.b16 %v5135
    %v5468 = vunpack.c.h.b16 %v5135
    %v5469 = vunpack.c.l.b16 %v5136
    %v5470 = vunpack.c.h.b16 %v5136
    %v5471 = vunpack.c.l.b16 %v5137
    %v5472 = vunpack.c.h.b16 %v5137
    %v5473 = vunpack.c.l.b16 %v5138
    %v5474 = vunpack.c.h.b16 %v5138
    %v5475 = vunpack.c.l.b16 %v5139
    %v5476 = vunpack.c.h.b16 %v5139
    %v5477 = vunpack.c.l.b16 %v5140
    %v5478 = vunpack.c.h.b16 %v5140
    %v5479 = vunpack.c.l.b16 %v5141
    %v5480 = vunpack.c.h.b16 %v5141
    %v5481 = vunpack.c.l.b16 %v5142
    %v5482 = vunpack.c.h.b16 %v5142
    %v5483 = vunpack.c.l.b16 %v5143
    %v5484 = vunpack.c.h.b16 %v5143
    %v5485 = vunpack.c.l.b16 %v5144
    %v5486 = vunpack.c.h.b16 %v5144
    %v5487 = vunpack.c.l.b16 %v5145
    %v5488 = vunpack.c.h.b16 %v5145
    %v5489 = vunpack.c.l.b16 %v5146
    %v5490 = vunpack.c.h.b16 %v5146
    %v5491 = vunpack.c.l.b16 %v5147
    %v5492 = vunpack.c.h.b16 %v5147
    %v5493 = vunpack.c.l.b16 %v5148
    %v5494 = vunpack.c.h.b16 %v5148
    %v5495 = vunpack.c.l.b16 %v5149
    %v5496 = vunpack.c.h.b16 %v5149
    %v5497 = vunpack.c.l.b16 %v5150
    %v5498 = vunpack.c.h.b16 %v5150
    %v5499 = vunpack.c.l.b16 %v5151
    %v5500 = vunpack.c.h.b16 %v5151
    %v5501 = vunpack.c.l.b16 %v5152
    %v5502 = vunpack.c.h.b16 %v5152
    %v5503 = vunpack.c.l.b16 %v5153
    %v5504 = vunpack.c.h.b16 %v5153
    %v5505 = vunpack.c.l.b16 %v5154
    %v5506 = vunpack.c.h.b16 %v5154
    %v5507 = vunpack.c.l.b16 %v5155
    %v5508 = vunpack.c.h.b16 %v5155
    %v5509 = vunpack.c.l.b16 %v5156
    %v5510 = vunpack.c.h.b16 %v5156
    %v5511 = vunpack.c.l.b16 %v5157
    %v5512 = vunpack.c.h.b16 %v5157
    %v5513 = vunpack.c.l.b16 %v5158
    %v5514 = vunpack.c.h.b16 %v5158
    %v5515 = vunpack.c.l.b16 %v5159
    %v5516 = vunpack.c.h.b16 %v5159
    %v5517 = vunpack.c.l.b16 %v5160
    %v5518 = vunpack.c.h.b16 %v5160
    %v5519 = vunpack.c.l.b16 %v5161
    %v5520 = vunpack.c.h.b16 %v5161
    %v5521 = vunpack.c.l.b16 %v5162
    %v5522 = vunpack.c.h.b16 %v5162
    %v5523 = vunpack.c.l.b16 %v5163
    %v5524 = vunpack.c.h.b16 %v5163
    %v5525 = vunpack.c.l.b16 %v5164
    %v5526 = vunpack.c.h.b16 %v5164
    %v5527 = vunpack.c.l.b16 %v5165
    %v5528 = vunpack.c.h.b16 %v5165
    %v5529 = vunpack.c.l.b16 %v5166
    %v5530 = vunpack.c.h.b16 %v5166
    %v5531 = vunpack.c.l.b16 %v5167
    %v5532 = vunpack.c.h.b16 %v5167
    %v5533 = vunpack.c.l.b16 %v5168
    %v5534 = vunpack.c.h.b16 %v5168
    %v5535 = vunpack.c.l.b16 %v5169
    %v5536 = vunpack.c.h.b16 %v5169
    %v5537 = vunpack.c.l.b16 %v5170
    %v5538 = vunpack.c.h.b16 %v5170
    %v5539 = vunpack.c.l.b16 %v5171
    %v5540 = vunpack.c.h.b16 %v5171
    %v5541 = vunpack.c.l.b16 %v5172
    %v5542 = vunpack.c.h.b16 %v5172
    %v5543 = vunpack.c.l.b16 %v5173
    %v5544 = vunpack.c.h.b16 %v5173
    %v5545 = vunpack.c.l.b16 %v5174
    %v5546 = vunpack.c.h.b16 %v5174
    %v5547 = vunpack.c.l.b16 %v5175
    %v5548 = vunpack.c.h.b16 %v5175
    %v5549 = vunpack.c.l.b16 %v5176
    %v5550 = vunpack.c.h.b16 %v5176
    %v5551 = vunpack.c.l.b16 %v5177
    %v5552 = vunpack.c.h.b16 %v5177
    %v5553 = vunpack.c.l.b16 %v5178
    %v5554 = vunpack.c.h.b16 %v5178
    %v5555 = vunpack.c.l.b16 %v5179
    %v5556 = vunpack.c.h.b16 %v5179
    %v5557 = vunpack.c.l.b16 %v5180
    %v5558 = vunpack.c.h.b16 %v5180
    %v5559 = vunpack.c.l.b16 %v5181
    %v5560 = vunpack.c.h.b16 %v5181
    %v5561 = vunpack.c.l.b16 %v5182
    %v5562 = vunpack.c.h.b16 %v5182
    %v5563 = vunpack.c.l.b16 %v5183
    %v5564 = vunpack.c.h.b16 %v5183
    %v5565 = vunpack.c.l.b16 %v5184
    %v5566 = vunpack.c.h.b16 %v5184
    %v5567 = vunpack.c.l.b16 %v5185
    %v5568 = vunpack.c.h.b16 %v5185
    %v5569 = vunpack.c.l.b16 %v5186
    %v5570 = vunpack.c.h.b16 %v5186
    %v5571 = vunpack.c.l.b16 %v5187
    %v5572 = vunpack.c.h.b16 %v5187
    %v5573 = vunpack.c.l.b16 %v5188
    %v5574 = vunpack.c.h.b16 %v5188
    %v5575 = vunpack.c.l.b16 %v5189
    %v5576 = vunpack.c.h.b16 %v5189
    %v5577 = vunpack.c.l.b16 %v5190
    %v5578 = vunpack.c.h.b16 %v5190
    %v5579 = vunpack.c.l.b16 %v5191
    %v5580 = vunpack.c.h.b16 %v5191
    %v5581 = vunpack.c.l.b16 %v5192
    %v5582 = vunpack.c.h.b16 %v5192
    %v5583 = vunpack.c.l.b16 %v5193
    %v5584 = vunpack.c.h.b16 %v5193
    %v5585 = vunpack.c.l.b16 %v5194
    %v5586 = vunpack.c.h.b16 %v5194
    %v5587 = vunpack.c.l.b16 %v5195
    %v5588 = vunpack.c.h.b16 %v5195
    %v5589 = vunpack.c.l.b16 %v5196
    %v5590 = vunpack.c.h.b16 %v5196
    %v5591 = vpack.c.b16 %v5339, %v5335
    %v5592 = vpack.c.b16 %v5340, %v5336
    %v5593 = vpack.c.b16 %v5341, %v5337
    %v5594 = vpack.c.b16 %v5342, %v5338
    %v5595 = vpack.c.b16 %v5347, %v5343
    %v5596 = vpack.c.b16 %v5348, %v5344
    %v5597 = vpack.c.b16 %v5349, %v5345
    %v5598 = vpack.c.b16 %v5350, %v5346
    %v5599 = vpack.c.b16 %v5355, %v5351
    %v5600 = vpack.c.b16 %v5356, %v5352
    %v5601 = vpack.c.b16 %v5357, %v5353
    %v5602 = vpack.c.b16 %v5358, %v5354
    %v5603 = vpack.c.b16 %v5363, %v5359
    %v5604 = vpack.c.b16 %v5364, %v5360
    %v5605 = vpack.c.b16 %v5365, %v5361
    %v5606 = vpack.c.b16 %v5366, %v5362
    %v5607 = vpack.c.b16 %v5371, %v5367
    %v5608 = vpack.c.b16 %v5372, %v5368
    %v5609 = vpack.c.b16 %v5373, %v5369
    %v5610 = vpack.c.b16 %v5374, %v5370
    %v5611 = vpack.c.b16 %v5379, %v5375
    %v5612 = vpack.c.b16 %v5380, %v5376
    %v5613 = vpack.c.b16 %v5381, %v5377
    %v5614 = vpack.c.b16 %v5382, %v5378
    %v5615 = vpack.c.b16 %v5387, %v5383
    %v5616 = vpack.c.b16 %v5388, %v5384
    %v5617 = vpack.c.b16 %v5389, %v5385
    %v5618 = vpack.c.b16 %v5390, %v5386
    %v5619 = vpack.c.b16 %v5395, %v5391
    %v5620 = vpack.c.b16 %v5396, %v5392
    %v5621 = vpack.c.b16 %v5397, %v5393
    %v5622 = vpack.c.b16 %v5398, %v5394
    %v5623 = vpack.c.b16 %v5403, %v5399
    %v5624 = vpack.c.b16 %v5404, %v5400
    %v5625 = vpack.c.b16 %v5405, %v5401
    %v5626 = vpack.c.b16 %v5406, %v5402
    %v5627 = vpack.c.b16 %v5411, %v5407
    %v5628 = vpack.c.b16 %v5412, %v5408
    %v5629 = vpack.c.b16 %v5413, %v5409
    %v5630 = vpack.c.b16 %v5414, %v5410
    %v5631 = vpack.c.b16 %v5419, %v5415
    %v5632 = vpack.c.b16 %v5420, %v5416
    %v5633 = vpack.c.b16 %v5421, %v5417
    %v5634 = vpack.c.b16 %v5422, %v5418
    %v5635 = vpack.c.b16 %v5427, %v5423
    %v5636 = vpack.c.b16 %v5428, %v5424
    %v5637 = vpack.c.b16 %v5429, %v5425
    %v5638 = vpack.c.b16 %v5430, %v5426
    %v5639 = vpack.c.b16 %v5435, %v5431
    %v5640 = vpack.c.b16 %v5436, %v5432
    %v5641 = vpack.c.b16 %v5437, %v5433
    %v5642 = vpack.c.b16 %v5438, %v5434
    %v5643 = vpack.c.b16 %v5443, %v5439
    %v5644 = vpack.c.b16 %v5444, %v5440
    %v5645 = vpack.c.b16 %v5445, %v5441
    %v5646 = vpack.c.b16 %v5446, %v5442
    %v5647 = vpack.c.b16 %v5451, %v5447
    %v5648 = vpack.c.b16 %v5452, %v5448
    %v5649 = vpack.c.b16 %v5453, %v5449
    %v5650 = vpack.c.b16 %v5454, %v5450
    %v5651 = vpack.c.b16 %v5459, %v5455
    %v5652 = vpack.c.b16 %v5460, %v5456
    %v5653 = vpack.c.b16 %v5461, %v5457
    %v5654 = vpack.c.b16 %v5462, %v5458
    %v5655 = vpack.c.b16 %v5467, %v5463
    %v5656 = vpack.c.b16 %v5468, %v5464
    %v5657 = vpack.c.b16 %v5469, %v5465
    %v5658 = vpack.c.b16 %v5470, %v5466
    %v5659 = vpack.c.b16 %v5475, %v5471
    %v5660 = vpack.c.b16 %v5476, %v5472
    %v5661 = vpack.c.b16 %v5477, %v5473
    %v5662 = vpack.c.b16 %v5478, %v5474
    %v5663 = vpack.c.b16 %v5483, %v5479
    %v5664 = vpack.c.b16 %v5484, %v5480
    %v5665 = vpack.c.b16 %v5485, %v5481
    %v5666 = vpack.c.b16 %v5486, %v5482
    %v5667 = vpack.c.b16 %v5491, %v5487
    %v5668 = vpack.c.b16 %v5492, %v5488
    %v5669 = vpack.c.b16 %v5493, %v5489
    %v5670 = vpack.c.b16 %v5494, %v5490
    %v5671 = vpack.c.b16 %v5499, %v5495
    %v5672 = vpack.c.b16 %v5500, %v5496
    %v5673 = vpack.c.b16 %v5501, %v5497
    %v5674 = vpack.c.b16 %v5502, %v5498
    %v5675 = vpack.c.b16 %v5507, %v5503
    %v5676 = vpack.c.b16 %v5508, %v5504
    %v5677 = vpack.c.b16 %v5509, %v5505
    %v5678 = vpack.c.b16 %v5510, %v5506
    %v5679 = vpack.c.b16 %v5515, %v5511
    %v5680 = vpack.c.b16 %v5516, %v5512
    %v5681 = vpack.c.b16 %v5517, %v5513
    %v5682 = vpack.c.b16 %v5518, %v5514
    %v5683 = vpack.c.b16 %v5523, %v5519
    %v5684 = vpack.c.b16 %v5524, %v5520
    %v5685 = vpack.c.b16 %v5525, %v5521
    %v5686 = vpack.c.b16 %v5526, %v5522
    %v5687 = vpack.c.b16 %v5531, %v5527
    %v5688 = vpack.c.b16 %v5532, %v5528
    %v5689 = vpack.c.b16 %v5533, %v5529
    %v5690 = vpack.c.b16 %v5534, %v5530
    %v5691 = vpack.c.b16 %v5539, %v5535
    %v5692 = vpack.c.b16 %v5540, %v5536
    %v5693 = vpack.c.b16 %v5541, %v5537
    %v5694 = vpack.c.b16 %v5542, %v5538
    %v5695 = vpack.c.b16 %v5547, %v5543
    %v5696 = vpack.c.b16 %v5548, %v5544
    %v5697 = vpack.c.b16 %v5549, %v5545
    %v5698 = vpack.c.b16 %v5550, %v5546
    %v5699 = vpack.c.b16 %v5555, %v5551
    %v5700 = vpack.c.b16 %v5556, %v5552
    %v5701 = vpack.c.b16 %v5557, %v5553
    %v5702 = vpack.c.b16 %v5558, %v5554
    %v5703 = vpack.c.b16 %v5563, %v5559
    %v5704 = vpack.c.b16 %v5564, %v5560
    %v5705 = vpack.c.b16 %v5565, %v5561
    %v5706 = vpack.c.b16 %v5566, %v5562
    %v5707 = vpack.c.b16 %v5571, %v5567
    %v5708 = vpack.c.b16 %v5572, %v5568
    %v5709 = vpack.c.b16 %v5573, %v5569
    %v5710 = vpack.c.b16 %v5574, %v5570
    %v5711 = vpack.c.b16 %v5579, %v5575
    %v5712 = vpack.c.b16 %v5580, %v5576
    %v5713 = vpack.c.b16 %v5581, %v5577
    %v5714 = vpack.c.b16 %v5582, %v5578
    %v5715 = vpack.c.b16 %v5587, %v5583
    %v5716 = vpack.c.b16 %v5588, %v5584
    %v5717 = vpack.c.b16 %v5589, %v5585
    %v5718 = vpack.c.b16 %v5590, %v5586
    %5847 = vmatpush.bf16.msra.mxu0 %v5619
    %5848 = vmatpush.bf16.msra.mxu0 %v5615
    %5849 = vmatpush.bf16.msra.mxu0 %v5611
    %5850 = vmatpush.bf16.msra.mxu0 %v5607
    %5851 = vmatpush.bf16.msra.mxu0 %v5603
    %5852 = vmatpush.bf16.msra.mxu0 %v5599
    %5853 = vmatpush.bf16.msra.mxu0 %v5595
    %5854 = vmatpush.bf16.msra.mxu0 %v5591
    %5855 = vmatmul.bf16.gmra.mxu0 %v5065
    %v5856 = vpop.f32.mrf.mxu0
    %v5857 = vadd.f32 %v5199, %v5856
    %v5858 = vpop.f32.mrf.mxu0
    %5859 = vdwg.mxu0
    %5860 = vmatpush.bf16.msra.mxu0 %v5651
    %5861 = vmatpush.bf16.msra.mxu0 %v5647
    %5862 = vmatpush.bf16.msra.mxu0 %v5643
    %5863 = vmatpush.bf16.msra.mxu0 %v5639
    %5864 = vmatpush.bf16.msra.mxu0 %v5635
    %5865 = vmatpush.bf16.msra.mxu0 %v5631
    %5866 = vmatpush.bf16.msra.mxu0 %v5627
    %5867 = vmatpush.bf16.msra.mxu0 %v5623
    %5868 = vmatmul.bf16.gmra.mxu0 %v5066
    %v5869 = vpop.f32.mrf.mxu0
    %v5870 = vadd.f32 %v5857, %v5869
    %v5871 = vpop.f32.mrf.mxu0
    %5872 = vdwg.mxu0
    %5873 = vmatpush.bf16.msra.mxu0 %v5683
    %5874 = vmatpush.bf16.msra.mxu0 %v5679
    %5875 = vmatpush.bf16.msra.mxu0 %v5675
    %5876 = vmatpush.bf16.msra.mxu0 %v5671
    %5877 = vmatpush.bf16.msra.mxu0 %v5667
    %5878 = vmatpush.bf16.msra.mxu0 %v5663
    %5879 = vmatpush.bf16.msra.mxu0 %v5659
    %5880 = vmatpush.bf16.msra.mxu0 %v5655
    %5881 = vmatmul.bf16.gmra.mxu0 %v5067
    %v5882 = vpop.f32.mrf.mxu0
    %v5883 = vadd.f32 %v5870, %v5882
    %v5884 = vpop.f32.mrf.mxu0
    %5885 = vdwg.mxu0
    %5886 = vmatpush.bf16.msra.mxu0 %v5715
    %5887 = vmatpush.bf16.msra.mxu0 %v5711
    %5888 = vmatpush.bf16.msra.mxu0 %v5707
    %5889 = vmatpush.bf16.msra.mxu0 %v5703
    %5890 = vmatpush.bf16.msra.mxu0 %v5699
    %5891 = vmatpush.bf16.msra.mxu0 %v5695
    %5892 = vmatpush.bf16.msra.mxu0 %v5691
    %5893 = vmatpush.bf16.msra.mxu0 %v5687
    %5894 = vmatmul.bf16.gmra.mxu0 %v5068
    %v5895 = vpop.f32.mrf.mxu0
    %v5896 = vadd.f32 %v5883, %v5895
    %v5897 = vpop.f32.mrf.mxu0
    %5898 = vdwg.mxu0
    %5899 = vmatpush.bf16.msra.mxu0 %v5620
    %5900 = vmatpush.bf16.msra.mxu0 %v5616
    %5901 = vmatpush.bf16.msra.mxu0 %v5612
    %5902 = vmatpush.bf16.msra.mxu0 %v5608
    %5903 = vmatpush.bf16.msra.mxu0 %v5604
    %5904 = vmatpush.bf16.msra.mxu0 %v5600
    %5905 = vmatpush.bf16.msra.mxu0 %v5596
    %5906 = vmatpush.bf16.msra.mxu0 %v5592
    %5907 = vmatmul.bf16.gmra.mxu0 %v5065
    %v5908 = vpop.f32.mrf.mxu0
    %v5909 = vadd.f32 %v5200, %v5908
    %v5910 = vpop.f32.mrf.mxu0
    %5911 = vdwg.mxu0
    %5912 = vmatpush.bf16.msra.mxu0 %v5652
    %5913 = vmatpush.bf16.msra.mxu0 %v5648
    %5914 = vmatpush.bf16.msra.mxu0 %v5644
    %5915 = vmatpush.bf16.msra.mxu0 %v5640
    %5916 = vmatpush.bf16.msra.mxu0 %v5636
    %5917 = vmatpush.bf16.msra.mxu0 %v5632
    %5918 = vmatpush.bf16.msra.mxu0 %v5628
    %5919 = vmatpush.bf16.msra.mxu0 %v5624
    %5920 = vmatmul.bf16.gmra.mxu0 %v5066
    %v5921 = vpop.f32.mrf.mxu0
    %v5922 = vadd.f32 %v5909, %v5921
    %v5923 = vpop.f32.mrf.mxu0
    %5924 = vdwg.mxu0
    %5925 = vmatpush.bf16.msra.mxu0 %v5684
    %5926 = vmatpush.bf16.msra.mxu0 %v5680
    %5927 = vmatpush.bf16.msra.mxu0 %v5676
    %5928 = vmatpush.bf16.msra.mxu0 %v5672
    %5929 = vmatpush.bf16.msra.mxu0 %v5668
    %5930 = vmatpush.bf16.msra.mxu0 %v5664
    %5931 = vmatpush.bf16.msra.mxu0 %v5660
    %5932 = vmatpush.bf16.msra.mxu0 %v5656
    %5933 = vmatmul.bf16.gmra.mxu0 %v5067
    %v5934 = vpop.f32.mrf.mxu0
    %v5935 = vadd.f32 %v5922, %v5934
    %v5936 = vpop.f32.mrf.mxu0
    %5937 = vdwg.mxu0
    %5938 = vmatpush.bf16.msra.mxu0 %v5716
    %5939 = vmatpush.bf16.msra.mxu0 %v5712
    %5940 = vmatpush.bf16.msra.mxu0 %v5708
    %5941 = vmatpush.bf16.msra.mxu0 %v5704
    %5942 = vmatpush.bf16.msra.mxu0 %v5700
    %5943 = vmatpush.bf16.msra.mxu0 %v5696
    %5944 = vmatpush.bf16.msra.mxu0 %v5692
    %5945 = vmatpush.bf16.msra.mxu0 %v5688
    %5946 = vmatmul.bf16.gmra.mxu0 %v5068
    %v5947 = vpop.f32.mrf.mxu0
    %v5948 = vadd.f32 %v5935, %v5947
    %v5949 = vpop.f32.mrf.mxu0
    %5950 = vdwg.mxu0
    %5951 = vmatpush.bf16.msra.mxu0 %v5621
    %5952 = vmatpush.bf16.msra.mxu0 %v5617
    %5953 = vmatpush.bf16.msra.mxu0 %v5613
    %5954 = vmatpush.bf16.msra.mxu0 %v5609
    %5955 = vmatpush.bf16.msra.mxu0 %v5605
    %5956 = vmatpush.bf16.msra.mxu0 %v5601
    %5957 = vmatpush.bf16.msra.mxu0 %v5597
    %5958 = vmatpush.bf16.msra.mxu0 %v5593
    %5959 = vmatmul.bf16.gmra.mxu0 %v5065
    %v5960 = vpop.f32.mrf.mxu0
    %v5961 = vadd.f32 %v5201, %v5960
    %v5962 = vpop.f32.mrf.mxu0
    %5963 = vdwg.mxu0
    %5964 = vmatpush.bf16.msra.mxu0 %v5653
    %5965 = vmatpush.bf16.msra.mxu0 %v5649
    %5966 = vmatpush.bf16.msra.mxu0 %v5645
    %5967 = vmatpush.bf16.msra.mxu0 %v5641
    %5968 = vmatpush.bf16.msra.mxu0 %v5637
    %5969 = vmatpush.bf16.msra.mxu0 %v5633
    %5970 = vmatpush.bf16.msra.mxu0 %v5629
    %5971 = vmatpush.bf16.msra.mxu0 %v5625
    %5972 = vmatmul.bf16.gmra.mxu0 %v5066
    %v5973 = vpop.f32.mrf.mxu0
    %v5974 = vadd.f32 %v5961, %v5973
    %v5975 = vpop.f32.mrf.mxu0
    %5976 = vdwg.mxu0
    %5977 = vmatpush.bf16.msra.mxu0 %v5685
    %5978 = vmatpush.bf16.msra.mxu0 %v5681
    %5979 = vmatpush.bf16.msra.mxu0 %v5677
    %5980 = vmatpush.bf16.msra.mxu0 %v5673
    %5981 = vmatpush.bf16.msra.mxu0 %v5669
    %5982 = vmatpush.bf16.msra.mxu0 %v5665
    %5983 = vmatpush.bf16.msra.mxu0 %v5661
    %5984 = vmatpush.bf16.msra.mxu0 %v5657
    %5985 = vmatmul.bf16.gmra.mxu0 %v5067
    %v5986 = vpop.f32.mrf.mxu0
    %v5987 = vadd.f32 %v5974, %v5986
    %v5988 = vpop.f32.mrf.mxu0
    %5989 = vdwg.mxu0
    %5990 = vmatpush.bf16.msra.mxu0 %v5717
    %5991 = vmatpush.bf16.msra.mxu0 %v5713
    %5992 = vmatpush.bf16.msra.mxu0 %v5709
    %5993 = vmatpush.bf16.msra.mxu0 %v5705
    %5994 = vmatpush.bf16.msra.mxu0 %v5701
    %5995 = vmatpush.bf16.msra.mxu0 %v5697
    %5996 = vmatpush.bf16.msra.mxu0 %v5693
    %5997 = vmatpush.bf16.msra.mxu0 %v5689
    %5998 = vmatmul.bf16.gmra.mxu0 %v5068
    %v5999 = vpop.f32.mrf.mxu0
    %v6000 = vadd.f32 %v5987, %v5999
    %v6001 = vpop.f32.mrf.mxu0
    %6002 = vdwg.mxu0
    %6003 = vmatpush.bf16.msra.mxu0 %v5622
    %6004 = vmatpush.bf16.msra.mxu0 %v5618
    %6005 = vmatpush.bf16.msra.mxu0 %v5614
    %6006 = vmatpush.bf16.msra.mxu0 %v5610
    %6007 = vmatpush.bf16.msra.mxu0 %v5606
    %6008 = vmatpush.bf16.msra.mxu0 %v5602
    %6009 = vmatpush.bf16.msra.mxu0 %v5598
    %6010 = vmatpush.bf16.msra.mxu0 %v5594
    %6011 = vmatmul.bf16.gmra.mxu0 %v5065
    %v6012 = vpop.f32.mrf.mxu0
    %v6013 = vadd.f32 %v5202, %v6012
    %v6014 = vpop.f32.mrf.mxu0
    %6015 = vdwg.mxu0
    %6016 = vmatpush.bf16.msra.mxu0 %v5654
    %6017 = vmatpush.bf16.msra.mxu0 %v5650
    %6018 = vmatpush.bf16.msra.mxu0 %v5646
    %6019 = vmatpush.bf16.msra.mxu0 %v5642
    %6020 = vmatpush.bf16.msra.mxu0 %v5638
    %6021 = vmatpush.bf16.msra.mxu0 %v5634
    %6022 = vmatpush.bf16.msra.mxu0 %v5630
    %6023 = vmatpush.bf16.msra.mxu0 %v5626
    %6024 = vmatmul.bf16.gmra.mxu0 %v5066
    %v6025 = vpop.f32.mrf.mxu0
    %v6026 = vadd.f32 %v6013, %v6025
    %v6027 = vpop.f32.mrf.mxu0
    %6028 = vdwg.mxu0
    %6029 = vmatpush.bf16.msra.mxu0 %v5686
    %6030 = vmatpush.bf16.msra.mxu0 %v5682
    %6031 = vmatpush.bf16.msra.mxu0 %v5678
    %6032 = vmatpush.bf16.msra.mxu0 %v5674
    %6033 = vmatpush.bf16.msra.mxu0 %v5670
    %6034 = vmatpush.bf16.msra.mxu0 %v5666
    %6035 = vmatpush.bf16.msra.mxu0 %v5662
    %6036 = vmatpush.bf16.msra.mxu0 %v5658
    %6037 = vmatmul.bf16.gmra.mxu0 %v5067
    %v6038 = vpop.f32.mrf.mxu0
    %v6039 = vadd.f32 %v6026, %v6038
    %v6040 = vpop.f32.mrf.mxu0
    %6041 = vdwg.mxu0
    %6042 = vmatpush.bf16.msra.mxu0 %v5718
    %6043 = vmatpush.bf16.msra.mxu0 %v5714
    %6044 = vmatpush.bf16.msra.mxu0 %v5710
    %6045 = vmatpush.bf16.msra.mxu0 %v5706
    %6046 = vmatpush.bf16.msra.mxu0 %v5702
    %6047 = vmatpush.bf16.msra.mxu0 %v5698
    %6048 = vmatpush.bf16.msra.mxu0 %v5694
    %6049 = vmatpush.bf16.msra.mxu0 %v5690
    %6050 = vmatmul.bf16.gmra.mxu0 %v5068
    %v6051 = vpop.f32.mrf.mxu0
    %v6052 = vadd.f32 %v6039, %v6051
    %v6053 = vpop.f32.mrf.mxu0
    %6054 = vdwg.mxu0
    %v6055 = vmax.f32 %v5896, 0.0
    %v6056 = vmax.f32 %v5948, 0.0
    %v6057 = vmax.f32 %v6000, 0.0
    %v6058 = vmax.f32 %v6052, 0.0
    %s6059 = sshll.u32 %s3070, 4
    %6060 = dma.done %s154, %s6059
    %v6061 = vpack.c.bf16 %v6055, %v6055
    %v6062 = vpack.c.bf16 %v6056, %v6056
    %v6063 = vpack.c.bf16 %v6057, %v6057
    %v6064 = vpack.c.bf16 %v6058, %v6058
    %v6065 = vld [vmem:[#allocation7] sm:$0xff]
    %v6066 = vld [vmem:[#allocation7 + $0x8] sm:$0xff]
    %v6067 = vld [vmem:[#allocation7 + $0x10] sm:$0xff]
    %v6068 = vld [vmem:[#allocation7 + $0x18] sm:$0xff]
    %v6069 = vld [vmem:[#allocation7 + $0x20] sm:$0xff]
    %v6070 = vld [vmem:[#allocation7 + $0x28] sm:$0xff]
    %v6071 = vld [vmem:[#allocation7 + $0x30] sm:$0xff]
    %v6072 = vld [vmem:[#allocation7 + $0x38] sm:$0xff]
    %v6073 = vld [vmem:[#allocation7 + $0x40] sm:$0xff]
    %v6074 = vld [vmem:[#allocation7 + $0x48] sm:$0xff]
    %v6075 = vld [vmem:[#allocation7 + $0x50] sm:$0xff]
    %v6076 = vld [vmem:[#allocation7 + $0x58] sm:$0xff]
    %v6077 = vld [vmem:[#allocation7 + $0x60] sm:$0xff]
    %v6078 = vld [vmem:[#allocation7 + $0x68] sm:$0xff]
    %v6079 = vld [vmem:[#allocation7 + $0x70] sm:$0xff]
    %v6080 = vld [vmem:[#allocation7 + $0x78] sm:$0xff]
    %v6081 = vld [vmem:[#allocation7 + $0x80] sm:$0xff]
    %v6082 = vld [vmem:[#allocation7 + $0x88] sm:$0xff]
    %v6083 = vld [vmem:[#allocation7 + $0x90] sm:$0xff]
    %v6084 = vld [vmem:[#allocation7 + $0x98] sm:$0xff]
    %v6085 = vld [vmem:[#allocation7 + $0xa0] sm:$0xff]
    %v6086 = vld [vmem:[#allocation7 + $0xa8] sm:$0xff]
    %v6087 = vld [vmem:[#allocation7 + $0xb0] sm:$0xff]
    %v6088 = vld [vmem:[#allocation7 + $0xb8] sm:$0xff]
    %v6089 = vld [vmem:[#allocation7 + $0xc0] sm:$0xff]
    %v6090 = vld [vmem:[#allocation7 + $0xc8] sm:$0xff]
    %v6091 = vld [vmem:[#allocation7 + $0xd0] sm:$0xff]
    %v6092 = vld [vmem:[#allocation7 + $0xd8] sm:$0xff]
    %v6093 = vld [vmem:[#allocation7 + $0xe0] sm:$0xff]
    %v6094 = vld [vmem:[#allocation7 + $0xe8] sm:$0xff]
    %v6095 = vld [vmem:[#allocation7 + $0xf0] sm:$0xff]
    %v6096 = vld [vmem:[#allocation7 + $0xf8] sm:$0xff]
    %v6097 = vld [vmem:[#allocation7 + $0x100] sm:$0xff]
    %v6098 = vld [vmem:[#allocation7 + $0x108] sm:$0xff]
    %v6099 = vld [vmem:[#allocation7 + $0x110] sm:$0xff]
    %v6100 = vld [vmem:[#allocation7 + $0x118] sm:$0xff]
    %v6101 = vld [vmem:[#allocation7 + $0x120] sm:$0xff]
    %v6102 = vld [vmem:[#allocation7 + $0x128] sm:$0xff]
    %v6103 = vld [vmem:[#allocation7 + $0x130] sm:$0xff]
    %v6104 = vld [vmem:[#allocation7 + $0x138] sm:$0xff]
    %v6105 = vld [vmem:[#allocation7 + $0x140] sm:$0xff]
    %v6106 = vld [vmem:[#allocation7 + $0x148] sm:$0xff]
    %v6107 = vld [vmem:[#allocation7 + $0x150] sm:$0xff]
    %v6108 = vld [vmem:[#allocation7 + $0x158] sm:$0xff]
    %v6109 = vld [vmem:[#allocation7 + $0x160] sm:$0xff]
    %v6110 = vld [vmem:[#allocation7 + $0x168] sm:$0xff]
    %v6111 = vld [vmem:[#allocation7 + $0x170] sm:$0xff]
    %v6112 = vld [vmem:[#allocation7 + $0x178] sm:$0xff]
    %v6113 = vld [vmem:[#allocation7 + $0x180] sm:$0xff]
    %v6114 = vld [vmem:[#allocation7 + $0x188] sm:$0xff]
    %v6115 = vld [vmem:[#allocation7 + $0x190] sm:$0xff]
    %v6116 = vld [vmem:[#allocation7 + $0x198] sm:$0xff]
    %v6117 = vld [vmem:[#allocation7 + $0x1a0] sm:$0xff]
    %v6118 = vld [vmem:[#allocation7 + $0x1a8] sm:$0xff]
    %v6119 = vld [vmem:[#allocation7 + $0x1b0] sm:$0xff]
    %v6120 = vld [vmem:[#allocation7 + $0x1b8] sm:$0xff]
    %v6121 = vld [vmem:[#allocation7 + $0x1c0] sm:$0xff]
    %v6122 = vld [vmem:[#allocation7 + $0x1c8] sm:$0xff]
    %v6123 = vld [vmem:[#allocation7 + $0x1d0] sm:$0xff]
    %v6124 = vld [vmem:[#allocation7 + $0x1d8] sm:$0xff]
    %v6125 = vld [vmem:[#allocation7 + $0x1e0] sm:$0xff]
    %v6126 = vld [vmem:[#allocation7 + $0x1e8] sm:$0xff]
    %v6127 = vld [vmem:[#allocation7 + $0x1f0] sm:$0xff]
    %v6128 = vld [vmem:[#allocation7 + $0x1f8] sm:$0xff]
    %v6129 = vld [vmem:[#allocation7 + $0x200] sm:$0xff]
    %v6130 = vld [vmem:[#allocation7 + $0x208] sm:$0xff]
    %v6131 = vld [vmem:[#allocation7 + $0x210] sm:$0xff]
    %v6132 = vld [vmem:[#allocation7 + $0x218] sm:$0xff]
    %v6133 = vld [vmem:[#allocation7 + $0x220] sm:$0xff]
    %v6134 = vld [vmem:[#allocation7 + $0x228] sm:$0xff]
    %v6135 = vld [vmem:[#allocation7 + $0x230] sm:$0xff]
    %v6136 = vld [vmem:[#allocation7 + $0x238] sm:$0xff]
    %v6137 = vld [vmem:[#allocation7 + $0x240] sm:$0xff]
    %v6138 = vld [vmem:[#allocation7 + $0x248] sm:$0xff]
    %v6139 = vld [vmem:[#allocation7 + $0x250] sm:$0xff]
    %v6140 = vld [vmem:[#allocation7 + $0x258] sm:$0xff]
    %v6141 = vld [vmem:[#allocation7 + $0x260] sm:$0xff]
    %v6142 = vld [vmem:[#allocation7 + $0x268] sm:$0xff]
    %v6143 = vld [vmem:[#allocation7 + $0x270] sm:$0xff]
    %v6144 = vld [vmem:[#allocation7 + $0x278] sm:$0xff]
    %v6145 = vld [vmem:[#allocation7 + $0x280] sm:$0xff]
    %v6146 = vld [vmem:[#allocation7 + $0x288] sm:$0xff]
    %v6147 = vld [vmem:[#allocation7 + $0x290] sm:$0xff]
    %v6148 = vld [vmem:[#allocation7 + $0x298] sm:$0xff]
    %v6149 = vld [vmem:[#allocation7 + $0x2a0] sm:$0xff]
    %v6150 = vld [vmem:[#allocation7 + $0x2a8] sm:$0xff]
    %v6151 = vld [vmem:[#allocation7 + $0x2b0] sm:$0xff]
    %v6152 = vld [vmem:[#allocation7 + $0x2b8] sm:$0xff]
    %v6153 = vld [vmem:[#allocation7 + $0x2c0] sm:$0xff]
    %v6154 = vld [vmem:[#allocation7 + $0x2c8] sm:$0xff]
    %v6155 = vld [vmem:[#allocation7 + $0x2d0] sm:$0xff]
    %v6156 = vld [vmem:[#allocation7 + $0x2d8] sm:$0xff]
    %v6157 = vld [vmem:[#allocation7 + $0x2e0] sm:$0xff]
    %v6158 = vld [vmem:[#allocation7 + $0x2e8] sm:$0xff]
    %v6159 = vld [vmem:[#allocation7 + $0x2f0] sm:$0xff]
    %v6160 = vld [vmem:[#allocation7 + $0x2f8] sm:$0xff]
    %v6161 = vld [vmem:[#allocation7 + $0x300] sm:$0xff]
    %v6162 = vld [vmem:[#allocation7 + $0x308] sm:$0xff]
    %v6163 = vld [vmem:[#allocation7 + $0x310] sm:$0xff]
    %v6164 = vld [vmem:[#allocation7 + $0x318] sm:$0xff]
    %v6165 = vld [vmem:[#allocation7 + $0x320] sm:$0xff]
    %v6166 = vld [vmem:[#allocation7 + $0x328] sm:$0xff]
    %v6167 = vld [vmem:[#allocation7 + $0x330] sm:$0xff]
    %v6168 = vld [vmem:[#allocation7 + $0x338] sm:$0xff]
    %v6169 = vld [vmem:[#allocation7 + $0x340] sm:$0xff]
    %v6170 = vld [vmem:[#allocation7 + $0x348] sm:$0xff]
    %v6171 = vld [vmem:[#allocation7 + $0x350] sm:$0xff]
    %v6172 = vld [vmem:[#allocation7 + $0x358] sm:$0xff]
    %v6173 = vld [vmem:[#allocation7 + $0x360] sm:$0xff]
    %v6174 = vld [vmem:[#allocation7 + $0x368] sm:$0xff]
    %v6175 = vld [vmem:[#allocation7 + $0x370] sm:$0xff]
    %v6176 = vld [vmem:[#allocation7 + $0x378] sm:$0xff]
    %v6177 = vld [vmem:[#allocation7 + $0x380] sm:$0xff]
    %v6178 = vld [vmem:[#allocation7 + $0x388] sm:$0xff]
    %v6179 = vld [vmem:[#allocation7 + $0x390] sm:$0xff]
    %v6180 = vld [vmem:[#allocation7 + $0x398] sm:$0xff]
    %v6181 = vld [vmem:[#allocation7 + $0x3a0] sm:$0xff]
    %v6182 = vld [vmem:[#allocation7 + $0x3a8] sm:$0xff]
    %v6183 = vld [vmem:[#allocation7 + $0x3b0] sm:$0xff]
    %v6184 = vld [vmem:[#allocation7 + $0x3b8] sm:$0xff]
    %v6185 = vld [vmem:[#allocation7 + $0x3c0] sm:$0xff]
    %v6186 = vld [vmem:[#allocation7 + $0x3c8] sm:$0xff]
    %v6187 = vld [vmem:[#allocation7 + $0x3d0] sm:$0xff]
    %v6188 = vld [vmem:[#allocation7 + $0x3d8] sm:$0xff]
    %v6189 = vld [vmem:[#allocation7 + $0x3e0] sm:$0xff]
    %v6190 = vld [vmem:[#allocation7 + $0x3e8] sm:$0xff]
    %v6191 = vld [vmem:[#allocation7 + $0x3f0] sm:$0xff]
    %v6192 = vld [vmem:[#allocation7 + $0x3f8] sm:$0xff]
    %v6193 = vld [vmem:[%s9] sm:$0xf]
    %v6195 = vperm.slane %v6193, 0
    %v6196 = vperm.slane %v6193, 1
    %v6197 = vperm.slane %v6193, 2
    %v6198 = vperm.slane %v6193, 3
    %v6331 = vunpack.c.l.b16 %v6065
    %v6332 = vunpack.c.h.b16 %v6065
    %v6333 = vunpack.c.l.b16 %v6066
    %v6334 = vunpack.c.h.b16 %v6066
    %v6335 = vunpack.c.l.b16 %v6067
    %v6336 = vunpack.c.h.b16 %v6067
    %v6337 = vunpack.c.l.b16 %v6068
    %v6338 = vunpack.c.h.b16 %v6068
    %v6339 = vunpack.c.l.b16 %v6069
    %v6340 = vunpack.c.h.b16 %v6069
    %v6341 = vunpack.c.l.b16 %v6070
    %v6342 = vunpack.c.h.b16 %v6070
    %v6343 = vunpack.c.l.b16 %v6071
    %v6344 = vunpack.c.h.b16 %v6071
    %v6345 = vunpack.c.l.b16 %v6072
    %v6346 = vunpack.c.h.b16 %v6072
    %v6347 = vunpack.c.l.b16 %v6073
    %v6348 = vunpack.c.h.b16 %v6073
    %v6349 = vunpack.c.l.b16 %v6074
    %v6350 = vunpack.c.h.b16 %v6074
    %v6351 = vunpack.c.l.b16 %v6075
    %v6352 = vunpack.c.h.b16 %v6075
    %v6353 = vunpack.c.l.b16 %v6076
    %v6354 = vunpack.c.h.b16 %v6076
    %v6355 = vunpack.c.l.b16 %v6077
    %v6356 = vunpack.c.h.b16 %v6077
    %v6357 = vunpack.c.l.b16 %v6078
    %v6358 = vunpack.c.h.b16 %v6078
    %v6359 = vunpack.c.l.b16 %v6079
    %v6360 = vunpack.c.h.b16 %v6079
    %v6361 = vunpack.c.l.b16 %v6080
    %v6362 = vunpack.c.h.b16 %v6080
    %v6363 = vunpack.c.l.b16 %v6081
    %v6364 = vunpack.c.h.b16 %v6081
    %v6365 = vunpack.c.l.b16 %v6082
    %v6366 = vunpack.c.h.b16 %v6082
    %v6367 = vunpack.c.l.b16 %v6083
    %v6368 = vunpack.c.h.b16 %v6083
    %v6369 = vunpack.c.l.b16 %v6084
    %v6370 = vunpack.c.h.b16 %v6084
    %v6371 = vunpack.c.l.b16 %v6085
    %v6372 = vunpack.c.h.b16 %v6085
    %v6373 = vunpack.c.l.b16 %v6086
    %v6374 = vunpack.c.h.b16 %v6086
    %v6375 = vunpack.c.l.b16 %v6087
    %v6376 = vunpack.c.h.b16 %v6087
    %v6377 = vunpack.c.l.b16 %v6088
    %v6378 = vunpack.c.h.b16 %v6088
    %v6379 = vunpack.c.l.b16 %v6089
    %v6380 = vunpack.c.h.b16 %v6089
    %v6381 = vunpack.c.l.b16 %v6090
    %v6382 = vunpack.c.h.b16 %v6090
    %v6383 = vunpack.c.l.b16 %v6091
    %v6384 = vunpack.c.h.b16 %v6091
    %v6385 = vunpack.c.l.b16 %v6092
    %v6386 = vunpack.c.h.b16 %v6092
    %v6387 = vunpack.c.l.b16 %v6093
    %v6388 = vunpack.c.h.b16 %v6093
    %v6389 = vunpack.c.l.b16 %v6094
    %v6390 = vunpack.c.h.b16 %v6094
    %v6391 = vunpack.c.l.b16 %v6095
    %v6392 = vunpack.c.h.b16 %v6095
    %v6393 = vunpack.c.l.b16 %v6096
    %v6394 = vunpack.c.h.b16 %v6096
    %v6395 = vunpack.c.l.b16 %v6097
    %v6396 = vunpack.c.h.b16 %v6097
    %v6397 = vunpack.c.l.b16 %v6098
    %v6398 = vunpack.c.h.b16 %v6098
    %v6399 = vunpack.c.l.b16 %v6099
    %v6400 = vunpack.c.h.b16 %v6099
    %v6401 = vunpack.c.l.b16 %v6100
    %v6402 = vunpack.c.h.b16 %v6100
    %v6403 = vunpack.c.l.b16 %v6101
    %v6404 = vunpack.c.h.b16 %v6101
    %v6405 = vunpack.c.l.b16 %v6102
    %v6406 = vunpack.c.h.b16 %v6102
    %v6407 = vunpack.c.l.b16 %v6103
    %v6408 = vunpack.c.h.b16 %v6103
    %v6409 = vunpack.c.l.b16 %v6104
    %v6410 = vunpack.c.h.b16 %v6104
    %v6411 = vunpack.c.l.b16 %v6105
    %v6412 = vunpack.c.h.b16 %v6105
    %v6413 = vunpack.c.l.b16 %v6106
    %v6414 = vunpack.c.h.b16 %v6106
    %v6415 = vunpack.c.l.b16 %v6107
    %v6416 = vunpack.c.h.b16 %v6107
    %v6417 = vunpack.c.l.b16 %v6108
    %v6418 = vunpack.c.h.b16 %v6108
    %v6419 = vunpack.c.l.b16 %v6109
    %v6420 = vunpack.c.h.b16 %v6109
    %v6421 = vunpack.c.l.b16 %v6110
    %v6422 = vunpack.c.h.b16 %v6110
    %v6423 = vunpack.c.l.b16 %v6111
    %v6424 = vunpack.c.h.b16 %v6111
    %v6425 = vunpack.c.l.b16 %v6112
    %v6426 = vunpack.c.h.b16 %v6112
    %v6427 = vunpack.c.l.b16 %v6113
    %v6428 = vunpack.c.h.b16 %v6113
    %v6429 = vunpack.c.l.b16 %v6114
    %v6430 = vunpack.c.h.b16 %v6114
    %v6431 = vunpack.c.l.b16 %v6115
    %v6432 = vunpack.c.h.b16 %v6115
    %v6433 = vunpack.c.l.b16 %v6116
    %v6434 = vunpack.c.h.b16 %v6116
    %v6435 = vunpack.c.l.b16 %v6117
    %v6436 = vunpack.c.h.b16 %v6117
    %v6437 = vunpack.c.l.b16 %v6118
    %v6438 = vunpack.c.h.b16 %v6118
    %v6439 = vunpack.c.l.b16 %v6119
    %v6440 = vunpack.c.h.b16 %v6119
    %v6441 = vunpack.c.l.b16 %v6120
    %v6442 = vunpack.c.h.b16 %v6120
    %v6443 = vunpack.c.l.b16 %v6121
    %v6444 = vunpack.c.h.b16 %v6121
    %v6445 = vunpack.c.l.b16 %v6122
    %v6446 = vunpack.c.h.b16 %v6122
    %v6447 = vunpack.c.l.b16 %v6123
    %v6448 = vunpack.c.h.b16 %v6123
    %v6449 = vunpack.c.l.b16 %v6124
    %v6450 = vunpack.c.h.b16 %v6124
    %v6451 = vunpack.c.l.b16 %v6125
    %v6452 = vunpack.c.h.b16 %v6125
    %v6453 = vunpack.c.l.b16 %v6126
    %v6454 = vunpack.c.h.b16 %v6126
    %v6455 = vunpack.c.l.b16 %v6127
    %v6456 = vunpack.c.h.b16 %v6127
    %v6457 = vunpack.c.l.b16 %v6128
    %v6458 = vunpack.c.h.b16 %v6128
    %v6459 = vunpack.c.l.b16 %v6129
    %v6460 = vunpack.c.h.b16 %v6129
    %v6461 = vunpack.c.l.b16 %v6130
    %v6462 = vunpack.c.h.b16 %v6130
    %v6463 = vunpack.c.l.b16 %v6131
    %v6464 = vunpack.c.h.b16 %v6131
    %v6465 = vunpack.c.l.b16 %v6132
    %v6466 = vunpack.c.h.b16 %v6132
    %v6467 = vunpack.c.l.b16 %v6133
    %v6468 = vunpack.c.h.b16 %v6133
    %v6469 = vunpack.c.l.b16 %v6134
    %v6470 = vunpack.c.h.b16 %v6134
    %v6471 = vunpack.c.l.b16 %v6135
    %v6472 = vunpack.c.h.b16 %v6135
    %v6473 = vunpack.c.l.b16 %v6136
    %v6474 = vunpack.c.h.b16 %v6136
    %v6475 = vunpack.c.l.b16 %v6137
    %v6476 = vunpack.c.h.b16 %v6137
    %v6477 = vunpack.c.l.b16 %v6138
    %v6478 = vunpack.c.h.b16 %v6138
    %v6479 = vunpack.c.l.b16 %v6139
    %v6480 = vunpack.c.h.b16 %v6139
    %v6481 = vunpack.c.l.b16 %v6140
    %v6482 = vunpack.c.h.b16 %v6140
    %v6483 = vunpack.c.l.b16 %v6141
    %v6484 = vunpack.c.h.b16 %v6141
    %v6485 = vunpack.c.l.b16 %v6142
    %v6486 = vunpack.c.h.b16 %v6142
    %v6487 = vunpack.c.l.b16 %v6143
    %v6488 = vunpack.c.h.b16 %v6143
    %v6489 = vunpack.c.l.b16 %v6144
    %v6490 = vunpack.c.h.b16 %v6144
    %v6491 = vunpack.c.l.b16 %v6145
    %v6492 = vunpack.c.h.b16 %v6145
    %v6493 = vunpack.c.l.b16 %v6146
    %v6494 = vunpack.c.h.b16 %v6146
    %v6495 = vunpack.c.l.b16 %v6147
    %v6496 = vunpack.c.h.b16 %v6147
    %v6497 = vunpack.c.l.b16 %v6148
    %v6498 = vunpack.c.h.b16 %v6148
    %v6499 = vunpack.c.l.b16 %v6149
    %v6500 = vunpack.c.h.b16 %v6149
    %v6501 = vunpack.c.l.b16 %v6150
    %v6502 = vunpack.c.h.b16 %v6150
    %v6503 = vunpack.c.l.b16 %v6151
    %v6504 = vunpack.c.h.b16 %v6151
    %v6505 = vunpack.c.l.b16 %v6152
    %v6506 = vunpack.c.h.b16 %v6152
    %v6507 = vunpack.c.l.b16 %v6153
    %v6508 = vunpack.c.h.b16 %v6153
    %v6509 = vunpack.c.l.b16 %v6154
    %v6510 = vunpack.c.h.b16 %v6154
    %v6511 = vunpack.c.l.b16 %v6155
    %v6512 = vunpack.c.h.b16 %v6155
    %v6513 = vunpack.c.l.b16 %v6156
    %v6514 = vunpack.c.h.b16 %v6156
    %v6515 = vunpack.c.l.b16 %v6157
    %v6516 = vunpack.c.h.b16 %v6157
    %v6517 = vunpack.c.l.b16 %v6158
    %v6518 = vunpack.c.h.b16 %v6158
    %v6519 = vunpack.c.l.b16 %v6159
    %v6520 = vunpack.c.h.b16 %v6159
    %v6521 = vunpack.c.l.b16 %v6160
    %v6522 = vunpack.c.h.b16 %v6160
    %v6523 = vunpack.c.l.b16 %v6161
    %v6524 = vunpack.c.h.b16 %v6161
    %v6525 = vunpack.c.l.b16 %v6162
    %v6526 = vunpack.c.h.b16 %v6162
    %v6527 = vunpack.c.l.b16 %v6163
    %v6528 = vunpack.c.h.b16 %v6163
    %v6529 = vunpack.c.l.b16 %v6164
    %v6530 = vunpack.c.h.b16 %v6164
    %v6531 = vunpack.c.l.b16 %v6165
    %v6532 = vunpack.c.h.b16 %v6165
    %v6533 = vunpack.c.l.b16 %v6166
    %v6534 = vunpack.c.h.b16 %v6166
    %v6535 = vunpack.c.l.b16 %v6167
    %v6536 = vunpack.c.h.b16 %v6167
    %v6537 = vunpack.c.l.b16 %v6168
    %v6538 = vunpack.c.h.b16 %v6168
    %v6539 = vunpack.c.l.b16 %v6169
    %v6540 = vunpack.c.h.b16 %v6169
    %v6541 = vunpack.c.l.b16 %v6170
    %v6542 = vunpack.c.h.b16 %v6170
    %v6543 = vunpack.c.l.b16 %v6171
    %v6544 = vunpack.c.h.b16 %v6171
    %v6545 = vunpack.c.l.b16 %v6172
    %v6546 = vunpack.c.h.b16 %v6172
    %v6547 = vunpack.c.l.b16 %v6173
    %v6548 = vunpack.c.h.b16 %v6173
    %v6549 = vunpack.c.l.b16 %v6174
    %v6550 = vunpack.c.h.b16 %v6174
    %v6551 = vunpack.c.l.b16 %v6175
    %v6552 = vunpack.c.h.b16 %v6175
    %v6553 = vunpack.c.l.b16 %v6176
    %v6554 = vunpack.c.h.b16 %v6176
    %v6555 = vunpack.c.l.b16 %v6177
    %v6556 = vunpack.c.h.b16 %v6177
    %v6557 = vunpack.c.l.b16 %v6178
    %v6558 = vunpack.c.h.b16 %v6178
    %v6559 = vunpack.c.l.b16 %v6179
    %v6560 = vunpack.c.h.b16 %v6179
    %v6561 = vunpack.c.l.b16 %v6180
    %v6562 = vunpack.c.h.b16 %v6180
    %v6563 = vunpack.c.l.b16 %v6181
    %v6564 = vunpack.c.h.b16 %v6181
    %v6565 = vunpack.c.l.b16 %v6182
    %v6566 = vunpack.c.h.b16 %v6182
    %v6567 = vunpack.c.l.b16 %v6183
    %v6568 = vunpack.c.h.b16 %v6183
    %v6569 = vunpack.c.l.b16 %v6184
    %v6570 = vunpack.c.h.b16 %v6184
    %v6571 = vunpack.c.l.b16 %v6185
    %v6572 = vunpack.c.h.b16 %v6185
    %v6573 = vunpack.c.l.b16 %v6186
    %v6574 = vunpack.c.h.b16 %v6186
    %v6575 = vunpack.c.l.b16 %v6187
    %v6576 = vunpack.c.h.b16 %v6187
    %v6577 = vunpack.c.l.b16 %v6188
    %v6578 = vunpack.c.h.b16 %v6188
    %v6579 = vunpack.c.l.b16 %v6189
    %v6580 = vunpack.c.h.b16 %v6189
    %v6581 = vunpack.c.l.b16 %v6190
    %v6582 = vunpack.c.h.b16 %v6190
    %v6583 = vunpack.c.l.b16 %v6191
    %v6584 = vunpack.c.h.b16 %v6191
    %v6585 = vunpack.c.l.b16 %v6192
    %v6586 = vunpack.c.h.b16 %v6192
    %v6587 = vpack.c.b16 %v6335, %v6331
    %v6588 = vpack.c.b16 %v6336, %v6332
    %v6589 = vpack.c.b16 %v6337, %v6333
    %v6590 = vpack.c.b16 %v6338, %v6334
    %v6591 = vpack.c.b16 %v6343, %v6339
    %v6592 = vpack.c.b16 %v6344, %v6340
    %v6593 = vpack.c.b16 %v6345, %v6341
    %v6594 = vpack.c.b16 %v6346, %v6342
    %v6595 = vpack.c.b16 %v6351, %v6347
    %v6596 = vpack.c.b16 %v6352, %v6348
    %v6597 = vpack.c.b16 %v6353, %v6349
    %v6598 = vpack.c.b16 %v6354, %v6350
    %v6599 = vpack.c.b16 %v6359, %v6355
    %v6600 = vpack.c.b16 %v6360, %v6356
    %v6601 = vpack.c.b16 %v6361, %v6357
    %v6602 = vpack.c.b16 %v6362, %v6358
    %v6603 = vpack.c.b16 %v6367, %v6363
    %v6604 = vpack.c.b16 %v6368, %v6364
    %v6605 = vpack.c.b16 %v6369, %v6365
    %v6606 = vpack.c.b16 %v6370, %v6366
    %v6607 = vpack.c.b16 %v6375, %v6371
    %v6608 = vpack.c.b16 %v6376, %v6372
    %v6609 = vpack.c.b16 %v6377, %v6373
    %v6610 = vpack.c.b16 %v6378, %v6374
    %v6611 = vpack.c.b16 %v6383, %v6379
    %v6612 = vpack.c.b16 %v6384, %v6380
    %v6613 = vpack.c.b16 %v6385, %v6381
    %v6614 = vpack.c.b16 %v6386, %v6382
    %v6615 = vpack.c.b16 %v6391, %v6387
    %v6616 = vpack.c.b16 %v6392, %v6388
    %v6617 = vpack.c.b16 %v6393, %v6389
    %v6618 = vpack.c.b16 %v6394, %v6390
    %v6619 = vpack.c.b16 %v6399, %v6395
    %v6620 = vpack.c.b16 %v6400, %v6396
    %v6621 = vpack.c.b16 %v6401, %v6397
    %v6622 = vpack.c.b16 %v6402, %v6398
    %v6623 = vpack.c.b16 %v6407, %v6403
    %v6624 = vpack.c.b16 %v6408, %v6404
    %v6625 = vpack.c.b16 %v6409, %v6405
    %v6626 = vpack.c.b16 %v6410, %v6406
    %v6627 = vpack.c.b16 %v6415, %v6411
    %v6628 = vpack.c.b16 %v6416, %v6412
    %v6629 = vpack.c.b16 %v6417, %v6413
    %v6630 = vpack.c.b16 %v6418, %v6414
    %v6631 = vpack.c.b16 %v6423, %v6419
    %v6632 = vpack.c.b16 %v6424, %v6420
    %v6633 = vpack.c.b16 %v6425, %v6421
    %v6634 = vpack.c.b16 %v6426, %v6422
    %v6635 = vpack.c.b16 %v6431, %v6427
    %v6636 = vpack.c.b16 %v6432, %v6428
    %v6637 = vpack.c.b16 %v6433, %v6429
    %v6638 = vpack.c.b16 %v6434, %v6430
    %v6639 = vpack.c.b16 %v6439, %v6435
    %v6640 = vpack.c.b16 %v6440, %v6436
    %v6641 = vpack.c.b16 %v6441, %v6437
    %v6642 = vpack.c.b16 %v6442, %v6438
    %v6643 = vpack.c.b16 %v6447, %v6443
    %v6644 = vpack.c.b16 %v6448, %v6444
    %v6645 = vpack.c.b16 %v6449, %v6445
    %v6646 = vpack.c.b16 %v6450, %v6446
    %v6647 = vpack.c.b16 %v6455, %v6451
    %v6648 = vpack.c.b16 %v6456, %v6452
    %v6649 = vpack.c.b16 %v6457, %v6453
    %v6650 = vpack.c.b16 %v6458, %v6454
    %v6651 = vpack.c.b16 %v6463, %v6459
    %v6652 = vpack.c.b16 %v6464, %v6460
    %v6653 = vpack.c.b16 %v6465, %v6461
    %v6654 = vpack.c.b16 %v6466, %v6462
    %v6655 = vpack.c.b16 %v6471, %v6467
    %v6656 = vpack.c.b16 %v6472, %v6468
    %v6657 = vpack.c.b16 %v6473, %v6469
    %v6658 = vpack.c.b16 %v6474, %v6470
    %v6659 = vpack.c.b16 %v6479, %v6475
    %v6660 = vpack.c.b16 %v6480, %v6476
    %v6661 = vpack.c.b16 %v6481, %v6477
    %v6662 = vpack.c.b16 %v6482, %v6478
    %v6663 = vpack.c.b16 %v6487, %v6483
    %v6664 = vpack.c.b16 %v6488, %v6484
    %v6665 = vpack.c.b16 %v6489, %v6485
    %v6666 = vpack.c.b16 %v6490, %v6486
    %v6667 = vpack.c.b16 %v6495, %v6491
    %v6668 = vpack.c.b16 %v6496, %v6492
    %v6669 = vpack.c.b16 %v6497, %v6493
    %v6670 = vpack.c.b16 %v6498, %v6494
    %v6671 = vpack.c.b16 %v6503, %v6499
    %v6672 = vpack.c.b16 %v6504, %v6500
    %v6673 = vpack.c.b16 %v6505, %v6501
    %v6674 = vpack.c.b16 %v6506, %v6502
    %v6675 = vpack.c.b16 %v6511, %v6507
    %v6676 = vpack.c.b16 %v6512, %v6508
    %v6677 = vpack.c.b16 %v6513, %v6509
    %v6678 = vpack.c.b16 %v6514, %v6510
    %v6679 = vpack.c.b16 %v6519, %v6515
    %v6680 = vpack.c.b16 %v6520, %v6516
    %v6681 = vpack.c.b16 %v6521, %v6517
    %v6682 = vpack.c.b16 %v6522, %v6518
    %v6683 = vpack.c.b16 %v6527, %v6523
    %v6684 = vpack.c.b16 %v6528, %v6524
    %v6685 = vpack.c.b16 %v6529, %v6525
    %v6686 = vpack.c.b16 %v6530, %v6526
    %v6687 = vpack.c.b16 %v6535, %v6531
    %v6688 = vpack.c.b16 %v6536, %v6532
    %v6689 = vpack.c.b16 %v6537, %v6533
    %v6690 = vpack.c.b16 %v6538, %v6534
    %v6691 = vpack.c.b16 %v6543, %v6539
    %v6692 = vpack.c.b16 %v6544, %v6540
    %v6693 = vpack.c.b16 %v6545, %v6541
    %v6694 = vpack.c.b16 %v6546, %v6542
    %v6695 = vpack.c.b16 %v6551, %v6547
    %v6696 = vpack.c.b16 %v6552, %v6548
    %v6697 = vpack.c.b16 %v6553, %v6549
    %v6698 = vpack.c.b16 %v6554, %v6550
    %v6699 = vpack.c.b16 %v6559, %v6555
    %v6700 = vpack.c.b16 %v6560, %v6556
    %v6701 = vpack.c.b16 %v6561, %v6557
    %v6702 = vpack.c.b16 %v6562, %v6558
    %v6703 = vpack.c.b16 %v6567, %v6563
    %v6704 = vpack.c.b16 %v6568, %v6564
    %v6705 = vpack.c.b16 %v6569, %v6565
    %v6706 = vpack.c.b16 %v6570, %v6566
    %v6707 = vpack.c.b16 %v6575, %v6571
    %v6708 = vpack.c.b16 %v6576, %v6572
    %v6709 = vpack.c.b16 %v6577, %v6573
    %v6710 = vpack.c.b16 %v6578, %v6574
    %v6711 = vpack.c.b16 %v6583, %v6579
    %v6712 = vpack.c.b16 %v6584, %v6580
    %v6713 = vpack.c.b16 %v6585, %v6581
    %v6714 = vpack.c.b16 %v6586, %v6582
    %6843 = vmatpush.bf16.msra.mxu0 %v6615
    %6844 = vmatpush.bf16.msra.mxu0 %v6611
    %6845 = vmatpush.bf16.msra.mxu0 %v6607
    %6846 = vmatpush.bf16.msra.mxu0 %v6603
    %6847 = vmatpush.bf16.msra.mxu0 %v6599
    %6848 = vmatpush.bf16.msra.mxu0 %v6595
    %6849 = vmatpush.bf16.msra.mxu0 %v6591
    %6850 = vmatpush.bf16.msra.mxu0 %v6587
    %6851 = vmatmul.bf16.gmra.mxu0 %v6061
    %v6852 = vpop.f32.mrf.mxu0
    %v6853 = vadd.f32 %v6195, %v6852
    %v6854 = vpop.f32.mrf.mxu0
    %6855 = vdwg.mxu0
    %6856 = vmatpush.bf16.msra.mxu0 %v6647
    %6857 = vmatpush.bf16.msra.mxu0 %v6643
    %6858 = vmatpush.bf16.msra.mxu0 %v6639
    %6859 = vmatpush.bf16.msra.mxu0 %v6635
    %6860 = vmatpush.bf16.msra.mxu0 %v6631
    %6861 = vmatpush.bf16.msra.mxu0 %v6627
    %6862 = vmatpush.bf16.msra.mxu0 %v6623
    %6863 = vmatpush.bf16.msra.mxu0 %v6619
    %6864 = vmatmul.bf16.gmra.mxu0 %v6062
    %v6865 = vpop.f32.mrf.mxu0
    %v6866 = vadd.f32 %v6853, %v6865
    %v6867 = vpop.f32.mrf.mxu0
    %6868 = vdwg.mxu0
    %6869 = vmatpush.bf16.msra.mxu0 %v6679
    %6870 = vmatpush.bf16.msra.mxu0 %v6675
    %6871 = vmatpush.bf16.msra.mxu0 %v6671
    %6872 = vmatpush.bf16.msra.mxu0 %v6667
    %6873 = vmatpush.bf16.msra.mxu0 %v6663
    %6874 = vmatpush.bf16.msra.mxu0 %v6659
    %6875 = vmatpush.bf16.msra.mxu0 %v6655
    %6876 = vmatpush.bf16.msra.mxu0 %v6651
    %6877 = vmatmul.bf16.gmra.mxu0 %v6063
    %v6878 = vpop.f32.mrf.mxu0
    %v6879 = vadd.f32 %v6866, %v6878
    %v6880 = vpop.f32.mrf.mxu0
    %6881 = vdwg.mxu0
    %6882 = vmatpush.bf16.msra.mxu0 %v6711
    %6883 = vmatpush.bf16.msra.mxu0 %v6707
    %6884 = vmatpush.bf16.msra.mxu0 %v6703
    %6885 = vmatpush.bf16.msra.mxu0 %v6699
    %6886 = vmatpush.bf16.msra.mxu0 %v6695
    %6887 = vmatpush.bf16.msra.mxu0 %v6691
    %6888 = vmatpush.bf16.msra.mxu0 %v6687
    %6889 = vmatpush.bf16.msra.mxu0 %v6683
    %6890 = vmatmul.bf16.gmra.mxu0 %v6064
    %v6891 = vpop.f32.mrf.mxu0
    %v6892 = vadd.f32 %v6879, %v6891
    %v6893 = vpop.f32.mrf.mxu0
    %6894 = vdwg.mxu0
    %6895 = vmatpush.bf16.msra.mxu0 %v6616
    %6896 = vmatpush.bf16.msra.mxu0 %v6612
    %6897 = vmatpush.bf16.msra.mxu0 %v6608
    %6898 = vmatpush.bf16.msra.mxu0 %v6604
    %6899 = vmatpush.bf16.msra.mxu0 %v6600
    %6900 = vmatpush.bf16.msra.mxu0 %v6596
    %6901 = vmatpush.bf16.msra.mxu0 %v6592
    %6902 = vmatpush.bf16.msra.mxu0 %v6588
    %6903 = vmatmul.bf16.gmra.mxu0 %v6061
    %v6904 = vpop.f32.mrf.mxu0
    %v6905 = vadd.f32 %v6196, %v6904
    %v6906 = vpop.f32.mrf.mxu0
    %6907 = vdwg.mxu0
    %6908 = vmatpush.bf16.msra.mxu0 %v6648
    %6909 = vmatpush.bf16.msra.mxu0 %v6644
    %6910 = vmatpush.bf16.msra.mxu0 %v6640
    %6911 = vmatpush.bf16.msra.mxu0 %v6636
    %6912 = vmatpush.bf16.msra.mxu0 %v6632
    %6913 = vmatpush.bf16.msra.mxu0 %v6628
    %6914 = vmatpush.bf16.msra.mxu0 %v6624
    %6915 = vmatpush.bf16.msra.mxu0 %v6620
    %6916 = vmatmul.bf16.gmra.mxu0 %v6062
    %v6917 = vpop.f32.mrf.mxu0
    %v6918 = vadd.f32 %v6905, %v6917
    %v6919 = vpop.f32.mrf.mxu0
    %6920 = vdwg.mxu0
    %6921 = vmatpush.bf16.msra.mxu0 %v6680
    %6922 = vmatpush.bf16.msra.mxu0 %v6676
    %6923 = vmatpush.bf16.msra.mxu0 %v6672
    %6924 = vmatpush.bf16.msra.mxu0 %v6668
    %6925 = vmatpush.bf16.msra.mxu0 %v6664
    %6926 = vmatpush.bf16.msra.mxu0 %v6660
    %6927 = vmatpush.bf16.msra.mxu0 %v6656
    %6928 = vmatpush.bf16.msra.mxu0 %v6652
    %6929 = vmatmul.bf16.gmra.mxu0 %v6063
    %v6930 = vpop.f32.mrf.mxu0
    %v6931 = vadd.f32 %v6918, %v6930
    %v6932 = vpop.f32.mrf.mxu0
    %6933 = vdwg.mxu0
    %6934 = vmatpush.bf16.msra.mxu0 %v6712
    %6935 = vmatpush.bf16.msra.mxu0 %v6708
    %6936 = vmatpush.bf16.msra.mxu0 %v6704
    %6937 = vmatpush.bf16.msra.mxu0 %v6700
    %6938 = vmatpush.bf16.msra.mxu0 %v6696
    %6939 = vmatpush.bf16.msra.mxu0 %v6692
    %6940 = vmatpush.bf16.msra.mxu0 %v6688
    %6941 = vmatpush.bf16.msra.mxu0 %v6684
    %6942 = vmatmul.bf16.gmra.mxu0 %v6064
    %v6943 = vpop.f32.mrf.mxu0
    %v6944 = vadd.f32 %v6931, %v6943
    %v6945 = vpop.f32.mrf.mxu0
    %6946 = vdwg.mxu0
    %6947 = vmatpush.bf16.msra.mxu0 %v6617
    %6948 = vmatpush.bf16.msra.mxu0 %v6613
    %6949 = vmatpush.bf16.msra.mxu0 %v6609
    %6950 = vmatpush.bf16.msra.mxu0 %v6605
    %6951 = vmatpush.bf16.msra.mxu0 %v6601
    %6952 = vmatpush.bf16.msra.mxu0 %v6597
    %6953 = vmatpush.bf16.msra.mxu0 %v6593
    %6954 = vmatpush.bf16.msra.mxu0 %v6589
    %6955 = vmatmul.bf16.gmra.mxu0 %v6061
    %v6956 = vpop.f32.mrf.mxu0
    %v6957 = vadd.f32 %v6197, %v6956
    %v6958 = vpop.f32.mrf.mxu0
    %6959 = vdwg.mxu0
    %6960 = vmatpush.bf16.msra.mxu0 %v6649
    %6961 = vmatpush.bf16.msra.mxu0 %v6645
    %6962 = vmatpush.bf16.msra.mxu0 %v6641
    %6963 = vmatpush.bf16.msra.mxu0 %v6637
    %6964 = vmatpush.bf16.msra.mxu0 %v6633
    %6965 = vmatpush.bf16.msra.mxu0 %v6629
    %6966 = vmatpush.bf16.msra.mxu0 %v6625
    %6967 = vmatpush.bf16.msra.mxu0 %v6621
    %6968 = vmatmul.bf16.gmra.mxu0 %v6062
    %v6969 = vpop.f32.mrf.mxu0
    %v6970 = vadd.f32 %v6957, %v6969
    %v6971 = vpop.f32.mrf.mxu0
    %6972 = vdwg.mxu0
    %6973 = vmatpush.bf16.msra.mxu0 %v6681
    %6974 = vmatpush.bf16.msra.mxu0 %v6677
    %6975 = vmatpush.bf16.msra.mxu0 %v6673
    %6976 = vmatpush.bf16.msra.mxu0 %v6669
    %6977 = vmatpush.bf16.msra.mxu0 %v6665
    %6978 = vmatpush.bf16.msra.mxu0 %v6661
    %6979 = vmatpush.bf16.msra.mxu0 %v6657
    %6980 = vmatpush.bf16.msra.mxu0 %v6653
    %6981 = vmatmul.bf16.gmra.mxu0 %v6063
    %v6982 = vpop.f32.mrf.mxu0
    %v6983 = vadd.f32 %v6970, %v6982
    %v6984 = vpop.f32.mrf.mxu0
    %6985 = vdwg.mxu0
    %6986 = vmatpush.bf16.msra.mxu0 %v6713
    %6987 = vmatpush.bf16.msra.mxu0 %v6709
    %6988 = vmatpush.bf16.msra.mxu0 %v6705
    %6989 = vmatpush.bf16.msra.mxu0 %v6701
    %6990 = vmatpush.bf16.msra.mxu0 %v6697
    %6991 = vmatpush.bf16.msra.mxu0 %v6693
    %6992 = vmatpush.bf16.msra.mxu0 %v6689
    %6993 = vmatpush.bf16.msra.mxu0 %v6685
    %6994 = vmatmul.bf16.gmra.mxu0 %v6064
    %v6995 = vpop.f32.mrf.mxu0
    %v6996 = vadd.f32 %v6983, %v6995
    %v6997 = vpop.f32.mrf.mxu0
    %6998 = vdwg.mxu0
    %6999 = vmatpush.bf16.msra.mxu0 %v6618
    %7000 = vmatpush.bf16.msra.mxu0 %v6614
    %7001 = vmatpush.bf16.msra.mxu0 %v6610
    %7002 = vmatpush.bf16.msra.mxu0 %v6606
    %7003 = vmatpush.bf16.msra.mxu0 %v6602
    %7004 = vmatpush.bf16.msra.mxu0 %v6598
    %7005 = vmatpush.bf16.msra.mxu0 %v6594
    %7006 = vmatpush.bf16.msra.mxu0 %v6590
    %7007 = vmatmul.bf16.gmra.mxu0 %v6061
    %v7008 = vpop.f32.mrf.mxu0
    %v7009 = vadd.f32 %v6198, %v7008
    %v7010 = vpop.f32.mrf.mxu0
    %7011 = vdwg.mxu0
    %7012 = vmatpush.bf16.msra.mxu0 %v6650
    %7013 = vmatpush.bf16.msra.mxu0 %v6646
    %7014 = vmatpush.bf16.msra.mxu0 %v6642
    %7015 = vmatpush.bf16.msra.mxu0 %v6638
    %7016 = vmatpush.bf16.msra.mxu0 %v6634
    %7017 = vmatpush.bf16.msra.mxu0 %v6630
    %7018 = vmatpush.bf16.msra.mxu0 %v6626
    %7019 = vmatpush.bf16.msra.mxu0 %v6622
    %7020 = vmatmul.bf16.gmra.mxu0 %v6062
    %v7021 = vpop.f32.mrf.mxu0
    %v7022 = vadd.f32 %v7009, %v7021
    %v7023 = vpop.f32.mrf.mxu0
    %7024 = vdwg.mxu0
    %7025 = vmatpush.bf16.msra.mxu0 %v6682
    %7026 = vmatpush.bf16.msra.mxu0 %v6678
    %7027 = vmatpush.bf16.msra.mxu0 %v6674
    %7028 = vmatpush.bf16.msra.mxu0 %v6670
    %7029 = vmatpush.bf16.msra.mxu0 %v6666
    %7030 = vmatpush.bf16.msra.mxu0 %v6662
    %7031 = vmatpush.bf16.msra.mxu0 %v6658
    %7032 = vmatpush.bf16.msra.mxu0 %v6654
    %7033 = vmatmul.bf16.gmra.mxu0 %v6063
    %v7034 = vpop.f32.mrf.mxu0
    %v7035 = vadd.f32 %v7022, %v7034
    %v7036 = vpop.f32.mrf.mxu0
    %7037 = vdwg.mxu0
    %7038 = vmatpush.bf16.msra.mxu0 %v6714
    %7039 = vmatpush.bf16.msra.mxu0 %v6710
    %7040 = vmatpush.bf16.msra.mxu0 %v6706
    %7041 = vmatpush.bf16.msra.mxu0 %v6702
    %7042 = vmatpush.bf16.msra.mxu0 %v6698
    %7043 = vmatpush.bf16.msra.mxu0 %v6694
    %7044 = vmatpush.bf16.msra.mxu0 %v6690
    %7045 = vmatpush.bf16.msra.mxu0 %v6686
    %7046 = vmatmul.bf16.gmra.mxu0 %v6064
    %v7047 = vpop.f32.mrf.mxu0
    %v7048 = vadd.f32 %v7035, %v7047
    %v7049 = vpop.f32.mrf.mxu0
    %7050 = vdwg.mxu0
    %v7051 = vmax.f32 %v6892, 0.0
    %v7052 = vmax.f32 %v6944, 0.0
    %v7053 = vmax.f32 %v6996, 0.0
    %v7054 = vmax.f32 %v7048, 0.0
    %v7055 = vld [vmem:[%s10] sm:$0xf]
    %v7057 = vperm.slane %v7055, 0
    %v7058 = vperm.slane %v7055, 1
    %v7059 = vperm.slane %v7055, 2
    %v7060 = vperm.slane %v7055, 3
    %v7065 = vmul.f32 %v7051, %v7057
    %v7066 = vmul.f32 %v7052, %v7058
    %v7067 = vmul.f32 %v7053, %v7059
    %v7068 = vmul.f32 %v7054, %v7060
    %v7069 = vsel %vm2578, %v7065, 0.0
    %v7070 = vsel %vm2578, %v7066, 0.0
    %v7071 = vadd.f32 %v7069, %v7070
    %v7072 = vsel %vm2578, %v7067, 0.0
    %v7073 = vadd.f32 %v7071, %v7072
    %v7074 = vsel %vm2578, %v7068, 0.0
    %v7075 = vadd.f32 %v7073, %v7074
    %7076 = vadd.xlane.f32.xlu0 %v7075
    %v7077 = vpop.xlane.xlu0 %7076
    %v7078 = vld [vmem:[#allocation9] sm:$0x1]
    %v7080 = vperm.slane %v7078, 0
    %v7082 = vadd.f32 %v7077, %v7080
    %vm7083 = vcmask 1024
    %7084 = vst.msk [vmem:[%s18] sm:$0x3] %vm7083, %v7082
    %v7086 = vrot.slane %v7082, 7
    %vm7088 = vcmp.gt.f32.partialorder %v7082, %v7086
    %v7089 = vsel %vm7088, 1, 0
    %vm7090 = vcmask 1025
    %7091 = vst.msk [vmem:[#allocation15 - $0x1] sm:$0x2] %vm7090, %v7089
    // Predicated region
    $region82: #{farmer_lstm_forward.1} parent=1 // pred_check
      _
    $region83: #{farmer_lstm_forward.1} parent=1 // pred_check_branch
      %7093 = sbr.rel (0) target = $region85
    $region84: #{farmer_lstm_forward.1} parent=1 // pred_region
      _
    $region85: #{farmer_lstm_forward.1} parent=1 // pred_fallthru
      _
    // Predicated region
    $region86: #{farmer_lstm_forward.1} parent=1 // pred_check
      _
    $region87: #{farmer_lstm_forward.1} parent=1 // pred_check_branch
      %7095 = sbr.rel (0) target = $region89
    $region88: #{farmer_lstm_forward.1} parent=1 // pred_region
      %7097 = vsyncadd [#allocation12], 0
      %s7099 = sshll.u32 [#allocation15], 4
      %s7100 = int_to_ptr.vmem [resolvable:$true] %s7099
      %s7101 = sshll.u32 %s19, 4
      %s7102 = int_to_ptr.hbm [resolvable:$true] %s7101
      %7104 = dma.vmem_to_hbm [thread:$0]  %s7100, 16, %s7102, [#allocation12]
    $region89: #{farmer_lstm_forward.1} parent=1 // pred_fallthru
      _
    // Predicated region
    $region90: #{farmer_lstm_forward.1} parent=1 // pred_check
      _
    $region91: #{farmer_lstm_forward.1} parent=1 // pred_check_branch
      %7106 = sbr.rel (0) target = $region93
    $region92: #{farmer_lstm_forward.1} parent=1 // pred_region
      _
    $region93: #{farmer_lstm_forward.1} parent=1 // pred_fallthru
      _
    // Predicated region
    $region94: #{farmer_lstm_forward.1} parent=1 // pred_check
      _
    $region95: #{farmer_lstm_forward.1} parent=1 // pred_check_branch
      %7108 = sbr.rel (0) target = $region97
    $region96: #{farmer_lstm_forward.1} parent=1 // pred_region
      %7110 = dma.done [#allocation12], 16
    $region97: #{farmer_lstm_forward.1} parent=1 // pred_fallthru
      _
    %7111 = vsyncpa [#allocation11], 1
    %7112 = vsyncpa [#allocation14], 1
    %7113 = vsyncpa [#allocation12], 1
  %7114 = vsyncmov [#allocation8]
  %s7115 = vpop.sfrf %7114
  %p7116 = scmp.eq.s32.totalorder %s7115, 0
  %p7117 = pneg %p7116
  %7119 = shalt.err (%p7117)
  %s7120 = scalar_lea.sflag [#allocation8], 1
  %7121 = vsyncmov %s7120
  %s7122 = vpop.sfrf %7121
  %p7123 = scmp.eq.s32.totalorder %s7122, 0
  %p7124 = pneg %p7123
  %7126 = shalt.err (%p7124)
  %s7127 = scalar_lea.sflag [#allocation8], 2
  %7128 = vsyncmov %s7127
  %s7129 = vpop.sfrf %7128
  %p7130 = scmp.eq.s32.totalorder %s7129, 0
  %p7131 = pneg %p7130
  %7133 = shalt.err (%p7131)
  %s7134 = scalar_lea.sflag [#allocation8], 3
  %7135 = vsyncmov %s7134
  %s7136 = vpop.sfrf %7135
  %p7137 = scmp.eq.s32.totalorder %s7136, 0
  %p7138 = pneg %p7137
  %7140 = shalt.err (%p7138)
  %s7141 = scalar_lea.sflag [#allocation8], 4
  %7142 = vsyncmov %s7141
  %s7143 = vpop.sfrf %7142
  %p7144 = scmp.eq.s32.totalorder %s7143, 0
  %p7145 = pneg %p7144
  %7147 = shalt.err (%p7145)
  %s7148 = scalar_lea.sflag [#allocation8], 5
  %7149 = vsyncmov %s7148
  %s7150 = vpop.sfrf %7149
  %p7151 = scmp.eq.s32.totalorder %s7150, 0
  %p7152 = pneg %p7151
  %7154 = shalt.err (%p7152)

</llo_original>
